<compile_context>
chip_gen: v6e
topology: v6e:2x2x1
jax: 0.10.0
libtpu: 0.0.40
codegen_flags: <defaults>
</compile_context>

<pallas_src>
import functools

import numpy as np
import jax
import jax.numpy as jnp
from jax.experimental import pallas as pl
from jax.experimental.pallas import tpu as pltpu

BN_EPS = 1e-5


def _pad_c(c):
    """Pad a channel count up to a multiple of 128 (lane-dense layout)."""
    return ((c + 127) // 128) * 128


def _row_pad(wo):
    """Front/back row padding of the flat conv scratch buffer.

    A multiple of 8 so the big activation store stays sublane-aligned; the
    shifted tap loads may be unaligned (cheap for f32)."""
    return ((wo + 1 + 7) // 8) * 8


# ------------------------------ kernel helpers ------------------------------

def _batchnorm(acc, g, b, m):
    """Training-mode BN over the row axis, single pass (sum & sum of squares)."""
    inv_m = 1.0 / m
    mu = jnp.sum(acc, axis=0, keepdims=True) * inv_m
    var = jnp.sum(acc * acc, axis=0, keepdims=True) * inv_m - mu * mu
    var = jnp.maximum(var, 0.0)
    return (acc - mu) * jax.lax.rsqrt(var + BN_EPS) * g + b


def _conv3x3_flat_acc(pbuf, mask_ref, w_ref, pad, m, wo):
    """3x3 / stride-1 / pad-1 conv on a row-flattened (M, Cin) activation stored at
    pbuf[pad:pad+m, :] (f32, pad rows zero).  Tap (kh,kw) is a shifted row-slice of
    pbuf multiplied by a precomputed 0/1 edge mask, then fed to the MXU in bf16.
    Returns the f32 (M, Cout) accumulator."""
    cout = w_ref.shape[2]
    acc = jnp.zeros((m, cout), jnp.float32)
    t = 0
    for kh in range(3):
        for kw in range(3):
            off = (kh - 1) * wo + (kw - 1)
            tap = pbuf[pl.ds(pad + off, m), :] * mask_ref[t]
            acc = acc + jnp.dot(tap.astype(jnp.bfloat16), w_ref[t],
                                preferred_element_type=jnp.float32)
            t += 1
    return acc


# -------------------------------- kernels -----------------------------------

def _stem_kernel(x_ref, mask_ref, w_ref, g_ref, b_ref, o_ref, pbuf, *, n, ho, wo):
    """conv1(3x3, s1, p1) + BN(batch stats) + ReLU."""
    m = n * ho * wo
    pad = _row_pad(wo)
    pbuf[...] = jnp.zeros_like(pbuf)
    pbuf[pl.ds(pad, m), :] = x_ref[...].astype(jnp.float32)
    acc = _conv3x3_flat_acc(pbuf, mask_ref, w_ref, pad, m, wo)
    out = jnp.maximum(_batchnorm(acc, g_ref[...], b_ref[...], m), 0.0)
    o_ref[...] = out.astype(o_ref.dtype)


def _block_s1_kernel(x_ref, mask_ref, w1_ref, g1_ref, b1_ref,
                     w2_ref, g2_ref, b2_ref, o_ref, pbuf, *, n, ho, wo):
    """Fused BasicBlock, stride 1, identity shortcut."""
    m = n * ho * wo
    pad = _row_pad(wo)
    # conv1 + bn1 + relu
    pbuf[...] = jnp.zeros_like(pbuf)
    pbuf[pl.ds(pad, m), :] = x_ref[...].astype(jnp.float32)
    acc1 = _conv3x3_flat_acc(pbuf, mask_ref, w1_ref, pad, m, wo)
    out1 = jnp.maximum(_batchnorm(acc1, g1_ref[...], b1_ref[...], m), 0.0)
    # conv2 + bn2 (reuse the same flat scratch; pad rows are still zero)
    pbuf[pl.ds(pad, m), :] = out1
    acc2 = _conv3x3_flat_acc(pbuf, mask_ref, w2_ref, pad, m, wo)
    y = _batchnorm(acc2, g2_ref[...], b2_ref[...], m)
    # identity shortcut + final relu
    y = y + x_ref[...].astype(jnp.float32)
    o_ref[...] = jnp.maximum(y, 0.0).astype(o_ref.dtype)


def _block_s2_kernel(taps_ref, xs_ref, mask_ref, w1_ref, g1_ref, b1_ref,
                     w2_ref, g2_ref, b2_ref, wsc_ref, gsc_ref, bsc_ref,
                     o_ref, pbuf, *, n, ho, wo):
    """Fused BasicBlock, stride 2, projection (1x1 conv + BN) shortcut."""
    m = n * ho * wo
    pad = _row_pad(wo)
    cout = o_ref.shape[1]
    # conv1 (3x3, stride 2): 9 taps were extracted at the XLA level (bf16)
    acc1 = jnp.zeros((m, cout), jnp.float32)
    for t in range(9):
        acc1 = acc1 + jnp.dot(taps_ref[t], w1_ref[t],
                              preferred_element_type=jnp.float32)
    out1 = jnp.maximum(_batchnorm(acc1, g1_ref[...], b1_ref[...], m), 0.0)
    # projection shortcut: 1x1 stride-2 conv + BN (input pre-strided at XLA level)
    accs = jnp.dot(xs_ref[...], wsc_ref[...], preferred_element_type=jnp.float32)
    res = _batchnorm(accs, gsc_ref[...], bsc_ref[...], m)
    # conv2 (3x3, stride 1) on out1, taps built in VMEM scratch
    pbuf[...] = jnp.zeros_like(pbuf)
    pbuf[pl.ds(pad, m), :] = out1
    acc2 = _conv3x3_flat_acc(pbuf, mask_ref, w2_ref, pad, m, wo)
    y = _batchnorm(acc2, g2_ref[...], b2_ref[...], m) + res
    o_ref[...] = jnp.maximum(y, 0.0).astype(o_ref.dtype)


def _head_kernel(x_ref, p_ref, w_ref, b_ref, o_ref):
    """AdaptiveAvgPool2d((1,1)) (as a tiny pooling matmul) + Linear, fused."""
    x32 = x_ref[...].astype(jnp.float32)
    pooled = jnp.dot(p_ref[...], x32, preferred_element_type=jnp.float32)
    o_ref[...] = jnp.dot(pooled, w_ref[...],
                         preferred_element_type=jnp.float32) + b_ref[...]


# ------------------------------ pallas wrappers ------------------------------

def _vmem_spec():
    return pl.BlockSpec(memory_space=pltpu.MemorySpace.VMEM)


def _vmem_specs(k):
    return [_vmem_spec() for _ in range(k)]


def _tap_masks(n, ho, wo):
    """(9, M, 1) f32 0/1 masks: tap (kh,kw) reads a valid in-image pixel at row p."""
    m = n * ho * wo
    row = (np.arange(m) // wo) % ho
    col = np.arange(m) % wo
    masks = np.zeros((9, m, 1), np.float32)
    t = 0
    for kh in range(3):
        for kw in range(3):
            dh, dw = kh - 1, kw - 1
            ok = (row + dh >= 0) & (row + dh < ho) & (col + dw >= 0) & (col + dw < wo)
            masks[t, :, 0] = ok.astype(np.float32)
            t += 1
    return jnp.asarray(masks)


def run_stem(x2d, masks, w, g, b, n, ho, wo):
    m, cin = x2d.shape
    cout = w.shape[2]
    pad = _row_pad(wo)
    return pl.pallas_call(
        functools.partial(_stem_kernel, n=n, ho=ho, wo=wo),
        out_shape=jax.ShapeDtypeStruct((m, cout), jnp.bfloat16),
        in_specs=_vmem_specs(5),
        out_specs=_vmem_spec(),
        scratch_shapes=[pltpu.VMEM((m + 2 * pad, cin), jnp.float32)],
    )(x2d, masks, w, g, b)


def run_block_s1(act, masks, blk, n, ho, wo):
    m, cpad = act.shape
    assert cpad == blk["cout_pad"]          # stride-1 blocks have in_planes == planes
    pad = _row_pad(wo)
    return pl.pallas_call(
        functools.partial(_block_s1_kernel, n=n, ho=ho, wo=wo),
        out_shape=jax.ShapeDtypeStruct((m, cpad), jnp.bfloat16),
        in_specs=_vmem_specs(8),
        out_specs=_vmem_spec(),
        scratch_shapes=[pltpu.VMEM((m + 2 * pad, cpad), jnp.float32)],
    )(act, masks, blk["w1"], blk["g1"], blk["b1"],
      blk["w2"], blk["g2"], blk["b2"])


def run_block_s2(taps, xs, masks, blk, n, ho, wo):
    m = n * ho * wo
    cpad = blk["cout_pad"]
    pad = _row_pad(wo)
    return pl.pallas_call(
        functools.partial(_block_s2_kernel, n=n, ho=ho, wo=wo),
        out_shape=jax.ShapeDtypeStruct((m, cpad), jnp.bfloat16),
        in_specs=_vmem_specs(12),
        out_specs=_vmem_spec(),
        scratch_shapes=[pltpu.VMEM((m + 2 * pad, cpad), jnp.float32)],
    )(taps, xs, masks, blk["w1"], blk["g1"], blk["b1"],
      blk["w2"], blk["g2"], blk["b2"],
      blk["wsc"], blk["gsc"], blk["bsc"])


# -------------------------------- JAX glue ----------------------------------

def _stride2_taps(x_nhwc):
    """Stride-2 / pad-1 3x3 conv taps (9, M, C) and the stride-2 1x1 shortcut input."""
    n, h, w, c = x_nhwc.shape
    ho, wo = (h - 1) // 2 + 1, (w - 1) // 2 + 1
    xp = jnp.pad(x_nhwc, ((0, 0), (1, 1), (1, 1), (0, 0)))
    taps = [xp[:, kh:kh + 2 * ho:2, kw:kw + 2 * wo:2, :].reshape(n * ho * wo, c)
            for kh in range(3) for kw in range(3)]
    taps = jnp.stack(taps, axis=0)
    xs = x_nhwc[:, ::2, ::2, :].reshape(n * ho * wo, c)
    return taps, xs, ho, wo


def resnet_forward(x_nchw, pp):
    n, cin, h, w = x_nchw.shape
    cin_pad = _pad_c(cin)
    x = jnp.transpose(x_nchw, (0, 2, 3, 1)).astype(jnp.float32)   # NCHW -> NHWC
    x = jnp.pad(x, ((0, 0), (0, 0), (0, 0), (0, cin_pad - cin)))
    x2d = x.reshape(n * h * w, cin_pad).astype(jnp.bfloat16)

    ho, wo = h, w
    masks = _tap_masks(n, ho, wo)
    act = run_stem(x2d, masks, pp["stem_w"], pp["stem_g"], pp["stem_b"], n, ho, wo)

    for blk in pp["blocks"]:
        if blk["stride"] == 1:
            act = run_block_s1(act, masks, blk, n, ho, wo)
        else:
            c_cur = act.shape[1]
            taps, xs, ho, wo = _stride2_taps(act.reshape(n, ho, wo, c_cur))
            masks = _tap_masks(n, ho, wo)
            act = run_block_s2(taps, xs, masks, blk, n, ho, wo)

    # fused adaptive-avg-pool(1,1) + linear head
    hw = ho * wo
    pool = jnp.repeat(jnp.eye(n, dtype=jnp.float32), hw, axis=1) * (1.0 / hw)
    num_classes = pp["lin_w"].shape[1]
    return pl.pallas_call(
        _head_kernel,
        out_shape=jax.ShapeDtypeStruct((n, num_classes), jnp.float32),
        in_specs=_vmem_specs(4),
        out_specs=_vmem_spec(),
    )(act, pool, pp["lin_w"], pp["lin_b"])


# -------------------------- parameters (torch layout) ------------------------

def init_params(key, num_blocks=(1, 1, 1, 1), num_classes=10):
    keys = iter(jax.random.split(key, 64))

    def conv_w(cout, cin, k):
        fan = cin * k * k
        return jax.random.normal(next(keys), (cout, cin, k, k), jnp.float32) * (2.0 / fan) ** 0.5

    params = {
        "conv1_w": conv_w(64, 3, 3),
        "bn1_g": jnp.ones((64,), jnp.float32),
        "bn1_b": jnp.zeros((64,), jnp.float32),
        "blocks": [],
    }
    in_planes = 64
    for planes, nb, stride0 in zip((64, 128, 256, 512), num_blocks, (1, 2, 2, 2)):
        for s in [stride0] + [1] * (nb - 1):
            bp = {
                "stride": s, "in_planes": in_planes, "planes": planes,
                "conv1_w": conv_w(planes, in_planes, 3),
                "bn1_g": jnp.ones((planes,), jnp.float32),
                "bn1_b": jnp.zeros((planes,), jnp.float32),
                "conv2_w": conv_w(planes, planes, 3),
                "bn2_g": jnp.ones((planes,), jnp.float32),
                "bn2_b": jnp.zeros((planes,), jnp.float32),
            }
            if s != 1 or in_planes != planes:   # projection shortcut (1x1 conv + BN)
                bp["sc_w"] = conv_w(planes, in_planes, 1)
                bp["sc_g"] = jnp.ones((planes,), jnp.float32)
                bp["sc_b"] = jnp.zeros((planes,), jnp.float32)
            params["blocks"].append(bp)
            in_planes = planes
    params["lin_w"] = jax.random.normal(next(keys), (512, num_classes), jnp.float32) * (1.0 / 512) ** 0.5
    params["lin_b"] = jnp.zeros((num_classes,), jnp.float32)
    return params


# ----------------- one-time weight prep (transpose / pad / bf16) -------------

def _prep_conv3x3(w, cin_pad, cout_pad):
    cout, cin = w.shape[0], w.shape[1]
    wt = jnp.transpose(w, (2, 3, 1, 0)).reshape(9, cin, cout)       # tap = kh*3+kw
    wt = jnp.pad(wt, ((0, 0), (0, cin_pad - cin), (0, cout_pad - cout)))
    return wt.astype(jnp.bfloat16)


def _prep_conv1x1(w, cin_pad, cout_pad):
    cout, cin = w.shape[0], w.shape[1]
    wt = jnp.transpose(w, (2, 3, 1, 0)).reshape(cin, cout)
    wt = jnp.pad(wt, ((0, cin_pad - cin), (0, cout_pad - cout)))
    return wt.astype(jnp.bfloat16)


def _prep_bn(g, b, cout_pad):
    c = g.shape[0]
    g = jnp.pad(g, (0, cout_pad - c)).reshape(1, cout_pad).astype(jnp.float32)
    b = jnp.pad(b, (0, cout_pad - c)).reshape(1, cout_pad).astype(jnp.float32)
    return g, b


def prepare_params(params):
    pp = {"blocks": []}
    pp["stem_w"] = _prep_conv3x3(params["conv1_w"], _pad_c(3), _pad_c(64))
    pp["stem_g"], pp["stem_b"] = _prep_bn(params["bn1_g"], params["bn1_b"], _pad_c(64))
    for bp in params["blocks"]:
        cin_pad, cout_pad = _pad_c(bp["in_planes"]), _pad_c(bp["planes"])
        blk = {"stride": bp["stride"], "cout_pad": cout_pad,
               "w1": _prep_conv3x3(bp["conv1_w"], cin_pad, cout_pad),
               "w2": _prep_conv3x3(bp["conv2_w"], cout_pad, cout_pad)}
        blk["g1"], blk["b1"] = _prep_bn(bp["bn1_g"], bp["bn1_b"], cout_pad)
        blk["g2"], blk["b2"] = _prep_bn(bp["bn2_g"], bp["bn2_b"], cout_pad)
        if "sc_w" in bp:
            assert bp["stride"] != 1 or bp["in_planes"] != bp["planes"]
            blk["wsc"] = _prep_conv1x1(bp["sc_w"], cin_pad, cout_pad)
            blk["gsc"], blk["bsc"] = _prep_bn(bp["sc_g"], bp["sc_b"], cout_pad)
        else:
            assert bp["stride"] == 1
        pp["blocks"].append(blk)
    feat = params["lin_w"].shape[0]
    pp["lin_w"] = jnp.pad(params["lin_w"],
                          ((0, _pad_c(feat) - feat), (0, 0))).astype(jnp.float32)
    pp["lin_b"] = params["lin_b"].reshape(1, -1).astype(jnp.float32)
    return pp


# ---------------------------------- driver -----------------------------------

if __name__ == "__main__":
    key = jax.random.PRNGKey(0)
    k_param, k_x = jax.random.split(key)

    # CIFAR-like input, NCHW as PyTorch expects: (batch=2, C=3, 16, 16)
    x = jax.random.normal(k_x, (2, 3, 16, 16), jnp.float32)

    # num_blocks=(1,1,1,1) keeps the synthetic test light; block = BasicBlock (expansion=1)
    params = init_params(k_param, num_blocks=(1, 1, 1, 1), num_classes=10)
    pp = prepare_params(params)      # one-time transpose / pad / bf16 cast of weights

    logits = resnet_forward(x, pp)
    logits = jax.block_until_ready(logits)
    assert logits.shape == (2, 10) and logits.dtype == jnp.float32
    assert bool(jnp.all(jnp.isfinite(logits)))
    print("KERNEL_OK")
</pallas_src>

<mosaic_0001>
module attributes {stable_mosaic.version = 11 : i64} {
  func.func @_stem_kernel(%arg0: memref<512x128xbf16, #tpu.memory_space<vmem>>, %arg1: memref<9x512x1xf32, #tpu.memory_space<vmem>>, %arg2: memref<9x128x128xbf16, #tpu.memory_space<vmem>>, %arg3: memref<1x128xf32, #tpu.memory_space<vmem>>, %arg4: memref<1x128xf32, #tpu.memory_space<vmem>>, %arg5: memref<512x128xbf16, #tpu.memory_space<vmem>>, %arg6: memref<560x128xf32, #tpu.memory_space<vmem>>) attributes {dimension_semantics = [], scalar_prefetch = 0 : i64, scratch_operands = 1 : i64, tpu.core_type = #tpu.core_type<tc>} {
    %cst = arith.constant 0.000000e+00 : f32
    %0 = vector.broadcast %cst : f32 to vector<560x128xf32>
    %c0 = arith.constant 0 : index
    %c0_0 = arith.constant 0 : index
    %1 = vector.load %arg6[%c0, %c0_0] : memref<560x128xf32, #tpu.memory_space<vmem>>, vector<560x128xf32>
    tpu.vector_store %arg6[%c0, %c0_0], %0 {strides = array<i32>} : memref<560x128xf32, #tpu.memory_space<vmem>>, vector<560x128xf32>,
    %c0_1 = arith.constant 0 : index
    %c0_2 = arith.constant 0 : index
    %2 = vector.load %arg0[%c0_1, %c0_2] : memref<512x128xbf16, #tpu.memory_space<vmem>>, vector<512x128xbf16>
    %3 = arith.extf %2 : vector<512x128xbf16> to vector<512x128xf32>
    %c24 = arith.constant 24 : index
    %c0_3 = arith.constant 0 : index
    %4 = vector.load %arg6[%c24, %c0_3] : memref<560x128xf32, #tpu.memory_space<vmem>>, vector<512x128xf32>
    tpu.vector_store %arg6[%c24, %c0_3], %3 {strides = array<i32>} : memref<560x128xf32, #tpu.memory_space<vmem>>, vector<512x128xf32>,
    %cst_4 = arith.constant 0.000000e+00 : f32
    %5 = vector.broadcast %cst_4 : f32 to vector<512x128xf32>
    %c7 = arith.constant 7 : index
    %c0_5 = arith.constant 0 : index
    %6 = vector.load %arg6[%c7, %c0_5] : memref<560x128xf32, #tpu.memory_space<vmem>>, vector<512x128xf32>
    %c0_6 = arith.constant 0 : index
    %c0_7 = arith.constant 0 : index
    %c0_8 = arith.constant 0 : index
    %7 = vector.load %arg1[%c0_6, %c0_7, %c0_8] : memref<9x512x1xf32, #tpu.memory_space<vmem>>, vector<1x512x1xf32>
    %8 = vector.shape_cast %7 : vector<1x512x1xf32> to vector<512x1xf32>
    %9 = vector.broadcast %8 : vector<512x1xf32> to vector<512x128xf32>
    %10 = arith.mulf %6, %9 : vector<512x128xf32>
    %11 = arith.truncf %10 : vector<512x128xf32> to vector<512x128xbf16>
    %c0_9 = arith.constant 0 : index
    %c0_10 = arith.constant 0 : index
    %c0_11 = arith.constant 0 : index
    %12 = vector.load %arg2[%c0_9, %c0_10, %c0_11] : memref<9x128x128xbf16, #tpu.memory_space<vmem>>, vector<1x128x128xbf16>
    %13 = vector.shape_cast %12 : vector<1x128x128xbf16> to vector<128x128xbf16>
    %cst_12 = arith.constant dense<0.000000e+00> : vector<512x128xf32>
    %14 = tpu.matmul %11, %13, %cst_12 {dimension_numbers = #tpu.dot_dimension_numbers<[1], [0], [0], [1], [0, 0, 1, 1], [], []>} : vector<512x128xbf16>, vector<128x128xbf16>, vector<512x128xf32> -> vector<512x128xf32>
    %15 = arith.addf %5, %14 : vector<512x128xf32>
    %c8 = arith.constant 8 : index
    %c0_13 = arith.constant 0 : index
    %16 = vector.load %arg6[%c8, %c0_13] : memref<560x128xf32, #tpu.memory_space<vmem>>, vector<512x128xf32>
    %c1 = arith.constant 1 : index
    %c0_14 = arith.constant 0 : index
    %c0_15 = arith.constant 0 : index
    %17 = vector.load %arg1[%c1, %c0_14, %c0_15] : memref<9x512x1xf32, #tpu.memory_space<vmem>>, vector<1x512x1xf32>
    %18 = vector.shape_cast %17 : vector<1x512x1xf32> to vector<512x1xf32>
    %19 = vector.broadcast %18 : vector<512x1xf32> to vector<512x128xf32>
    %20 = arith.mulf %16, %19 : vector<512x128xf32>
    %21 = arith.truncf %20 : vector<512x128xf32> to vector<512x128xbf16>
    %c1_16 = arith.constant 1 : index
    %c0_17 = arith.constant 0 : index
    %c0_18 = arith.constant 0 : index
    %22 = vector.load %arg2[%c1_16, %c0_17, %c0_18] : memref<9x128x128xbf16, #tpu.memory_space<vmem>>, vector<1x128x128xbf16>
    %23 = vector.shape_cast %22 : vector<1x128x128xbf16> to vector<128x128xbf16>
    %cst_19 = arith.constant dense<0.000000e+00> : vector<512x128xf32>
    %24 = tpu.matmul %21, %23, %cst_19 {dimension_numbers = #tpu.dot_dimension_numbers<[1], [0], [0], [1], [0, 0, 1, 1], [], []>} : vector<512x128xbf16>, vector<128x128xbf16>, vector<512x128xf32> -> vector<512x128xf32>
    %25 = arith.addf %15, %24 : vector<512x128xf32>
    %c9 = arith.constant 9 : index
    %c0_20 = arith.constant 0 : index
    %26 = vector.load %arg6[%c9, %c0_20] : memref<560x128xf32, #tpu.memory_space<vmem>>, vector<512x128xf32>
    %c2 = arith.constant 2 : index
    %c0_21 = arith.constant 0 : index
    %c0_22 = arith.constant 0 : index
    %27 = vector.load %arg1[%c2, %c0_21, %c0_22] : memref<9x512x1xf32, #tpu.memory_space<vmem>>, vector<1x512x1xf32>
    %28 = vector.shape_cast %27 : vector<1x512x1xf32> to vector<512x1xf32>
    %29 = vector.broadcast %28 : vector<512x1xf32> to vector<512x128xf32>
    %30 = arith.mulf %26, %29 : vector<512x128xf32>
    %31 = arith.truncf %30 : vector<512x128xf32> to vector<512x128xbf16>
    %c2_23 = arith.constant 2 : index
    %c0_24 = arith.constant 0 : index
    %c0_25 = arith.constant 0 : index
    %32 = vector.load %arg2[%c2_23, %c0_24, %c0_25] : memref<9x128x128xbf16, #tpu.memory_space<vmem>>, vector<1x128x128xbf16>
    %33 = vector.shape_cast %32 : vector<1x128x128xbf16> to vector<128x128xbf16>
    %cst_26 = arith.constant dense<0.000000e+00> : vector<512x128xf32>
    %34 = tpu.matmul %31, %33, %cst_26 {dimension_numbers = #tpu.dot_dimension_numbers<[1], [0], [0], [1], [0, 0, 1, 1], [], []>} : vector<512x128xbf16>, vector<128x128xbf16>, vector<512x128xf32> -> vector<512x128xf32>
    %35 = arith.addf %25, %34 : vector<512x128xf32>
    %c23 = arith.constant 23 : index
    %c0_27 = arith.constant 0 : index
    %36 = vector.load %arg6[%c23, %c0_27] : memref<560x128xf32, #tpu.memory_space<vmem>>, vector<512x128xf32>
    %c3 = arith.constant 3 : index
    %c0_28 = arith.constant 0 : index
    %c0_29 = arith.constant 0 : index
    %37 = vector.load %arg1[%c3, %c0_28, %c0_29] : memref<9x512x1xf32, #tpu.memory_space<vmem>>, vector<1x512x1xf32>
    %38 = vector.shape_cast %37 : vector<1x512x1xf32> to vector<512x1xf32>
    %39 = vector.broadcast %38 : vector<512x1xf32> to vector<512x128xf32>
    %40 = arith.mulf %36, %39 : vector<512x128xf32>
    %41 = arith.truncf %40 : vector<512x128xf32> to vector<512x128xbf16>
    %c3_30 = arith.constant 3 : index
    %c0_31 = arith.constant 0 : index
    %c0_32 = arith.constant 0 : index
    %42 = vector.load %arg2[%c3_30, %c0_31, %c0_32] : memref<9x128x128xbf16, #tpu.memory_space<vmem>>, vector<1x128x128xbf16>
    %43 = vector.shape_cast %42 : vector<1x128x128xbf16> to vector<128x128xbf16>
    %cst_33 = arith.constant dense<0.000000e+00> : vector<512x128xf32>
    %44 = tpu.matmul %41, %43, %cst_33 {dimension_numbers = #tpu.dot_dimension_numbers<[1], [0], [0], [1], [0, 0, 1, 1], [], []>} : vector<512x128xbf16>, vector<128x128xbf16>, vector<512x128xf32> -> vector<512x128xf32>
    %45 = arith.addf %35, %44 : vector<512x128xf32>
    %c24_34 = arith.constant 24 : index
    %c0_35 = arith.constant 0 : index
    %46 = vector.load %arg6[%c24_34, %c0_35] : memref<560x128xf32, #tpu.memory_space<vmem>>, vector<512x128xf32>
    %c4 = arith.constant 4 : index
    %c0_36 = arith.constant 0 : index
    %c0_37 = arith.constant 0 : index
    %47 = vector.load %arg1[%c4, %c0_36, %c0_37] : memref<9x512x1xf32, #tpu.memory_space<vmem>>, vector<1x512x1xf32>
    %48 = vector.shape_cast %47 : vector<1x512x1xf32> to vector<512x1xf32>
    %49 = vector.broadcast %48 : vector<512x1xf32> to vector<512x128xf32>
    %50 = arith.mulf %46, %49 : vector<512x128xf32>
    %51 = arith.truncf %50 : vector<512x128xf32> to vector<512x128xbf16>
    %c4_38 = arith.constant 4 : index
    %c0_39 = arith.constant 0 : index
    %c0_40 = arith.constant 0 : index
    %52 = vector.load %arg2[%c4_38, %c0_39, %c0_40] : memref<9x128x128xbf16, #tpu.memory_space<vmem>>, vector<1x128x128xbf16>
    %53 = vector.shape_cast %52 : vector<1x128x128xbf16> to vector<128x128xbf16>
    %cst_41 = arith.constant dense<0.000000e+00> : vector<512x128xf32>
    %54 = tpu.matmul %51, %53, %cst_41 {dimension_numbers = #tpu.dot_dimension_numbers<[1], [0], [0], [1], [0, 0, 1, 1], [], []>} : vector<512x128xbf16>, vector<128x128xbf16>, vector<512x128xf32> -> vector<512x128xf32>
    %55 = arith.addf %45, %54 : vector<512x128xf32>
    %c25 = arith.constant 25 : index
    %c0_42 = arith.constant 0 : index
    %56 = vector.load %arg6[%c25, %c0_42] : memref<560x128xf32, #tpu.memory_space<vmem>>, vector<512x128xf32>
    %c5 = arith.constant 5 : index
    %c0_43 = arith.constant 0 : index
    %c0_44 = arith.constant 0 : index
    %57 = vector.load %arg1[%c5, %c0_43, %c0_44] : memref<9x512x1xf32, #tpu.memory_space<vmem>>, vector<1x512x1xf32>
    %58 = vector.shape_cast %57 : vector<1x512x1xf32> to vector<512x1xf32>
    %59 = vector.broadcast %58 : vector<512x1xf32> to vector<512x128xf32>
    %60 = arith.mulf %56, %59 : vector<512x128xf32>
    %61 = arith.truncf %60 : vector<512x128xf32> to vector<512x128xbf16>
    %c5_45 = arith.constant 5 : index
    %c0_46 = arith.constant 0 : index
    %c0_47 = arith.constant 0 : index
    %62 = vector.load %arg2[%c5_45, %c0_46, %c0_47] : memref<9x128x128xbf16, #tpu.memory_space<vmem>>, vector<1x128x128xbf16>
    %63 = vector.shape_cast %62 : vector<1x128x128xbf16> to vector<128x128xbf16>
    %cst_48 = arith.constant dense<0.000000e+00> : vector<512x128xf32>
    %64 = tpu.matmul %61, %63, %cst_48 {dimension_numbers = #tpu.dot_dimension_numbers<[1], [0], [0], [1], [0, 0, 1, 1], [], []>} : vector<512x128xbf16>, vector<128x128xbf16>, vector<512x128xf32> -> vector<512x128xf32>
    %65 = arith.addf %55, %64 : vector<512x128xf32>
    %c39 = arith.constant 39 : index
    %c0_49 = arith.constant 0 : index
    %66 = vector.load %arg6[%c39, %c0_49] : memref<560x128xf32, #tpu.memory_space<vmem>>, vector<512x128xf32>
    %c6 = arith.constant 6 : index
    %c0_50 = arith.constant 0 : index
    %c0_51 = arith.constant 0 : index
    %67 = vector.load %arg1[%c6, %c0_50, %c0_51] : memref<9x512x1xf32, #tpu.memory_space<vmem>>, vector<1x512x1xf32>
    %68 = vector.shape_cast %67 : vector<1x512x1xf32> to vector<512x1xf32>
    %69 = vector.broadcast %68 : vector<512x1xf32> to vector<512x128xf32>
    %70 = arith.mulf %66, %69 : vector<512x128xf32>
    %71 = arith.truncf %70 : vector<512x128xf32> to vector<512x128xbf16>
    %c6_52 = arith.constant 6 : index
    %c0_53 = arith.constant 0 : index
    %c0_54 = arith.constant 0 : index
    %72 = vector.load %arg2[%c6_52, %c0_53, %c0_54] : memref<9x128x128xbf16, #tpu.memory_space<vmem>>, vector<1x128x128xbf16>
    %73 = vector.shape_cast %72 : vector<1x128x128xbf16> to vector<128x128xbf16>
    %cst_55 = arith.constant dense<0.000000e+00> : vector<512x128xf32>
    %74 = tpu.matmul %71, %73, %cst_55 {dimension_numbers = #tpu.dot_dimension_numbers<[1], [0], [0], [1], [0, 0, 1, 1], [], []>} : vector<512x128xbf16>, vector<128x128xbf16>, vector<512x128xf32> -> vector<512x128xf32>
    %75 = arith.addf %65, %74 : vector<512x128xf32>
    %c40 = arith.constant 40 : index
    %c0_56 = arith.constant 0 : index
    %76 = vector.load %arg6[%c40, %c0_56] : memref<560x128xf32, #tpu.memory_space<vmem>>, vector<512x128xf32>
    %c7_57 = arith.constant 7 : index
    %c0_58 = arith.constant 0 : index
    %c0_59 = arith.constant 0 : index
    %77 = vector.load %arg1[%c7_57, %c0_58, %c0_59] : memref<9x512x1xf32, #tpu.memory_space<vmem>>, vector<1x512x1xf32>
    %78 = vector.shape_cast %77 : vector<1x512x1xf32> to vector<512x1xf32>
    %79 = vector.broadcast %78 : vector<512x1xf32> to vector<512x128xf32>
    %80 = arith.mulf %76, %79 : vector<512x128xf32>
    %81 = arith.truncf %80 : vector<512x128xf32> to vector<512x128xbf16>
    %c7_60 = arith.constant 7 : index
    %c0_61 = arith.constant 0 : index
    %c0_62 = arith.constant 0 : index
    %82 = vector.load %arg2[%c7_60, %c0_61, %c0_62] : memref<9x128x128xbf16, #tpu.memory_space<vmem>>, vector<1x128x128xbf16>
    %83 = vector.shape_cast %82 : vector<1x128x128xbf16> to vector<128x128xbf16>
    %cst_63 = arith.constant dense<0.000000e+00> : vector<512x128xf32>
    %84 = tpu.matmul %81, %83, %cst_63 {dimension_numbers = #tpu.dot_dimension_numbers<[1], [0], [0], [1], [0, 0, 1, 1], [], []>} : vector<512x128xbf16>, vector<128x128xbf16>, vector<512x128xf32> -> vector<512x128xf32>
    %85 = arith.addf %75, %84 : vector<512x128xf32>
    %c41 = arith.constant 41 : index
    %c0_64 = arith.constant 0 : index
    %86 = vector.load %arg6[%c41, %c0_64] : memref<560x128xf32, #tpu.memory_space<vmem>>, vector<512x128xf32>
    %c8_65 = arith.constant 8 : index
    %c0_66 = arith.constant 0 : index
    %c0_67 = arith.constant 0 : index
    %87 = vector.load %arg1[%c8_65, %c0_66, %c0_67] : memref<9x512x1xf32, #tpu.memory_space<vmem>>, vector<1x512x1xf32>
    %88 = vector.shape_cast %87 : vector<1x512x1xf32> to vector<512x1xf32>
    %89 = vector.broadcast %88 : vector<512x1xf32> to vector<512x128xf32>
    %90 = arith.mulf %86, %89 : vector<512x128xf32>
    %91 = arith.truncf %90 : vector<512x128xf32> to vector<512x128xbf16>
    %c8_68 = arith.constant 8 : index
    %c0_69 = arith.constant 0 : index
    %c0_70 = arith.constant 0 : index
    %92 = vector.load %arg2[%c8_68, %c0_69, %c0_70] : memref<9x128x128xbf16, #tpu.memory_space<vmem>>, vector<1x128x128xbf16>
    %93 = vector.shape_cast %92 : vector<1x128x128xbf16> to vector<128x128xbf16>
    %cst_71 = arith.constant dense<0.000000e+00> : vector<512x128xf32>
    %94 = tpu.matmul %91, %93, %cst_71 {dimension_numbers = #tpu.dot_dimension_numbers<[1], [0], [0], [1], [0, 0, 1, 1], [], []>} : vector<512x128xbf16>, vector<128x128xbf16>, vector<512x128xf32> -> vector<512x128xf32>
    %95 = arith.addf %85, %94 : vector<512x128xf32>
    %c0_72 = arith.constant 0 : index
    %c0_73 = arith.constant 0 : index
    %96 = vector.load %arg3[%c0_72, %c0_73] : memref<1x128xf32, #tpu.memory_space<vmem>>, vector<1x128xf32>
    %c0_74 = arith.constant 0 : index
    %c0_75 = arith.constant 0 : index
    %97 = vector.load %arg4[%c0_74, %c0_75] : memref<1x128xf32, #tpu.memory_space<vmem>>, vector<1x128xf32>
    %cst_76 = arith.constant dense<0.000000e+00> : vector<128xf32>
    %98 = vector.multi_reduction <add>, %95, %cst_76 [0] : vector<512x128xf32> to vector<128xf32>
    %99 = vector.shape_cast %98 : vector<128xf32> to vector<1x128xf32>
    %cst_77 = arith.constant 0.001953125 : f32
    %100 = vector.broadcast %cst_77 : f32 to vector<1x128xf32>
    %101 = arith.mulf %99, %100 : vector<1x128xf32>
    %102 = arith.mulf %95, %95 : vector<512x128xf32>
    %cst_78 = arith.constant dense<0.000000e+00> : vector<128xf32>
    %103 = vector.multi_reduction <add>, %102, %cst_78 [0] : vector<512x128xf32> to vector<128xf32>
    %104 = vector.shape_cast %103 : vector<128xf32> to vector<1x128xf32>
    %cst_79 = arith.constant 0.001953125 : f32
    %105 = vector.broadcast %cst_79 : f32 to vector<1x128xf32>
    %106 = arith.mulf %104, %105 : vector<1x128xf32>
    %107 = arith.mulf %101, %101 : vector<1x128xf32>
    %108 = arith.subf %106, %107 : vector<1x128xf32>
    %cst_80 = arith.constant 0.000000e+00 : f32
    %109 = vector.broadcast %cst_80 : f32 to vector<1x128xf32>
    %110 = arith.maximumf %108, %109 : vector<1x128xf32>
    %111 = vector.broadcast %101 : vector<1x128xf32> to vector<512x128xf32>
    %112 = arith.subf %95, %111 : vector<512x128xf32>
    %cst_81 = arith.constant 9.99999974E-6 : f32
    %113 = vector.broadcast %cst_81 : f32 to vector<1x128xf32>
    %114 = arith.addf %110, %113 : vector<1x128xf32>
    %115 = math.rsqrt %114 : vector<1x128xf32>
    %116 = vector.broadcast %115 : vector<1x128xf32> to vector<512x128xf32>
    %117 = arith.mulf %112, %116 : vector<512x128xf32>
    %118 = vector.broadcast %96 : vector<1x128xf32> to vector<512x128xf32>
    %119 = arith.mulf %117, %118 : vector<512x128xf32>
    %120 = vector.broadcast %97 : vector<1x128xf32> to vector<512x128xf32>
    %121 = arith.addf %119, %120 : vector<512x128xf32>
    %cst_82 = arith.constant 0.000000e+00 : f32
    %122 = vector.broadcast %cst_82 : f32 to vector<512x128xf32>
    %123 = arith.maximumf %121, %122 : vector<512x128xf32>
    %124 = arith.truncf %123 : vector<512x128xf32> to vector<512x128xbf16>
    %c0_83 = arith.constant 0 : index
    %c0_84 = arith.constant 0 : index
    %125 = vector.load %arg5[%c0_83, %c0_84] : memref<512x128xbf16, #tpu.memory_space<vmem>>, vector<512x128xbf16>
    tpu.vector_store %arg5[%c0_83, %c0_84], %124 {strides = array<i32>} : memref<512x128xbf16, #tpu.memory_space<vmem>>, vector<512x128xbf16>,
    return
  }
}

</mosaic_0001>

<llo_original>
// kernel: tpu_custom_call.1
$region0: #{tpu_custom_call.1}
  #allocation0 [shape = 'u32[]', space=smem, size = 0x4, offset = 0x4, fixed_abs, tag = 'smem constant byte address 0x4 - core index']
  #allocation1 [shape = 'u32[144,128]{1,0:T(1,128)}', space=vmem, size = 0x12000, scoped, tag = 'internal scratch']
  #allocation2 [shape = 'f32[560,128]{1,0:T(8,128)}', space=vmem, size = 0x46000, scoped, tag = 'scratch operand']
  %s0 = inlined_call_operand.vmem [shape: bf16[512,128], index: 0, kind: input, shape index: {}]
  %s1 = inlined_call_operand.vmem [shape: f32[9,512,1], index: 1, kind: input, shape index: {}]
  %s2 = inlined_call_operand.vmem [shape: bf16[9,128,128], index: 2, kind: input, shape index: {}]
  %s3 = inlined_call_operand.vmem [shape: f32[1,128], index: 3, kind: input, shape index: {}]
  %s4 = inlined_call_operand.vmem [shape: f32[1,128], index: 4, kind: input, shape index: {}]
  %s5 = inlined_call_operand.hbm [shape: bf16[512,128], index: 5, kind: output, shape index: {}]
  %s6 = sld [smem:[#allocation0]]
  $region30: #{tpu_custom_call.1} parent=0
    _
  %s8 = ssub.s32 1, %s6
  %s9 = scalar_select 0, %s8, %s6
  $region1: #{tpu_custom_call.1} parent=0
    #allocation3 [shape = 'u8[131072]{0}', space=vmem, size = 0x20000, scoped, tag = 'output window, operand 0, single buffered']
    #allocation4 [shape = 's32[1]{0}', space=sflag, size = 0x4, scoped, tag = 'scoped memory for tpu_custom_call.1']
    %10 = vsyncpa [#allocation4], 0
    // Predicated region
    $region2: #{tpu_custom_call.1} parent=1 // pred_check
      _
    $region3: #{tpu_custom_call.1} parent=1 // pred_check_branch
      %12 = sbr.rel (0) target = $region5
    $region4: #{tpu_custom_call.1} parent=1 // pred_region
      _
    $region5: #{tpu_custom_call.1} parent=1 // pred_fallthru
      _
    // Predicated region
    $region6: #{tpu_custom_call.1} parent=1 // pred_check
      _
    $region7: #{tpu_custom_call.1} parent=1 // pred_check_branch
      %14 = sbr.rel (0) target = $region9
    $region8: #{tpu_custom_call.1} parent=1 // pred_region
      _
    $region9: #{tpu_custom_call.1} parent=1 // pred_fallthru
      _
    // Predicated region
    $region10: #{tpu_custom_call.1} parent=1 // pred_check
      _
    $region11: #{tpu_custom_call.1} parent=1 // pred_check_branch
      %16 = sbr.rel (0) target = $region13
    $region12: #{tpu_custom_call.1} parent=1 // pred_region
      _
    $region13: #{tpu_custom_call.1} parent=1 // pred_fallthru
      _
    // Predicated region
    $region14: #{tpu_custom_call.1} parent=1 // pred_check
      _
    $region15: #{tpu_custom_call.1} parent=1 // pred_check_branch
      %18 = sbr.rel (0) target = $region17
    $region16: #{tpu_custom_call.1} parent=1 // pred_region
      _
    $region17: #{tpu_custom_call.1} parent=1 // pred_fallthru
      _
    // Predicated region
    $region18: #{tpu_custom_call.1} parent=1 // pred_check
      _
    $region19: #{tpu_custom_call.1} parent=1 // pred_check_branch
      %20 = sbr.rel (0) target = $region21
    $region20: #{tpu_custom_call.1} parent=1 // pred_region
      _
    $region21: #{tpu_custom_call.1} parent=1 // pred_fallthru
      _
    %22 = vst [vmem:[#allocation2] sm:$0xff] 0.0
    %23 = vst [vmem:[#allocation2 + $0x8] sm:$0xff] 0.0
    %24 = vst [vmem:[#allocation2 + $0x10] sm:$0xff] 0.0
    %25 = vst [vmem:[#allocation2 + $0x18] sm:$0xff] 0.0
    %26 = vst [vmem:[#allocation2 + $0x20] sm:$0xff] 0.0
    %27 = vst [vmem:[#allocation2 + $0x28] sm:$0xff] 0.0
    %28 = vst [vmem:[#allocation2 + $0x30] sm:$0xff] 0.0
    %29 = vst [vmem:[#allocation2 + $0x38] sm:$0xff] 0.0
    %30 = vst [vmem:[#allocation2 + $0x40] sm:$0xff] 0.0
    %31 = vst [vmem:[#allocation2 + $0x48] sm:$0xff] 0.0
    %32 = vst [vmem:[#allocation2 + $0x50] sm:$0xff] 0.0
    %33 = vst [vmem:[#allocation2 + $0x58] sm:$0xff] 0.0
    %34 = vst [vmem:[#allocation2 + $0x60] sm:$0xff] 0.0
    %35 = vst [vmem:[#allocation2 + $0x68] sm:$0xff] 0.0
    %36 = vst [vmem:[#allocation2 + $0x70] sm:$0xff] 0.0
    %37 = vst [vmem:[#allocation2 + $0x78] sm:$0xff] 0.0
    %38 = vst [vmem:[#allocation2 + $0x80] sm:$0xff] 0.0
    %39 = vst [vmem:[#allocation2 + $0x88] sm:$0xff] 0.0
    %40 = vst [vmem:[#allocation2 + $0x90] sm:$0xff] 0.0
    %41 = vst [vmem:[#allocation2 + $0x98] sm:$0xff] 0.0
    %42 = vst [vmem:[#allocation2 + $0xa0] sm:$0xff] 0.0
    %43 = vst [vmem:[#allocation2 + $0xa8] sm:$0xff] 0.0
    %44 = vst [vmem:[#allocation2 + $0xb0] sm:$0xff] 0.0
    %45 = vst [vmem:[#allocation2 + $0xb8] sm:$0xff] 0.0
    %46 = vst [vmem:[#allocation2 + $0xc0] sm:$0xff] 0.0
    %47 = vst [vmem:[#allocation2 + $0xc8] sm:$0xff] 0.0
    %48 = vst [vmem:[#allocation2 + $0xd0] sm:$0xff] 0.0
    %49 = vst [vmem:[#allocation2 + $0xd8] sm:$0xff] 0.0
    %50 = vst [vmem:[#allocation2 + $0xe0] sm:$0xff] 0.0
    %51 = vst [vmem:[#allocation2 + $0xe8] sm:$0xff] 0.0
    %52 = vst [vmem:[#allocation2 + $0xf0] sm:$0xff] 0.0
    %53 = vst [vmem:[#allocation2 + $0xf8] sm:$0xff] 0.0
    %54 = vst [vmem:[#allocation2 + $0x100] sm:$0xff] 0.0
    %55 = vst [vmem:[#allocation2 + $0x108] sm:$0xff] 0.0
    %56 = vst [vmem:[#allocation2 + $0x110] sm:$0xff] 0.0
    %57 = vst [vmem:[#allocation2 + $0x118] sm:$0xff] 0.0
    %58 = vst [vmem:[#allocation2 + $0x120] sm:$0xff] 0.0
    %59 = vst [vmem:[#allocation2 + $0x128] sm:$0xff] 0.0
    %60 = vst [vmem:[#allocation2 + $0x130] sm:$0xff] 0.0
    %61 = vst [vmem:[#allocation2 + $0x138] sm:$0xff] 0.0
    %62 = vst [vmem:[#allocation2 + $0x140] sm:$0xff] 0.0
    %63 = vst [vmem:[#allocation2 + $0x148] sm:$0xff] 0.0
    %64 = vst [vmem:[#allocation2 + $0x150] sm:$0xff] 0.0
    %65 = vst [vmem:[#allocation2 + $0x158] sm:$0xff] 0.0
    %66 = vst [vmem:[#allocation2 + $0x160] sm:$0xff] 0.0
    %67 = vst [vmem:[#allocation2 + $0x168] sm:$0xff] 0.0
    %68 = vst [vmem:[#allocation2 + $0x170] sm:$0xff] 0.0
    %69 = vst [vmem:[#allocation2 + $0x178] sm:$0xff] 0.0
    %70 = vst [vmem:[#allocation2 + $0x180] sm:$0xff] 0.0
    %71 = vst [vmem:[#allocation2 + $0x188] sm:$0xff] 0.0
    %72 = vst [vmem:[#allocation2 + $0x190] sm:$0xff] 0.0
    %73 = vst [vmem:[#allocation2 + $0x198] sm:$0xff] 0.0
    %74 = vst [vmem:[#allocation2 + $0x1a0] sm:$0xff] 0.0
    %75 = vst [vmem:[#allocation2 + $0x1a8] sm:$0xff] 0.0
    %76 = vst [vmem:[#allocation2 + $0x1b0] sm:$0xff] 0.0
    %77 = vst [vmem:[#allocation2 + $0x1b8] sm:$0xff] 0.0
    %78 = vst [vmem:[#allocation2 + $0x1c0] sm:$0xff] 0.0
    %79 = vst [vmem:[#allocation2 + $0x1c8] sm:$0xff] 0.0
    %80 = vst [vmem:[#allocation2 + $0x1d0] sm:$0xff] 0.0
    %81 = vst [vmem:[#allocation2 + $0x1d8] sm:$0xff] 0.0
    %82 = vst [vmem:[#allocation2 + $0x1e0] sm:$0xff] 0.0
    %83 = vst [vmem:[#allocation2 + $0x1e8] sm:$0xff] 0.0
    %84 = vst [vmem:[#allocation2 + $0x1f0] sm:$0xff] 0.0
    %85 = vst [vmem:[#allocation2 + $0x1f8] sm:$0xff] 0.0
    %86 = vst [vmem:[#allocation2 + $0x200] sm:$0xff] 0.0
    %87 = vst [vmem:[#allocation2 + $0x208] sm:$0xff] 0.0
    %88 = vst [vmem:[#allocation2 + $0x210] sm:$0xff] 0.0
    %89 = vst [vmem:[#allocation2 + $0x218] sm:$0xff] 0.0
    %90 = vst [vmem:[#allocation2 + $0x220] sm:$0xff] 0.0
    %91 = vst [vmem:[#allocation2 + $0x228] sm:$0xff] 0.0
    %v92 = vld [vmem:[%s0] sm:$0xf]
    %v93 = vld [vmem:[%s0 + $0x4] sm:$0xf]
    %v94 = vld [vmem:[%s0 + $0x8] sm:$0xf]
    %v95 = vld [vmem:[%s0 + $0xc] sm:$0xf]
    %v96 = vld [vmem:[%s0 + $0x10] sm:$0xf]
    %v97 = vld [vmem:[%s0 + $0x14] sm:$0xf]
    %v98 = vld [vmem:[%s0 + $0x18] sm:$0xf]
    %v99 = vld [vmem:[%s0 + $0x1c] sm:$0xf]
    %v100 = vld [vmem:[%s0 + $0x20] sm:$0xf]
    %v101 = vld [vmem:[%s0 + $0x24] sm:$0xf]
    %v102 = vld [vmem:[%s0 + $0x28] sm:$0xf]
    %v103 = vld [vmem:[%s0 + $0x2c] sm:$0xf]
    %v104 = vld [vmem:[%s0 + $0x30] sm:$0xf]
    %v105 = vld [vmem:[%s0 + $0x34] sm:$0xf]
    %v106 = vld [vmem:[%s0 + $0x38] sm:$0xf]
    %v107 = vld [vmem:[%s0 + $0x3c] sm:$0xf]
    %v108 = vld [vmem:[%s0 + $0x40] sm:$0xf]
    %v109 = vld [vmem:[%s0 + $0x44] sm:$0xf]
    %v110 = vld [vmem:[%s0 + $0x48] sm:$0xf]
    %v111 = vld [vmem:[%s0 + $0x4c] sm:$0xf]
    %v112 = vld [vmem:[%s0 + $0x50] sm:$0xf]
    %v113 = vld [vmem:[%s0 + $0x54] sm:$0xf]
    %v114 = vld [vmem:[%s0 + $0x58] sm:$0xf]
    %v115 = vld [vmem:[%s0 + $0x5c] sm:$0xf]
    %v116 = vld [vmem:[%s0 + $0x60] sm:$0xf]
    %v117 = vld [vmem:[%s0 + $0x64] sm:$0xf]
    %v118 = vld [vmem:[%s0 + $0x68] sm:$0xf]
    %v119 = vld [vmem:[%s0 + $0x6c] sm:$0xf]
    %v120 = vld [vmem:[%s0 + $0x70] sm:$0xf]
    %v121 = vld [vmem:[%s0 + $0x74] sm:$0xf]
    %v122 = vld [vmem:[%s0 + $0x78] sm:$0xf]
    %v123 = vld [vmem:[%s0 + $0x7c] sm:$0xf]
    %v124 = vld [vmem:[%s0 + $0x80] sm:$0xf]
    %v125 = vld [vmem:[%s0 + $0x84] sm:$0xf]
    %v126 = vld [vmem:[%s0 + $0x88] sm:$0xf]
    %v127 = vld [vmem:[%s0 + $0x8c] sm:$0xf]
    %v128 = vld [vmem:[%s0 + $0x90] sm:$0xf]
    %v129 = vld [vmem:[%s0 + $0x94] sm:$0xf]
    %v130 = vld [vmem:[%s0 + $0x98] sm:$0xf]
    %v131 = vld [vmem:[%s0 + $0x9c] sm:$0xf]
    %v132 = vld [vmem:[%s0 + $0xa0] sm:$0xf]
    %v133 = vld [vmem:[%s0 + $0xa4] sm:$0xf]
    %v134 = vld [vmem:[%s0 + $0xa8] sm:$0xf]
    %v135 = vld [vmem:[%s0 + $0xac] sm:$0xf]
    %v136 = vld [vmem:[%s0 + $0xb0] sm:$0xf]
    %v137 = vld [vmem:[%s0 + $0xb4] sm:$0xf]
    %v138 = vld [vmem:[%s0 + $0xb8] sm:$0xf]
    %v139 = vld [vmem:[%s0 + $0xbc] sm:$0xf]
    %v140 = vld [vmem:[%s0 + $0xc0] sm:$0xf]
    %v141 = vld [vmem:[%s0 + $0xc4] sm:$0xf]
    %v142 = vld [vmem:[%s0 + $0xc8] sm:$0xf]
    %v143 = vld [vmem:[%s0 + $0xcc] sm:$0xf]
    %v144 = vld [vmem:[%s0 + $0xd0] sm:$0xf]
    %v145 = vld [vmem:[%s0 + $0xd4] sm:$0xf]
    %v146 = vld [vmem:[%s0 + $0xd8] sm:$0xf]
    %v147 = vld [vmem:[%s0 + $0xdc] sm:$0xf]
    %v148 = vld [vmem:[%s0 + $0xe0] sm:$0xf]
    %v149 = vld [vmem:[%s0 + $0xe4] sm:$0xf]
    %v150 = vld [vmem:[%s0 + $0xe8] sm:$0xf]
    %v151 = vld [vmem:[%s0 + $0xec] sm:$0xf]
    %v152 = vld [vmem:[%s0 + $0xf0] sm:$0xf]
    %v153 = vld [vmem:[%s0 + $0xf4] sm:$0xf]
    %v154 = vld [vmem:[%s0 + $0xf8] sm:$0xf]
    %v155 = vld [vmem:[%s0 + $0xfc] sm:$0xf]
    %v156 = vunpack.c.l.bf16 %v92
    %v157 = vunpack.c.l.bf16 %v93
    %v158 = vunpack.c.l.bf16 %v94
    %v159 = vunpack.c.l.bf16 %v95
    %v160 = vunpack.c.l.bf16 %v96
    %v161 = vunpack.c.l.bf16 %v97
    %v162 = vunpack.c.l.bf16 %v98
    %v163 = vunpack.c.l.bf16 %v99
    %v164 = vunpack.c.l.bf16 %v100
    %v165 = vunpack.c.l.bf16 %v101
    %v166 = vunpack.c.l.bf16 %v102
    %v167 = vunpack.c.l.bf16 %v103
    %v168 = vunpack.c.l.bf16 %v104
    %v169 = vunpack.c.l.bf16 %v105
    %v170 = vunpack.c.l.bf16 %v106
    %v171 = vunpack.c.l.bf16 %v107
    %v172 = vunpack.c.l.bf16 %v108
    %v173 = vunpack.c.l.bf16 %v109
    %v174 = vunpack.c.l.bf16 %v110
    %v175 = vunpack.c.l.bf16 %v111
    %v176 = vunpack.c.l.bf16 %v112
    %v177 = vunpack.c.l.bf16 %v113
    %v178 = vunpack.c.l.bf16 %v114
    %v179 = vunpack.c.l.bf16 %v115
    %v180 = vunpack.c.l.bf16 %v116
    %v181 = vunpack.c.l.bf16 %v117
    %v182 = vunpack.c.l.bf16 %v118
    %v183 = vunpack.c.l.bf16 %v119
    %v184 = vunpack.c.l.bf16 %v120
    %v185 = vunpack.c.l.bf16 %v121
    %v186 = vunpack.c.l.bf16 %v122
    %v187 = vunpack.c.l.bf16 %v123
    %v188 = vunpack.c.l.bf16 %v124
    %v189 = vunpack.c.l.bf16 %v125
    %v190 = vunpack.c.l.bf16 %v126
    %v191 = vunpack.c.l.bf16 %v127
    %v192 = vunpack.c.l.bf16 %v128
    %v193 = vunpack.c.l.bf16 %v129
    %v194 = vunpack.c.l.bf16 %v130
    %v195 = vunpack.c.l.bf16 %v131
    %v196 = vunpack.c.l.bf16 %v132
    %v197 = vunpack.c.l.bf16 %v133
    %v198 = vunpack.c.l.bf16 %v134
    %v199 = vunpack.c.l.bf16 %v135
    %v200 = vunpack.c.l.bf16 %v136
    %v201 = vunpack.c.l.bf16 %v137
    %v202 = vunpack.c.l.bf16 %v138
    %v203 = vunpack.c.l.bf16 %v139
    %v204 = vunpack.c.l.bf16 %v140
    %v205 = vunpack.c.l.bf16 %v141
    %v206 = vunpack.c.l.bf16 %v142
    %v207 = vunpack.c.l.bf16 %v143
    %v208 = vunpack.c.l.bf16 %v144
    %v209 = vunpack.c.l.bf16 %v145
    %v210 = vunpack.c.l.bf16 %v146
    %v211 = vunpack.c.l.bf16 %v147
    %v212 = vunpack.c.l.bf16 %v148
    %v213 = vunpack.c.l.bf16 %v149
    %v214 = vunpack.c.l.bf16 %v150
    %v215 = vunpack.c.l.bf16 %v151
    %v216 = vunpack.c.l.bf16 %v152
    %v217 = vunpack.c.l.bf16 %v153
    %v218 = vunpack.c.l.bf16 %v154
    %v219 = vunpack.c.l.bf16 %v155
    %220 = vst [vmem:[#allocation2 + $0x18] sm:$0xff] %v156
    %221 = vst [vmem:[#allocation2 + $0x20] sm:$0xff] %v157
    %222 = vst [vmem:[#allocation2 + $0x28] sm:$0xff] %v158
    %223 = vst [vmem:[#allocation2 + $0x30] sm:$0xff] %v159
    %224 = vst [vmem:[#allocation2 + $0x38] sm:$0xff] %v160
    %225 = vst [vmem:[#allocation2 + $0x40] sm:$0xff] %v161
    %226 = vst [vmem:[#allocation2 + $0x48] sm:$0xff] %v162
    %227 = vst [vmem:[#allocation2 + $0x50] sm:$0xff] %v163
    %228 = vst [vmem:[#allocation2 + $0x58] sm:$0xff] %v164
    %229 = vst [vmem:[#allocation2 + $0x60] sm:$0xff] %v165
    %230 = vst [vmem:[#allocation2 + $0x68] sm:$0xff] %v166
    %231 = vst [vmem:[#allocation2 + $0x70] sm:$0xff] %v167
    %232 = vst [vmem:[#allocation2 + $0x78] sm:$0xff] %v168
    %233 = vst [vmem:[#allocation2 + $0x80] sm:$0xff] %v169
    %234 = vst [vmem:[#allocation2 + $0x88] sm:$0xff] %v170
    %235 = vst [vmem:[#allocation2 + $0x90] sm:$0xff] %v171
    %236 = vst [vmem:[#allocation2 + $0x98] sm:$0xff] %v172
    %237 = vst [vmem:[#allocation2 + $0xa0] sm:$0xff] %v173
    %238 = vst [vmem:[#allocation2 + $0xa8] sm:$0xff] %v174
    %239 = vst [vmem:[#allocation2 + $0xb0] sm:$0xff] %v175
    %240 = vst [vmem:[#allocation2 + $0xb8] sm:$0xff] %v176
    %241 = vst [vmem:[#allocation2 + $0xc0] sm:$0xff] %v177
    %242 = vst [vmem:[#allocation2 + $0xc8] sm:$0xff] %v178
    %243 = vst [vmem:[#allocation2 + $0xd0] sm:$0xff] %v179
    %244 = vst [vmem:[#allocation2 + $0xd8] sm:$0xff] %v180
    %245 = vst [vmem:[#allocation2 + $0xe0] sm:$0xff] %v181
    %246 = vst [vmem:[#allocation2 + $0xe8] sm:$0xff] %v182
    %247 = vst [vmem:[#allocation2 + $0xf0] sm:$0xff] %v183
    %248 = vst [vmem:[#allocation2 + $0xf8] sm:$0xff] %v184
    %249 = vst [vmem:[#allocation2 + $0x100] sm:$0xff] %v185
    %250 = vst [vmem:[#allocation2 + $0x108] sm:$0xff] %v186
    %251 = vst [vmem:[#allocation2 + $0x110] sm:$0xff] %v187
    %252 = vst [vmem:[#allocation2 + $0x118] sm:$0xff] %v188
    %253 = vst [vmem:[#allocation2 + $0x120] sm:$0xff] %v189
    %254 = vst [vmem:[#allocation2 + $0x128] sm:$0xff] %v190
    %255 = vst [vmem:[#allocation2 + $0x130] sm:$0xff] %v191
    %256 = vst [vmem:[#allocation2 + $0x138] sm:$0xff] %v192
    %257 = vst [vmem:[#allocation2 + $0x140] sm:$0xff] %v193
    %258 = vst [vmem:[#allocation2 + $0x148] sm:$0xff] %v194
    %259 = vst [vmem:[#allocation2 + $0x150] sm:$0xff] %v195
    %260 = vst [vmem:[#allocation2 + $0x158] sm:$0xff] %v196
    %261 = vst [vmem:[#allocation2 + $0x160] sm:$0xff] %v197
    %262 = vst [vmem:[#allocation2 + $0x168] sm:$0xff] %v198
    %263 = vst [vmem:[#allocation2 + $0x170] sm:$0xff] %v199
    %264 = vst [vmem:[#allocation2 + $0x178] sm:$0xff] %v200
    %265 = vst [vmem:[#allocation2 + $0x180] sm:$0xff] %v201
    %266 = vst [vmem:[#allocation2 + $0x188] sm:$0xff] %v202
    %267 = vst [vmem:[#allocation2 + $0x190] sm:$0xff] %v203
    %268 = vst [vmem:[#allocation2 + $0x198] sm:$0xff] %v204
    %269 = vst [vmem:[#allocation2 + $0x1a0] sm:$0xff] %v205
    %270 = vst [vmem:[#allocation2 + $0x1a8] sm:$0xff] %v206
    %271 = vst [vmem:[#allocation2 + $0x1b0] sm:$0xff] %v207
    %272 = vst [vmem:[#allocation2 + $0x1b8] sm:$0xff] %v208
    %273 = vst [vmem:[#allocation2 + $0x1c0] sm:$0xff] %v209
    %274 = vst [vmem:[#allocation2 + $0x1c8] sm:$0xff] %v210
    %275 = vst [vmem:[#allocation2 + $0x1d0] sm:$0xff] %v211
    %276 = vst [vmem:[#allocation2 + $0x1d8] sm:$0xff] %v212
    %277 = vst [vmem:[#allocation2 + $0x1e0] sm:$0xff] %v213
    %278 = vst [vmem:[#allocation2 + $0x1e8] sm:$0xff] %v214
    %279 = vst [vmem:[#allocation2 + $0x1f0] sm:$0xff] %v215
    %280 = vst [vmem:[#allocation2 + $0x1f8] sm:$0xff] %v216
    %281 = vst [vmem:[#allocation2 + $0x200] sm:$0xff] %v217
    %282 = vst [vmem:[#allocation2 + $0x208] sm:$0xff] %v218
    %283 = vst [vmem:[#allocation2 + $0x210] sm:$0xff] %v219
    %v284 = vld [vmem:[#allocation2 + $0x7] sm:$0xff]
    %v285 = vld [vmem:[#allocation2 + $0xf] sm:$0xff]
    %v286 = vld [vmem:[#allocation2 + $0x17] sm:$0xff]
    %v287 = vld [vmem:[#allocation2 + $0x1f] sm:$0xff]
    %v288 = vld [vmem:[#allocation2 + $0x27] sm:$0xff]
    %v289 = vld [vmem:[#allocation2 + $0x2f] sm:$0xff]
    %v290 = vld [vmem:[#allocation2 + $0x37] sm:$0xff]
    %v291 = vld [vmem:[#allocation2 + $0x3f] sm:$0xff]
    %v292 = vld [vmem:[#allocation2 + $0x47] sm:$0xff]
    %v293 = vld [vmem:[#allocation2 + $0x4f] sm:$0xff]
    %v294 = vld [vmem:[#allocation2 + $0x57] sm:$0xff]
    %v295 = vld [vmem:[#allocation2 + $0x5f] sm:$0xff]
    %v296 = vld [vmem:[#allocation2 + $0x67] sm:$0xff]
    %v297 = vld [vmem:[#allocation2 + $0x6f] sm:$0xff]
    %v298 = vld [vmem:[#allocation2 + $0x77] sm:$0xff]
    %v299 = vld [vmem:[#allocation2 + $0x7f] sm:$0xff]
    %v300 = vld [vmem:[#allocation2 + $0x87] sm:$0xff]
    %v301 = vld [vmem:[#allocation2 + $0x8f] sm:$0xff]
    %v302 = vld [vmem:[#allocation2 + $0x97] sm:$0xff]
    %v303 = vld [vmem:[#allocation2 + $0x9f] sm:$0xff]
    %v304 = vld [vmem:[#allocation2 + $0xa7] sm:$0xff]
    %v305 = vld [vmem:[#allocation2 + $0xaf] sm:$0xff]
    %v306 = vld [vmem:[#allocation2 + $0xb7] sm:$0xff]
    %v307 = vld [vmem:[#allocation2 + $0xbf] sm:$0xff]
    %v308 = vld [vmem:[#allocation2 + $0xc7] sm:$0xff]
    %v309 = vld [vmem:[#allocation2 + $0xcf] sm:$0xff]
    %v310 = vld [vmem:[#allocation2 + $0xd7] sm:$0xff]
    %v311 = vld [vmem:[#allocation2 + $0xdf] sm:$0xff]
    %v312 = vld [vmem:[#allocation2 + $0xe7] sm:$0xff]
    %v313 = vld [vmem:[#allocation2 + $0xef] sm:$0xff]
    %v314 = vld [vmem:[#allocation2 + $0xf7] sm:$0xff]
    %v315 = vld [vmem:[#allocation2 + $0xff] sm:$0xff]
    %v316 = vld [vmem:[#allocation2 + $0x107] sm:$0xff]
    %v317 = vld [vmem:[#allocation2 + $0x10f] sm:$0xff]
    %v318 = vld [vmem:[#allocation2 + $0x117] sm:$0xff]
    %v319 = vld [vmem:[#allocation2 + $0x11f] sm:$0xff]
    %v320 = vld [vmem:[#allocation2 + $0x127] sm:$0xff]
    %v321 = vld [vmem:[#allocation2 + $0x12f] sm:$0xff]
    %v322 = vld [vmem:[#allocation2 + $0x137] sm:$0xff]
    %v323 = vld [vmem:[#allocation2 + $0x13f] sm:$0xff]
    %v324 = vld [vmem:[#allocation2 + $0x147] sm:$0xff]
    %v325 = vld [vmem:[#allocation2 + $0x14f] sm:$0xff]
    %v326 = vld [vmem:[#allocation2 + $0x157] sm:$0xff]
    %v327 = vld [vmem:[#allocation2 + $0x15f] sm:$0xff]
    %v328 = vld [vmem:[#allocation2 + $0x167] sm:$0xff]
    %v329 = vld [vmem:[#allocation2 + $0x16f] sm:$0xff]
    %v330 = vld [vmem:[#allocation2 + $0x177] sm:$0xff]
    %v331 = vld [vmem:[#allocation2 + $0x17f] sm:$0xff]
    %v332 = vld [vmem:[#allocation2 + $0x187] sm:$0xff]
    %v333 = vld [vmem:[#allocation2 + $0x18f] sm:$0xff]
    %v334 = vld [vmem:[#allocation2 + $0x197] sm:$0xff]
    %v335 = vld [vmem:[#allocation2 + $0x19f] sm:$0xff]
    %v336 = vld [vmem:[#allocation2 + $0x1a7] sm:$0xff]
    %v337 = vld [vmem:[#allocation2 + $0x1af] sm:$0xff]
    %v338 = vld [vmem:[#allocation2 + $0x1b7] sm:$0xff]
    %v339 = vld [vmem:[#allocation2 + $0x1bf] sm:$0xff]
    %v340 = vld [vmem:[#allocation2 + $0x1c7] sm:$0xff]
    %v341 = vld [vmem:[#allocation2 + $0x1cf] sm:$0xff]
    %v342 = vld [vmem:[#allocation2 + $0x1d7] sm:$0xff]
    %v343 = vld [vmem:[#allocation2 + $0x1df] sm:$0xff]
    %v344 = vld [vmem:[#allocation2 + $0x1e7] sm:$0xff]
    %v345 = vld [vmem:[#allocation2 + $0x1ef] sm:$0xff]
    %v346 = vld [vmem:[#allocation2 + $0x1f7] sm:$0xff]
    %v347 = vld [vmem:[#allocation2 + $0x1ff] sm:$0xff]
    %v348 = vld [vmem:[%s1] sm:$0xff]
    %v349 = vld [vmem:[%s1 + $0x8] sm:$0xff]
    %v350 = vld [vmem:[%s1 + $0x10] sm:$0xff]
    %v351 = vld [vmem:[%s1 + $0x18] sm:$0xff]
    %v352 = vld [vmem:[%s1 + $0x20] sm:$0xff]
    %v353 = vld [vmem:[%s1 + $0x28] sm:$0xff]
    %v354 = vld [vmem:[%s1 + $0x30] sm:$0xff]
    %v355 = vld [vmem:[%s1 + $0x38] sm:$0xff]
    %v356 = vld [vmem:[%s1 + $0x40] sm:$0xff]
    %v357 = vld [vmem:[%s1 + $0x48] sm:$0xff]
    %v358 = vld [vmem:[%s1 + $0x50] sm:$0xff]
    %v359 = vld [vmem:[%s1 + $0x58] sm:$0xff]
    %v360 = vld [vmem:[%s1 + $0x60] sm:$0xff]
    %v361 = vld [vmem:[%s1 + $0x68] sm:$0xff]
    %v362 = vld [vmem:[%s1 + $0x70] sm:$0xff]
    %v363 = vld [vmem:[%s1 + $0x78] sm:$0xff]
    %v364 = vld [vmem:[%s1 + $0x80] sm:$0xff]
    %v365 = vld [vmem:[%s1 + $0x88] sm:$0xff]
    %v366 = vld [vmem:[%s1 + $0x90] sm:$0xff]
    %v367 = vld [vmem:[%s1 + $0x98] sm:$0xff]
    %v368 = vld [vmem:[%s1 + $0xa0] sm:$0xff]
    %v369 = vld [vmem:[%s1 + $0xa8] sm:$0xff]
    %v370 = vld [vmem:[%s1 + $0xb0] sm:$0xff]
    %v371 = vld [vmem:[%s1 + $0xb8] sm:$0xff]
    %v372 = vld [vmem:[%s1 + $0xc0] sm:$0xff]
    %v373 = vld [vmem:[%s1 + $0xc8] sm:$0xff]
    %v374 = vld [vmem:[%s1 + $0xd0] sm:$0xff]
    %v375 = vld [vmem:[%s1 + $0xd8] sm:$0xff]
    %v376 = vld [vmem:[%s1 + $0xe0] sm:$0xff]
    %v377 = vld [vmem:[%s1 + $0xe8] sm:$0xff]
    %v378 = vld [vmem:[%s1 + $0xf0] sm:$0xff]
    %v379 = vld [vmem:[%s1 + $0xf8] sm:$0xff]
    %v380 = vld [vmem:[%s1 + $0x100] sm:$0xff]
    %v381 = vld [vmem:[%s1 + $0x108] sm:$0xff]
    %v382 = vld [vmem:[%s1 + $0x110] sm:$0xff]
    %v383 = vld [vmem:[%s1 + $0x118] sm:$0xff]
    %v384 = vld [vmem:[%s1 + $0x120] sm:$0xff]
    %v385 = vld [vmem:[%s1 + $0x128] sm:$0xff]
    %v386 = vld [vmem:[%s1 + $0x130] sm:$0xff]
    %v387 = vld [vmem:[%s1 + $0x138] sm:$0xff]
    %v388 = vld [vmem:[%s1 + $0x140] sm:$0xff]
    %v389 = vld [vmem:[%s1 + $0x148] sm:$0xff]
    %v390 = vld [vmem:[%s1 + $0x150] sm:$0xff]
    %v391 = vld [vmem:[%s1 + $0x158] sm:$0xff]
    %v392 = vld [vmem:[%s1 + $0x160] sm:$0xff]
    %v393 = vld [vmem:[%s1 + $0x168] sm:$0xff]
    %v394 = vld [vmem:[%s1 + $0x170] sm:$0xff]
    %v395 = vld [vmem:[%s1 + $0x178] sm:$0xff]
    %v396 = vld [vmem:[%s1 + $0x180] sm:$0xff]
    %v397 = vld [vmem:[%s1 + $0x188] sm:$0xff]
    %v398 = vld [vmem:[%s1 + $0x190] sm:$0xff]
    %v399 = vld [vmem:[%s1 + $0x198] sm:$0xff]
    %v400 = vld [vmem:[%s1 + $0x1a0] sm:$0xff]
    %v401 = vld [vmem:[%s1 + $0x1a8] sm:$0xff]
    %v402 = vld [vmem:[%s1 + $0x1b0] sm:$0xff]
    %v403 = vld [vmem:[%s1 + $0x1b8] sm:$0xff]
    %v404 = vld [vmem:[%s1 + $0x1c0] sm:$0xff]
    %v405 = vld [vmem:[%s1 + $0x1c8] sm:$0xff]
    %v406 = vld [vmem:[%s1 + $0x1d0] sm:$0xff]
    %v407 = vld [vmem:[%s1 + $0x1d8] sm:$0xff]
    %v408 = vld [vmem:[%s1 + $0x1e0] sm:$0xff]
    %v409 = vld [vmem:[%s1 + $0x1e8] sm:$0xff]
    %v410 = vld [vmem:[%s1 + $0x1f0] sm:$0xff]
    %v411 = vld [vmem:[%s1 + $0x1f8] sm:$0xff]
    %413 = vset.pattern.permute.xlu0 0
    %414 = vperm.xlu0 %413, %v348
    %v415 = vpop.permute.xlu0 %414
    %418 = vset.pattern.permute.xlu0 0
    %419 = vperm.xlu0 %418, %v349
    %v420 = vpop.permute.xlu0 %419
    %423 = vset.pattern.permute.xlu0 0
    %424 = vperm.xlu0 %423, %v350
    %v425 = vpop.permute.xlu0 %424
    %428 = vset.pattern.permute.xlu0 0
    %429 = vperm.xlu0 %428, %v351
    %v430 = vpop.permute.xlu0 %429
    %433 = vset.pattern.permute.xlu0 0
    %434 = vperm.xlu0 %433, %v352
    %v435 = vpop.permute.xlu0 %434
    %438 = vset.pattern.permute.xlu0 0
    %439 = vperm.xlu0 %438, %v353
    %v440 = vpop.permute.xlu0 %439
    %443 = vset.pattern.permute.xlu0 0
    %444 = vperm.xlu0 %443, %v354
    %v445 = vpop.permute.xlu0 %444
    %448 = vset.pattern.permute.xlu0 0
    %449 = vperm.xlu0 %448, %v355
    %v450 = vpop.permute.xlu0 %449
    %453 = vset.pattern.permute.xlu0 0
    %454 = vperm.xlu0 %453, %v356
    %v455 = vpop.permute.xlu0 %454
    %458 = vset.pattern.permute.xlu0 0
    %459 = vperm.xlu0 %458, %v357
    %v460 = vpop.permute.xlu0 %459
    %463 = vset.pattern.permute.xlu0 0
    %464 = vperm.xlu0 %463, %v358
    %v465 = vpop.permute.xlu0 %464
    %468 = vset.pattern.permute.xlu0 0
    %469 = vperm.xlu0 %468, %v359
    %v470 = vpop.permute.xlu0 %469
    %473 = vset.pattern.permute.xlu0 0
    %474 = vperm.xlu0 %473, %v360
    %v475 = vpop.permute.xlu0 %474
    %478 = vset.pattern.permute.xlu0 0
    %479 = vperm.xlu0 %478, %v361
    %v480 = vpop.permute.xlu0 %479
    %483 = vset.pattern.permute.xlu0 0
    %484 = vperm.xlu0 %483, %v362
    %v485 = vpop.permute.xlu0 %484
    %488 = vset.pattern.permute.xlu0 0
    %489 = vperm.xlu0 %488, %v363
    %v490 = vpop.permute.xlu0 %489
    %493 = vset.pattern.permute.xlu0 0
    %494 = vperm.xlu0 %493, %v364
    %v495 = vpop.permute.xlu0 %494
    %498 = vset.pattern.permute.xlu0 0
    %499 = vperm.xlu0 %498, %v365
    %v500 = vpop.permute.xlu0 %499
    %503 = vset.pattern.permute.xlu0 0
    %504 = vperm.xlu0 %503, %v366
    %v505 = vpop.permute.xlu0 %504
    %508 = vset.pattern.permute.xlu0 0
    %509 = vperm.xlu0 %508, %v367
    %v510 = vpop.permute.xlu0 %509
    %513 = vset.pattern.permute.xlu0 0
    %514 = vperm.xlu0 %513, %v368
    %v515 = vpop.permute.xlu0 %514
    %518 = vset.pattern.permute.xlu0 0
    %519 = vperm.xlu0 %518, %v369
    %v520 = vpop.permute.xlu0 %519
    %523 = vset.pattern.permute.xlu0 0
    %524 = vperm.xlu0 %523, %v370
    %v525 = vpop.permute.xlu0 %524
    %528 = vset.pattern.permute.xlu0 0
    %529 = vperm.xlu0 %528, %v371
    %v530 = vpop.permute.xlu0 %529
    %533 = vset.pattern.permute.xlu0 0
    %534 = vperm.xlu0 %533, %v372
    %v535 = vpop.permute.xlu0 %534
    %538 = vset.pattern.permute.xlu0 0
    %539 = vperm.xlu0 %538, %v373
    %v540 = vpop.permute.xlu0 %539
    %543 = vset.pattern.permute.xlu0 0
    %544 = vperm.xlu0 %543, %v374
    %v545 = vpop.permute.xlu0 %544
    %548 = vset.pattern.permute.xlu0 0
    %549 = vperm.xlu0 %548, %v375
    %v550 = vpop.permute.xlu0 %549
    %553 = vset.pattern.permute.xlu0 0
    %554 = vperm.xlu0 %553, %v376
    %v555 = vpop.permute.xlu0 %554
    %558 = vset.pattern.permute.xlu0 0
    %559 = vperm.xlu0 %558, %v377
    %v560 = vpop.permute.xlu0 %559
    %563 = vset.pattern.permute.xlu0 0
    %564 = vperm.xlu0 %563, %v378
    %v565 = vpop.permute.xlu0 %564
    %568 = vset.pattern.permute.xlu0 0
    %569 = vperm.xlu0 %568, %v379
    %v570 = vpop.permute.xlu0 %569
    %573 = vset.pattern.permute.xlu0 0
    %574 = vperm.xlu0 %573, %v380
    %v575 = vpop.permute.xlu0 %574
    %578 = vset.pattern.permute.xlu0 0
    %579 = vperm.xlu0 %578, %v381
    %v580 = vpop.permute.xlu0 %579
    %583 = vset.pattern.permute.xlu0 0
    %584 = vperm.xlu0 %583, %v382
    %v585 = vpop.permute.xlu0 %584
    %588 = vset.pattern.permute.xlu0 0
    %589 = vperm.xlu0 %588, %v383
    %v590 = vpop.permute.xlu0 %589
    %593 = vset.pattern.permute.xlu0 0
    %594 = vperm.xlu0 %593, %v384
    %v595 = vpop.permute.xlu0 %594
    %598 = vset.pattern.permute.xlu0 0
    %599 = vperm.xlu0 %598, %v385
    %v600 = vpop.permute.xlu0 %599
    %603 = vset.pattern.permute.xlu0 0
    %604 = vperm.xlu0 %603, %v386
    %v605 = vpop.permute.xlu0 %604
    %608 = vset.pattern.permute.xlu0 0
    %609 = vperm.xlu0 %608, %v387
    %v610 = vpop.permute.xlu0 %609
    %613 = vset.pattern.permute.xlu0 0
    %614 = vperm.xlu0 %613, %v388
    %v615 = vpop.permute.xlu0 %614
    %618 = vset.pattern.permute.xlu0 0
    %619 = vperm.xlu0 %618, %v389
    %v620 = vpop.permute.xlu0 %619
    %623 = vset.pattern.permute.xlu0 0
    %624 = vperm.xlu0 %623, %v390
    %v625 = vpop.permute.xlu0 %624
    %628 = vset.pattern.permute.xlu0 0
    %629 = vperm.xlu0 %628, %v391
    %v630 = vpop.permute.xlu0 %629
    %633 = vset.pattern.permute.xlu0 0
    %634 = vperm.xlu0 %633, %v392
    %v635 = vpop.permute.xlu0 %634
    %638 = vset.pattern.permute.xlu0 0
    %639 = vperm.xlu0 %638, %v393
    %v640 = vpop.permute.xlu0 %639
    %643 = vset.pattern.permute.xlu0 0
    %644 = vperm.xlu0 %643, %v394
    %v645 = vpop.permute.xlu0 %644
    %648 = vset.pattern.permute.xlu0 0
    %649 = vperm.xlu0 %648, %v395
    %v650 = vpop.permute.xlu0 %649
    %653 = vset.pattern.permute.xlu0 0
    %654 = vperm.xlu0 %653, %v396
    %v655 = vpop.permute.xlu0 %654
    %658 = vset.pattern.permute.xlu0 0
    %659 = vperm.xlu0 %658, %v397
    %v660 = vpop.permute.xlu0 %659
    %663 = vset.pattern.permute.xlu0 0
    %664 = vperm.xlu0 %663, %v398
    %v665 = vpop.permute.xlu0 %664
    %668 = vset.pattern.permute.xlu0 0
    %669 = vperm.xlu0 %668, %v399
    %v670 = vpop.permute.xlu0 %669
    %673 = vset.pattern.permute.xlu0 0
    %674 = vperm.xlu0 %673, %v400
    %v675 = vpop.permute.xlu0 %674
    %678 = vset.pattern.permute.xlu0 0
    %679 = vperm.xlu0 %678, %v401
    %v680 = vpop.permute.xlu0 %679
    %683 = vset.pattern.permute.xlu0 0
    %684 = vperm.xlu0 %683, %v402
    %v685 = vpop.permute.xlu0 %684
    %688 = vset.pattern.permute.xlu0 0
    %689 = vperm.xlu0 %688, %v403
    %v690 = vpop.permute.xlu0 %689
    %693 = vset.pattern.permute.xlu0 0
    %694 = vperm.xlu0 %693, %v404
    %v695 = vpop.permute.xlu0 %694
    %698 = vset.pattern.permute.xlu0 0
    %699 = vperm.xlu0 %698, %v405
    %v700 = vpop.permute.xlu0 %699
    %703 = vset.pattern.permute.xlu0 0
    %704 = vperm.xlu0 %703, %v406
    %v705 = vpop.permute.xlu0 %704
    %708 = vset.pattern.permute.xlu0 0
    %709 = vperm.xlu0 %708, %v407
    %v710 = vpop.permute.xlu0 %709
    %713 = vset.pattern.permute.xlu0 0
    %714 = vperm.xlu0 %713, %v408
    %v715 = vpop.permute.xlu0 %714
    %718 = vset.pattern.permute.xlu0 0
    %719 = vperm.xlu0 %718, %v409
    %v720 = vpop.permute.xlu0 %719
    %723 = vset.pattern.permute.xlu0 0
    %724 = vperm.xlu0 %723, %v410
    %v725 = vpop.permute.xlu0 %724
    %728 = vset.pattern.permute.xlu0 0
    %729 = vperm.xlu0 %728, %v411
    %v730 = vpop.permute.xlu0 %729
    %v732 = vmul.f32 %v284, %v415
    %v733 = vmul.f32 %v285, %v420
    %v734 = vmul.f32 %v286, %v425
    %v735 = vmul.f32 %v287, %v430
    %v736 = vmul.f32 %v288, %v435
    %v737 = vmul.f32 %v289, %v440
    %v738 = vmul.f32 %v290, %v445
    %v739 = vmul.f32 %v291, %v450
    %v740 = vmul.f32 %v292, %v455
    %v741 = vmul.f32 %v293, %v460
    %v742 = vmul.f32 %v294, %v465
    %v743 = vmul.f32 %v295, %v470
    %v744 = vmul.f32 %v296, %v475
    %v745 = vmul.f32 %v297, %v480
    %v746 = vmul.f32 %v298, %v485
    %v747 = vmul.f32 %v299, %v490
    %v748 = vmul.f32 %v300, %v495
    %v749 = vmul.f32 %v301, %v500
    %v750 = vmul.f32 %v302, %v505
    %v751 = vmul.f32 %v303, %v510
    %v752 = vmul.f32 %v304, %v515
    %v753 = vmul.f32 %v305, %v520
    %v754 = vmul.f32 %v306, %v525
    %v755 = vmul.f32 %v307, %v530
    %v756 = vmul.f32 %v308, %v535
    %v757 = vmul.f32 %v309, %v540
    %v758 = vmul.f32 %v310, %v545
    %v759 = vmul.f32 %v311, %v550
    %v760 = vmul.f32 %v312, %v555
    %v761 = vmul.f32 %v313, %v560
    %v762 = vmul.f32 %v314, %v565
    %v763 = vmul.f32 %v315, %v570
    %v764 = vmul.f32 %v316, %v575
    %v765 = vmul.f32 %v317, %v580
    %v766 = vmul.f32 %v318, %v585
    %v767 = vmul.f32 %v319, %v590
    %v768 = vmul.f32 %v320, %v595
    %v769 = vmul.f32 %v321, %v600
    %v770 = vmul.f32 %v322, %v605
    %v771 = vmul.f32 %v323, %v610
    %v772 = vmul.f32 %v324, %v615
    %v773 = vmul.f32 %v325, %v620
    %v774 = vmul.f32 %v326, %v625
    %v775 = vmul.f32 %v327, %v630
    %v776 = vmul.f32 %v328, %v635
    %v777 = vmul.f32 %v329, %v640
    %v778 = vmul.f32 %v330, %v645
    %v779 = vmul.f32 %v331, %v650
    %v780 = vmul.f32 %v332, %v655
    %v781 = vmul.f32 %v333, %v660
    %v782 = vmul.f32 %v334, %v665
    %v783 = vmul.f32 %v335, %v670
    %v784 = vmul.f32 %v336, %v675
    %v785 = vmul.f32 %v337, %v680
    %v786 = vmul.f32 %v338, %v685
    %v787 = vmul.f32 %v339, %v690
    %v788 = vmul.f32 %v340, %v695
    %v789 = vmul.f32 %v341, %v700
    %v790 = vmul.f32 %v342, %v705
    %v791 = vmul.f32 %v343, %v710
    %v792 = vmul.f32 %v344, %v715
    %v793 = vmul.f32 %v345, %v720
    %v794 = vmul.f32 %v346, %v725
    %v795 = vmul.f32 %v347, %v730
    %v796 = vpack.c.bf16 %v733, %v732
    %v797 = vpack.c.bf16 %v735, %v734
    %v798 = vpack.c.bf16 %v737, %v736
    %v799 = vpack.c.bf16 %v739, %v738
    %v800 = vpack.c.bf16 %v741, %v740
    %v801 = vpack.c.bf16 %v743, %v742
    %v802 = vpack.c.bf16 %v745, %v744
    %v803 = vpack.c.bf16 %v747, %v746
    %v804 = vpack.c.bf16 %v749, %v748
    %v805 = vpack.c.bf16 %v751, %v750
    %v806 = vpack.c.bf16 %v753, %v752
    %v807 = vpack.c.bf16 %v755, %v754
    %v808 = vpack.c.bf16 %v757, %v756
    %v809 = vpack.c.bf16 %v759, %v758
    %v810 = vpack.c.bf16 %v761, %v760
    %v811 = vpack.c.bf16 %v763, %v762
    %v812 = vpack.c.bf16 %v765, %v764
    %v813 = vpack.c.bf16 %v767, %v766
    %v814 = vpack.c.bf16 %v769, %v768
    %v815 = vpack.c.bf16 %v771, %v770
    %v816 = vpack.c.bf16 %v773, %v772
    %v817 = vpack.c.bf16 %v775, %v774
    %v818 = vpack.c.bf16 %v777, %v776
    %v819 = vpack.c.bf16 %v779, %v778
    %v820 = vpack.c.bf16 %v781, %v780
    %v821 = vpack.c.bf16 %v783, %v782
    %v822 = vpack.c.bf16 %v785, %v784
    %v823 = vpack.c.bf16 %v787, %v786
    %v824 = vpack.c.bf16 %v789, %v788
    %v825 = vpack.c.bf16 %v791, %v790
    %v826 = vpack.c.bf16 %v793, %v792
    %v827 = vpack.c.bf16 %v795, %v794
    %v828 = vld [vmem:[%s2] sm:$0xf]
    %v829 = vld [vmem:[%s2 + $0x4] sm:$0xf]
    %v830 = vld [vmem:[%s2 + $0x8] sm:$0xf]
    %v831 = vld [vmem:[%s2 + $0xc] sm:$0xf]
    %v832 = vld [vmem:[%s2 + $0x10] sm:$0xf]
    %v833 = vld [vmem:[%s2 + $0x14] sm:$0xf]
    %v834 = vld [vmem:[%s2 + $0x18] sm:$0xf]
    %v835 = vld [vmem:[%s2 + $0x1c] sm:$0xf]
    %v836 = vld [vmem:[%s2 + $0x20] sm:$0xf]
    %v837 = vld [vmem:[%s2 + $0x24] sm:$0xf]
    %v838 = vld [vmem:[%s2 + $0x28] sm:$0xf]
    %v839 = vld [vmem:[%s2 + $0x2c] sm:$0xf]
    %v840 = vld [vmem:[%s2 + $0x30] sm:$0xf]
    %v841 = vld [vmem:[%s2 + $0x34] sm:$0xf]
    %v842 = vld [vmem:[%s2 + $0x38] sm:$0xf]
    %v843 = vld [vmem:[%s2 + $0x3c] sm:$0xf]
    %v844 = vld [vmem:[#allocation2 + $0x8] sm:$0xff]
    %v845 = vld [vmem:[#allocation2 + $0x10] sm:$0xff]
    %v846 = vld [vmem:[#allocation2 + $0x18] sm:$0xff]
    %v847 = vld [vmem:[#allocation2 + $0x20] sm:$0xff]
    %v848 = vld [vmem:[#allocation2 + $0x28] sm:$0xff]
    %v849 = vld [vmem:[#allocation2 + $0x30] sm:$0xff]
    %v850 = vld [vmem:[#allocation2 + $0x38] sm:$0xff]
    %v851 = vld [vmem:[#allocation2 + $0x40] sm:$0xff]
    %v852 = vld [vmem:[#allocation2 + $0x48] sm:$0xff]
    %v853 = vld [vmem:[#allocation2 + $0x50] sm:$0xff]
    %v854 = vld [vmem:[#allocation2 + $0x58] sm:$0xff]
    %v855 = vld [vmem:[#allocation2 + $0x60] sm:$0xff]
    %v856 = vld [vmem:[#allocation2 + $0x68] sm:$0xff]
    %v857 = vld [vmem:[#allocation2 + $0x70] sm:$0xff]
    %v858 = vld [vmem:[#allocation2 + $0x78] sm:$0xff]
    %v859 = vld [vmem:[#allocation2 + $0x80] sm:$0xff]
    %v860 = vld [vmem:[#allocation2 + $0x88] sm:$0xff]
    %v861 = vld [vmem:[#allocation2 + $0x90] sm:$0xff]
    %v862 = vld [vmem:[#allocation2 + $0x98] sm:$0xff]
    %v863 = vld [vmem:[#allocation2 + $0xa0] sm:$0xff]
    %v864 = vld [vmem:[#allocation2 + $0xa8] sm:$0xff]
    %v865 = vld [vmem:[#allocation2 + $0xb0] sm:$0xff]
    %v866 = vld [vmem:[#allocation2 + $0xb8] sm:$0xff]
    %v867 = vld [vmem:[#allocation2 + $0xc0] sm:$0xff]
    %v868 = vld [vmem:[#allocation2 + $0xc8] sm:$0xff]
    %v869 = vld [vmem:[#allocation2 + $0xd0] sm:$0xff]
    %v870 = vld [vmem:[#allocation2 + $0xd8] sm:$0xff]
    %v871 = vld [vmem:[#allocation2 + $0xe0] sm:$0xff]
    %v872 = vld [vmem:[#allocation2 + $0xe8] sm:$0xff]
    %v873 = vld [vmem:[#allocation2 + $0xf0] sm:$0xff]
    %v874 = vld [vmem:[#allocation2 + $0xf8] sm:$0xff]
    %v875 = vld [vmem:[#allocation2 + $0x100] sm:$0xff]
    %v876 = vld [vmem:[#allocation2 + $0x108] sm:$0xff]
    %v877 = vld [vmem:[#allocation2 + $0x110] sm:$0xff]
    %v878 = vld [vmem:[#allocation2 + $0x118] sm:$0xff]
    %v879 = vld [vmem:[#allocation2 + $0x120] sm:$0xff]
    %v880 = vld [vmem:[#allocation2 + $0x128] sm:$0xff]
    %v881 = vld [vmem:[#allocation2 + $0x130] sm:$0xff]
    %v882 = vld [vmem:[#allocation2 + $0x138] sm:$0xff]
    %v883 = vld [vmem:[#allocation2 + $0x140] sm:$0xff]
    %v884 = vld [vmem:[#allocation2 + $0x148] sm:$0xff]
    %v885 = vld [vmem:[#allocation2 + $0x150] sm:$0xff]
    %v886 = vld [vmem:[#allocation2 + $0x158] sm:$0xff]
    %v887 = vld [vmem:[#allocation2 + $0x160] sm:$0xff]
    %v888 = vld [vmem:[#allocation2 + $0x168] sm:$0xff]
    %v889 = vld [vmem:[#allocation2 + $0x170] sm:$0xff]
    %v890 = vld [vmem:[#allocation2 + $0x178] sm:$0xff]
    %v891 = vld [vmem:[#allocation2 + $0x180] sm:$0xff]
    %v892 = vld [vmem:[#allocation2 + $0x188] sm:$0xff]
    %v893 = vld [vmem:[#allocation2 + $0x190] sm:$0xff]
    %v894 = vld [vmem:[#allocation2 + $0x198] sm:$0xff]
    %v895 = vld [vmem:[#allocation2 + $0x1a0] sm:$0xff]
    %v896 = vld [vmem:[#allocation2 + $0x1a8] sm:$0xff]
    %v897 = vld [vmem:[#allocation2 + $0x1b0] sm:$0xff]
    %v898 = vld [vmem:[#allocation2 + $0x1b8] sm:$0xff]
    %v899 = vld [vmem:[#allocation2 + $0x1c0] sm:$0xff]
    %v900 = vld [vmem:[#allocation2 + $0x1c8] sm:$0xff]
    %v901 = vld [vmem:[#allocation2 + $0x1d0] sm:$0xff]
    %v902 = vld [vmem:[#allocation2 + $0x1d8] sm:$0xff]
    %v903 = vld [vmem:[#allocation2 + $0x1e0] sm:$0xff]
    %v904 = vld [vmem:[#allocation2 + $0x1e8] sm:$0xff]
    %v905 = vld [vmem:[#allocation2 + $0x1f0] sm:$0xff]
    %v906 = vld [vmem:[#allocation2 + $0x1f8] sm:$0xff]
    %v907 = vld [vmem:[#allocation2 + $0x200] sm:$0xff]
    %s908 = scalar_lea.vmem %s1, 512
    %v909 = vld [vmem:[%s908] sm:$0xff]
    %v910 = vld [vmem:[%s908 + $0x8] sm:$0xff]
    %v911 = vld [vmem:[%s908 + $0x10] sm:$0xff]
    %v912 = vld [vmem:[%s908 + $0x18] sm:$0xff]
    %v913 = vld [vmem:[%s908 + $0x20] sm:$0xff]
    %v914 = vld [vmem:[%s908 + $0x28] sm:$0xff]
    %v915 = vld [vmem:[%s908 + $0x30] sm:$0xff]
    %v916 = vld [vmem:[%s908 + $0x38] sm:$0xff]
    %v917 = vld [vmem:[%s908 + $0x40] sm:$0xff]
    %v918 = vld [vmem:[%s908 + $0x48] sm:$0xff]
    %v919 = vld [vmem:[%s908 + $0x50] sm:$0xff]
    %v920 = vld [vmem:[%s908 + $0x58] sm:$0xff]
    %v921 = vld [vmem:[%s908 + $0x60] sm:$0xff]
    %v922 = vld [vmem:[%s908 + $0x68] sm:$0xff]
    %v923 = vld [vmem:[%s908 + $0x70] sm:$0xff]
    %v924 = vld [vmem:[%s908 + $0x78] sm:$0xff]
    %v925 = vld [vmem:[%s908 + $0x80] sm:$0xff]
    %v926 = vld [vmem:[%s908 + $0x88] sm:$0xff]
    %v927 = vld [vmem:[%s908 + $0x90] sm:$0xff]
    %v928 = vld [vmem:[%s908 + $0x98] sm:$0xff]
    %v929 = vld [vmem:[%s908 + $0xa0] sm:$0xff]
    %v930 = vld [vmem:[%s908 + $0xa8] sm:$0xff]
    %v931 = vld [vmem:[%s908 + $0xb0] sm:$0xff]
    %v932 = vld [vmem:[%s908 + $0xb8] sm:$0xff]
    %v933 = vld [vmem:[%s908 + $0xc0] sm:$0xff]
    %v934 = vld [vmem:[%s908 + $0xc8] sm:$0xff]
    %v935 = vld [vmem:[%s908 + $0xd0] sm:$0xff]
    %v936 = vld [vmem:[%s908 + $0xd8] sm:$0xff]
    %v937 = vld [vmem:[%s908 + $0xe0] sm:$0xff]
    %v938 = vld [vmem:[%s908 + $0xe8] sm:$0xff]
    %v939 = vld [vmem:[%s908 + $0xf0] sm:$0xff]
    %v940 = vld [vmem:[%s908 + $0xf8] sm:$0xff]
    %v941 = vld [vmem:[%s908 + $0x100] sm:$0xff]
    %v942 = vld [vmem:[%s908 + $0x108] sm:$0xff]
    %v943 = vld [vmem:[%s908 + $0x110] sm:$0xff]
    %v944 = vld [vmem:[%s908 + $0x118] sm:$0xff]
    %v945 = vld [vmem:[%s908 + $0x120] sm:$0xff]
    %v946 = vld [vmem:[%s908 + $0x128] sm:$0xff]
    %v947 = vld [vmem:[%s908 + $0x130] sm:$0xff]
    %v948 = vld [vmem:[%s908 + $0x138] sm:$0xff]
    %v949 = vld [vmem:[%s908 + $0x140] sm:$0xff]
    %v950 = vld [vmem:[%s908 + $0x148] sm:$0xff]
    %v951 = vld [vmem:[%s908 + $0x150] sm:$0xff]
    %v952 = vld [vmem:[%s908 + $0x158] sm:$0xff]
    %v953 = vld [vmem:[%s908 + $0x160] sm:$0xff]
    %v954 = vld [vmem:[%s908 + $0x168] sm:$0xff]
    %v955 = vld [vmem:[%s908 + $0x170] sm:$0xff]
    %v956 = vld [vmem:[%s908 + $0x178] sm:$0xff]
    %v957 = vld [vmem:[%s908 + $0x180] sm:$0xff]
    %v958 = vld [vmem:[%s908 + $0x188] sm:$0xff]
    %v959 = vld [vmem:[%s908 + $0x190] sm:$0xff]
    %v960 = vld [vmem:[%s908 + $0x198] sm:$0xff]
    %v961 = vld [vmem:[%s908 + $0x1a0] sm:$0xff]
    %v962 = vld [vmem:[%s908 + $0x1a8] sm:$0xff]
    %v963 = vld [vmem:[%s908 + $0x1b0] sm:$0xff]
    %v964 = vld [vmem:[%s908 + $0x1b8] sm:$0xff]
    %v965 = vld [vmem:[%s908 + $0x1c0] sm:$0xff]
    %v966 = vld [vmem:[%s908 + $0x1c8] sm:$0xff]
    %v967 = vld [vmem:[%s908 + $0x1d0] sm:$0xff]
    %v968 = vld [vmem:[%s908 + $0x1d8] sm:$0xff]
    %v969 = vld [vmem:[%s908 + $0x1e0] sm:$0xff]
    %v970 = vld [vmem:[%s908 + $0x1e8] sm:$0xff]
    %v971 = vld [vmem:[%s908 + $0x1f0] sm:$0xff]
    %v972 = vld [vmem:[%s908 + $0x1f8] sm:$0xff]
    %974 = vset.pattern.permute.xlu0 0
    %975 = vperm.xlu0 %974, %v909
    %v976 = vpop.permute.xlu0 %975
    %979 = vset.pattern.permute.xlu0 0
    %980 = vperm.xlu0 %979, %v910
    %v981 = vpop.permute.xlu0 %980
    %984 = vset.pattern.permute.xlu0 0
    %985 = vperm.xlu0 %984, %v911
    %v986 = vpop.permute.xlu0 %985
    %989 = vset.pattern.permute.xlu0 0
    %990 = vperm.xlu0 %989, %v912
    %v991 = vpop.permute.xlu0 %990
    %994 = vset.pattern.permute.xlu0 0
    %995 = vperm.xlu0 %994, %v913
    %v996 = vpop.permute.xlu0 %995
    %999 = vset.pattern.permute.xlu0 0
    %1000 = vperm.xlu0 %999, %v914
    %v1001 = vpop.permute.xlu0 %1000
    %1004 = vset.pattern.permute.xlu0 0
    %1005 = vperm.xlu0 %1004, %v915
    %v1006 = vpop.permute.xlu0 %1005
    %1009 = vset.pattern.permute.xlu0 0
    %1010 = vperm.xlu0 %1009, %v916
    %v1011 = vpop.permute.xlu0 %1010
    %1014 = vset.pattern.permute.xlu0 0
    %1015 = vperm.xlu0 %1014, %v917
    %v1016 = vpop.permute.xlu0 %1015
    %1019 = vset.pattern.permute.xlu0 0
    %1020 = vperm.xlu0 %1019, %v918
    %v1021 = vpop.permute.xlu0 %1020
    %1024 = vset.pattern.permute.xlu0 0
    %1025 = vperm.xlu0 %1024, %v919
    %v1026 = vpop.permute.xlu0 %1025
    %1029 = vset.pattern.permute.xlu0 0
    %1030 = vperm.xlu0 %1029, %v920
    %v1031 = vpop.permute.xlu0 %1030
    %1034 = vset.pattern.permute.xlu0 0
    %1035 = vperm.xlu0 %1034, %v921
    %v1036 = vpop.permute.xlu0 %1035
    %1039 = vset.pattern.permute.xlu0 0
    %1040 = vperm.xlu0 %1039, %v922
    %v1041 = vpop.permute.xlu0 %1040
    %1044 = vset.pattern.permute.xlu0 0
    %1045 = vperm.xlu0 %1044, %v923
    %v1046 = vpop.permute.xlu0 %1045
    %1049 = vset.pattern.permute.xlu0 0
    %1050 = vperm.xlu0 %1049, %v924
    %v1051 = vpop.permute.xlu0 %1050
    %1054 = vset.pattern.permute.xlu0 0
    %1055 = vperm.xlu0 %1054, %v925
    %v1056 = vpop.permute.xlu0 %1055
    %1059 = vset.pattern.permute.xlu0 0
    %1060 = vperm.xlu0 %1059, %v926
    %v1061 = vpop.permute.xlu0 %1060
    %1064 = vset.pattern.permute.xlu0 0
    %1065 = vperm.xlu0 %1064, %v927
    %v1066 = vpop.permute.xlu0 %1065
    %1069 = vset.pattern.permute.xlu0 0
    %1070 = vperm.xlu0 %1069, %v928
    %v1071 = vpop.permute.xlu0 %1070
    %1074 = vset.pattern.permute.xlu0 0
    %1075 = vperm.xlu0 %1074, %v929
    %v1076 = vpop.permute.xlu0 %1075
    %1079 = vset.pattern.permute.xlu0 0
    %1080 = vperm.xlu0 %1079, %v930
    %v1081 = vpop.permute.xlu0 %1080
    %1084 = vset.pattern.permute.xlu0 0
    %1085 = vperm.xlu0 %1084, %v931
    %v1086 = vpop.permute.xlu0 %1085
    %1089 = vset.pattern.permute.xlu0 0
    %1090 = vperm.xlu0 %1089, %v932
    %v1091 = vpop.permute.xlu0 %1090
    %1094 = vset.pattern.permute.xlu0 0
    %1095 = vperm.xlu0 %1094, %v933
    %v1096 = vpop.permute.xlu0 %1095
    %1099 = vset.pattern.permute.xlu0 0
    %1100 = vperm.xlu0 %1099, %v934
    %v1101 = vpop.permute.xlu0 %1100
    %1104 = vset.pattern.permute.xlu0 0
    %1105 = vperm.xlu0 %1104, %v935
    %v1106 = vpop.permute.xlu0 %1105
    %1109 = vset.pattern.permute.xlu0 0
    %1110 = vperm.xlu0 %1109, %v936
    %v1111 = vpop.permute.xlu0 %1110
    %1114 = vset.pattern.permute.xlu0 0
    %1115 = vperm.xlu0 %1114, %v937
    %v1116 = vpop.permute.xlu0 %1115
    %1119 = vset.pattern.permute.xlu0 0
    %1120 = vperm.xlu0 %1119, %v938
    %v1121 = vpop.permute.xlu0 %1120
    %1124 = vset.pattern.permute.xlu0 0
    %1125 = vperm.xlu0 %1124, %v939
    %v1126 = vpop.permute.xlu0 %1125
    %1129 = vset.pattern.permute.xlu0 0
    %1130 = vperm.xlu0 %1129, %v940
    %v1131 = vpop.permute.xlu0 %1130
    %1134 = vset.pattern.permute.xlu0 0
    %1135 = vperm.xlu0 %1134, %v941
    %v1136 = vpop.permute.xlu0 %1135
    %1139 = vset.pattern.permute.xlu0 0
    %1140 = vperm.xlu0 %1139, %v942
    %v1141 = vpop.permute.xlu0 %1140
    %1144 = vset.pattern.permute.xlu0 0
    %1145 = vperm.xlu0 %1144, %v943
    %v1146 = vpop.permute.xlu0 %1145
    %1149 = vset.pattern.permute.xlu0 0
    %1150 = vperm.xlu0 %1149, %v944
    %v1151 = vpop.permute.xlu0 %1150
    %1154 = vset.pattern.permute.xlu0 0
    %1155 = vperm.xlu0 %1154, %v945
    %v1156 = vpop.permute.xlu0 %1155
    %1159 = vset.pattern.permute.xlu0 0
    %1160 = vperm.xlu0 %1159, %v946
    %v1161 = vpop.permute.xlu0 %1160
    %1164 = vset.pattern.permute.xlu0 0
    %1165 = vperm.xlu0 %1164, %v947
    %v1166 = vpop.permute.xlu0 %1165
    %1169 = vset.pattern.permute.xlu0 0
    %1170 = vperm.xlu0 %1169, %v948
    %v1171 = vpop.permute.xlu0 %1170
    %1174 = vset.pattern.permute.xlu0 0
    %1175 = vperm.xlu0 %1174, %v949
    %v1176 = vpop.permute.xlu0 %1175
    %1179 = vset.pattern.permute.xlu0 0
    %1180 = vperm.xlu0 %1179, %v950
    %v1181 = vpop.permute.xlu0 %1180
    %1184 = vset.pattern.permute.xlu0 0
    %1185 = vperm.xlu0 %1184, %v951
    %v1186 = vpop.permute.xlu0 %1185
    %1189 = vset.pattern.permute.xlu0 0
    %1190 = vperm.xlu0 %1189, %v952
    %v1191 = vpop.permute.xlu0 %1190
    %1194 = vset.pattern.permute.xlu0 0
    %1195 = vperm.xlu0 %1194, %v953
    %v1196 = vpop.permute.xlu0 %1195
    %1199 = vset.pattern.permute.xlu0 0
    %1200 = vperm.xlu0 %1199, %v954
    %v1201 = vpop.permute.xlu0 %1200
    %1204 = vset.pattern.permute.xlu0 0
    %1205 = vperm.xlu0 %1204, %v955
    %v1206 = vpop.permute.xlu0 %1205
    %1209 = vset.pattern.permute.xlu0 0
    %1210 = vperm.xlu0 %1209, %v956
    %v1211 = vpop.permute.xlu0 %1210
    %1214 = vset.pattern.permute.xlu0 0
    %1215 = vperm.xlu0 %1214, %v957
    %v1216 = vpop.permute.xlu0 %1215
    %1219 = vset.pattern.permute.xlu0 0
    %1220 = vperm.xlu0 %1219, %v958
    %v1221 = vpop.permute.xlu0 %1220
    %1224 = vset.pattern.permute.xlu0 0
    %1225 = vperm.xlu0 %1224, %v959
    %v1226 = vpop.permute.xlu0 %1225
    %1229 = vset.pattern.permute.xlu0 0
    %1230 = vperm.xlu0 %1229, %v960
    %v1231 = vpop.permute.xlu0 %1230
    %1234 = vset.pattern.permute.xlu0 0
    %1235 = vperm.xlu0 %1234, %v961
    %v1236 = vpop.permute.xlu0 %1235
    %1239 = vset.pattern.permute.xlu0 0
    %1240 = vperm.xlu0 %1239, %v962
    %v1241 = vpop.permute.xlu0 %1240
    %1244 = vset.pattern.permute.xlu0 0
    %1245 = vperm.xlu0 %1244, %v963
    %v1246 = vpop.permute.xlu0 %1245
    %1249 = vset.pattern.permute.xlu0 0
    %1250 = vperm.xlu0 %1249, %v964
    %v1251 = vpop.permute.xlu0 %1250
    %1254 = vset.pattern.permute.xlu0 0
    %1255 = vperm.xlu0 %1254, %v965
    %v1256 = vpop.permute.xlu0 %1255
    %1259 = vset.pattern.permute.xlu0 0
    %1260 = vperm.xlu0 %1259, %v966
    %v1261 = vpop.permute.xlu0 %1260
    %1264 = vset.pattern.permute.xlu0 0
    %1265 = vperm.xlu0 %1264, %v967
    %v1266 = vpop.permute.xlu0 %1265
    %1269 = vset.pattern.permute.xlu0 0
    %1270 = vperm.xlu0 %1269, %v968
    %v1271 = vpop.permute.xlu0 %1270
    %1274 = vset.pattern.permute.xlu0 0
    %1275 = vperm.xlu0 %1274, %v969
    %v1276 = vpop.permute.xlu0 %1275
    %1279 = vset.pattern.permute.xlu0 0
    %1280 = vperm.xlu0 %1279, %v970
    %v1281 = vpop.permute.xlu0 %1280
    %1284 = vset.pattern.permute.xlu0 0
    %1285 = vperm.xlu0 %1284, %v971
    %v1286 = vpop.permute.xlu0 %1285
    %1289 = vset.pattern.permute.xlu0 0
    %1290 = vperm.xlu0 %1289, %v972
    %v1291 = vpop.permute.xlu0 %1290
    %v1293 = vmul.f32 %v844, %v976
    %v1294 = vmul.f32 %v845, %v981
    %v1295 = vmul.f32 %v846, %v986
    %v1296 = vmul.f32 %v847, %v991
    %v1297 = vmul.f32 %v848, %v996
    %v1298 = vmul.f32 %v849, %v1001
    %v1299 = vmul.f32 %v850, %v1006
    %v1300 = vmul.f32 %v851, %v1011
    %v1301 = vmul.f32 %v852, %v1016
    %v1302 = vmul.f32 %v853, %v1021
    %v1303 = vmul.f32 %v854, %v1026
    %v1304 = vmul.f32 %v855, %v1031
    %v1305 = vmul.f32 %v856, %v1036
    %v1306 = vmul.f32 %v857, %v1041
    %v1307 = vmul.f32 %v858, %v1046
    %v1308 = vmul.f32 %v859, %v1051
    %v1309 = vmul.f32 %v860, %v1056
    %v1310 = vmul.f32 %v861, %v1061
    %v1311 = vmul.f32 %v862, %v1066
    %v1312 = vmul.f32 %v863, %v1071
    %v1313 = vmul.f32 %v864, %v1076
    %v1314 = vmul.f32 %v865, %v1081
    %v1315 = vmul.f32 %v866, %v1086
    %v1316 = vmul.f32 %v867, %v1091
    %v1317 = vmul.f32 %v868, %v1096
    %v1318 = vmul.f32 %v869, %v1101
    %v1319 = vmul.f32 %v870, %v1106
    %v1320 = vmul.f32 %v871, %v1111
    %v1321 = vmul.f32 %v872, %v1116
    %v1322 = vmul.f32 %v873, %v1121
    %v1323 = vmul.f32 %v874, %v1126
    %v1324 = vmul.f32 %v875, %v1131
    %v1325 = vmul.f32 %v876, %v1136
    %v1326 = vmul.f32 %v877, %v1141
    %v1327 = vmul.f32 %v878, %v1146
    %v1328 = vmul.f32 %v879, %v1151
    %v1329 = vmul.f32 %v880, %v1156
    %v1330 = vmul.f32 %v881, %v1161
    %v1331 = vmul.f32 %v882, %v1166
    %v1332 = vmul.f32 %v883, %v1171
    %v1333 = vmul.f32 %v884, %v1176
    %v1334 = vmul.f32 %v885, %v1181
    %v1335 = vmul.f32 %v886, %v1186
    %v1336 = vmul.f32 %v887, %v1191
    %v1337 = vmul.f32 %v888, %v1196
    %v1338 = vmul.f32 %v889, %v1201
    %v1339 = vmul.f32 %v890, %v1206
    %v1340 = vmul.f32 %v891, %v1211
    %v1341 = vmul.f32 %v892, %v1216
    %v1342 = vmul.f32 %v893, %v1221
    %v1343 = vmul.f32 %v894, %v1226
    %v1344 = vmul.f32 %v895, %v1231
    %v1345 = vmul.f32 %v896, %v1236
    %v1346 = vmul.f32 %v897, %v1241
    %v1347 = vmul.f32 %v898, %v1246
    %v1348 = vmul.f32 %v899, %v1251
    %v1349 = vmul.f32 %v900, %v1256
    %v1350 = vmul.f32 %v901, %v1261
    %v1351 = vmul.f32 %v902, %v1266
    %v1352 = vmul.f32 %v903, %v1271
    %v1353 = vmul.f32 %v904, %v1276
    %v1354 = vmul.f32 %v905, %v1281
    %v1355 = vmul.f32 %v906, %v1286
    %v1356 = vmul.f32 %v907, %v1291
    %v1357 = vpack.c.bf16 %v1294, %v1293
    %v1358 = vpack.c.bf16 %v1296, %v1295
    %v1359 = vpack.c.bf16 %v1298, %v1297
    %v1360 = vpack.c.bf16 %v1300, %v1299
    %v1361 = vpack.c.bf16 %v1302, %v1301
    %v1362 = vpack.c.bf16 %v1304, %v1303
    %v1363 = vpack.c.bf16 %v1306, %v1305
    %v1364 = vpack.c.bf16 %v1308, %v1307
    %v1365 = vpack.c.bf16 %v1310, %v1309
    %v1366 = vpack.c.bf16 %v1312, %v1311
    %v1367 = vpack.c.bf16 %v1314, %v1313
    %v1368 = vpack.c.bf16 %v1316, %v1315
    %v1369 = vpack.c.bf16 %v1318, %v1317
    %v1370 = vpack.c.bf16 %v1320, %v1319
    %v1371 = vpack.c.bf16 %v1322, %v1321
    %v1372 = vpack.c.bf16 %v1324, %v1323
    %v1373 = vpack.c.bf16 %v1326, %v1325
    %v1374 = vpack.c.bf16 %v1328, %v1327
    %v1375 = vpack.c.bf16 %v1330, %v1329
    %v1376 = vpack.c.bf16 %v1332, %v1331
    %v1377 = vpack.c.bf16 %v1334, %v1333
    %v1378 = vpack.c.bf16 %v1336, %v1335
    %v1379 = vpack.c.bf16 %v1338, %v1337
    %v1380 = vpack.c.bf16 %v1340, %v1339
    %v1381 = vpack.c.bf16 %v1342, %v1341
    %v1382 = vpack.c.bf16 %v1344, %v1343
    %v1383 = vpack.c.bf16 %v1346, %v1345
    %v1384 = vpack.c.bf16 %v1348, %v1347
    %v1385 = vpack.c.bf16 %v1350, %v1349
    %v1386 = vpack.c.bf16 %v1352, %v1351
    %v1387 = vpack.c.bf16 %v1354, %v1353
    %v1388 = vpack.c.bf16 %v1356, %v1355
    %s1389 = scalar_lea.vmem %s2, 64
    %v1390 = vld [vmem:[%s1389] sm:$0xf]
    %v1391 = vld [vmem:[%s1389 + $0x4] sm:$0xf]
    %v1392 = vld [vmem:[%s1389 + $0x8] sm:$0xf]
    %v1393 = vld [vmem:[%s1389 + $0xc] sm:$0xf]
    %v1394 = vld [vmem:[%s1389 + $0x10] sm:$0xf]
    %v1395 = vld [vmem:[%s1389 + $0x14] sm:$0xf]
    %v1396 = vld [vmem:[%s1389 + $0x18] sm:$0xf]
    %v1397 = vld [vmem:[%s1389 + $0x1c] sm:$0xf]
    %v1398 = vld [vmem:[%s1389 + $0x20] sm:$0xf]
    %v1399 = vld [vmem:[%s1389 + $0x24] sm:$0xf]
    %v1400 = vld [vmem:[%s1389 + $0x28] sm:$0xf]
    %v1401 = vld [vmem:[%s1389 + $0x2c] sm:$0xf]
    %v1402 = vld [vmem:[%s1389 + $0x30] sm:$0xf]
    %v1403 = vld [vmem:[%s1389 + $0x34] sm:$0xf]
    %v1404 = vld [vmem:[%s1389 + $0x38] sm:$0xf]
    %v1405 = vld [vmem:[%s1389 + $0x3c] sm:$0xf]
    %v1422 = vunpack.c.l.b16 %v1390
    %v1423 = vunpack.c.l.b16 %v1391
    %v1424 = vunpack.c.l.b16 %v1392
    %v1425 = vunpack.c.l.b16 %v1393
    %v1426 = vunpack.c.l.b16 %v1394
    %v1427 = vunpack.c.l.b16 %v1395
    %v1428 = vunpack.c.l.b16 %v1396
    %v1429 = vunpack.c.l.b16 %v1397
    %v1430 = vunpack.c.l.b16 %v1398
    %v1431 = vunpack.c.l.b16 %v1399
    %v1432 = vunpack.c.l.b16 %v1400
    %v1433 = vunpack.c.l.b16 %v1401
    %v1434 = vunpack.c.l.b16 %v1402
    %v1435 = vunpack.c.l.b16 %v1403
    %v1436 = vunpack.c.l.b16 %v1404
    %v1437 = vunpack.c.l.b16 %v1405
    %v1438 = vpack.c.b16 %v1423, %v1422
    %v1439 = vpack.c.b16 %v1425, %v1424
    %v1440 = vpack.c.b16 %v1427, %v1426
    %v1441 = vpack.c.b16 %v1429, %v1428
    %v1442 = vpack.c.b16 %v1431, %v1430
    %v1443 = vpack.c.b16 %v1433, %v1432
    %v1444 = vpack.c.b16 %v1435, %v1434
    %v1445 = vpack.c.b16 %v1437, %v1436
    %1454 = vmatprep.subr.bf16.mxu0 0
    %1455 = vmatpush1.bf16.msra.mxu0 %v1445
    %1456 = vmatprep.subr.bf16.mxu0 0
    %1457 = vmatpush1.bf16.msra.mxu0 %v1444
    %1458 = vmatprep.subr.bf16.mxu0 0
    %1459 = vmatpush1.bf16.msra.mxu0 %v1443
    %1460 = vmatprep.subr.bf16.mxu0 0
    %1461 = vmatpush1.bf16.msra.mxu0 %v1442
    %1462 = vmatprep.subr.bf16.mxu0 0
    %1463 = vmatpush1.bf16.msra.mxu0 %v1441
    %1464 = vmatprep.subr.bf16.mxu0 0
    %1465 = vmatpush1.bf16.msra.mxu0 %v1440
    %1466 = vmatprep.subr.bf16.mxu0 0
    %1467 = vmatpush1.bf16.msra.mxu0 %v1439
    %1468 = vmatprep.subr.bf16.mxu0 0
    %1469 = vmatpush1.bf16.msra.mxu0 %v1438
    %1470 = vmatprep.subr.bf16.mxu0 0
    %1471 = vmatpush2.bf16.msra.mxu0 0
    %1472 = vmatprep.subr.bf16.mxu0 0
    %1473 = vmatpush2.bf16.msra.mxu0 0
    %1474 = vmatprep.subr.bf16.mxu0 0
    %1475 = vmatpush2.bf16.msra.mxu0 0
    %1476 = vmatprep.subr.bf16.mxu0 0
    %1477 = vmatpush2.bf16.msra.mxu0 0
    %1478 = vmatprep.subr.bf16.mxu0 0
    %1479 = vmatpush2.bf16.msra.mxu0 0
    %1480 = vmatprep.subr.bf16.mxu0 0
    %1481 = vmatpush2.bf16.msra.mxu0 0
    %1482 = vmatprep.subr.bf16.mxu0 0
    %1483 = vmatpush2.bf16.msra.mxu0 0
    %1484 = vmatprep.subr.bf16.mxu0 0
    %1485 = vmatpush2.bf16.msra.mxu0 0
    %1486 = vmatprep.mubr.bf16.mxu0 0
    %1487 = vmatmul.mubr.bf16.gmra.mxu0 %v1357
    %v1488 = vpop.f32.mrf.mxu0
    %v1489 = vadd.f32 0.0, %v1488
    %v1490 = vpop.f32.mrf.mxu0
    %v1491 = vpop.f32.mrf.mxu0
    %v1492 = vadd.f32 0.0, %v1491
    %v1493 = vpop.f32.mrf.mxu0
    %1494 = vmatprep.mubr.bf16.mxu0 0
    %1495 = vmatmul.mubr.bf16.gmra.mxu0 %v1358
    %v1496 = vpop.f32.mrf.mxu0
    %v1497 = vadd.f32 0.0, %v1496
    %v1498 = vpop.f32.mrf.mxu0
    %v1499 = vpop.f32.mrf.mxu0
    %v1500 = vadd.f32 0.0, %v1499
    %v1501 = vpop.f32.mrf.mxu0
    %1502 = vmatprep.mubr.bf16.mxu0 0
    %1503 = vmatmul.mubr.bf16.gmra.mxu0 %v1359
    %v1504 = vpop.f32.mrf.mxu0
    %v1505 = vadd.f32 0.0, %v1504
    %v1506 = vpop.f32.mrf.mxu0
    %v1507 = vpop.f32.mrf.mxu0
    %v1508 = vadd.f32 0.0, %v1507
    %v1509 = vpop.f32.mrf.mxu0
    %1510 = vmatprep.mubr.bf16.mxu0 0
    %1511 = vmatmul.mubr.bf16.gmra.mxu0 %v1360
    %v1512 = vpop.f32.mrf.mxu0
    %v1513 = vadd.f32 0.0, %v1512
    %v1514 = vpop.f32.mrf.mxu0
    %v1515 = vpop.f32.mrf.mxu0
    %v1516 = vadd.f32 0.0, %v1515
    %v1517 = vpop.f32.mrf.mxu0
    %1518 = vmatprep.mubr.bf16.mxu0 0
    %1519 = vmatmul.mubr.bf16.gmra.mxu0 %v1361
    %v1520 = vpop.f32.mrf.mxu0
    %v1521 = vadd.f32 0.0, %v1520
    %v1522 = vpop.f32.mrf.mxu0
    %v1523 = vpop.f32.mrf.mxu0
    %v1524 = vadd.f32 0.0, %v1523
    %v1525 = vpop.f32.mrf.mxu0
    %1526 = vmatprep.mubr.bf16.mxu0 0
    %1527 = vmatmul.mubr.bf16.gmra.mxu0 %v1362
    %v1528 = vpop.f32.mrf.mxu0
    %v1529 = vadd.f32 0.0, %v1528
    %v1530 = vpop.f32.mrf.mxu0
    %v1531 = vpop.f32.mrf.mxu0
    %v1532 = vadd.f32 0.0, %v1531
    %v1533 = vpop.f32.mrf.mxu0
    %1534 = vmatprep.mubr.bf16.mxu0 0
    %1535 = vmatmul.mubr.bf16.gmra.mxu0 %v1363
    %v1536 = vpop.f32.mrf.mxu0
    %v1537 = vadd.f32 0.0, %v1536
    %v1538 = vpop.f32.mrf.mxu0
    %v1539 = vpop.f32.mrf.mxu0
    %v1540 = vadd.f32 0.0, %v1539
    %v1541 = vpop.f32.mrf.mxu0
    %1542 = vmatprep.mubr.bf16.mxu0 0
    %1543 = vmatmul.mubr.bf16.gmra.mxu0 %v1364
    %v1544 = vpop.f32.mrf.mxu0
    %v1545 = vadd.f32 0.0, %v1544
    %v1546 = vpop.f32.mrf.mxu0
    %v1547 = vpop.f32.mrf.mxu0
    %v1548 = vadd.f32 0.0, %v1547
    %v1549 = vpop.f32.mrf.mxu0
    %1550 = vmatprep.mubr.bf16.mxu0 0
    %1551 = vmatmul.mubr.bf16.gmra.mxu0 %v1365
    %v1552 = vpop.f32.mrf.mxu0
    %v1553 = vadd.f32 0.0, %v1552
    %v1554 = vpop.f32.mrf.mxu0
    %v1555 = vpop.f32.mrf.mxu0
    %v1556 = vadd.f32 0.0, %v1555
    %v1557 = vpop.f32.mrf.mxu0
    %1558 = vmatprep.mubr.bf16.mxu0 0
    %1559 = vmatmul.mubr.bf16.gmra.mxu0 %v1366
    %v1560 = vpop.f32.mrf.mxu0
    %v1561 = vadd.f32 0.0, %v1560
    %v1562 = vpop.f32.mrf.mxu0
    %v1563 = vpop.f32.mrf.mxu0
    %v1564 = vadd.f32 0.0, %v1563
    %v1565 = vpop.f32.mrf.mxu0
    %1566 = vmatprep.mubr.bf16.mxu0 0
    %1567 = vmatmul.mubr.bf16.gmra.mxu0 %v1367
    %v1568 = vpop.f32.mrf.mxu0
    %v1569 = vadd.f32 0.0, %v1568
    %v1570 = vpop.f32.mrf.mxu0
    %v1571 = vpop.f32.mrf.mxu0
    %v1572 = vadd.f32 0.0, %v1571
    %v1573 = vpop.f32.mrf.mxu0
    %1574 = vmatprep.mubr.bf16.mxu0 0
    %1575 = vmatmul.mubr.bf16.gmra.mxu0 %v1368
    %v1576 = vpop.f32.mrf.mxu0
    %v1577 = vadd.f32 0.0, %v1576
    %v1578 = vpop.f32.mrf.mxu0
    %v1579 = vpop.f32.mrf.mxu0
    %v1580 = vadd.f32 0.0, %v1579
    %v1581 = vpop.f32.mrf.mxu0
    %1582 = vmatprep.mubr.bf16.mxu0 0
    %1583 = vmatmul.mubr.bf16.gmra.mxu0 %v1369
    %v1584 = vpop.f32.mrf.mxu0
    %v1585 = vadd.f32 0.0, %v1584
    %v1586 = vpop.f32.mrf.mxu0
    %v1587 = vpop.f32.mrf.mxu0
    %v1588 = vadd.f32 0.0, %v1587
    %v1589 = vpop.f32.mrf.mxu0
    %1590 = vmatprep.mubr.bf16.mxu0 0
    %1591 = vmatmul.mubr.bf16.gmra.mxu0 %v1370
    %v1592 = vpop.f32.mrf.mxu0
    %v1593 = vadd.f32 0.0, %v1592
    %v1594 = vpop.f32.mrf.mxu0
    %v1595 = vpop.f32.mrf.mxu0
    %v1596 = vadd.f32 0.0, %v1595
    %v1597 = vpop.f32.mrf.mxu0
    %1598 = vmatprep.mubr.bf16.mxu0 0
    %1599 = vmatmul.mubr.bf16.gmra.mxu0 %v1371
    %v1600 = vpop.f32.mrf.mxu0
    %v1601 = vadd.f32 0.0, %v1600
    %v1602 = vpop.f32.mrf.mxu0
    %v1603 = vpop.f32.mrf.mxu0
    %v1604 = vadd.f32 0.0, %v1603
    %v1605 = vpop.f32.mrf.mxu0
    %1606 = vmatprep.mubr.bf16.mxu0 0
    %1607 = vmatmul.mubr.bf16.gmra.mxu0 %v1372
    %v1608 = vpop.f32.mrf.mxu0
    %v1609 = vadd.f32 0.0, %v1608
    %v1610 = vpop.f32.mrf.mxu0
    %v1611 = vpop.f32.mrf.mxu0
    %v1612 = vadd.f32 0.0, %v1611
    %v1613 = vpop.f32.mrf.mxu0
    %1614 = vmatprep.mubr.bf16.mxu0 0
    %1615 = vmatmul.mubr.bf16.gmra.mxu0 %v1373
    %v1616 = vpop.f32.mrf.mxu0
    %v1617 = vadd.f32 0.0, %v1616
    %v1618 = vpop.f32.mrf.mxu0
    %v1619 = vpop.f32.mrf.mxu0
    %v1620 = vadd.f32 0.0, %v1619
    %v1621 = vpop.f32.mrf.mxu0
    %1622 = vmatprep.mubr.bf16.mxu0 0
    %1623 = vmatmul.mubr.bf16.gmra.mxu0 %v1374
    %v1624 = vpop.f32.mrf.mxu0
    %v1625 = vadd.f32 0.0, %v1624
    %v1626 = vpop.f32.mrf.mxu0
    %v1627 = vpop.f32.mrf.mxu0
    %v1628 = vadd.f32 0.0, %v1627
    %v1629 = vpop.f32.mrf.mxu0
    %1630 = vmatprep.mubr.bf16.mxu0 0
    %1631 = vmatmul.mubr.bf16.gmra.mxu0 %v1375
    %v1632 = vpop.f32.mrf.mxu0
    %v1633 = vadd.f32 0.0, %v1632
    %v1634 = vpop.f32.mrf.mxu0
    %v1635 = vpop.f32.mrf.mxu0
    %v1636 = vadd.f32 0.0, %v1635
    %v1637 = vpop.f32.mrf.mxu0
    %1638 = vmatprep.mubr.bf16.mxu0 0
    %1639 = vmatmul.mubr.bf16.gmra.mxu0 %v1376
    %v1640 = vpop.f32.mrf.mxu0
    %v1641 = vadd.f32 0.0, %v1640
    %v1642 = vpop.f32.mrf.mxu0
    %v1643 = vpop.f32.mrf.mxu0
    %v1644 = vadd.f32 0.0, %v1643
    %v1645 = vpop.f32.mrf.mxu0
    %1646 = vmatprep.mubr.bf16.mxu0 0
    %1647 = vmatmul.mubr.bf16.gmra.mxu0 %v1377
    %v1648 = vpop.f32.mrf.mxu0
    %v1649 = vadd.f32 0.0, %v1648
    %v1650 = vpop.f32.mrf.mxu0
    %v1651 = vpop.f32.mrf.mxu0
    %v1652 = vadd.f32 0.0, %v1651
    %v1653 = vpop.f32.mrf.mxu0
    %1654 = vmatprep.mubr.bf16.mxu0 0
    %1655 = vmatmul.mubr.bf16.gmra.mxu0 %v1378
    %v1656 = vpop.f32.mrf.mxu0
    %v1657 = vadd.f32 0.0, %v1656
    %v1658 = vpop.f32.mrf.mxu0
    %v1659 = vpop.f32.mrf.mxu0
    %v1660 = vadd.f32 0.0, %v1659
    %v1661 = vpop.f32.mrf.mxu0
    %1662 = vmatprep.mubr.bf16.mxu0 0
    %1663 = vmatmul.mubr.bf16.gmra.mxu0 %v1379
    %v1664 = vpop.f32.mrf.mxu0
    %v1665 = vadd.f32 0.0, %v1664
    %v1666 = vpop.f32.mrf.mxu0
    %v1667 = vpop.f32.mrf.mxu0
    %v1668 = vadd.f32 0.0, %v1667
    %v1669 = vpop.f32.mrf.mxu0
    %1670 = vmatprep.mubr.bf16.mxu0 0
    %1671 = vmatmul.mubr.bf16.gmra.mxu0 %v1380
    %v1672 = vpop.f32.mrf.mxu0
    %v1673 = vadd.f32 0.0, %v1672
    %v1674 = vpop.f32.mrf.mxu0
    %v1675 = vpop.f32.mrf.mxu0
    %v1676 = vadd.f32 0.0, %v1675
    %v1677 = vpop.f32.mrf.mxu0
    %1678 = vmatprep.mubr.bf16.mxu0 0
    %1679 = vmatmul.mubr.bf16.gmra.mxu0 %v1381
    %v1680 = vpop.f32.mrf.mxu0
    %v1681 = vadd.f32 0.0, %v1680
    %v1682 = vpop.f32.mrf.mxu0
    %v1683 = vpop.f32.mrf.mxu0
    %v1684 = vadd.f32 0.0, %v1683
    %v1685 = vpop.f32.mrf.mxu0
    %1686 = vmatprep.mubr.bf16.mxu0 0
    %1687 = vmatmul.mubr.bf16.gmra.mxu0 %v1382
    %v1688 = vpop.f32.mrf.mxu0
    %v1689 = vadd.f32 0.0, %v1688
    %v1690 = vpop.f32.mrf.mxu0
    %v1691 = vpop.f32.mrf.mxu0
    %v1692 = vadd.f32 0.0, %v1691
    %v1693 = vpop.f32.mrf.mxu0
    %1694 = vmatprep.mubr.bf16.mxu0 0
    %1695 = vmatmul.mubr.bf16.gmra.mxu0 %v1383
    %v1696 = vpop.f32.mrf.mxu0
    %v1697 = vadd.f32 0.0, %v1696
    %v1698 = vpop.f32.mrf.mxu0
    %v1699 = vpop.f32.mrf.mxu0
    %v1700 = vadd.f32 0.0, %v1699
    %v1701 = vpop.f32.mrf.mxu0
    %1702 = vmatprep.mubr.bf16.mxu0 0
    %1703 = vmatmul.mubr.bf16.gmra.mxu0 %v1384
    %v1704 = vpop.f32.mrf.mxu0
    %v1705 = vadd.f32 0.0, %v1704
    %v1706 = vpop.f32.mrf.mxu0
    %v1707 = vpop.f32.mrf.mxu0
    %v1708 = vadd.f32 0.0, %v1707
    %v1709 = vpop.f32.mrf.mxu0
    %1710 = vmatprep.mubr.bf16.mxu0 0
    %1711 = vmatmul.mubr.bf16.gmra.mxu0 %v1385
    %v1712 = vpop.f32.mrf.mxu0
    %v1713 = vadd.f32 0.0, %v1712
    %v1714 = vpop.f32.mrf.mxu0
    %v1715 = vpop.f32.mrf.mxu0
    %v1716 = vadd.f32 0.0, %v1715
    %v1717 = vpop.f32.mrf.mxu0
    %1718 = vmatprep.mubr.bf16.mxu0 0
    %1719 = vmatmul.mubr.bf16.gmra.mxu0 %v1386
    %v1720 = vpop.f32.mrf.mxu0
    %v1721 = vadd.f32 0.0, %v1720
    %v1722 = vpop.f32.mrf.mxu0
    %v1723 = vpop.f32.mrf.mxu0
    %v1724 = vadd.f32 0.0, %v1723
    %v1725 = vpop.f32.mrf.mxu0
    %1726 = vmatprep.mubr.bf16.mxu0 0
    %1727 = vmatmul.mubr.bf16.gmra.mxu0 %v1387
    %v1728 = vpop.f32.mrf.mxu0
    %v1729 = vadd.f32 0.0, %v1728
    %v1730 = vpop.f32.mrf.mxu0
    %v1731 = vpop.f32.mrf.mxu0
    %v1732 = vadd.f32 0.0, %v1731
    %v1733 = vpop.f32.mrf.mxu0
    %1734 = vmatprep.mubr.bf16.mxu0 0
    %1735 = vmatmul.mubr.bf16.gmra.mxu0 %v1388
    %v1736 = vpop.f32.mrf.mxu0
    %v1737 = vadd.f32 0.0, %v1736
    %v1738 = vpop.f32.mrf.mxu0
    %v1739 = vpop.f32.mrf.mxu0
    %v1740 = vadd.f32 0.0, %v1739
    %v1741 = vpop.f32.mrf.mxu0
    %1742 = vdwg.mxu0
    %v1759 = vunpack.c.l.b16 %v828
    %v1760 = vunpack.c.l.b16 %v829
    %v1761 = vunpack.c.l.b16 %v830
    %v1762 = vunpack.c.l.b16 %v831
    %v1763 = vunpack.c.l.b16 %v832
    %v1764 = vunpack.c.l.b16 %v833
    %v1765 = vunpack.c.l.b16 %v834
    %v1766 = vunpack.c.l.b16 %v835
    %v1767 = vunpack.c.l.b16 %v836
    %v1768 = vunpack.c.l.b16 %v837
    %v1769 = vunpack.c.l.b16 %v838
    %v1770 = vunpack.c.l.b16 %v839
    %v1771 = vunpack.c.l.b16 %v840
    %v1772 = vunpack.c.l.b16 %v841
    %v1773 = vunpack.c.l.b16 %v842
    %v1774 = vunpack.c.l.b16 %v843
    %v1775 = vpack.c.b16 %v1760, %v1759
    %v1776 = vpack.c.b16 %v1762, %v1761
    %v1777 = vpack.c.b16 %v1764, %v1763
    %v1778 = vpack.c.b16 %v1766, %v1765
    %v1779 = vpack.c.b16 %v1768, %v1767
    %v1780 = vpack.c.b16 %v1770, %v1769
    %v1781 = vpack.c.b16 %v1772, %v1771
    %v1782 = vpack.c.b16 %v1774, %v1773
    %1791 = vmatprep.subr.bf16.mxu0 0
    %1792 = vmatpush1.bf16.msra.mxu0 %v1782
    %1793 = vmatprep.subr.bf16.mxu0 0
    %1794 = vmatpush1.bf16.msra.mxu0 %v1781
    %1795 = vmatprep.subr.bf16.mxu0 0
    %1796 = vmatpush1.bf16.msra.mxu0 %v1780
    %1797 = vmatprep.subr.bf16.mxu0 0
    %1798 = vmatpush1.bf16.msra.mxu0 %v1779
    %1799 = vmatprep.subr.bf16.mxu0 0
    %1800 = vmatpush1.bf16.msra.mxu0 %v1778
    %1801 = vmatprep.subr.bf16.mxu0 0
    %1802 = vmatpush1.bf16.msra.mxu0 %v1777
    %1803 = vmatprep.subr.bf16.mxu0 0
    %1804 = vmatpush1.bf16.msra.mxu0 %v1776
    %1805 = vmatprep.subr.bf16.mxu0 0
    %1806 = vmatpush1.bf16.msra.mxu0 %v1775
    %1807 = vmatprep.subr.bf16.mxu0 0
    %1808 = vmatpush2.bf16.msra.mxu0 0
    %1809 = vmatprep.subr.bf16.mxu0 0
    %1810 = vmatpush2.bf16.msra.mxu0 0
    %1811 = vmatprep.subr.bf16.mxu0 0
    %1812 = vmatpush2.bf16.msra.mxu0 0
    %1813 = vmatprep.subr.bf16.mxu0 0
    %1814 = vmatpush2.bf16.msra.mxu0 0
    %1815 = vmatprep.subr.bf16.mxu0 0
    %1816 = vmatpush2.bf16.msra.mxu0 0
    %1817 = vmatprep.subr.bf16.mxu0 0
    %1818 = vmatpush2.bf16.msra.mxu0 0
    %1819 = vmatprep.subr.bf16.mxu0 0
    %1820 = vmatpush2.bf16.msra.mxu0 0
    %1821 = vmatprep.subr.bf16.mxu0 0
    %1822 = vmatpush2.bf16.msra.mxu0 0
    %1823 = vmatprep.mubr.bf16.mxu0 0
    %1824 = vmatmul.mubr.bf16.gmra.mxu0 %v796
    %v1825 = vpop.f32.mrf.mxu0
    %v1826 = vadd.f32 %v1489, %v1825
    %v1827 = vpop.f32.mrf.mxu0
    %v1828 = vpop.f32.mrf.mxu0
    %v1829 = vadd.f32 %v1492, %v1828
    %v1830 = vpop.f32.mrf.mxu0
    %1831 = vmatprep.mubr.bf16.mxu0 0
    %1832 = vmatmul.mubr.bf16.gmra.mxu0 %v797
    %v1833 = vpop.f32.mrf.mxu0
    %v1834 = vadd.f32 %v1497, %v1833
    %v1835 = vpop.f32.mrf.mxu0
    %v1836 = vpop.f32.mrf.mxu0
    %v1837 = vadd.f32 %v1500, %v1836
    %v1838 = vpop.f32.mrf.mxu0
    %1839 = vmatprep.mubr.bf16.mxu0 0
    %1840 = vmatmul.mubr.bf16.gmra.mxu0 %v798
    %v1841 = vpop.f32.mrf.mxu0
    %v1842 = vadd.f32 %v1505, %v1841
    %v1843 = vpop.f32.mrf.mxu0
    %v1844 = vpop.f32.mrf.mxu0
    %v1845 = vadd.f32 %v1508, %v1844
    %v1846 = vpop.f32.mrf.mxu0
    %1847 = vmatprep.mubr.bf16.mxu0 0
    %1848 = vmatmul.mubr.bf16.gmra.mxu0 %v799
    %v1849 = vpop.f32.mrf.mxu0
    %v1850 = vadd.f32 %v1513, %v1849
    %v1851 = vpop.f32.mrf.mxu0
    %v1852 = vpop.f32.mrf.mxu0
    %v1853 = vadd.f32 %v1516, %v1852
    %v1854 = vpop.f32.mrf.mxu0
    %1855 = vmatprep.mubr.bf16.mxu0 0
    %1856 = vmatmul.mubr.bf16.gmra.mxu0 %v800
    %v1857 = vpop.f32.mrf.mxu0
    %v1858 = vadd.f32 %v1521, %v1857
    %v1859 = vpop.f32.mrf.mxu0
    %v1860 = vpop.f32.mrf.mxu0
    %v1861 = vadd.f32 %v1524, %v1860
    %v1862 = vpop.f32.mrf.mxu0
    %1863 = vmatprep.mubr.bf16.mxu0 0
    %1864 = vmatmul.mubr.bf16.gmra.mxu0 %v801
    %v1865 = vpop.f32.mrf.mxu0
    %v1866 = vadd.f32 %v1529, %v1865
    %v1867 = vpop.f32.mrf.mxu0
    %v1868 = vpop.f32.mrf.mxu0
    %v1869 = vadd.f32 %v1532, %v1868
    %v1870 = vpop.f32.mrf.mxu0
    %1871 = vmatprep.mubr.bf16.mxu0 0
    %1872 = vmatmul.mubr.bf16.gmra.mxu0 %v802
    %v1873 = vpop.f32.mrf.mxu0
    %v1874 = vadd.f32 %v1537, %v1873
    %v1875 = vpop.f32.mrf.mxu0
    %v1876 = vpop.f32.mrf.mxu0
    %v1877 = vadd.f32 %v1540, %v1876
    %v1878 = vpop.f32.mrf.mxu0
    %1879 = vmatprep.mubr.bf16.mxu0 0
    %1880 = vmatmul.mubr.bf16.gmra.mxu0 %v803
    %v1881 = vpop.f32.mrf.mxu0
    %v1882 = vadd.f32 %v1545, %v1881
    %v1883 = vpop.f32.mrf.mxu0
    %v1884 = vpop.f32.mrf.mxu0
    %v1885 = vadd.f32 %v1548, %v1884
    %v1886 = vpop.f32.mrf.mxu0
    %1887 = vmatprep.mubr.bf16.mxu0 0
    %1888 = vmatmul.mubr.bf16.gmra.mxu0 %v804
    %v1889 = vpop.f32.mrf.mxu0
    %v1890 = vadd.f32 %v1553, %v1889
    %v1891 = vpop.f32.mrf.mxu0
    %v1892 = vpop.f32.mrf.mxu0
    %v1893 = vadd.f32 %v1556, %v1892
    %v1894 = vpop.f32.mrf.mxu0
    %1895 = vmatprep.mubr.bf16.mxu0 0
    %1896 = vmatmul.mubr.bf16.gmra.mxu0 %v805
    %v1897 = vpop.f32.mrf.mxu0
    %v1898 = vadd.f32 %v1561, %v1897
    %v1899 = vpop.f32.mrf.mxu0
    %v1900 = vpop.f32.mrf.mxu0
    %v1901 = vadd.f32 %v1564, %v1900
    %v1902 = vpop.f32.mrf.mxu0
    %1903 = vmatprep.mubr.bf16.mxu0 0
    %1904 = vmatmul.mubr.bf16.gmra.mxu0 %v806
    %v1905 = vpop.f32.mrf.mxu0
    %v1906 = vadd.f32 %v1569, %v1905
    %v1907 = vpop.f32.mrf.mxu0
    %v1908 = vpop.f32.mrf.mxu0
    %v1909 = vadd.f32 %v1572, %v1908
    %v1910 = vpop.f32.mrf.mxu0
    %1911 = vmatprep.mubr.bf16.mxu0 0
    %1912 = vmatmul.mubr.bf16.gmra.mxu0 %v807
    %v1913 = vpop.f32.mrf.mxu0
    %v1914 = vadd.f32 %v1577, %v1913
    %v1915 = vpop.f32.mrf.mxu0
    %v1916 = vpop.f32.mrf.mxu0
    %v1917 = vadd.f32 %v1580, %v1916
    %v1918 = vpop.f32.mrf.mxu0
    %1919 = vmatprep.mubr.bf16.mxu0 0
    %1920 = vmatmul.mubr.bf16.gmra.mxu0 %v808
    %v1921 = vpop.f32.mrf.mxu0
    %v1922 = vadd.f32 %v1585, %v1921
    %v1923 = vpop.f32.mrf.mxu0
    %v1924 = vpop.f32.mrf.mxu0
    %v1925 = vadd.f32 %v1588, %v1924
    %v1926 = vpop.f32.mrf.mxu0
    %1927 = vmatprep.mubr.bf16.mxu0 0
    %1928 = vmatmul.mubr.bf16.gmra.mxu0 %v809
    %v1929 = vpop.f32.mrf.mxu0
    %v1930 = vadd.f32 %v1593, %v1929
    %v1931 = vpop.f32.mrf.mxu0
    %v1932 = vpop.f32.mrf.mxu0
    %v1933 = vadd.f32 %v1596, %v1932
    %v1934 = vpop.f32.mrf.mxu0
    %1935 = vmatprep.mubr.bf16.mxu0 0
    %1936 = vmatmul.mubr.bf16.gmra.mxu0 %v810
    %v1937 = vpop.f32.mrf.mxu0
    %v1938 = vadd.f32 %v1601, %v1937
    %v1939 = vpop.f32.mrf.mxu0
    %v1940 = vpop.f32.mrf.mxu0
    %v1941 = vadd.f32 %v1604, %v1940
    %v1942 = vpop.f32.mrf.mxu0
    %1943 = vmatprep.mubr.bf16.mxu0 0
    %1944 = vmatmul.mubr.bf16.gmra.mxu0 %v811
    %v1945 = vpop.f32.mrf.mxu0
    %v1946 = vadd.f32 %v1609, %v1945
    %v1947 = vpop.f32.mrf.mxu0
    %v1948 = vpop.f32.mrf.mxu0
    %v1949 = vadd.f32 %v1612, %v1948
    %v1950 = vpop.f32.mrf.mxu0
    %1951 = vmatprep.mubr.bf16.mxu0 0
    %1952 = vmatmul.mubr.bf16.gmra.mxu0 %v812
    %v1953 = vpop.f32.mrf.mxu0
    %v1954 = vadd.f32 %v1617, %v1953
    %v1955 = vpop.f32.mrf.mxu0
    %v1956 = vpop.f32.mrf.mxu0
    %v1957 = vadd.f32 %v1620, %v1956
    %v1958 = vpop.f32.mrf.mxu0
    %1959 = vmatprep.mubr.bf16.mxu0 0
    %1960 = vmatmul.mubr.bf16.gmra.mxu0 %v813
    %v1961 = vpop.f32.mrf.mxu0
    %v1962 = vadd.f32 %v1625, %v1961
    %v1963 = vpop.f32.mrf.mxu0
    %v1964 = vpop.f32.mrf.mxu0
    %v1965 = vadd.f32 %v1628, %v1964
    %v1966 = vpop.f32.mrf.mxu0
    %1967 = vmatprep.mubr.bf16.mxu0 0
    %1968 = vmatmul.mubr.bf16.gmra.mxu0 %v814
    %v1969 = vpop.f32.mrf.mxu0
    %v1970 = vadd.f32 %v1633, %v1969
    %v1971 = vpop.f32.mrf.mxu0
    %v1972 = vpop.f32.mrf.mxu0
    %v1973 = vadd.f32 %v1636, %v1972
    %v1974 = vpop.f32.mrf.mxu0
    %1975 = vmatprep.mubr.bf16.mxu0 0
    %1976 = vmatmul.mubr.bf16.gmra.mxu0 %v815
    %v1977 = vpop.f32.mrf.mxu0
    %v1978 = vadd.f32 %v1641, %v1977
    %v1979 = vpop.f32.mrf.mxu0
    %v1980 = vpop.f32.mrf.mxu0
    %v1981 = vadd.f32 %v1644, %v1980
    %v1982 = vpop.f32.mrf.mxu0
    %1983 = vmatprep.mubr.bf16.mxu0 0
    %1984 = vmatmul.mubr.bf16.gmra.mxu0 %v816
    %v1985 = vpop.f32.mrf.mxu0
    %v1986 = vadd.f32 %v1649, %v1985
    %v1987 = vpop.f32.mrf.mxu0
    %v1988 = vpop.f32.mrf.mxu0
    %v1989 = vadd.f32 %v1652, %v1988
    %v1990 = vpop.f32.mrf.mxu0
    %1991 = vmatprep.mubr.bf16.mxu0 0
    %1992 = vmatmul.mubr.bf16.gmra.mxu0 %v817
    %v1993 = vpop.f32.mrf.mxu0
    %v1994 = vadd.f32 %v1657, %v1993
    %v1995 = vpop.f32.mrf.mxu0
    %v1996 = vpop.f32.mrf.mxu0
    %v1997 = vadd.f32 %v1660, %v1996
    %v1998 = vpop.f32.mrf.mxu0
    %1999 = vmatprep.mubr.bf16.mxu0 0
    %2000 = vmatmul.mubr.bf16.gmra.mxu0 %v818
    %v2001 = vpop.f32.mrf.mxu0
    %v2002 = vadd.f32 %v1665, %v2001
    %v2003 = vpop.f32.mrf.mxu0
    %v2004 = vpop.f32.mrf.mxu0
    %v2005 = vadd.f32 %v1668, %v2004
    %v2006 = vpop.f32.mrf.mxu0
    %2007 = vmatprep.mubr.bf16.mxu0 0
    %2008 = vmatmul.mubr.bf16.gmra.mxu0 %v819
    %v2009 = vpop.f32.mrf.mxu0
    %v2010 = vadd.f32 %v1673, %v2009
    %v2011 = vpop.f32.mrf.mxu0
    %v2012 = vpop.f32.mrf.mxu0
    %v2013 = vadd.f32 %v1676, %v2012
    %v2014 = vpop.f32.mrf.mxu0
    %2015 = vmatprep.mubr.bf16.mxu0 0
    %2016 = vmatmul.mubr.bf16.gmra.mxu0 %v820
    %v2017 = vpop.f32.mrf.mxu0
    %v2018 = vadd.f32 %v1681, %v2017
    %v2019 = vpop.f32.mrf.mxu0
    %v2020 = vpop.f32.mrf.mxu0
    %v2021 = vadd.f32 %v1684, %v2020
    %v2022 = vpop.f32.mrf.mxu0
    %2023 = vmatprep.mubr.bf16.mxu0 0
    %2024 = vmatmul.mubr.bf16.gmra.mxu0 %v821
    %v2025 = vpop.f32.mrf.mxu0
    %v2026 = vadd.f32 %v1689, %v2025
    %v2027 = vpop.f32.mrf.mxu0
    %v2028 = vpop.f32.mrf.mxu0
    %v2029 = vadd.f32 %v1692, %v2028
    %v2030 = vpop.f32.mrf.mxu0
    %2031 = vmatprep.mubr.bf16.mxu0 0
    %2032 = vmatmul.mubr.bf16.gmra.mxu0 %v822
    %v2033 = vpop.f32.mrf.mxu0
    %v2034 = vadd.f32 %v1697, %v2033
    %v2035 = vpop.f32.mrf.mxu0
    %v2036 = vpop.f32.mrf.mxu0
    %v2037 = vadd.f32 %v1700, %v2036
    %v2038 = vpop.f32.mrf.mxu0
    %2039 = vmatprep.mubr.bf16.mxu0 0
    %2040 = vmatmul.mubr.bf16.gmra.mxu0 %v823
    %v2041 = vpop.f32.mrf.mxu0
    %v2042 = vadd.f32 %v1705, %v2041
    %v2043 = vpop.f32.mrf.mxu0
    %v2044 = vpop.f32.mrf.mxu0
    %v2045 = vadd.f32 %v1708, %v2044
    %v2046 = vpop.f32.mrf.mxu0
    %2047 = vmatprep.mubr.bf16.mxu0 0
    %2048 = vmatmul.mubr.bf16.gmra.mxu0 %v824
    %v2049 = vpop.f32.mrf.mxu0
    %v2050 = vadd.f32 %v1713, %v2049
    %v2051 = vpop.f32.mrf.mxu0
    %v2052 = vpop.f32.mrf.mxu0
    %v2053 = vadd.f32 %v1716, %v2052
    %v2054 = vpop.f32.mrf.mxu0
    %2055 = vmatprep.mubr.bf16.mxu0 0
    %2056 = vmatmul.mubr.bf16.gmra.mxu0 %v825
    %v2057 = vpop.f32.mrf.mxu0
    %v2058 = vadd.f32 %v1721, %v2057
    %v2059 = vpop.f32.mrf.mxu0
    %v2060 = vpop.f32.mrf.mxu0
    %v2061 = vadd.f32 %v1724, %v2060
    %v2062 = vpop.f32.mrf.mxu0
    %2063 = vmatprep.mubr.bf16.mxu0 0
    %2064 = vmatmul.mubr.bf16.gmra.mxu0 %v826
    %v2065 = vpop.f32.mrf.mxu0
    %v2066 = vadd.f32 %v1729, %v2065
    %v2067 = vpop.f32.mrf.mxu0
    %v2068 = vpop.f32.mrf.mxu0
    %v2069 = vadd.f32 %v1732, %v2068
    %v2070 = vpop.f32.mrf.mxu0
    %2071 = vmatprep.mubr.bf16.mxu0 0
    %2072 = vmatmul.mubr.bf16.gmra.mxu0 %v827
    %v2073 = vpop.f32.mrf.mxu0
    %v2074 = vadd.f32 %v1737, %v2073
    %v2075 = vpop.f32.mrf.mxu0
    %v2076 = vpop.f32.mrf.mxu0
    %v2077 = vadd.f32 %v1740, %v2076
    %v2078 = vpop.f32.mrf.mxu0
    %2079 = vdwg.mxu0
    %v2080 = vld [vmem:[#allocation2 + $0x9] sm:$0xff]
    %v2081 = vld [vmem:[#allocation2 + $0x11] sm:$0xff]
    %v2082 = vld [vmem:[#allocation2 + $0x19] sm:$0xff]
    %v2083 = vld [vmem:[#allocation2 + $0x21] sm:$0xff]
    %v2084 = vld [vmem:[#allocation2 + $0x29] sm:$0xff]
    %v2085 = vld [vmem:[#allocation2 + $0x31] sm:$0xff]
    %v2086 = vld [vmem:[#allocation2 + $0x39] sm:$0xff]
    %v2087 = vld [vmem:[#allocation2 + $0x41] sm:$0xff]
    %v2088 = vld [vmem:[#allocation2 + $0x49] sm:$0xff]
    %v2089 = vld [vmem:[#allocation2 + $0x51] sm:$0xff]
    %v2090 = vld [vmem:[#allocation2 + $0x59] sm:$0xff]
    %v2091 = vld [vmem:[#allocation2 + $0x61] sm:$0xff]
    %v2092 = vld [vmem:[#allocation2 + $0x69] sm:$0xff]
    %v2093 = vld [vmem:[#allocation2 + $0x71] sm:$0xff]
    %v2094 = vld [vmem:[#allocation2 + $0x79] sm:$0xff]
    %v2095 = vld [vmem:[#allocation2 + $0x81] sm:$0xff]
    %v2096 = vld [vmem:[#allocation2 + $0x89] sm:$0xff]
    %v2097 = vld [vmem:[#allocation2 + $0x91] sm:$0xff]
    %v2098 = vld [vmem:[#allocation2 + $0x99] sm:$0xff]
    %v2099 = vld [vmem:[#allocation2 + $0xa1] sm:$0xff]
    %v2100 = vld [vmem:[#allocation2 + $0xa9] sm:$0xff]
    %v2101 = vld [vmem:[#allocation2 + $0xb1] sm:$0xff]
    %v2102 = vld [vmem:[#allocation2 + $0xb9] sm:$0xff]
    %v2103 = vld [vmem:[#allocation2 + $0xc1] sm:$0xff]
    %v2104 = vld [vmem:[#allocation2 + $0xc9] sm:$0xff]
    %v2105 = vld [vmem:[#allocation2 + $0xd1] sm:$0xff]
    %v2106 = vld [vmem:[#allocation2 + $0xd9] sm:$0xff]
    %v2107 = vld [vmem:[#allocation2 + $0xe1] sm:$0xff]
    %v2108 = vld [vmem:[#allocation2 + $0xe9] sm:$0xff]
    %v2109 = vld [vmem:[#allocation2 + $0xf1] sm:$0xff]
    %v2110 = vld [vmem:[#allocation2 + $0xf9] sm:$0xff]
    %v2111 = vld [vmem:[#allocation2 + $0x101] sm:$0xff]
    %v2112 = vld [vmem:[#allocation2 + $0x109] sm:$0xff]
    %v2113 = vld [vmem:[#allocation2 + $0x111] sm:$0xff]
    %v2114 = vld [vmem:[#allocation2 + $0x119] sm:$0xff]
    %v2115 = vld [vmem:[#allocation2 + $0x121] sm:$0xff]
    %v2116 = vld [vmem:[#allocation2 + $0x129] sm:$0xff]
    %v2117 = vld [vmem:[#allocation2 + $0x131] sm:$0xff]
    %v2118 = vld [vmem:[#allocation2 + $0x139] sm:$0xff]
    %v2119 = vld [vmem:[#allocation2 + $0x141] sm:$0xff]
    %v2120 = vld [vmem:[#allocation2 + $0x149] sm:$0xff]
    %v2121 = vld [vmem:[#allocation2 + $0x151] sm:$0xff]
    %v2122 = vld [vmem:[#allocation2 + $0x159] sm:$0xff]
    %v2123 = vld [vmem:[#allocation2 + $0x161] sm:$0xff]
    %v2124 = vld [vmem:[#allocation2 + $0x169] sm:$0xff]
    %v2125 = vld [vmem:[#allocation2 + $0x171] sm:$0xff]
    %v2126 = vld [vmem:[#allocation2 + $0x179] sm:$0xff]
    %v2127 = vld [vmem:[#allocation2 + $0x181] sm:$0xff]
    %v2128 = vld [vmem:[#allocation2 + $0x189] sm:$0xff]
    %v2129 = vld [vmem:[#allocation2 + $0x191] sm:$0xff]
    %v2130 = vld [vmem:[#allocation2 + $0x199] sm:$0xff]
    %v2131 = vld [vmem:[#allocation2 + $0x1a1] sm:$0xff]
    %v2132 = vld [vmem:[#allocation2 + $0x1a9] sm:$0xff]
    %v2133 = vld [vmem:[#allocation2 + $0x1b1] sm:$0xff]
    %v2134 = vld [vmem:[#allocation2 + $0x1b9] sm:$0xff]
    %v2135 = vld [vmem:[#allocation2 + $0x1c1] sm:$0xff]
    %v2136 = vld [vmem:[#allocation2 + $0x1c9] sm:$0xff]
    %v2137 = vld [vmem:[#allocation2 + $0x1d1] sm:$0xff]
    %v2138 = vld [vmem:[#allocation2 + $0x1d9] sm:$0xff]
    %v2139 = vld [vmem:[#allocation2 + $0x1e1] sm:$0xff]
    %v2140 = vld [vmem:[#allocation2 + $0x1e9] sm:$0xff]
    %v2141 = vld [vmem:[#allocation2 + $0x1f1] sm:$0xff]
    %v2142 = vld [vmem:[#allocation2 + $0x1f9] sm:$0xff]
    %v2143 = vld [vmem:[#allocation2 + $0x201] sm:$0xff]
    %s2144 = scalar_lea.vmem %s1, 1024
    %v2145 = vld [vmem:[%s2144] sm:$0xff]
    %v2146 = vld [vmem:[%s2144 + $0x8] sm:$0xff]
    %v2147 = vld [vmem:[%s2144 + $0x10] sm:$0xff]
    %v2148 = vld [vmem:[%s2144 + $0x18] sm:$0xff]
    %v2149 = vld [vmem:[%s2144 + $0x20] sm:$0xff]
    %v2150 = vld [vmem:[%s2144 + $0x28] sm:$0xff]
    %v2151 = vld [vmem:[%s2144 + $0x30] sm:$0xff]
    %v2152 = vld [vmem:[%s2144 + $0x38] sm:$0xff]
    %v2153 = vld [vmem:[%s2144 + $0x40] sm:$0xff]
    %v2154 = vld [vmem:[%s2144 + $0x48] sm:$0xff]
    %v2155 = vld [vmem:[%s2144 + $0x50] sm:$0xff]
    %v2156 = vld [vmem:[%s2144 + $0x58] sm:$0xff]
    %v2157 = vld [vmem:[%s2144 + $0x60] sm:$0xff]
    %v2158 = vld [vmem:[%s2144 + $0x68] sm:$0xff]
    %v2159 = vld [vmem:[%s2144 + $0x70] sm:$0xff]
    %v2160 = vld [vmem:[%s2144 + $0x78] sm:$0xff]
    %v2161 = vld [vmem:[%s2144 + $0x80] sm:$0xff]
    %v2162 = vld [vmem:[%s2144 + $0x88] sm:$0xff]
    %v2163 = vld [vmem:[%s2144 + $0x90] sm:$0xff]
    %v2164 = vld [vmem:[%s2144 + $0x98] sm:$0xff]
    %v2165 = vld [vmem:[%s2144 + $0xa0] sm:$0xff]
    %v2166 = vld [vmem:[%s2144 + $0xa8] sm:$0xff]
    %v2167 = vld [vmem:[%s2144 + $0xb0] sm:$0xff]
    %v2168 = vld [vmem:[%s2144 + $0xb8] sm:$0xff]
    %v2169 = vld [vmem:[%s2144 + $0xc0] sm:$0xff]
    %v2170 = vld [vmem:[%s2144 + $0xc8] sm:$0xff]
    %v2171 = vld [vmem:[%s2144 + $0xd0] sm:$0xff]
    %v2172 = vld [vmem:[%s2144 + $0xd8] sm:$0xff]
    %v2173 = vld [vmem:[%s2144 + $0xe0] sm:$0xff]
    %v2174 = vld [vmem:[%s2144 + $0xe8] sm:$0xff]
    %v2175 = vld [vmem:[%s2144 + $0xf0] sm:$0xff]
    %v2176 = vld [vmem:[%s2144 + $0xf8] sm:$0xff]
    %v2177 = vld [vmem:[%s2144 + $0x100] sm:$0xff]
    %v2178 = vld [vmem:[%s2144 + $0x108] sm:$0xff]
    %v2179 = vld [vmem:[%s2144 + $0x110] sm:$0xff]
    %v2180 = vld [vmem:[%s2144 + $0x118] sm:$0xff]
    %v2181 = vld [vmem:[%s2144 + $0x120] sm:$0xff]
    %v2182 = vld [vmem:[%s2144 + $0x128] sm:$0xff]
    %v2183 = vld [vmem:[%s2144 + $0x130] sm:$0xff]
    %v2184 = vld [vmem:[%s2144 + $0x138] sm:$0xff]
    %v2185 = vld [vmem:[%s2144 + $0x140] sm:$0xff]
    %v2186 = vld [vmem:[%s2144 + $0x148] sm:$0xff]
    %v2187 = vld [vmem:[%s2144 + $0x150] sm:$0xff]
    %v2188 = vld [vmem:[%s2144 + $0x158] sm:$0xff]
    %v2189 = vld [vmem:[%s2144 + $0x160] sm:$0xff]
    %v2190 = vld [vmem:[%s2144 + $0x168] sm:$0xff]
    %v2191 = vld [vmem:[%s2144 + $0x170] sm:$0xff]
    %v2192 = vld [vmem:[%s2144 + $0x178] sm:$0xff]
    %v2193 = vld [vmem:[%s2144 + $0x180] sm:$0xff]
    %v2194 = vld [vmem:[%s2144 + $0x188] sm:$0xff]
    %v2195 = vld [vmem:[%s2144 + $0x190] sm:$0xff]
    %v2196 = vld [vmem:[%s2144 + $0x198] sm:$0xff]
    %v2197 = vld [vmem:[%s2144 + $0x1a0] sm:$0xff]
    %v2198 = vld [vmem:[%s2144 + $0x1a8] sm:$0xff]
    %v2199 = vld [vmem:[%s2144 + $0x1b0] sm:$0xff]
    %v2200 = vld [vmem:[%s2144 + $0x1b8] sm:$0xff]
    %v2201 = vld [vmem:[%s2144 + $0x1c0] sm:$0xff]
    %v2202 = vld [vmem:[%s2144 + $0x1c8] sm:$0xff]
    %v2203 = vld [vmem:[%s2144 + $0x1d0] sm:$0xff]
    %v2204 = vld [vmem:[%s2144 + $0x1d8] sm:$0xff]
    %v2205 = vld [vmem:[%s2144 + $0x1e0] sm:$0xff]
    %v2206 = vld [vmem:[%s2144 + $0x1e8] sm:$0xff]
    %v2207 = vld [vmem:[%s2144 + $0x1f0] sm:$0xff]
    %v2208 = vld [vmem:[%s2144 + $0x1f8] sm:$0xff]
    %2210 = vset.pattern.permute.xlu0 0
    %2211 = vperm.xlu0 %2210, %v2145
    %v2212 = vpop.permute.xlu0 %2211
    %2215 = vset.pattern.permute.xlu0 0
    %2216 = vperm.xlu0 %2215, %v2146
    %v2217 = vpop.permute.xlu0 %2216
    %2220 = vset.pattern.permute.xlu0 0
    %2221 = vperm.xlu0 %2220, %v2147
    %v2222 = vpop.permute.xlu0 %2221
    %2225 = vset.pattern.permute.xlu0 0
    %2226 = vperm.xlu0 %2225, %v2148
    %v2227 = vpop.permute.xlu0 %2226
    %2230 = vset.pattern.permute.xlu0 0
    %2231 = vperm.xlu0 %2230, %v2149
    %v2232 = vpop.permute.xlu0 %2231
    %2235 = vset.pattern.permute.xlu0 0
    %2236 = vperm.xlu0 %2235, %v2150
    %v2237 = vpop.permute.xlu0 %2236
    %2240 = vset.pattern.permute.xlu0 0
    %2241 = vperm.xlu0 %2240, %v2151
    %v2242 = vpop.permute.xlu0 %2241
    %2245 = vset.pattern.permute.xlu0 0
    %2246 = vperm.xlu0 %2245, %v2152
    %v2247 = vpop.permute.xlu0 %2246
    %2250 = vset.pattern.permute.xlu0 0
    %2251 = vperm.xlu0 %2250, %v2153
    %v2252 = vpop.permute.xlu0 %2251
    %2255 = vset.pattern.permute.xlu0 0
    %2256 = vperm.xlu0 %2255, %v2154
    %v2257 = vpop.permute.xlu0 %2256
    %2260 = vset.pattern.permute.xlu0 0
    %2261 = vperm.xlu0 %2260, %v2155
    %v2262 = vpop.permute.xlu0 %2261
    %2265 = vset.pattern.permute.xlu0 0
    %2266 = vperm.xlu0 %2265, %v2156
    %v2267 = vpop.permute.xlu0 %2266
    %2270 = vset.pattern.permute.xlu0 0
    %2271 = vperm.xlu0 %2270, %v2157
    %v2272 = vpop.permute.xlu0 %2271
    %2275 = vset.pattern.permute.xlu0 0
    %2276 = vperm.xlu0 %2275, %v2158
    %v2277 = vpop.permute.xlu0 %2276
    %2280 = vset.pattern.permute.xlu0 0
    %2281 = vperm.xlu0 %2280, %v2159
    %v2282 = vpop.permute.xlu0 %2281
    %2285 = vset.pattern.permute.xlu0 0
    %2286 = vperm.xlu0 %2285, %v2160
    %v2287 = vpop.permute.xlu0 %2286
    %2290 = vset.pattern.permute.xlu0 0
    %2291 = vperm.xlu0 %2290, %v2161
    %v2292 = vpop.permute.xlu0 %2291
    %2295 = vset.pattern.permute.xlu0 0
    %2296 = vperm.xlu0 %2295, %v2162
    %v2297 = vpop.permute.xlu0 %2296
    %2300 = vset.pattern.permute.xlu0 0
    %2301 = vperm.xlu0 %2300, %v2163
    %v2302 = vpop.permute.xlu0 %2301
    %2305 = vset.pattern.permute.xlu0 0
    %2306 = vperm.xlu0 %2305, %v2164
    %v2307 = vpop.permute.xlu0 %2306
    %2310 = vset.pattern.permute.xlu0 0
    %2311 = vperm.xlu0 %2310, %v2165
    %v2312 = vpop.permute.xlu0 %2311
    %2315 = vset.pattern.permute.xlu0 0
    %2316 = vperm.xlu0 %2315, %v2166
    %v2317 = vpop.permute.xlu0 %2316
    %2320 = vset.pattern.permute.xlu0 0
    %2321 = vperm.xlu0 %2320, %v2167
    %v2322 = vpop.permute.xlu0 %2321
    %2325 = vset.pattern.permute.xlu0 0
    %2326 = vperm.xlu0 %2325, %v2168
    %v2327 = vpop.permute.xlu0 %2326
    %2330 = vset.pattern.permute.xlu0 0
    %2331 = vperm.xlu0 %2330, %v2169
    %v2332 = vpop.permute.xlu0 %2331
    %2335 = vset.pattern.permute.xlu0 0
    %2336 = vperm.xlu0 %2335, %v2170
    %v2337 = vpop.permute.xlu0 %2336
    %2340 = vset.pattern.permute.xlu0 0
    %2341 = vperm.xlu0 %2340, %v2171
    %v2342 = vpop.permute.xlu0 %2341
    %2345 = vset.pattern.permute.xlu0 0
    %2346 = vperm.xlu0 %2345, %v2172
    %v2347 = vpop.permute.xlu0 %2346
    %2350 = vset.pattern.permute.xlu0 0
    %2351 = vperm.xlu0 %2350, %v2173
    %v2352 = vpop.permute.xlu0 %2351
    %2355 = vset.pattern.permute.xlu0 0
    %2356 = vperm.xlu0 %2355, %v2174
    %v2357 = vpop.permute.xlu0 %2356
    %2360 = vset.pattern.permute.xlu0 0
    %2361 = vperm.xlu0 %2360, %v2175
    %v2362 = vpop.permute.xlu0 %2361
    %2365 = vset.pattern.permute.xlu0 0
    %2366 = vperm.xlu0 %2365, %v2176
    %v2367 = vpop.permute.xlu0 %2366
    %2370 = vset.pattern.permute.xlu0 0
    %2371 = vperm.xlu0 %2370, %v2177
    %v2372 = vpop.permute.xlu0 %2371
    %2375 = vset.pattern.permute.xlu0 0
    %2376 = vperm.xlu0 %2375, %v2178
    %v2377 = vpop.permute.xlu0 %2376
    %2380 = vset.pattern.permute.xlu0 0
    %2381 = vperm.xlu0 %2380, %v2179
    %v2382 = vpop.permute.xlu0 %2381
    %2385 = vset.pattern.permute.xlu0 0
    %2386 = vperm.xlu0 %2385, %v2180
    %v2387 = vpop.permute.xlu0 %2386
    %2390 = vset.pattern.permute.xlu0 0
    %2391 = vperm.xlu0 %2390, %v2181
    %v2392 = vpop.permute.xlu0 %2391
    %2395 = vset.pattern.permute.xlu0 0
    %2396 = vperm.xlu0 %2395, %v2182
    %v2397 = vpop.permute.xlu0 %2396
    %2400 = vset.pattern.permute.xlu0 0
    %2401 = vperm.xlu0 %2400, %v2183
    %v2402 = vpop.permute.xlu0 %2401
    %2405 = vset.pattern.permute.xlu0 0
    %2406 = vperm.xlu0 %2405, %v2184
    %v2407 = vpop.permute.xlu0 %2406
    %2410 = vset.pattern.permute.xlu0 0
    %2411 = vperm.xlu0 %2410, %v2185
    %v2412 = vpop.permute.xlu0 %2411
    %2415 = vset.pattern.permute.xlu0 0
    %2416 = vperm.xlu0 %2415, %v2186
    %v2417 = vpop.permute.xlu0 %2416
    %2420 = vset.pattern.permute.xlu0 0
    %2421 = vperm.xlu0 %2420, %v2187
    %v2422 = vpop.permute.xlu0 %2421
    %2425 = vset.pattern.permute.xlu0 0
    %2426 = vperm.xlu0 %2425, %v2188
    %v2427 = vpop.permute.xlu0 %2426
    %2430 = vset.pattern.permute.xlu0 0
    %2431 = vperm.xlu0 %2430, %v2189
    %v2432 = vpop.permute.xlu0 %2431
    %2435 = vset.pattern.permute.xlu0 0
    %2436 = vperm.xlu0 %2435, %v2190
    %v2437 = vpop.permute.xlu0 %2436
    %2440 = vset.pattern.permute.xlu0 0
    %2441 = vperm.xlu0 %2440, %v2191
    %v2442 = vpop.permute.xlu0 %2441
    %2445 = vset.pattern.permute.xlu0 0
    %2446 = vperm.xlu0 %2445, %v2192
    %v2447 = vpop.permute.xlu0 %2446
    %2450 = vset.pattern.permute.xlu0 0
    %2451 = vperm.xlu0 %2450, %v2193
    %v2452 = vpop.permute.xlu0 %2451
    %2455 = vset.pattern.permute.xlu0 0
    %2456 = vperm.xlu0 %2455, %v2194
    %v2457 = vpop.permute.xlu0 %2456
    %2460 = vset.pattern.permute.xlu0 0
    %2461 = vperm.xlu0 %2460, %v2195
    %v2462 = vpop.permute.xlu0 %2461
    %2465 = vset.pattern.permute.xlu0 0
    %2466 = vperm.xlu0 %2465, %v2196
    %v2467 = vpop.permute.xlu0 %2466
    %2470 = vset.pattern.permute.xlu0 0
    %2471 = vperm.xlu0 %2470, %v2197
    %v2472 = vpop.permute.xlu0 %2471
    %2475 = vset.pattern.permute.xlu0 0
    %2476 = vperm.xlu0 %2475, %v2198
    %v2477 = vpop.permute.xlu0 %2476
    %2480 = vset.pattern.permute.xlu0 0
    %2481 = vperm.xlu0 %2480, %v2199
    %v2482 = vpop.permute.xlu0 %2481
    %2485 = vset.pattern.permute.xlu0 0
    %2486 = vperm.xlu0 %2485, %v2200
    %v2487 = vpop.permute.xlu0 %2486
    %2490 = vset.pattern.permute.xlu0 0
    %2491 = vperm.xlu0 %2490, %v2201
    %v2492 = vpop.permute.xlu0 %2491
    %2495 = vset.pattern.permute.xlu0 0
    %2496 = vperm.xlu0 %2495, %v2202
    %v2497 = vpop.permute.xlu0 %2496
    %2500 = vset.pattern.permute.xlu0 0
    %2501 = vperm.xlu0 %2500, %v2203
    %v2502 = vpop.permute.xlu0 %2501
    %2505 = vset.pattern.permute.xlu0 0
    %2506 = vperm.xlu0 %2505, %v2204
    %v2507 = vpop.permute.xlu0 %2506
    %2510 = vset.pattern.permute.xlu0 0
    %2511 = vperm.xlu0 %2510, %v2205
    %v2512 = vpop.permute.xlu0 %2511
    %2515 = vset.pattern.permute.xlu0 0
    %2516 = vperm.xlu0 %2515, %v2206
    %v2517 = vpop.permute.xlu0 %2516
    %2520 = vset.pattern.permute.xlu0 0
    %2521 = vperm.xlu0 %2520, %v2207
    %v2522 = vpop.permute.xlu0 %2521
    %2525 = vset.pattern.permute.xlu0 0
    %2526 = vperm.xlu0 %2525, %v2208
    %v2527 = vpop.permute.xlu0 %2526
    %v2529 = vmul.f32 %v2080, %v2212
    %v2530 = vmul.f32 %v2081, %v2217
    %v2531 = vmul.f32 %v2082, %v2222
    %v2532 = vmul.f32 %v2083, %v2227
    %v2533 = vmul.f32 %v2084, %v2232
    %v2534 = vmul.f32 %v2085, %v2237
    %v2535 = vmul.f32 %v2086, %v2242
    %v2536 = vmul.f32 %v2087, %v2247
    %v2537 = vmul.f32 %v2088, %v2252
    %v2538 = vmul.f32 %v2089, %v2257
    %v2539 = vmul.f32 %v2090, %v2262
    %v2540 = vmul.f32 %v2091, %v2267
    %v2541 = vmul.f32 %v2092, %v2272
    %v2542 = vmul.f32 %v2093, %v2277
    %v2543 = vmul.f32 %v2094, %v2282
    %v2544 = vmul.f32 %v2095, %v2287
    %v2545 = vmul.f32 %v2096, %v2292
    %v2546 = vmul.f32 %v2097, %v2297
    %v2547 = vmul.f32 %v2098, %v2302
    %v2548 = vmul.f32 %v2099, %v2307
    %v2549 = vmul.f32 %v2100, %v2312
    %v2550 = vmul.f32 %v2101, %v2317
    %v2551 = vmul.f32 %v2102, %v2322
    %v2552 = vmul.f32 %v2103, %v2327
    %v2553 = vmul.f32 %v2104, %v2332
    %v2554 = vmul.f32 %v2105, %v2337
    %v2555 = vmul.f32 %v2106, %v2342
    %v2556 = vmul.f32 %v2107, %v2347
    %v2557 = vmul.f32 %v2108, %v2352
    %v2558 = vmul.f32 %v2109, %v2357
    %v2559 = vmul.f32 %v2110, %v2362
    %v2560 = vmul.f32 %v2111, %v2367
    %v2561 = vmul.f32 %v2112, %v2372
    %v2562 = vmul.f32 %v2113, %v2377
    %v2563 = vmul.f32 %v2114, %v2382
    %v2564 = vmul.f32 %v2115, %v2387
    %v2565 = vmul.f32 %v2116, %v2392
    %v2566 = vmul.f32 %v2117, %v2397
    %v2567 = vmul.f32 %v2118, %v2402
    %v2568 = vmul.f32 %v2119, %v2407
    %v2569 = vmul.f32 %v2120, %v2412
    %v2570 = vmul.f32 %v2121, %v2417
    %v2571 = vmul.f32 %v2122, %v2422
    %v2572 = vmul.f32 %v2123, %v2427
    %v2573 = vmul.f32 %v2124, %v2432
    %v2574 = vmul.f32 %v2125, %v2437
    %v2575 = vmul.f32 %v2126, %v2442
    %v2576 = vmul.f32 %v2127, %v2447
    %v2577 = vmul.f32 %v2128, %v2452
    %v2578 = vmul.f32 %v2129, %v2457
    %v2579 = vmul.f32 %v2130, %v2462
    %v2580 = vmul.f32 %v2131, %v2467
    %v2581 = vmul.f32 %v2132, %v2472
    %v2582 = vmul.f32 %v2133, %v2477
    %v2583 = vmul.f32 %v2134, %v2482
    %v2584 = vmul.f32 %v2135, %v2487
    %v2585 = vmul.f32 %v2136, %v2492
    %v2586 = vmul.f32 %v2137, %v2497
    %v2587 = vmul.f32 %v2138, %v2502
    %v2588 = vmul.f32 %v2139, %v2507
    %v2589 = vmul.f32 %v2140, %v2512
    %v2590 = vmul.f32 %v2141, %v2517
    %v2591 = vmul.f32 %v2142, %v2522
    %v2592 = vmul.f32 %v2143, %v2527
    %v2593 = vpack.c.bf16 %v2530, %v2529
    %v2594 = vpack.c.bf16 %v2532, %v2531
    %v2595 = vpack.c.bf16 %v2534, %v2533
    %v2596 = vpack.c.bf16 %v2536, %v2535
    %v2597 = vpack.c.bf16 %v2538, %v2537
    %v2598 = vpack.c.bf16 %v2540, %v2539
    %v2599 = vpack.c.bf16 %v2542, %v2541
    %v2600 = vpack.c.bf16 %v2544, %v2543
    %v2601 = vpack.c.bf16 %v2546, %v2545
    %v2602 = vpack.c.bf16 %v2548, %v2547
    %v2603 = vpack.c.bf16 %v2550, %v2549
    %v2604 = vpack.c.bf16 %v2552, %v2551
    %v2605 = vpack.c.bf16 %v2554, %v2553
    %v2606 = vpack.c.bf16 %v2556, %v2555
    %v2607 = vpack.c.bf16 %v2558, %v2557
    %v2608 = vpack.c.bf16 %v2560, %v2559
    %v2609 = vpack.c.bf16 %v2562, %v2561
    %v2610 = vpack.c.bf16 %v2564, %v2563
    %v2611 = vpack.c.bf16 %v2566, %v2565
    %v2612 = vpack.c.bf16 %v2568, %v2567
    %v2613 = vpack.c.bf16 %v2570, %v2569
    %v2614 = vpack.c.bf16 %v2572, %v2571
    %v2615 = vpack.c.bf16 %v2574, %v2573
    %v2616 = vpack.c.bf16 %v2576, %v2575
    %v2617 = vpack.c.bf16 %v2578, %v2577
    %v2618 = vpack.c.bf16 %v2580, %v2579
    %v2619 = vpack.c.bf16 %v2582, %v2581
    %v2620 = vpack.c.bf16 %v2584, %v2583
    %v2621 = vpack.c.bf16 %v2586, %v2585
    %v2622 = vpack.c.bf16 %v2588, %v2587
    %v2623 = vpack.c.bf16 %v2590, %v2589
    %v2624 = vpack.c.bf16 %v2592, %v2591
    %s2625 = scalar_lea.vmem %s2, 128
    %v2626 = vld [vmem:[%s2625] sm:$0xf]
    %v2627 = vld [vmem:[%s2625 + $0x4] sm:$0xf]
    %v2628 = vld [vmem:[%s2625 + $0x8] sm:$0xf]
    %v2629 = vld [vmem:[%s2625 + $0xc] sm:$0xf]
    %v2630 = vld [vmem:[%s2625 + $0x10] sm:$0xf]
    %v2631 = vld [vmem:[%s2625 + $0x14] sm:$0xf]
    %v2632 = vld [vmem:[%s2625 + $0x18] sm:$0xf]
    %v2633 = vld [vmem:[%s2625 + $0x1c] sm:$0xf]
    %v2634 = vld [vmem:[%s2625 + $0x20] sm:$0xf]
    %v2635 = vld [vmem:[%s2625 + $0x24] sm:$0xf]
    %v2636 = vld [vmem:[%s2625 + $0x28] sm:$0xf]
    %v2637 = vld [vmem:[%s2625 + $0x2c] sm:$0xf]
    %v2638 = vld [vmem:[%s2625 + $0x30] sm:$0xf]
    %v2639 = vld [vmem:[%s2625 + $0x34] sm:$0xf]
    %v2640 = vld [vmem:[%s2625 + $0x38] sm:$0xf]
    %v2641 = vld [vmem:[%s2625 + $0x3c] sm:$0xf]
    %v2658 = vunpack.c.l.b16 %v2626
    %v2659 = vunpack.c.l.b16 %v2627
    %v2660 = vunpack.c.l.b16 %v2628
    %v2661 = vunpack.c.l.b16 %v2629
    %v2662 = vunpack.c.l.b16 %v2630
    %v2663 = vunpack.c.l.b16 %v2631
    %v2664 = vunpack.c.l.b16 %v2632
    %v2665 = vunpack.c.l.b16 %v2633
    %v2666 = vunpack.c.l.b16 %v2634
    %v2667 = vunpack.c.l.b16 %v2635
    %v2668 = vunpack.c.l.b16 %v2636
    %v2669 = vunpack.c.l.b16 %v2637
    %v2670 = vunpack.c.l.b16 %v2638
    %v2671 = vunpack.c.l.b16 %v2639
    %v2672 = vunpack.c.l.b16 %v2640
    %v2673 = vunpack.c.l.b16 %v2641
    %v2674 = vpack.c.b16 %v2659, %v2658
    %v2675 = vpack.c.b16 %v2661, %v2660
    %v2676 = vpack.c.b16 %v2663, %v2662
    %v2677 = vpack.c.b16 %v2665, %v2664
    %v2678 = vpack.c.b16 %v2667, %v2666
    %v2679 = vpack.c.b16 %v2669, %v2668
    %v2680 = vpack.c.b16 %v2671, %v2670
    %v2681 = vpack.c.b16 %v2673, %v2672
    %2690 = vmatprep.subr.bf16.mxu0 0
    %2691 = vmatpush1.bf16.msra.mxu0 %v2681
    %2692 = vmatprep.subr.bf16.mxu0 0
    %2693 = vmatpush1.bf16.msra.mxu0 %v2680
    %2694 = vmatprep.subr.bf16.mxu0 0
    %2695 = vmatpush1.bf16.msra.mxu0 %v2679
    %2696 = vmatprep.subr.bf16.mxu0 0
    %2697 = vmatpush1.bf16.msra.mxu0 %v2678
    %2698 = vmatprep.subr.bf16.mxu0 0
    %2699 = vmatpush1.bf16.msra.mxu0 %v2677
    %2700 = vmatprep.subr.bf16.mxu0 0
    %2701 = vmatpush1.bf16.msra.mxu0 %v2676
    %2702 = vmatprep.subr.bf16.mxu0 0
    %2703 = vmatpush1.bf16.msra.mxu0 %v2675
    %2704 = vmatprep.subr.bf16.mxu0 0
    %2705 = vmatpush1.bf16.msra.mxu0 %v2674
    %2706 = vmatprep.subr.bf16.mxu0 0
    %2707 = vmatpush2.bf16.msra.mxu0 0
    %2708 = vmatprep.subr.bf16.mxu0 0
    %2709 = vmatpush2.bf16.msra.mxu0 0
    %2710 = vmatprep.subr.bf16.mxu0 0
    %2711 = vmatpush2.bf16.msra.mxu0 0
    %2712 = vmatprep.subr.bf16.mxu0 0
    %2713 = vmatpush2.bf16.msra.mxu0 0
    %2714 = vmatprep.subr.bf16.mxu0 0
    %2715 = vmatpush2.bf16.msra.mxu0 0
    %2716 = vmatprep.subr.bf16.mxu0 0
    %2717 = vmatpush2.bf16.msra.mxu0 0
    %2718 = vmatprep.subr.bf16.mxu0 0
    %2719 = vmatpush2.bf16.msra.mxu0 0
    %2720 = vmatprep.subr.bf16.mxu0 0
    %2721 = vmatpush2.bf16.msra.mxu0 0
    %2722 = vmatprep.mubr.bf16.mxu0 0
    %2723 = vmatmul.mubr.bf16.gmra.mxu0 %v2593
    %v2724 = vpop.f32.mrf.mxu0
    %v2725 = vadd.f32 0.0, %v2724
    %v2726 = vpop.f32.mrf.mxu0
    %v2727 = vpop.f32.mrf.mxu0
    %v2728 = vadd.f32 0.0, %v2727
    %v2729 = vpop.f32.mrf.mxu0
    %2730 = vmatprep.mubr.bf16.mxu0 0
    %2731 = vmatmul.mubr.bf16.gmra.mxu0 %v2594
    %v2732 = vpop.f32.mrf.mxu0
    %v2733 = vadd.f32 0.0, %v2732
    %v2734 = vpop.f32.mrf.mxu0
    %v2735 = vpop.f32.mrf.mxu0
    %v2736 = vadd.f32 0.0, %v2735
    %v2737 = vpop.f32.mrf.mxu0
    %2738 = vmatprep.mubr.bf16.mxu0 0
    %2739 = vmatmul.mubr.bf16.gmra.mxu0 %v2595
    %v2740 = vpop.f32.mrf.mxu0
    %v2741 = vadd.f32 0.0, %v2740
    %v2742 = vpop.f32.mrf.mxu0
    %v2743 = vpop.f32.mrf.mxu0
    %v2744 = vadd.f32 0.0, %v2743
    %v2745 = vpop.f32.mrf.mxu0
    %2746 = vmatprep.mubr.bf16.mxu0 0
    %2747 = vmatmul.mubr.bf16.gmra.mxu0 %v2596
    %v2748 = vpop.f32.mrf.mxu0
    %v2749 = vadd.f32 0.0, %v2748
    %v2750 = vpop.f32.mrf.mxu0
    %v2751 = vpop.f32.mrf.mxu0
    %v2752 = vadd.f32 0.0, %v2751
    %v2753 = vpop.f32.mrf.mxu0
    %2754 = vmatprep.mubr.bf16.mxu0 0
    %2755 = vmatmul.mubr.bf16.gmra.mxu0 %v2597
    %v2756 = vpop.f32.mrf.mxu0
    %v2757 = vadd.f32 0.0, %v2756
    %v2758 = vpop.f32.mrf.mxu0
    %v2759 = vpop.f32.mrf.mxu0
    %v2760 = vadd.f32 0.0, %v2759
    %v2761 = vpop.f32.mrf.mxu0
    %2762 = vmatprep.mubr.bf16.mxu0 0
    %2763 = vmatmul.mubr.bf16.gmra.mxu0 %v2598
    %v2764 = vpop.f32.mrf.mxu0
    %v2765 = vadd.f32 0.0, %v2764
    %v2766 = vpop.f32.mrf.mxu0
    %v2767 = vpop.f32.mrf.mxu0
    %v2768 = vadd.f32 0.0, %v2767
    %v2769 = vpop.f32.mrf.mxu0
    %2770 = vmatprep.mubr.bf16.mxu0 0
    %2771 = vmatmul.mubr.bf16.gmra.mxu0 %v2599
    %v2772 = vpop.f32.mrf.mxu0
    %v2773 = vadd.f32 0.0, %v2772
    %v2774 = vpop.f32.mrf.mxu0
    %v2775 = vpop.f32.mrf.mxu0
    %v2776 = vadd.f32 0.0, %v2775
    %v2777 = vpop.f32.mrf.mxu0
    %2778 = vmatprep.mubr.bf16.mxu0 0
    %2779 = vmatmul.mubr.bf16.gmra.mxu0 %v2600
    %v2780 = vpop.f32.mrf.mxu0
    %v2781 = vadd.f32 0.0, %v2780
    %v2782 = vpop.f32.mrf.mxu0
    %v2783 = vpop.f32.mrf.mxu0
    %v2784 = vadd.f32 0.0, %v2783
    %v2785 = vpop.f32.mrf.mxu0
    %2786 = vmatprep.mubr.bf16.mxu0 0
    %2787 = vmatmul.mubr.bf16.gmra.mxu0 %v2601
    %v2788 = vpop.f32.mrf.mxu0
    %v2789 = vadd.f32 0.0, %v2788
    %v2790 = vpop.f32.mrf.mxu0
    %v2791 = vpop.f32.mrf.mxu0
    %v2792 = vadd.f32 0.0, %v2791
    %v2793 = vpop.f32.mrf.mxu0
    %2794 = vmatprep.mubr.bf16.mxu0 0
    %2795 = vmatmul.mubr.bf16.gmra.mxu0 %v2602
    %v2796 = vpop.f32.mrf.mxu0
    %v2797 = vadd.f32 0.0, %v2796
    %v2798 = vpop.f32.mrf.mxu0
    %v2799 = vpop.f32.mrf.mxu0
    %v2800 = vadd.f32 0.0, %v2799
    %v2801 = vpop.f32.mrf.mxu0
    %2802 = vmatprep.mubr.bf16.mxu0 0
    %2803 = vmatmul.mubr.bf16.gmra.mxu0 %v2603
    %v2804 = vpop.f32.mrf.mxu0
    %v2805 = vadd.f32 0.0, %v2804
    %v2806 = vpop.f32.mrf.mxu0
    %v2807 = vpop.f32.mrf.mxu0
    %v2808 = vadd.f32 0.0, %v2807
    %v2809 = vpop.f32.mrf.mxu0
    %2810 = vmatprep.mubr.bf16.mxu0 0
    %2811 = vmatmul.mubr.bf16.gmra.mxu0 %v2604
    %v2812 = vpop.f32.mrf.mxu0
    %v2813 = vadd.f32 0.0, %v2812
    %v2814 = vpop.f32.mrf.mxu0
    %v2815 = vpop.f32.mrf.mxu0
    %v2816 = vadd.f32 0.0, %v2815
    %v2817 = vpop.f32.mrf.mxu0
    %2818 = vmatprep.mubr.bf16.mxu0 0
    %2819 = vmatmul.mubr.bf16.gmra.mxu0 %v2605
    %v2820 = vpop.f32.mrf.mxu0
    %v2821 = vadd.f32 0.0, %v2820
    %v2822 = vpop.f32.mrf.mxu0
    %v2823 = vpop.f32.mrf.mxu0
    %v2824 = vadd.f32 0.0, %v2823
    %v2825 = vpop.f32.mrf.mxu0
    %2826 = vmatprep.mubr.bf16.mxu0 0
    %2827 = vmatmul.mubr.bf16.gmra.mxu0 %v2606
    %v2828 = vpop.f32.mrf.mxu0
    %v2829 = vadd.f32 0.0, %v2828
    %v2830 = vpop.f32.mrf.mxu0
    %v2831 = vpop.f32.mrf.mxu0
    %v2832 = vadd.f32 0.0, %v2831
    %v2833 = vpop.f32.mrf.mxu0
    %2834 = vmatprep.mubr.bf16.mxu0 0
    %2835 = vmatmul.mubr.bf16.gmra.mxu0 %v2607
    %v2836 = vpop.f32.mrf.mxu0
    %v2837 = vadd.f32 0.0, %v2836
    %v2838 = vpop.f32.mrf.mxu0
    %v2839 = vpop.f32.mrf.mxu0
    %v2840 = vadd.f32 0.0, %v2839
    %v2841 = vpop.f32.mrf.mxu0
    %2842 = vmatprep.mubr.bf16.mxu0 0
    %2843 = vmatmul.mubr.bf16.gmra.mxu0 %v2608
    %v2844 = vpop.f32.mrf.mxu0
    %v2845 = vadd.f32 0.0, %v2844
    %v2846 = vpop.f32.mrf.mxu0
    %v2847 = vpop.f32.mrf.mxu0
    %v2848 = vadd.f32 0.0, %v2847
    %v2849 = vpop.f32.mrf.mxu0
    %2850 = vmatprep.mubr.bf16.mxu0 0
    %2851 = vmatmul.mubr.bf16.gmra.mxu0 %v2609
    %v2852 = vpop.f32.mrf.mxu0
    %v2853 = vadd.f32 0.0, %v2852
    %v2854 = vpop.f32.mrf.mxu0
    %v2855 = vpop.f32.mrf.mxu0
    %v2856 = vadd.f32 0.0, %v2855
    %v2857 = vpop.f32.mrf.mxu0
    %2858 = vmatprep.mubr.bf16.mxu0 0
    %2859 = vmatmul.mubr.bf16.gmra.mxu0 %v2610
    %v2860 = vpop.f32.mrf.mxu0
    %v2861 = vadd.f32 0.0, %v2860
    %v2862 = vpop.f32.mrf.mxu0
    %v2863 = vpop.f32.mrf.mxu0
    %v2864 = vadd.f32 0.0, %v2863
    %v2865 = vpop.f32.mrf.mxu0
    %2866 = vmatprep.mubr.bf16.mxu0 0
    %2867 = vmatmul.mubr.bf16.gmra.mxu0 %v2611
    %v2868 = vpop.f32.mrf.mxu0
    %v2869 = vadd.f32 0.0, %v2868
    %v2870 = vpop.f32.mrf.mxu0
    %v2871 = vpop.f32.mrf.mxu0
    %v2872 = vadd.f32 0.0, %v2871
    %v2873 = vpop.f32.mrf.mxu0
    %2874 = vmatprep.mubr.bf16.mxu0 0
    %2875 = vmatmul.mubr.bf16.gmra.mxu0 %v2612
    %v2876 = vpop.f32.mrf.mxu0
    %v2877 = vadd.f32 0.0, %v2876
    %v2878 = vpop.f32.mrf.mxu0
    %v2879 = vpop.f32.mrf.mxu0
    %v2880 = vadd.f32 0.0, %v2879
    %v2881 = vpop.f32.mrf.mxu0
    %2882 = vmatprep.mubr.bf16.mxu0 0
    %2883 = vmatmul.mubr.bf16.gmra.mxu0 %v2613
    %v2884 = vpop.f32.mrf.mxu0
    %v2885 = vadd.f32 0.0, %v2884
    %v2886 = vpop.f32.mrf.mxu0
    %v2887 = vpop.f32.mrf.mxu0
    %v2888 = vadd.f32 0.0, %v2887
    %v2889 = vpop.f32.mrf.mxu0
    %2890 = vmatprep.mubr.bf16.mxu0 0
    %2891 = vmatmul.mubr.bf16.gmra.mxu0 %v2614
    %v2892 = vpop.f32.mrf.mxu0
    %v2893 = vadd.f32 0.0, %v2892
    %v2894 = vpop.f32.mrf.mxu0
    %v2895 = vpop.f32.mrf.mxu0
    %v2896 = vadd.f32 0.0, %v2895
    %v2897 = vpop.f32.mrf.mxu0
    %2898 = vmatprep.mubr.bf16.mxu0 0
    %2899 = vmatmul.mubr.bf16.gmra.mxu0 %v2615
    %v2900 = vpop.f32.mrf.mxu0
    %v2901 = vadd.f32 0.0, %v2900
    %v2902 = vpop.f32.mrf.mxu0
    %v2903 = vpop.f32.mrf.mxu0
    %v2904 = vadd.f32 0.0, %v2903
    %v2905 = vpop.f32.mrf.mxu0
    %2906 = vmatprep.mubr.bf16.mxu0 0
    %2907 = vmatmul.mubr.bf16.gmra.mxu0 %v2616
    %v2908 = vpop.f32.mrf.mxu0
    %v2909 = vadd.f32 0.0, %v2908
    %v2910 = vpop.f32.mrf.mxu0
    %v2911 = vpop.f32.mrf.mxu0
    %v2912 = vadd.f32 0.0, %v2911
    %v2913 = vpop.f32.mrf.mxu0
    %2914 = vmatprep.mubr.bf16.mxu0 0
    %2915 = vmatmul.mubr.bf16.gmra.mxu0 %v2617
    %v2916 = vpop.f32.mrf.mxu0
    %v2917 = vadd.f32 0.0, %v2916
    %v2918 = vpop.f32.mrf.mxu0
    %v2919 = vpop.f32.mrf.mxu0
    %v2920 = vadd.f32 0.0, %v2919
    %v2921 = vpop.f32.mrf.mxu0
    %2922 = vmatprep.mubr.bf16.mxu0 0
    %2923 = vmatmul.mubr.bf16.gmra.mxu0 %v2618
    %v2924 = vpop.f32.mrf.mxu0
    %v2925 = vadd.f32 0.0, %v2924
    %v2926 = vpop.f32.mrf.mxu0
    %v2927 = vpop.f32.mrf.mxu0
    %v2928 = vadd.f32 0.0, %v2927
    %v2929 = vpop.f32.mrf.mxu0
    %2930 = vmatprep.mubr.bf16.mxu0 0
    %2931 = vmatmul.mubr.bf16.gmra.mxu0 %v2619
    %v2932 = vpop.f32.mrf.mxu0
    %v2933 = vadd.f32 0.0, %v2932
    %v2934 = vpop.f32.mrf.mxu0
    %v2935 = vpop.f32.mrf.mxu0
    %v2936 = vadd.f32 0.0, %v2935
    %v2937 = vpop.f32.mrf.mxu0
    %2938 = vmatprep.mubr.bf16.mxu0 0
    %2939 = vmatmul.mubr.bf16.gmra.mxu0 %v2620
    %v2940 = vpop.f32.mrf.mxu0
    %v2941 = vadd.f32 0.0, %v2940
    %v2942 = vpop.f32.mrf.mxu0
    %v2943 = vpop.f32.mrf.mxu0
    %v2944 = vadd.f32 0.0, %v2943
    %v2945 = vpop.f32.mrf.mxu0
    %2946 = vmatprep.mubr.bf16.mxu0 0
    %2947 = vmatmul.mubr.bf16.gmra.mxu0 %v2621
    %v2948 = vpop.f32.mrf.mxu0
    %v2949 = vadd.f32 0.0, %v2948
    %v2950 = vpop.f32.mrf.mxu0
    %v2951 = vpop.f32.mrf.mxu0
    %v2952 = vadd.f32 0.0, %v2951
    %v2953 = vpop.f32.mrf.mxu0
    %2954 = vmatprep.mubr.bf16.mxu0 0
    %2955 = vmatmul.mubr.bf16.gmra.mxu0 %v2622
    %v2956 = vpop.f32.mrf.mxu0
    %v2957 = vadd.f32 0.0, %v2956
    %v2958 = vpop.f32.mrf.mxu0
    %v2959 = vpop.f32.mrf.mxu0
    %v2960 = vadd.f32 0.0, %v2959
    %v2961 = vpop.f32.mrf.mxu0
    %2962 = vmatprep.mubr.bf16.mxu0 0
    %2963 = vmatmul.mubr.bf16.gmra.mxu0 %v2623
    %v2964 = vpop.f32.mrf.mxu0
    %v2965 = vadd.f32 0.0, %v2964
    %v2966 = vpop.f32.mrf.mxu0
    %v2967 = vpop.f32.mrf.mxu0
    %v2968 = vadd.f32 0.0, %v2967
    %v2969 = vpop.f32.mrf.mxu0
    %2970 = vmatprep.mubr.bf16.mxu0 0
    %2971 = vmatmul.mubr.bf16.gmra.mxu0 %v2624
    %v2972 = vpop.f32.mrf.mxu0
    %v2973 = vadd.f32 0.0, %v2972
    %v2974 = vpop.f32.mrf.mxu0
    %v2975 = vpop.f32.mrf.mxu0
    %v2976 = vadd.f32 0.0, %v2975
    %v2977 = vpop.f32.mrf.mxu0
    %2978 = vdwg.mxu0
    %v2979 = vadd.f32 %v1826, %v2725
    %v2980 = vadd.f32 %v1829, %v2728
    %v2981 = vadd.f32 %v1834, %v2733
    %v2982 = vadd.f32 %v1837, %v2736
    %v2983 = vadd.f32 %v1842, %v2741
    %v2984 = vadd.f32 %v1845, %v2744
    %v2985 = vadd.f32 %v1850, %v2749
    %v2986 = vadd.f32 %v1853, %v2752
    %v2987 = vadd.f32 %v1858, %v2757
    %v2988 = vadd.f32 %v1861, %v2760
    %v2989 = vadd.f32 %v1866, %v2765
    %v2990 = vadd.f32 %v1869, %v2768
    %v2991 = vadd.f32 %v1874, %v2773
    %v2992 = vadd.f32 %v1877, %v2776
    %v2993 = vadd.f32 %v1882, %v2781
    %v2994 = vadd.f32 %v1885, %v2784
    %v2995 = vadd.f32 %v1890, %v2789
    %v2996 = vadd.f32 %v1893, %v2792
    %v2997 = vadd.f32 %v1898, %v2797
    %v2998 = vadd.f32 %v1901, %v2800
    %v2999 = vadd.f32 %v1906, %v2805
    %v3000 = vadd.f32 %v1909, %v2808
    %v3001 = vadd.f32 %v1914, %v2813
    %v3002 = vadd.f32 %v1917, %v2816
    %v3003 = vadd.f32 %v1922, %v2821
    %v3004 = vadd.f32 %v1925, %v2824
    %v3005 = vadd.f32 %v1930, %v2829
    %v3006 = vadd.f32 %v1933, %v2832
    %v3007 = vadd.f32 %v1938, %v2837
    %v3008 = vadd.f32 %v1941, %v2840
    %v3009 = vadd.f32 %v1946, %v2845
    %v3010 = vadd.f32 %v1949, %v2848
    %v3011 = vadd.f32 %v1954, %v2853
    %v3012 = vadd.f32 %v1957, %v2856
    %v3013 = vadd.f32 %v1962, %v2861
    %v3014 = vadd.f32 %v1965, %v2864
    %v3015 = vadd.f32 %v1970, %v2869
    %v3016 = vadd.f32 %v1973, %v2872
    %v3017 = vadd.f32 %v1978, %v2877
    %v3018 = vadd.f32 %v1981, %v2880
    %v3019 = vadd.f32 %v1986, %v2885
    %v3020 = vadd.f32 %v1989, %v2888
    %v3021 = vadd.f32 %v1994, %v2893
    %v3022 = vadd.f32 %v1997, %v2896
    %v3023 = vadd.f32 %v2002, %v2901
    %v3024 = vadd.f32 %v2005, %v2904
    %v3025 = vadd.f32 %v2010, %v2909
    %v3026 = vadd.f32 %v2013, %v2912
    %v3027 = vadd.f32 %v2018, %v2917
    %v3028 = vadd.f32 %v2021, %v2920
    %v3029 = vadd.f32 %v2026, %v2925
    %v3030 = vadd.f32 %v2029, %v2928
    %v3031 = vadd.f32 %v2034, %v2933
    %v3032 = vadd.f32 %v2037, %v2936
    %v3033 = vadd.f32 %v2042, %v2941
    %v3034 = vadd.f32 %v2045, %v2944
    %v3035 = vadd.f32 %v2050, %v2949
    %v3036 = vadd.f32 %v2053, %v2952
    %v3037 = vadd.f32 %v2058, %v2957
    %v3038 = vadd.f32 %v2061, %v2960
    %v3039 = vadd.f32 %v2066, %v2965
    %v3040 = vadd.f32 %v2069, %v2968
    %v3041 = vadd.f32 %v2074, %v2973
    %v3042 = vadd.f32 %v2077, %v2976
    %v3043 = vld [vmem:[#allocation2 + $0x17] sm:$0xff]
    %v3044 = vld [vmem:[#allocation2 + $0x1f] sm:$0xff]
    %v3045 = vld [vmem:[#allocation2 + $0x27] sm:$0xff]
    %v3046 = vld [vmem:[#allocation2 + $0x2f] sm:$0xff]
    %v3047 = vld [vmem:[#allocation2 + $0x37] sm:$0xff]
    %v3048 = vld [vmem:[#allocation2 + $0x3f] sm:$0xff]
    %v3049 = vld [vmem:[#allocation2 + $0x47] sm:$0xff]
    %v3050 = vld [vmem:[#allocation2 + $0x4f] sm:$0xff]
    %v3051 = vld [vmem:[#allocation2 + $0x57] sm:$0xff]
    %v3052 = vld [vmem:[#allocation2 + $0x5f] sm:$0xff]
    %v3053 = vld [vmem:[#allocation2 + $0x67] sm:$0xff]
    %v3054 = vld [vmem:[#allocation2 + $0x6f] sm:$0xff]
    %v3055 = vld [vmem:[#allocation2 + $0x77] sm:$0xff]
    %v3056 = vld [vmem:[#allocation2 + $0x7f] sm:$0xff]
    %v3057 = vld [vmem:[#allocation2 + $0x87] sm:$0xff]
    %v3058 = vld [vmem:[#allocation2 + $0x8f] sm:$0xff]
    %v3059 = vld [vmem:[#allocation2 + $0x97] sm:$0xff]
    %v3060 = vld [vmem:[#allocation2 + $0x9f] sm:$0xff]
    %v3061 = vld [vmem:[#allocation2 + $0xa7] sm:$0xff]
    %v3062 = vld [vmem:[#allocation2 + $0xaf] sm:$0xff]
    %v3063 = vld [vmem:[#allocation2 + $0xb7] sm:$0xff]
    %v3064 = vld [vmem:[#allocation2 + $0xbf] sm:$0xff]
    %v3065 = vld [vmem:[#allocation2 + $0xc7] sm:$0xff]
    %v3066 = vld [vmem:[#allocation2 + $0xcf] sm:$0xff]
    %v3067 = vld [vmem:[#allocation2 + $0xd7] sm:$0xff]
    %v3068 = vld [vmem:[#allocation2 + $0xdf] sm:$0xff]
    %v3069 = vld [vmem:[#allocation2 + $0xe7] sm:$0xff]
    %v3070 = vld [vmem:[#allocation2 + $0xef] sm:$0xff]
    %v3071 = vld [vmem:[#allocation2 + $0xf7] sm:$0xff]
    %v3072 = vld [vmem:[#allocation2 + $0xff] sm:$0xff]
    %v3073 = vld [vmem:[#allocation2 + $0x107] sm:$0xff]
    %v3074 = vld [vmem:[#allocation2 + $0x10f] sm:$0xff]
    %v3075 = vld [vmem:[#allocation2 + $0x117] sm:$0xff]
    %v3076 = vld [vmem:[#allocation2 + $0x11f] sm:$0xff]
    %v3077 = vld [vmem:[#allocation2 + $0x127] sm:$0xff]
    %v3078 = vld [vmem:[#allocation2 + $0x12f] sm:$0xff]
    %v3079 = vld [vmem:[#allocation2 + $0x137] sm:$0xff]
    %v3080 = vld [vmem:[#allocation2 + $0x13f] sm:$0xff]
    %v3081 = vld [vmem:[#allocation2 + $0x147] sm:$0xff]
    %v3082 = vld [vmem:[#allocation2 + $0x14f] sm:$0xff]
    %v3083 = vld [vmem:[#allocation2 + $0x157] sm:$0xff]
    %v3084 = vld [vmem:[#allocation2 + $0x15f] sm:$0xff]
    %v3085 = vld [vmem:[#allocation2 + $0x167] sm:$0xff]
    %v3086 = vld [vmem:[#allocation2 + $0x16f] sm:$0xff]
    %v3087 = vld [vmem:[#allocation2 + $0x177] sm:$0xff]
    %v3088 = vld [vmem:[#allocation2 + $0x17f] sm:$0xff]
    %v3089 = vld [vmem:[#allocation2 + $0x187] sm:$0xff]
    %v3090 = vld [vmem:[#allocation2 + $0x18f] sm:$0xff]
    %v3091 = vld [vmem:[#allocation2 + $0x197] sm:$0xff]
    %v3092 = vld [vmem:[#allocation2 + $0x19f] sm:$0xff]
    %v3093 = vld [vmem:[#allocation2 + $0x1a7] sm:$0xff]
    %v3094 = vld [vmem:[#allocation2 + $0x1af] sm:$0xff]
    %v3095 = vld [vmem:[#allocation2 + $0x1b7] sm:$0xff]
    %v3096 = vld [vmem:[#allocation2 + $0x1bf] sm:$0xff]
    %v3097 = vld [vmem:[#allocation2 + $0x1c7] sm:$0xff]
    %v3098 = vld [vmem:[#allocation2 + $0x1cf] sm:$0xff]
    %v3099 = vld [vmem:[#allocation2 + $0x1d7] sm:$0xff]
    %v3100 = vld [vmem:[#allocation2 + $0x1df] sm:$0xff]
    %v3101 = vld [vmem:[#allocation2 + $0x1e7] sm:$0xff]
    %v3102 = vld [vmem:[#allocation2 + $0x1ef] sm:$0xff]
    %v3103 = vld [vmem:[#allocation2 + $0x1f7] sm:$0xff]
    %v3104 = vld [vmem:[#allocation2 + $0x1ff] sm:$0xff]
    %v3105 = vld [vmem:[#allocation2 + $0x207] sm:$0xff]
    %v3106 = vld [vmem:[#allocation2 + $0x20f] sm:$0xff]
    %s3107 = scalar_lea.vmem %s1, 1536
    %v3108 = vld [vmem:[%s3107] sm:$0xff]
    %v3109 = vld [vmem:[%s3107 + $0x8] sm:$0xff]
    %v3110 = vld [vmem:[%s3107 + $0x10] sm:$0xff]
    %v3111 = vld [vmem:[%s3107 + $0x18] sm:$0xff]
    %v3112 = vld [vmem:[%s3107 + $0x20] sm:$0xff]
    %v3113 = vld [vmem:[%s3107 + $0x28] sm:$0xff]
    %v3114 = vld [vmem:[%s3107 + $0x30] sm:$0xff]
    %v3115 = vld [vmem:[%s3107 + $0x38] sm:$0xff]
    %v3116 = vld [vmem:[%s3107 + $0x40] sm:$0xff]
    %v3117 = vld [vmem:[%s3107 + $0x48] sm:$0xff]
    %v3118 = vld [vmem:[%s3107 + $0x50] sm:$0xff]
    %v3119 = vld [vmem:[%s3107 + $0x58] sm:$0xff]
    %v3120 = vld [vmem:[%s3107 + $0x60] sm:$0xff]
    %v3121 = vld [vmem:[%s3107 + $0x68] sm:$0xff]
    %v3122 = vld [vmem:[%s3107 + $0x70] sm:$0xff]
    %v3123 = vld [vmem:[%s3107 + $0x78] sm:$0xff]
    %v3124 = vld [vmem:[%s3107 + $0x80] sm:$0xff]
    %v3125 = vld [vmem:[%s3107 + $0x88] sm:$0xff]
    %v3126 = vld [vmem:[%s3107 + $0x90] sm:$0xff]
    %v3127 = vld [vmem:[%s3107 + $0x98] sm:$0xff]
    %v3128 = vld [vmem:[%s3107 + $0xa0] sm:$0xff]
    %v3129 = vld [vmem:[%s3107 + $0xa8] sm:$0xff]
    %v3130 = vld [vmem:[%s3107 + $0xb0] sm:$0xff]
    %v3131 = vld [vmem:[%s3107 + $0xb8] sm:$0xff]
    %v3132 = vld [vmem:[%s3107 + $0xc0] sm:$0xff]
    %v3133 = vld [vmem:[%s3107 + $0xc8] sm:$0xff]
    %v3134 = vld [vmem:[%s3107 + $0xd0] sm:$0xff]
    %v3135 = vld [vmem:[%s3107 + $0xd8] sm:$0xff]
    %v3136 = vld [vmem:[%s3107 + $0xe0] sm:$0xff]
    %v3137 = vld [vmem:[%s3107 + $0xe8] sm:$0xff]
    %v3138 = vld [vmem:[%s3107 + $0xf0] sm:$0xff]
    %v3139 = vld [vmem:[%s3107 + $0xf8] sm:$0xff]
    %v3140 = vld [vmem:[%s3107 + $0x100] sm:$0xff]
    %v3141 = vld [vmem:[%s3107 + $0x108] sm:$0xff]
    %v3142 = vld [vmem:[%s3107 + $0x110] sm:$0xff]
    %v3143 = vld [vmem:[%s3107 + $0x118] sm:$0xff]
    %v3144 = vld [vmem:[%s3107 + $0x120] sm:$0xff]
    %v3145 = vld [vmem:[%s3107 + $0x128] sm:$0xff]
    %v3146 = vld [vmem:[%s3107 + $0x130] sm:$0xff]
    %v3147 = vld [vmem:[%s3107 + $0x138] sm:$0xff]
    %v3148 = vld [vmem:[%s3107 + $0x140] sm:$0xff]
    %v3149 = vld [vmem:[%s3107 + $0x148] sm:$0xff]
    %v3150 = vld [vmem:[%s3107 + $0x150] sm:$0xff]
    %v3151 = vld [vmem:[%s3107 + $0x158] sm:$0xff]
    %v3152 = vld [vmem:[%s3107 + $0x160] sm:$0xff]
    %v3153 = vld [vmem:[%s3107 + $0x168] sm:$0xff]
    %v3154 = vld [vmem:[%s3107 + $0x170] sm:$0xff]
    %v3155 = vld [vmem:[%s3107 + $0x178] sm:$0xff]
    %v3156 = vld [vmem:[%s3107 + $0x180] sm:$0xff]
    %v3157 = vld [vmem:[%s3107 + $0x188] sm:$0xff]
    %v3158 = vld [vmem:[%s3107 + $0x190] sm:$0xff]
    %v3159 = vld [vmem:[%s3107 + $0x198] sm:$0xff]
    %v3160 = vld [vmem:[%s3107 + $0x1a0] sm:$0xff]
    %v3161 = vld [vmem:[%s3107 + $0x1a8] sm:$0xff]
    %v3162 = vld [vmem:[%s3107 + $0x1b0] sm:$0xff]
    %v3163 = vld [vmem:[%s3107 + $0x1b8] sm:$0xff]
    %v3164 = vld [vmem:[%s3107 + $0x1c0] sm:$0xff]
    %v3165 = vld [vmem:[%s3107 + $0x1c8] sm:$0xff]
    %v3166 = vld [vmem:[%s3107 + $0x1d0] sm:$0xff]
    %v3167 = vld [vmem:[%s3107 + $0x1d8] sm:$0xff]
    %v3168 = vld [vmem:[%s3107 + $0x1e0] sm:$0xff]
    %v3169 = vld [vmem:[%s3107 + $0x1e8] sm:$0xff]
    %v3170 = vld [vmem:[%s3107 + $0x1f0] sm:$0xff]
    %v3171 = vld [vmem:[%s3107 + $0x1f8] sm:$0xff]
    %3173 = vset.pattern.permute.xlu0 0
    %3174 = vperm.xlu0 %3173, %v3108
    %v3175 = vpop.permute.xlu0 %3174
    %3178 = vset.pattern.permute.xlu0 0
    %3179 = vperm.xlu0 %3178, %v3109
    %v3180 = vpop.permute.xlu0 %3179
    %3183 = vset.pattern.permute.xlu0 0
    %3184 = vperm.xlu0 %3183, %v3110
    %v3185 = vpop.permute.xlu0 %3184
    %3188 = vset.pattern.permute.xlu0 0
    %3189 = vperm.xlu0 %3188, %v3111
    %v3190 = vpop.permute.xlu0 %3189
    %3193 = vset.pattern.permute.xlu0 0
    %3194 = vperm.xlu0 %3193, %v3112
    %v3195 = vpop.permute.xlu0 %3194
    %3198 = vset.pattern.permute.xlu0 0
    %3199 = vperm.xlu0 %3198, %v3113
    %v3200 = vpop.permute.xlu0 %3199
    %3203 = vset.pattern.permute.xlu0 0
    %3204 = vperm.xlu0 %3203, %v3114
    %v3205 = vpop.permute.xlu0 %3204
    %3208 = vset.pattern.permute.xlu0 0
    %3209 = vperm.xlu0 %3208, %v3115
    %v3210 = vpop.permute.xlu0 %3209
    %3213 = vset.pattern.permute.xlu0 0
    %3214 = vperm.xlu0 %3213, %v3116
    %v3215 = vpop.permute.xlu0 %3214
    %3218 = vset.pattern.permute.xlu0 0
    %3219 = vperm.xlu0 %3218, %v3117
    %v3220 = vpop.permute.xlu0 %3219
    %3223 = vset.pattern.permute.xlu0 0
    %3224 = vperm.xlu0 %3223, %v3118
    %v3225 = vpop.permute.xlu0 %3224
    %3228 = vset.pattern.permute.xlu0 0
    %3229 = vperm.xlu0 %3228, %v3119
    %v3230 = vpop.permute.xlu0 %3229
    %3233 = vset.pattern.permute.xlu0 0
    %3234 = vperm.xlu0 %3233, %v3120
    %v3235 = vpop.permute.xlu0 %3234
    %3238 = vset.pattern.permute.xlu0 0
    %3239 = vperm.xlu0 %3238, %v3121
    %v3240 = vpop.permute.xlu0 %3239
    %3243 = vset.pattern.permute.xlu0 0
    %3244 = vperm.xlu0 %3243, %v3122
    %v3245 = vpop.permute.xlu0 %3244
    %3248 = vset.pattern.permute.xlu0 0
    %3249 = vperm.xlu0 %3248, %v3123
    %v3250 = vpop.permute.xlu0 %3249
    %3253 = vset.pattern.permute.xlu0 0
    %3254 = vperm.xlu0 %3253, %v3124
    %v3255 = vpop.permute.xlu0 %3254
    %3258 = vset.pattern.permute.xlu0 0
    %3259 = vperm.xlu0 %3258, %v3125
    %v3260 = vpop.permute.xlu0 %3259
    %3263 = vset.pattern.permute.xlu0 0
    %3264 = vperm.xlu0 %3263, %v3126
    %v3265 = vpop.permute.xlu0 %3264
    %3268 = vset.pattern.permute.xlu0 0
    %3269 = vperm.xlu0 %3268, %v3127
    %v3270 = vpop.permute.xlu0 %3269
    %3273 = vset.pattern.permute.xlu0 0
    %3274 = vperm.xlu0 %3273, %v3128
    %v3275 = vpop.permute.xlu0 %3274
    %3278 = vset.pattern.permute.xlu0 0
    %3279 = vperm.xlu0 %3278, %v3129
    %v3280 = vpop.permute.xlu0 %3279
    %3283 = vset.pattern.permute.xlu0 0
    %3284 = vperm.xlu0 %3283, %v3130
    %v3285 = vpop.permute.xlu0 %3284
    %3288 = vset.pattern.permute.xlu0 0
    %3289 = vperm.xlu0 %3288, %v3131
    %v3290 = vpop.permute.xlu0 %3289
    %3293 = vset.pattern.permute.xlu0 0
    %3294 = vperm.xlu0 %3293, %v3132
    %v3295 = vpop.permute.xlu0 %3294
    %3298 = vset.pattern.permute.xlu0 0
    %3299 = vperm.xlu0 %3298, %v3133
    %v3300 = vpop.permute.xlu0 %3299
    %3303 = vset.pattern.permute.xlu0 0
    %3304 = vperm.xlu0 %3303, %v3134
    %v3305 = vpop.permute.xlu0 %3304
    %3308 = vset.pattern.permute.xlu0 0
    %3309 = vperm.xlu0 %3308, %v3135
    %v3310 = vpop.permute.xlu0 %3309
    %3313 = vset.pattern.permute.xlu0 0
    %3314 = vperm.xlu0 %3313, %v3136
    %v3315 = vpop.permute.xlu0 %3314
    %3318 = vset.pattern.permute.xlu0 0
    %3319 = vperm.xlu0 %3318, %v3137
    %v3320 = vpop.permute.xlu0 %3319
    %3323 = vset.pattern.permute.xlu0 0
    %3324 = vperm.xlu0 %3323, %v3138
    %v3325 = vpop.permute.xlu0 %3324
    %3328 = vset.pattern.permute.xlu0 0
    %3329 = vperm.xlu0 %3328, %v3139
    %v3330 = vpop.permute.xlu0 %3329
    %3333 = vset.pattern.permute.xlu0 0
    %3334 = vperm.xlu0 %3333, %v3140
    %v3335 = vpop.permute.xlu0 %3334
    %3338 = vset.pattern.permute.xlu0 0
    %3339 = vperm.xlu0 %3338, %v3141
    %v3340 = vpop.permute.xlu0 %3339
    %3343 = vset.pattern.permute.xlu0 0
    %3344 = vperm.xlu0 %3343, %v3142
    %v3345 = vpop.permute.xlu0 %3344
    %3348 = vset.pattern.permute.xlu0 0
    %3349 = vperm.xlu0 %3348, %v3143
    %v3350 = vpop.permute.xlu0 %3349
    %3353 = vset.pattern.permute.xlu0 0
    %3354 = vperm.xlu0 %3353, %v3144
    %v3355 = vpop.permute.xlu0 %3354
    %3358 = vset.pattern.permute.xlu0 0
    %3359 = vperm.xlu0 %3358, %v3145
    %v3360 = vpop.permute.xlu0 %3359
    %3363 = vset.pattern.permute.xlu0 0
    %3364 = vperm.xlu0 %3363, %v3146
    %v3365 = vpop.permute.xlu0 %3364
    %3368 = vset.pattern.permute.xlu0 0
    %3369 = vperm.xlu0 %3368, %v3147
    %v3370 = vpop.permute.xlu0 %3369
    %3373 = vset.pattern.permute.xlu0 0
    %3374 = vperm.xlu0 %3373, %v3148
    %v3375 = vpop.permute.xlu0 %3374
    %3378 = vset.pattern.permute.xlu0 0
    %3379 = vperm.xlu0 %3378, %v3149
    %v3380 = vpop.permute.xlu0 %3379
    %3383 = vset.pattern.permute.xlu0 0
    %3384 = vperm.xlu0 %3383, %v3150
    %v3385 = vpop.permute.xlu0 %3384
    %3388 = vset.pattern.permute.xlu0 0
    %3389 = vperm.xlu0 %3388, %v3151
    %v3390 = vpop.permute.xlu0 %3389
    %3393 = vset.pattern.permute.xlu0 0
    %3394 = vperm.xlu0 %3393, %v3152
    %v3395 = vpop.permute.xlu0 %3394
    %3398 = vset.pattern.permute.xlu0 0
    %3399 = vperm.xlu0 %3398, %v3153
    %v3400 = vpop.permute.xlu0 %3399
    %3403 = vset.pattern.permute.xlu0 0
    %3404 = vperm.xlu0 %3403, %v3154
    %v3405 = vpop.permute.xlu0 %3404
    %3408 = vset.pattern.permute.xlu0 0
    %3409 = vperm.xlu0 %3408, %v3155
    %v3410 = vpop.permute.xlu0 %3409
    %3413 = vset.pattern.permute.xlu0 0
    %3414 = vperm.xlu0 %3413, %v3156
    %v3415 = vpop.permute.xlu0 %3414
    %3418 = vset.pattern.permute.xlu0 0
    %3419 = vperm.xlu0 %3418, %v3157
    %v3420 = vpop.permute.xlu0 %3419
    %3423 = vset.pattern.permute.xlu0 0
    %3424 = vperm.xlu0 %3423, %v3158
    %v3425 = vpop.permute.xlu0 %3424
    %3428 = vset.pattern.permute.xlu0 0
    %3429 = vperm.xlu0 %3428, %v3159
    %v3430 = vpop.permute.xlu0 %3429
    %3433 = vset.pattern.permute.xlu0 0
    %3434 = vperm.xlu0 %3433, %v3160
    %v3435 = vpop.permute.xlu0 %3434
    %3438 = vset.pattern.permute.xlu0 0
    %3439 = vperm.xlu0 %3438, %v3161
    %v3440 = vpop.permute.xlu0 %3439
    %3443 = vset.pattern.permute.xlu0 0
    %3444 = vperm.xlu0 %3443, %v3162
    %v3445 = vpop.permute.xlu0 %3444
    %3448 = vset.pattern.permute.xlu0 0
    %3449 = vperm.xlu0 %3448, %v3163
    %v3450 = vpop.permute.xlu0 %3449
    %3453 = vset.pattern.permute.xlu0 0
    %3454 = vperm.xlu0 %3453, %v3164
    %v3455 = vpop.permute.xlu0 %3454
    %3458 = vset.pattern.permute.xlu0 0
    %3459 = vperm.xlu0 %3458, %v3165
    %v3460 = vpop.permute.xlu0 %3459
    %3463 = vset.pattern.permute.xlu0 0
    %3464 = vperm.xlu0 %3463, %v3166
    %v3465 = vpop.permute.xlu0 %3464
    %3468 = vset.pattern.permute.xlu0 0
    %3469 = vperm.xlu0 %3468, %v3167
    %v3470 = vpop.permute.xlu0 %3469
    %3473 = vset.pattern.permute.xlu0 0
    %3474 = vperm.xlu0 %3473, %v3168
    %v3475 = vpop.permute.xlu0 %3474
    %3478 = vset.pattern.permute.xlu0 0
    %3479 = vperm.xlu0 %3478, %v3169
    %v3480 = vpop.permute.xlu0 %3479
    %3483 = vset.pattern.permute.xlu0 0
    %3484 = vperm.xlu0 %3483, %v3170
    %v3485 = vpop.permute.xlu0 %3484
    %3488 = vset.pattern.permute.xlu0 0
    %3489 = vperm.xlu0 %3488, %v3171
    %v3490 = vpop.permute.xlu0 %3489
    %v3492 = vmul.f32 %v3043, %v3175
    %v3493 = vmul.f32 %v3044, %v3180
    %v3494 = vmul.f32 %v3045, %v3185
    %v3495 = vmul.f32 %v3046, %v3190
    %v3496 = vmul.f32 %v3047, %v3195
    %v3497 = vmul.f32 %v3048, %v3200
    %v3498 = vmul.f32 %v3049, %v3205
    %v3499 = vmul.f32 %v3050, %v3210
    %v3500 = vmul.f32 %v3051, %v3215
    %v3501 = vmul.f32 %v3052, %v3220
    %v3502 = vmul.f32 %v3053, %v3225
    %v3503 = vmul.f32 %v3054, %v3230
    %v3504 = vmul.f32 %v3055, %v3235
    %v3505 = vmul.f32 %v3056, %v3240
    %v3506 = vmul.f32 %v3057, %v3245
    %v3507 = vmul.f32 %v3058, %v3250
    %v3508 = vmul.f32 %v3059, %v3255
    %v3509 = vmul.f32 %v3060, %v3260
    %v3510 = vmul.f32 %v3061, %v3265
    %v3511 = vmul.f32 %v3062, %v3270
    %v3512 = vmul.f32 %v3063, %v3275
    %v3513 = vmul.f32 %v3064, %v3280
    %v3514 = vmul.f32 %v3065, %v3285
    %v3515 = vmul.f32 %v3066, %v3290
    %v3516 = vmul.f32 %v3067, %v3295
    %v3517 = vmul.f32 %v3068, %v3300
    %v3518 = vmul.f32 %v3069, %v3305
    %v3519 = vmul.f32 %v3070, %v3310
    %v3520 = vmul.f32 %v3071, %v3315
    %v3521 = vmul.f32 %v3072, %v3320
    %v3522 = vmul.f32 %v3073, %v3325
    %v3523 = vmul.f32 %v3074, %v3330
    %v3524 = vmul.f32 %v3075, %v3335
    %v3525 = vmul.f32 %v3076, %v3340
    %v3526 = vmul.f32 %v3077, %v3345
    %v3527 = vmul.f32 %v3078, %v3350
    %v3528 = vmul.f32 %v3079, %v3355
    %v3529 = vmul.f32 %v3080, %v3360
    %v3530 = vmul.f32 %v3081, %v3365
    %v3531 = vmul.f32 %v3082, %v3370
    %v3532 = vmul.f32 %v3083, %v3375
    %v3533 = vmul.f32 %v3084, %v3380
    %v3534 = vmul.f32 %v3085, %v3385
    %v3535 = vmul.f32 %v3086, %v3390
    %v3536 = vmul.f32 %v3087, %v3395
    %v3537 = vmul.f32 %v3088, %v3400
    %v3538 = vmul.f32 %v3089, %v3405
    %v3539 = vmul.f32 %v3090, %v3410
    %v3540 = vmul.f32 %v3091, %v3415
    %v3541 = vmul.f32 %v3092, %v3420
    %v3542 = vmul.f32 %v3093, %v3425
    %v3543 = vmul.f32 %v3094, %v3430
    %v3544 = vmul.f32 %v3095, %v3435
    %v3545 = vmul.f32 %v3096, %v3440
    %v3546 = vmul.f32 %v3097, %v3445
    %v3547 = vmul.f32 %v3098, %v3450
    %v3548 = vmul.f32 %v3099, %v3455
    %v3549 = vmul.f32 %v3100, %v3460
    %v3550 = vmul.f32 %v3101, %v3465
    %v3551 = vmul.f32 %v3102, %v3470
    %v3552 = vmul.f32 %v3103, %v3475
    %v3553 = vmul.f32 %v3104, %v3480
    %v3554 = vmul.f32 %v3105, %v3485
    %v3555 = vmul.f32 %v3106, %v3490
    %v3556 = vpack.c.bf16 %v3493, %v3492
    %v3557 = vpack.c.bf16 %v3495, %v3494
    %v3558 = vpack.c.bf16 %v3497, %v3496
    %v3559 = vpack.c.bf16 %v3499, %v3498
    %v3560 = vpack.c.bf16 %v3501, %v3500
    %v3561 = vpack.c.bf16 %v3503, %v3502
    %v3562 = vpack.c.bf16 %v3505, %v3504
    %v3563 = vpack.c.bf16 %v3507, %v3506
    %v3564 = vpack.c.bf16 %v3509, %v3508
    %v3565 = vpack.c.bf16 %v3511, %v3510
    %v3566 = vpack.c.bf16 %v3513, %v3512
    %v3567 = vpack.c.bf16 %v3515, %v3514
    %v3568 = vpack.c.bf16 %v3517, %v3516
    %v3569 = vpack.c.bf16 %v3519, %v3518
    %v3570 = vpack.c.bf16 %v3521, %v3520
    %v3571 = vpack.c.bf16 %v3523, %v3522
    %v3572 = vpack.c.bf16 %v3525, %v3524
    %v3573 = vpack.c.bf16 %v3527, %v3526
    %v3574 = vpack.c.bf16 %v3529, %v3528
    %v3575 = vpack.c.bf16 %v3531, %v3530
    %v3576 = vpack.c.bf16 %v3533, %v3532
    %v3577 = vpack.c.bf16 %v3535, %v3534
    %v3578 = vpack.c.bf16 %v3537, %v3536
    %v3579 = vpack.c.bf16 %v3539, %v3538
    %v3580 = vpack.c.bf16 %v3541, %v3540
    %v3581 = vpack.c.bf16 %v3543, %v3542
    %v3582 = vpack.c.bf16 %v3545, %v3544
    %v3583 = vpack.c.bf16 %v3547, %v3546
    %v3584 = vpack.c.bf16 %v3549, %v3548
    %v3585 = vpack.c.bf16 %v3551, %v3550
    %v3586 = vpack.c.bf16 %v3553, %v3552
    %v3587 = vpack.c.bf16 %v3555, %v3554
    %s3588 = scalar_lea.vmem %s2, 192
    %v3589 = vld [vmem:[%s3588] sm:$0xf]
    %v3590 = vld [vmem:[%s3588 + $0x4] sm:$0xf]
    %v3591 = vld [vmem:[%s3588 + $0x8] sm:$0xf]
    %v3592 = vld [vmem:[%s3588 + $0xc] sm:$0xf]
    %v3593 = vld [vmem:[%s3588 + $0x10] sm:$0xf]
    %v3594 = vld [vmem:[%s3588 + $0x14] sm:$0xf]
    %v3595 = vld [vmem:[%s3588 + $0x18] sm:$0xf]
    %v3596 = vld [vmem:[%s3588 + $0x1c] sm:$0xf]
    %v3597 = vld [vmem:[%s3588 + $0x20] sm:$0xf]
    %v3598 = vld [vmem:[%s3588 + $0x24] sm:$0xf]
    %v3599 = vld [vmem:[%s3588 + $0x28] sm:$0xf]
    %v3600 = vld [vmem:[%s3588 + $0x2c] sm:$0xf]
    %v3601 = vld [vmem:[%s3588 + $0x30] sm:$0xf]
    %v3602 = vld [vmem:[%s3588 + $0x34] sm:$0xf]
    %v3603 = vld [vmem:[%s3588 + $0x38] sm:$0xf]
    %v3604 = vld [vmem:[%s3588 + $0x3c] sm:$0xf]
    %v3621 = vunpack.c.l.b16 %v3589
    %v3622 = vunpack.c.l.b16 %v3590
    %v3623 = vunpack.c.l.b16 %v3591
    %v3624 = vunpack.c.l.b16 %v3592
    %v3625 = vunpack.c.l.b16 %v3593
    %v3626 = vunpack.c.l.b16 %v3594
    %v3627 = vunpack.c.l.b16 %v3595
    %v3628 = vunpack.c.l.b16 %v3596
    %v3629 = vunpack.c.l.b16 %v3597
    %v3630 = vunpack.c.l.b16 %v3598
    %v3631 = vunpack.c.l.b16 %v3599
    %v3632 = vunpack.c.l.b16 %v3600
    %v3633 = vunpack.c.l.b16 %v3601
    %v3634 = vunpack.c.l.b16 %v3602
    %v3635 = vunpack.c.l.b16 %v3603
    %v3636 = vunpack.c.l.b16 %v3604
    %v3637 = vpack.c.b16 %v3622, %v3621
    %v3638 = vpack.c.b16 %v3624, %v3623
    %v3639 = vpack.c.b16 %v3626, %v3625
    %v3640 = vpack.c.b16 %v3628, %v3627
    %v3641 = vpack.c.b16 %v3630, %v3629
    %v3642 = vpack.c.b16 %v3632, %v3631
    %v3643 = vpack.c.b16 %v3634, %v3633
    %v3644 = vpack.c.b16 %v3636, %v3635
    %3653 = vmatprep.subr.bf16.mxu0 0
    %3654 = vmatpush1.bf16.msra.mxu0 %v3644
    %3655 = vmatprep.subr.bf16.mxu0 0
    %3656 = vmatpush1.bf16.msra.mxu0 %v3643
    %3657 = vmatprep.subr.bf16.mxu0 0
    %3658 = vmatpush1.bf16.msra.mxu0 %v3642
    %3659 = vmatprep.subr.bf16.mxu0 0
    %3660 = vmatpush1.bf16.msra.mxu0 %v3641
    %3661 = vmatprep.subr.bf16.mxu0 0
    %3662 = vmatpush1.bf16.msra.mxu0 %v3640
    %3663 = vmatprep.subr.bf16.mxu0 0
    %3664 = vmatpush1.bf16.msra.mxu0 %v3639
    %3665 = vmatprep.subr.bf16.mxu0 0
    %3666 = vmatpush1.bf16.msra.mxu0 %v3638
    %3667 = vmatprep.subr.bf16.mxu0 0
    %3668 = vmatpush1.bf16.msra.mxu0 %v3637
    %3669 = vmatprep.subr.bf16.mxu0 0
    %3670 = vmatpush2.bf16.msra.mxu0 0
    %3671 = vmatprep.subr.bf16.mxu0 0
    %3672 = vmatpush2.bf16.msra.mxu0 0
    %3673 = vmatprep.subr.bf16.mxu0 0
    %3674 = vmatpush2.bf16.msra.mxu0 0
    %3675 = vmatprep.subr.bf16.mxu0 0
    %3676 = vmatpush2.bf16.msra.mxu0 0
    %3677 = vmatprep.subr.bf16.mxu0 0
    %3678 = vmatpush2.bf16.msra.mxu0 0
    %3679 = vmatprep.subr.bf16.mxu0 0
    %3680 = vmatpush2.bf16.msra.mxu0 0
    %3681 = vmatprep.subr.bf16.mxu0 0
    %3682 = vmatpush2.bf16.msra.mxu0 0
    %3683 = vmatprep.subr.bf16.mxu0 0
    %3684 = vmatpush2.bf16.msra.mxu0 0
    %3685 = vmatprep.mubr.bf16.mxu0 0
    %3686 = vmatmul.mubr.bf16.gmra.mxu0 %v3556
    %v3687 = vpop.f32.mrf.mxu0
    %v3688 = vadd.f32 0.0, %v3687
    %v3689 = vpop.f32.mrf.mxu0
    %v3690 = vpop.f32.mrf.mxu0
    %v3691 = vadd.f32 0.0, %v3690
    %v3692 = vpop.f32.mrf.mxu0
    %3693 = vmatprep.mubr.bf16.mxu0 0
    %3694 = vmatmul.mubr.bf16.gmra.mxu0 %v3557
    %v3695 = vpop.f32.mrf.mxu0
    %v3696 = vadd.f32 0.0, %v3695
    %v3697 = vpop.f32.mrf.mxu0
    %v3698 = vpop.f32.mrf.mxu0
    %v3699 = vadd.f32 0.0, %v3698
    %v3700 = vpop.f32.mrf.mxu0
    %3701 = vmatprep.mubr.bf16.mxu0 0
    %3702 = vmatmul.mubr.bf16.gmra.mxu0 %v3558
    %v3703 = vpop.f32.mrf.mxu0
    %v3704 = vadd.f32 0.0, %v3703
    %v3705 = vpop.f32.mrf.mxu0
    %v3706 = vpop.f32.mrf.mxu0
    %v3707 = vadd.f32 0.0, %v3706
    %v3708 = vpop.f32.mrf.mxu0
    %3709 = vmatprep.mubr.bf16.mxu0 0
    %3710 = vmatmul.mubr.bf16.gmra.mxu0 %v3559
    %v3711 = vpop.f32.mrf.mxu0
    %v3712 = vadd.f32 0.0, %v3711
    %v3713 = vpop.f32.mrf.mxu0
    %v3714 = vpop.f32.mrf.mxu0
    %v3715 = vadd.f32 0.0, %v3714
    %v3716 = vpop.f32.mrf.mxu0
    %3717 = vmatprep.mubr.bf16.mxu0 0
    %3718 = vmatmul.mubr.bf16.gmra.mxu0 %v3560
    %v3719 = vpop.f32.mrf.mxu0
    %v3720 = vadd.f32 0.0, %v3719
    %v3721 = vpop.f32.mrf.mxu0
    %v3722 = vpop.f32.mrf.mxu0
    %v3723 = vadd.f32 0.0, %v3722
    %v3724 = vpop.f32.mrf.mxu0
    %3725 = vmatprep.mubr.bf16.mxu0 0
    %3726 = vmatmul.mubr.bf16.gmra.mxu0 %v3561
    %v3727 = vpop.f32.mrf.mxu0
    %v3728 = vadd.f32 0.0, %v3727
    %v3729 = vpop.f32.mrf.mxu0
    %v3730 = vpop.f32.mrf.mxu0
    %v3731 = vadd.f32 0.0, %v3730
    %v3732 = vpop.f32.mrf.mxu0
    %3733 = vmatprep.mubr.bf16.mxu0 0
    %3734 = vmatmul.mubr.bf16.gmra.mxu0 %v3562
    %v3735 = vpop.f32.mrf.mxu0
    %v3736 = vadd.f32 0.0, %v3735
    %v3737 = vpop.f32.mrf.mxu0
    %v3738 = vpop.f32.mrf.mxu0
    %v3739 = vadd.f32 0.0, %v3738
    %v3740 = vpop.f32.mrf.mxu0
    %3741 = vmatprep.mubr.bf16.mxu0 0
    %3742 = vmatmul.mubr.bf16.gmra.mxu0 %v3563
    %v3743 = vpop.f32.mrf.mxu0
    %v3744 = vadd.f32 0.0, %v3743
    %v3745 = vpop.f32.mrf.mxu0
    %v3746 = vpop.f32.mrf.mxu0
    %v3747 = vadd.f32 0.0, %v3746
    %v3748 = vpop.f32.mrf.mxu0
    %3749 = vmatprep.mubr.bf16.mxu0 0
    %3750 = vmatmul.mubr.bf16.gmra.mxu0 %v3564
    %v3751 = vpop.f32.mrf.mxu0
    %v3752 = vadd.f32 0.0, %v3751
    %v3753 = vpop.f32.mrf.mxu0
    %v3754 = vpop.f32.mrf.mxu0
    %v3755 = vadd.f32 0.0, %v3754
    %v3756 = vpop.f32.mrf.mxu0
    %3757 = vmatprep.mubr.bf16.mxu0 0
    %3758 = vmatmul.mubr.bf16.gmra.mxu0 %v3565
    %v3759 = vpop.f32.mrf.mxu0
    %v3760 = vadd.f32 0.0, %v3759
    %v3761 = vpop.f32.mrf.mxu0
    %v3762 = vpop.f32.mrf.mxu0
    %v3763 = vadd.f32 0.0, %v3762
    %v3764 = vpop.f32.mrf.mxu0
    %3765 = vmatprep.mubr.bf16.mxu0 0
    %3766 = vmatmul.mubr.bf16.gmra.mxu0 %v3566
    %v3767 = vpop.f32.mrf.mxu0
    %v3768 = vadd.f32 0.0, %v3767
    %v3769 = vpop.f32.mrf.mxu0
    %v3770 = vpop.f32.mrf.mxu0
    %v3771 = vadd.f32 0.0, %v3770
    %v3772 = vpop.f32.mrf.mxu0
    %3773 = vmatprep.mubr.bf16.mxu0 0
    %3774 = vmatmul.mubr.bf16.gmra.mxu0 %v3567
    %v3775 = vpop.f32.mrf.mxu0
    %v3776 = vadd.f32 0.0, %v3775
    %v3777 = vpop.f32.mrf.mxu0
    %v3778 = vpop.f32.mrf.mxu0
    %v3779 = vadd.f32 0.0, %v3778
    %v3780 = vpop.f32.mrf.mxu0
    %3781 = vmatprep.mubr.bf16.mxu0 0
    %3782 = vmatmul.mubr.bf16.gmra.mxu0 %v3568
    %v3783 = vpop.f32.mrf.mxu0
    %v3784 = vadd.f32 0.0, %v3783
    %v3785 = vpop.f32.mrf.mxu0
    %v3786 = vpop.f32.mrf.mxu0
    %v3787 = vadd.f32 0.0, %v3786
    %v3788 = vpop.f32.mrf.mxu0
    %3789 = vmatprep.mubr.bf16.mxu0 0
    %3790 = vmatmul.mubr.bf16.gmra.mxu0 %v3569
    %v3791 = vpop.f32.mrf.mxu0
    %v3792 = vadd.f32 0.0, %v3791
    %v3793 = vpop.f32.mrf.mxu0
    %v3794 = vpop.f32.mrf.mxu0
    %v3795 = vadd.f32 0.0, %v3794
    %v3796 = vpop.f32.mrf.mxu0
    %3797 = vmatprep.mubr.bf16.mxu0 0
    %3798 = vmatmul.mubr.bf16.gmra.mxu0 %v3570
    %v3799 = vpop.f32.mrf.mxu0
    %v3800 = vadd.f32 0.0, %v3799
    %v3801 = vpop.f32.mrf.mxu0
    %v3802 = vpop.f32.mrf.mxu0
    %v3803 = vadd.f32 0.0, %v3802
    %v3804 = vpop.f32.mrf.mxu0
    %3805 = vmatprep.mubr.bf16.mxu0 0
    %3806 = vmatmul.mubr.bf16.gmra.mxu0 %v3571
    %v3807 = vpop.f32.mrf.mxu0
    %v3808 = vadd.f32 0.0, %v3807
    %v3809 = vpop.f32.mrf.mxu0
    %v3810 = vpop.f32.mrf.mxu0
    %v3811 = vadd.f32 0.0, %v3810
    %v3812 = vpop.f32.mrf.mxu0
    %3813 = vmatprep.mubr.bf16.mxu0 0
    %3814 = vmatmul.mubr.bf16.gmra.mxu0 %v3572
    %v3815 = vpop.f32.mrf.mxu0
    %v3816 = vadd.f32 0.0, %v3815
    %v3817 = vpop.f32.mrf.mxu0
    %v3818 = vpop.f32.mrf.mxu0
    %v3819 = vadd.f32 0.0, %v3818
    %v3820 = vpop.f32.mrf.mxu0
    %3821 = vmatprep.mubr.bf16.mxu0 0
    %3822 = vmatmul.mubr.bf16.gmra.mxu0 %v3573
    %v3823 = vpop.f32.mrf.mxu0
    %v3824 = vadd.f32 0.0, %v3823
    %v3825 = vpop.f32.mrf.mxu0
    %v3826 = vpop.f32.mrf.mxu0
    %v3827 = vadd.f32 0.0, %v3826
    %v3828 = vpop.f32.mrf.mxu0
    %3829 = vmatprep.mubr.bf16.mxu0 0
    %3830 = vmatmul.mubr.bf16.gmra.mxu0 %v3574
    %v3831 = vpop.f32.mrf.mxu0
    %v3832 = vadd.f32 0.0, %v3831
    %v3833 = vpop.f32.mrf.mxu0
    %v3834 = vpop.f32.mrf.mxu0
    %v3835 = vadd.f32 0.0, %v3834
    %v3836 = vpop.f32.mrf.mxu0
    %3837 = vmatprep.mubr.bf16.mxu0 0
    %3838 = vmatmul.mubr.bf16.gmra.mxu0 %v3575
    %v3839 = vpop.f32.mrf.mxu0
    %v3840 = vadd.f32 0.0, %v3839
    %v3841 = vpop.f32.mrf.mxu0
    %v3842 = vpop.f32.mrf.mxu0
    %v3843 = vadd.f32 0.0, %v3842
    %v3844 = vpop.f32.mrf.mxu0
    %3845 = vmatprep.mubr.bf16.mxu0 0
    %3846 = vmatmul.mubr.bf16.gmra.mxu0 %v3576
    %v3847 = vpop.f32.mrf.mxu0
    %v3848 = vadd.f32 0.0, %v3847
    %v3849 = vpop.f32.mrf.mxu0
    %v3850 = vpop.f32.mrf.mxu0
    %v3851 = vadd.f32 0.0, %v3850
    %v3852 = vpop.f32.mrf.mxu0
    %3853 = vmatprep.mubr.bf16.mxu0 0
    %3854 = vmatmul.mubr.bf16.gmra.mxu0 %v3577
    %v3855 = vpop.f32.mrf.mxu0
    %v3856 = vadd.f32 0.0, %v3855
    %v3857 = vpop.f32.mrf.mxu0
    %v3858 = vpop.f32.mrf.mxu0
    %v3859 = vadd.f32 0.0, %v3858
    %v3860 = vpop.f32.mrf.mxu0
    %3861 = vmatprep.mubr.bf16.mxu0 0
    %3862 = vmatmul.mubr.bf16.gmra.mxu0 %v3578
    %v3863 = vpop.f32.mrf.mxu0
    %v3864 = vadd.f32 0.0, %v3863
    %v3865 = vpop.f32.mrf.mxu0
    %v3866 = vpop.f32.mrf.mxu0
    %v3867 = vadd.f32 0.0, %v3866
    %v3868 = vpop.f32.mrf.mxu0
    %3869 = vmatprep.mubr.bf16.mxu0 0
    %3870 = vmatmul.mubr.bf16.gmra.mxu0 %v3579
    %v3871 = vpop.f32.mrf.mxu0
    %v3872 = vadd.f32 0.0, %v3871
    %v3873 = vpop.f32.mrf.mxu0
    %v3874 = vpop.f32.mrf.mxu0
    %v3875 = vadd.f32 0.0, %v3874
    %v3876 = vpop.f32.mrf.mxu0
    %3877 = vmatprep.mubr.bf16.mxu0 0
    %3878 = vmatmul.mubr.bf16.gmra.mxu0 %v3580
    %v3879 = vpop.f32.mrf.mxu0
    %v3880 = vadd.f32 0.0, %v3879
    %v3881 = vpop.f32.mrf.mxu0
    %v3882 = vpop.f32.mrf.mxu0
    %v3883 = vadd.f32 0.0, %v3882
    %v3884 = vpop.f32.mrf.mxu0
    %3885 = vmatprep.mubr.bf16.mxu0 0
    %3886 = vmatmul.mubr.bf16.gmra.mxu0 %v3581
    %v3887 = vpop.f32.mrf.mxu0
    %v3888 = vadd.f32 0.0, %v3887
    %v3889 = vpop.f32.mrf.mxu0
    %v3890 = vpop.f32.mrf.mxu0
    %v3891 = vadd.f32 0.0, %v3890
    %v3892 = vpop.f32.mrf.mxu0
    %3893 = vmatprep.mubr.bf16.mxu0 0
    %3894 = vmatmul.mubr.bf16.gmra.mxu0 %v3582
    %v3895 = vpop.f32.mrf.mxu0
    %v3896 = vadd.f32 0.0, %v3895
    %v3897 = vpop.f32.mrf.mxu0
    %v3898 = vpop.f32.mrf.mxu0
    %v3899 = vadd.f32 0.0, %v3898
    %v3900 = vpop.f32.mrf.mxu0
    %3901 = vmatprep.mubr.bf16.mxu0 0
    %3902 = vmatmul.mubr.bf16.gmra.mxu0 %v3583
    %v3903 = vpop.f32.mrf.mxu0
    %v3904 = vadd.f32 0.0, %v3903
    %v3905 = vpop.f32.mrf.mxu0
    %v3906 = vpop.f32.mrf.mxu0
    %v3907 = vadd.f32 0.0, %v3906
    %v3908 = vpop.f32.mrf.mxu0
    %3909 = vmatprep.mubr.bf16.mxu0 0
    %3910 = vmatmul.mubr.bf16.gmra.mxu0 %v3584
    %v3911 = vpop.f32.mrf.mxu0
    %v3912 = vadd.f32 0.0, %v3911
    %v3913 = vpop.f32.mrf.mxu0
    %v3914 = vpop.f32.mrf.mxu0
    %v3915 = vadd.f32 0.0, %v3914
    %v3916 = vpop.f32.mrf.mxu0
    %3917 = vmatprep.mubr.bf16.mxu0 0
    %3918 = vmatmul.mubr.bf16.gmra.mxu0 %v3585
    %v3919 = vpop.f32.mrf.mxu0
    %v3920 = vadd.f32 0.0, %v3919
    %v3921 = vpop.f32.mrf.mxu0
    %v3922 = vpop.f32.mrf.mxu0
    %v3923 = vadd.f32 0.0, %v3922
    %v3924 = vpop.f32.mrf.mxu0
    %3925 = vmatprep.mubr.bf16.mxu0 0
    %3926 = vmatmul.mubr.bf16.gmra.mxu0 %v3586
    %v3927 = vpop.f32.mrf.mxu0
    %v3928 = vadd.f32 0.0, %v3927
    %v3929 = vpop.f32.mrf.mxu0
    %v3930 = vpop.f32.mrf.mxu0
    %v3931 = vadd.f32 0.0, %v3930
    %v3932 = vpop.f32.mrf.mxu0
    %3933 = vmatprep.mubr.bf16.mxu0 0
    %3934 = vmatmul.mubr.bf16.gmra.mxu0 %v3587
    %v3935 = vpop.f32.mrf.mxu0
    %v3936 = vadd.f32 0.0, %v3935
    %v3937 = vpop.f32.mrf.mxu0
    %v3938 = vpop.f32.mrf.mxu0
    %v3939 = vadd.f32 0.0, %v3938
    %v3940 = vpop.f32.mrf.mxu0
    %3941 = vdwg.mxu0
    %v3942 = vadd.f32 %v2979, %v3688
    %v3943 = vadd.f32 %v2980, %v3691
    %v3944 = vadd.f32 %v2981, %v3696
    %v3945 = vadd.f32 %v2982, %v3699
    %v3946 = vadd.f32 %v2983, %v3704
    %v3947 = vadd.f32 %v2984, %v3707
    %v3948 = vadd.f32 %v2985, %v3712
    %v3949 = vadd.f32 %v2986, %v3715
    %v3950 = vadd.f32 %v2987, %v3720
    %v3951 = vadd.f32 %v2988, %v3723
    %v3952 = vadd.f32 %v2989, %v3728
    %v3953 = vadd.f32 %v2990, %v3731
    %v3954 = vadd.f32 %v2991, %v3736
    %v3955 = vadd.f32 %v2992, %v3739
    %v3956 = vadd.f32 %v2993, %v3744
    %v3957 = vadd.f32 %v2994, %v3747
    %v3958 = vadd.f32 %v2995, %v3752
    %v3959 = vadd.f32 %v2996, %v3755
    %v3960 = vadd.f32 %v2997, %v3760
    %v3961 = vadd.f32 %v2998, %v3763
    %v3962 = vadd.f32 %v2999, %v3768
    %v3963 = vadd.f32 %v3000, %v3771
    %v3964 = vadd.f32 %v3001, %v3776
    %v3965 = vadd.f32 %v3002, %v3779
    %v3966 = vadd.f32 %v3003, %v3784
    %v3967 = vadd.f32 %v3004, %v3787
    %v3968 = vadd.f32 %v3005, %v3792
    %v3969 = vadd.f32 %v3006, %v3795
    %v3970 = vadd.f32 %v3007, %v3800
    %v3971 = vadd.f32 %v3008, %v3803
    %v3972 = vadd.f32 %v3009, %v3808
    %v3973 = vadd.f32 %v3010, %v3811
    %v3974 = vadd.f32 %v3011, %v3816
    %v3975 = vadd.f32 %v3012, %v3819
    %v3976 = vadd.f32 %v3013, %v3824
    %v3977 = vadd.f32 %v3014, %v3827
    %v3978 = vadd.f32 %v3015, %v3832
    %v3979 = vadd.f32 %v3016, %v3835
    %v3980 = vadd.f32 %v3017, %v3840
    %v3981 = vadd.f32 %v3018, %v3843
    %v3982 = vadd.f32 %v3019, %v3848
    %v3983 = vadd.f32 %v3020, %v3851
    %v3984 = vadd.f32 %v3021, %v3856
    %v3985 = vadd.f32 %v3022, %v3859
    %v3986 = vadd.f32 %v3023, %v3864
    %v3987 = vadd.f32 %v3024, %v3867
    %v3988 = vadd.f32 %v3025, %v3872
    %v3989 = vadd.f32 %v3026, %v3875
    %v3990 = vadd.f32 %v3027, %v3880
    %v3991 = vadd.f32 %v3028, %v3883
    %v3992 = vadd.f32 %v3029, %v3888
    %v3993 = vadd.f32 %v3030, %v3891
    %v3994 = vadd.f32 %v3031, %v3896
    %v3995 = vadd.f32 %v3032, %v3899
    %v3996 = vadd.f32 %v3033, %v3904
    %v3997 = vadd.f32 %v3034, %v3907
    %v3998 = vadd.f32 %v3035, %v3912
    %v3999 = vadd.f32 %v3036, %v3915
    %v4000 = vadd.f32 %v3037, %v3920
    %v4001 = vadd.f32 %v3038, %v3923
    %v4002 = vadd.f32 %v3039, %v3928
    %v4003 = vadd.f32 %v3040, %v3931
    %v4004 = vadd.f32 %v3041, %v3936
    %v4005 = vadd.f32 %v3042, %v3939
    %v4006 = vld [vmem:[#allocation2 + $0x18] sm:$0xff]
    %v4007 = vld [vmem:[#allocation2 + $0x20] sm:$0xff]
    %v4008 = vld [vmem:[#allocation2 + $0x28] sm:$0xff]
    %v4009 = vld [vmem:[#allocation2 + $0x30] sm:$0xff]
    %v4010 = vld [vmem:[#allocation2 + $0x38] sm:$0xff]
    %v4011 = vld [vmem:[#allocation2 + $0x40] sm:$0xff]
    %v4012 = vld [vmem:[#allocation2 + $0x48] sm:$0xff]
    %v4013 = vld [vmem:[#allocation2 + $0x50] sm:$0xff]
    %v4014 = vld [vmem:[#allocation2 + $0x58] sm:$0xff]
    %v4015 = vld [vmem:[#allocation2 + $0x60] sm:$0xff]
    %v4016 = vld [vmem:[#allocation2 + $0x68] sm:$0xff]
    %v4017 = vld [vmem:[#allocation2 + $0x70] sm:$0xff]
    %v4018 = vld [vmem:[#allocation2 + $0x78] sm:$0xff]
    %v4019 = vld [vmem:[#allocation2 + $0x80] sm:$0xff]
    %v4020 = vld [vmem:[#allocation2 + $0x88] sm:$0xff]
    %v4021 = vld [vmem:[#allocation2 + $0x90] sm:$0xff]
    %v4022 = vld [vmem:[#allocation2 + $0x98] sm:$0xff]
    %v4023 = vld [vmem:[#allocation2 + $0xa0] sm:$0xff]
    %v4024 = vld [vmem:[#allocation2 + $0xa8] sm:$0xff]
    %v4025 = vld [vmem:[#allocation2 + $0xb0] sm:$0xff]
    %v4026 = vld [vmem:[#allocation2 + $0xb8] sm:$0xff]
    %v4027 = vld [vmem:[#allocation2 + $0xc0] sm:$0xff]
    %v4028 = vld [vmem:[#allocation2 + $0xc8] sm:$0xff]
    %v4029 = vld [vmem:[#allocation2 + $0xd0] sm:$0xff]
    %v4030 = vld [vmem:[#allocation2 + $0xd8] sm:$0xff]
    %v4031 = vld [vmem:[#allocation2 + $0xe0] sm:$0xff]
    %v4032 = vld [vmem:[#allocation2 + $0xe8] sm:$0xff]
    %v4033 = vld [vmem:[#allocation2 + $0xf0] sm:$0xff]
    %v4034 = vld [vmem:[#allocation2 + $0xf8] sm:$0xff]
    %v4035 = vld [vmem:[#allocation2 + $0x100] sm:$0xff]
    %v4036 = vld [vmem:[#allocation2 + $0x108] sm:$0xff]
    %v4037 = vld [vmem:[#allocation2 + $0x110] sm:$0xff]
    %v4038 = vld [vmem:[#allocation2 + $0x118] sm:$0xff]
    %v4039 = vld [vmem:[#allocation2 + $0x120] sm:$0xff]
    %v4040 = vld [vmem:[#allocation2 + $0x128] sm:$0xff]
    %v4041 = vld [vmem:[#allocation2 + $0x130] sm:$0xff]
    %v4042 = vld [vmem:[#allocation2 + $0x138] sm:$0xff]
    %v4043 = vld [vmem:[#allocation2 + $0x140] sm:$0xff]
    %v4044 = vld [vmem:[#allocation2 + $0x148] sm:$0xff]
    %v4045 = vld [vmem:[#allocation2 + $0x150] sm:$0xff]
    %v4046 = vld [vmem:[#allocation2 + $0x158] sm:$0xff]
    %v4047 = vld [vmem:[#allocation2 + $0x160] sm:$0xff]
    %v4048 = vld [vmem:[#allocation2 + $0x168] sm:$0xff]
    %v4049 = vld [vmem:[#allocation2 + $0x170] sm:$0xff]
    %v4050 = vld [vmem:[#allocation2 + $0x178] sm:$0xff]
    %v4051 = vld [vmem:[#allocation2 + $0x180] sm:$0xff]
    %v4052 = vld [vmem:[#allocation2 + $0x188] sm:$0xff]
    %v4053 = vld [vmem:[#allocation2 + $0x190] sm:$0xff]
    %v4054 = vld [vmem:[#allocation2 + $0x198] sm:$0xff]
    %v4055 = vld [vmem:[#allocation2 + $0x1a0] sm:$0xff]
    %v4056 = vld [vmem:[#allocation2 + $0x1a8] sm:$0xff]
    %v4057 = vld [vmem:[#allocation2 + $0x1b0] sm:$0xff]
    %v4058 = vld [vmem:[#allocation2 + $0x1b8] sm:$0xff]
    %v4059 = vld [vmem:[#allocation2 + $0x1c0] sm:$0xff]
    %v4060 = vld [vmem:[#allocation2 + $0x1c8] sm:$0xff]
    %v4061 = vld [vmem:[#allocation2 + $0x1d0] sm:$0xff]
    %v4062 = vld [vmem:[#allocation2 + $0x1d8] sm:$0xff]
    %v4063 = vld [vmem:[#allocation2 + $0x1e0] sm:$0xff]
    %v4064 = vld [vmem:[#allocation2 + $0x1e8] sm:$0xff]
    %v4065 = vld [vmem:[#allocation2 + $0x1f0] sm:$0xff]
    %v4066 = vld [vmem:[#allocation2 + $0x1f8] sm:$0xff]
    %v4067 = vld [vmem:[#allocation2 + $0x200] sm:$0xff]
    %v4068 = vld [vmem:[#allocation2 + $0x208] sm:$0xff]
    %v4069 = vld [vmem:[#allocation2 + $0x210] sm:$0xff]
    %s4070 = scalar_lea.vmem %s1, 2048
    %v4071 = vld [vmem:[%s4070] sm:$0xff]
    %v4072 = vld [vmem:[%s4070 + $0x8] sm:$0xff]
    %v4073 = vld [vmem:[%s4070 + $0x10] sm:$0xff]
    %v4074 = vld [vmem:[%s4070 + $0x18] sm:$0xff]
    %v4075 = vld [vmem:[%s4070 + $0x20] sm:$0xff]
    %v4076 = vld [vmem:[%s4070 + $0x28] sm:$0xff]
    %v4077 = vld [vmem:[%s4070 + $0x30] sm:$0xff]
    %v4078 = vld [vmem:[%s4070 + $0x38] sm:$0xff]
    %v4079 = vld [vmem:[%s4070 + $0x40] sm:$0xff]
    %v4080 = vld [vmem:[%s4070 + $0x48] sm:$0xff]
    %v4081 = vld [vmem:[%s4070 + $0x50] sm:$0xff]
    %v4082 = vld [vmem:[%s4070 + $0x58] sm:$0xff]
    %v4083 = vld [vmem:[%s4070 + $0x60] sm:$0xff]
    %v4084 = vld [vmem:[%s4070 + $0x68] sm:$0xff]
    %v4085 = vld [vmem:[%s4070 + $0x70] sm:$0xff]
    %v4086 = vld [vmem:[%s4070 + $0x78] sm:$0xff]
    %v4087 = vld [vmem:[%s4070 + $0x80] sm:$0xff]
    %v4088 = vld [vmem:[%s4070 + $0x88] sm:$0xff]
    %v4089 = vld [vmem:[%s4070 + $0x90] sm:$0xff]
    %v4090 = vld [vmem:[%s4070 + $0x98] sm:$0xff]
    %v4091 = vld [vmem:[%s4070 + $0xa0] sm:$0xff]
    %v4092 = vld [vmem:[%s4070 + $0xa8] sm:$0xff]
    %v4093 = vld [vmem:[%s4070 + $0xb0] sm:$0xff]
    %v4094 = vld [vmem:[%s4070 + $0xb8] sm:$0xff]
    %v4095 = vld [vmem:[%s4070 + $0xc0] sm:$0xff]
    %v4096 = vld [vmem:[%s4070 + $0xc8] sm:$0xff]
    %v4097 = vld [vmem:[%s4070 + $0xd0] sm:$0xff]
    %v4098 = vld [vmem:[%s4070 + $0xd8] sm:$0xff]
    %v4099 = vld [vmem:[%s4070 + $0xe0] sm:$0xff]
    %v4100 = vld [vmem:[%s4070 + $0xe8] sm:$0xff]
    %v4101 = vld [vmem:[%s4070 + $0xf0] sm:$0xff]
    %v4102 = vld [vmem:[%s4070 + $0xf8] sm:$0xff]
    %v4103 = vld [vmem:[%s4070 + $0x100] sm:$0xff]
    %v4104 = vld [vmem:[%s4070 + $0x108] sm:$0xff]
    %v4105 = vld [vmem:[%s4070 + $0x110] sm:$0xff]
    %v4106 = vld [vmem:[%s4070 + $0x118] sm:$0xff]
    %v4107 = vld [vmem:[%s4070 + $0x120] sm:$0xff]
    %v4108 = vld [vmem:[%s4070 + $0x128] sm:$0xff]
    %v4109 = vld [vmem:[%s4070 + $0x130] sm:$0xff]
    %v4110 = vld [vmem:[%s4070 + $0x138] sm:$0xff]
    %v4111 = vld [vmem:[%s4070 + $0x140] sm:$0xff]
    %v4112 = vld [vmem:[%s4070 + $0x148] sm:$0xff]
    %v4113 = vld [vmem:[%s4070 + $0x150] sm:$0xff]
    %v4114 = vld [vmem:[%s4070 + $0x158] sm:$0xff]
    %v4115 = vld [vmem:[%s4070 + $0x160] sm:$0xff]
    %v4116 = vld [vmem:[%s4070 + $0x168] sm:$0xff]
    %v4117 = vld [vmem:[%s4070 + $0x170] sm:$0xff]
    %v4118 = vld [vmem:[%s4070 + $0x178] sm:$0xff]
    %v4119 = vld [vmem:[%s4070 + $0x180] sm:$0xff]
    %v4120 = vld [vmem:[%s4070 + $0x188] sm:$0xff]
    %v4121 = vld [vmem:[%s4070 + $0x190] sm:$0xff]
    %v4122 = vld [vmem:[%s4070 + $0x198] sm:$0xff]
    %v4123 = vld [vmem:[%s4070 + $0x1a0] sm:$0xff]
    %v4124 = vld [vmem:[%s4070 + $0x1a8] sm:$0xff]
    %v4125 = vld [vmem:[%s4070 + $0x1b0] sm:$0xff]
    %v4126 = vld [vmem:[%s4070 + $0x1b8] sm:$0xff]
    %v4127 = vld [vmem:[%s4070 + $0x1c0] sm:$0xff]
    %v4128 = vld [vmem:[%s4070 + $0x1c8] sm:$0xff]
    %v4129 = vld [vmem:[%s4070 + $0x1d0] sm:$0xff]
    %v4130 = vld [vmem:[%s4070 + $0x1d8] sm:$0xff]
    %v4131 = vld [vmem:[%s4070 + $0x1e0] sm:$0xff]
    %v4132 = vld [vmem:[%s4070 + $0x1e8] sm:$0xff]
    %v4133 = vld [vmem:[%s4070 + $0x1f0] sm:$0xff]
    %v4134 = vld [vmem:[%s4070 + $0x1f8] sm:$0xff]
    %4136 = vset.pattern.permute.xlu0 0
    %4137 = vperm.xlu0 %4136, %v4071
    %v4138 = vpop.permute.xlu0 %4137
    %4141 = vset.pattern.permute.xlu0 0
    %4142 = vperm.xlu0 %4141, %v4072
    %v4143 = vpop.permute.xlu0 %4142
    %4146 = vset.pattern.permute.xlu0 0
    %4147 = vperm.xlu0 %4146, %v4073
    %v4148 = vpop.permute.xlu0 %4147
    %4151 = vset.pattern.permute.xlu0 0
    %4152 = vperm.xlu0 %4151, %v4074
    %v4153 = vpop.permute.xlu0 %4152
    %4156 = vset.pattern.permute.xlu0 0
    %4157 = vperm.xlu0 %4156, %v4075
    %v4158 = vpop.permute.xlu0 %4157
    %4161 = vset.pattern.permute.xlu0 0
    %4162 = vperm.xlu0 %4161, %v4076
    %v4163 = vpop.permute.xlu0 %4162
    %4166 = vset.pattern.permute.xlu0 0
    %4167 = vperm.xlu0 %4166, %v4077
    %v4168 = vpop.permute.xlu0 %4167
    %4171 = vset.pattern.permute.xlu0 0
    %4172 = vperm.xlu0 %4171, %v4078
    %v4173 = vpop.permute.xlu0 %4172
    %4176 = vset.pattern.permute.xlu0 0
    %4177 = vperm.xlu0 %4176, %v4079
    %v4178 = vpop.permute.xlu0 %4177
    %4181 = vset.pattern.permute.xlu0 0
    %4182 = vperm.xlu0 %4181, %v4080
    %v4183 = vpop.permute.xlu0 %4182
    %4186 = vset.pattern.permute.xlu0 0
    %4187 = vperm.xlu0 %4186, %v4081
    %v4188 = vpop.permute.xlu0 %4187
    %4191 = vset.pattern.permute.xlu0 0
    %4192 = vperm.xlu0 %4191, %v4082
    %v4193 = vpop.permute.xlu0 %4192
    %4196 = vset.pattern.permute.xlu0 0
    %4197 = vperm.xlu0 %4196, %v4083
    %v4198 = vpop.permute.xlu0 %4197
    %4201 = vset.pattern.permute.xlu0 0
    %4202 = vperm.xlu0 %4201, %v4084
    %v4203 = vpop.permute.xlu0 %4202
    %4206 = vset.pattern.permute.xlu0 0
    %4207 = vperm.xlu0 %4206, %v4085
    %v4208 = vpop.permute.xlu0 %4207
    %4211 = vset.pattern.permute.xlu0 0
    %4212 = vperm.xlu0 %4211, %v4086
    %v4213 = vpop.permute.xlu0 %4212
    %4216 = vset.pattern.permute.xlu0 0
    %4217 = vperm.xlu0 %4216, %v4087
    %v4218 = vpop.permute.xlu0 %4217
    %4221 = vset.pattern.permute.xlu0 0
    %4222 = vperm.xlu0 %4221, %v4088
    %v4223 = vpop.permute.xlu0 %4222
    %4226 = vset.pattern.permute.xlu0 0
    %4227 = vperm.xlu0 %4226, %v4089
    %v4228 = vpop.permute.xlu0 %4227
    %4231 = vset.pattern.permute.xlu0 0
    %4232 = vperm.xlu0 %4231, %v4090
    %v4233 = vpop.permute.xlu0 %4232
    %4236 = vset.pattern.permute.xlu0 0
    %4237 = vperm.xlu0 %4236, %v4091
    %v4238 = vpop.permute.xlu0 %4237
    %4241 = vset.pattern.permute.xlu0 0
    %4242 = vperm.xlu0 %4241, %v4092
    %v4243 = vpop.permute.xlu0 %4242
    %4246 = vset.pattern.permute.xlu0 0
    %4247 = vperm.xlu0 %4246, %v4093
    %v4248 = vpop.permute.xlu0 %4247
    %4251 = vset.pattern.permute.xlu0 0
    %4252 = vperm.xlu0 %4251, %v4094
    %v4253 = vpop.permute.xlu0 %4252
    %4256 = vset.pattern.permute.xlu0 0
    %4257 = vperm.xlu0 %4256, %v4095
    %v4258 = vpop.permute.xlu0 %4257
    %4261 = vset.pattern.permute.xlu0 0
    %4262 = vperm.xlu0 %4261, %v4096
    %v4263 = vpop.permute.xlu0 %4262
    %4266 = vset.pattern.permute.xlu0 0
    %4267 = vperm.xlu0 %4266, %v4097
    %v4268 = vpop.permute.xlu0 %4267
    %4271 = vset.pattern.permute.xlu0 0
    %4272 = vperm.xlu0 %4271, %v4098
    %v4273 = vpop.permute.xlu0 %4272
    %4276 = vset.pattern.permute.xlu0 0
    %4277 = vperm.xlu0 %4276, %v4099
    %v4278 = vpop.permute.xlu0 %4277
    %4281 = vset.pattern.permute.xlu0 0
    %4282 = vperm.xlu0 %4281, %v4100
    %v4283 = vpop.permute.xlu0 %4282
    %4286 = vset.pattern.permute.xlu0 0
    %4287 = vperm.xlu0 %4286, %v4101
    %v4288 = vpop.permute.xlu0 %4287
    %4291 = vset.pattern.permute.xlu0 0
    %4292 = vperm.xlu0 %4291, %v4102
    %v4293 = vpop.permute.xlu0 %4292
    %4296 = vset.pattern.permute.xlu0 0
    %4297 = vperm.xlu0 %4296, %v4103
    %v4298 = vpop.permute.xlu0 %4297
    %4301 = vset.pattern.permute.xlu0 0
    %4302 = vperm.xlu0 %4301, %v4104
    %v4303 = vpop.permute.xlu0 %4302
    %4306 = vset.pattern.permute.xlu0 0
    %4307 = vperm.xlu0 %4306, %v4105
    %v4308 = vpop.permute.xlu0 %4307
    %4311 = vset.pattern.permute.xlu0 0
    %4312 = vperm.xlu0 %4311, %v4106
    %v4313 = vpop.permute.xlu0 %4312
    %4316 = vset.pattern.permute.xlu0 0
    %4317 = vperm.xlu0 %4316, %v4107
    %v4318 = vpop.permute.xlu0 %4317
    %4321 = vset.pattern.permute.xlu0 0
    %4322 = vperm.xlu0 %4321, %v4108
    %v4323 = vpop.permute.xlu0 %4322
    %4326 = vset.pattern.permute.xlu0 0
    %4327 = vperm.xlu0 %4326, %v4109
    %v4328 = vpop.permute.xlu0 %4327
    %4331 = vset.pattern.permute.xlu0 0
    %4332 = vperm.xlu0 %4331, %v4110
    %v4333 = vpop.permute.xlu0 %4332
    %4336 = vset.pattern.permute.xlu0 0
    %4337 = vperm.xlu0 %4336, %v4111
    %v4338 = vpop.permute.xlu0 %4337
    %4341 = vset.pattern.permute.xlu0 0
    %4342 = vperm.xlu0 %4341, %v4112
    %v4343 = vpop.permute.xlu0 %4342
    %4346 = vset.pattern.permute.xlu0 0
    %4347 = vperm.xlu0 %4346, %v4113
    %v4348 = vpop.permute.xlu0 %4347
    %4351 = vset.pattern.permute.xlu0 0
    %4352 = vperm.xlu0 %4351, %v4114
    %v4353 = vpop.permute.xlu0 %4352
    %4356 = vset.pattern.permute.xlu0 0
    %4357 = vperm.xlu0 %4356, %v4115
    %v4358 = vpop.permute.xlu0 %4357
    %4361 = vset.pattern.permute.xlu0 0
    %4362 = vperm.xlu0 %4361, %v4116
    %v4363 = vpop.permute.xlu0 %4362
    %4366 = vset.pattern.permute.xlu0 0
    %4367 = vperm.xlu0 %4366, %v4117
    %v4368 = vpop.permute.xlu0 %4367
    %4371 = vset.pattern.permute.xlu0 0
    %4372 = vperm.xlu0 %4371, %v4118
    %v4373 = vpop.permute.xlu0 %4372
    %4376 = vset.pattern.permute.xlu0 0
    %4377 = vperm.xlu0 %4376, %v4119
    %v4378 = vpop.permute.xlu0 %4377
    %4381 = vset.pattern.permute.xlu0 0
    %4382 = vperm.xlu0 %4381, %v4120
    %v4383 = vpop.permute.xlu0 %4382
    %4386 = vset.pattern.permute.xlu0 0
    %4387 = vperm.xlu0 %4386, %v4121
    %v4388 = vpop.permute.xlu0 %4387
    %4391 = vset.pattern.permute.xlu0 0
    %4392 = vperm.xlu0 %4391, %v4122
    %v4393 = vpop.permute.xlu0 %4392
    %4396 = vset.pattern.permute.xlu0 0
    %4397 = vperm.xlu0 %4396, %v4123
    %v4398 = vpop.permute.xlu0 %4397
    %4401 = vset.pattern.permute.xlu0 0
    %4402 = vperm.xlu0 %4401, %v4124
    %v4403 = vpop.permute.xlu0 %4402
    %4406 = vset.pattern.permute.xlu0 0
    %4407 = vperm.xlu0 %4406, %v4125
    %v4408 = vpop.permute.xlu0 %4407
    %4411 = vset.pattern.permute.xlu0 0
    %4412 = vperm.xlu0 %4411, %v4126
    %v4413 = vpop.permute.xlu0 %4412
    %4416 = vset.pattern.permute.xlu0 0
    %4417 = vperm.xlu0 %4416, %v4127
    %v4418 = vpop.permute.xlu0 %4417
    %4421 = vset.pattern.permute.xlu0 0
    %4422 = vperm.xlu0 %4421, %v4128
    %v4423 = vpop.permute.xlu0 %4422
    %4426 = vset.pattern.permute.xlu0 0
    %4427 = vperm.xlu0 %4426, %v4129
    %v4428 = vpop.permute.xlu0 %4427
    %4431 = vset.pattern.permute.xlu0 0
    %4432 = vperm.xlu0 %4431, %v4130
    %v4433 = vpop.permute.xlu0 %4432
    %4436 = vset.pattern.permute.xlu0 0
    %4437 = vperm.xlu0 %4436, %v4131
    %v4438 = vpop.permute.xlu0 %4437
    %4441 = vset.pattern.permute.xlu0 0
    %4442 = vperm.xlu0 %4441, %v4132
    %v4443 = vpop.permute.xlu0 %4442
    %4446 = vset.pattern.permute.xlu0 0
    %4447 = vperm.xlu0 %4446, %v4133
    %v4448 = vpop.permute.xlu0 %4447
    %4451 = vset.pattern.permute.xlu0 0
    %4452 = vperm.xlu0 %4451, %v4134
    %v4453 = vpop.permute.xlu0 %4452
    %v4455 = vmul.f32 %v4006, %v4138
    %v4456 = vmul.f32 %v4007, %v4143
    %v4457 = vmul.f32 %v4008, %v4148
    %v4458 = vmul.f32 %v4009, %v4153
    %v4459 = vmul.f32 %v4010, %v4158
    %v4460 = vmul.f32 %v4011, %v4163
    %v4461 = vmul.f32 %v4012, %v4168
    %v4462 = vmul.f32 %v4013, %v4173
    %v4463 = vmul.f32 %v4014, %v4178
    %v4464 = vmul.f32 %v4015, %v4183
    %v4465 = vmul.f32 %v4016, %v4188
    %v4466 = vmul.f32 %v4017, %v4193
    %v4467 = vmul.f32 %v4018, %v4198
    %v4468 = vmul.f32 %v4019, %v4203
    %v4469 = vmul.f32 %v4020, %v4208
    %v4470 = vmul.f32 %v4021, %v4213
    %v4471 = vmul.f32 %v4022, %v4218
    %v4472 = vmul.f32 %v4023, %v4223
    %v4473 = vmul.f32 %v4024, %v4228
    %v4474 = vmul.f32 %v4025, %v4233
    %v4475 = vmul.f32 %v4026, %v4238
    %v4476 = vmul.f32 %v4027, %v4243
    %v4477 = vmul.f32 %v4028, %v4248
    %v4478 = vmul.f32 %v4029, %v4253
    %v4479 = vmul.f32 %v4030, %v4258
    %v4480 = vmul.f32 %v4031, %v4263
    %v4481 = vmul.f32 %v4032, %v4268
    %v4482 = vmul.f32 %v4033, %v4273
    %v4483 = vmul.f32 %v4034, %v4278
    %v4484 = vmul.f32 %v4035, %v4283
    %v4485 = vmul.f32 %v4036, %v4288
    %v4486 = vmul.f32 %v4037, %v4293
    %v4487 = vmul.f32 %v4038, %v4298
    %v4488 = vmul.f32 %v4039, %v4303
    %v4489 = vmul.f32 %v4040, %v4308
    %v4490 = vmul.f32 %v4041, %v4313
    %v4491 = vmul.f32 %v4042, %v4318
    %v4492 = vmul.f32 %v4043, %v4323
    %v4493 = vmul.f32 %v4044, %v4328
    %v4494 = vmul.f32 %v4045, %v4333
    %v4495 = vmul.f32 %v4046, %v4338
    %v4496 = vmul.f32 %v4047, %v4343
    %v4497 = vmul.f32 %v4048, %v4348
    %v4498 = vmul.f32 %v4049, %v4353
    %v4499 = vmul.f32 %v4050, %v4358
    %v4500 = vmul.f32 %v4051, %v4363
    %v4501 = vmul.f32 %v4052, %v4368
    %v4502 = vmul.f32 %v4053, %v4373
    %v4503 = vmul.f32 %v4054, %v4378
    %v4504 = vmul.f32 %v4055, %v4383
    %v4505 = vmul.f32 %v4056, %v4388
    %v4506 = vmul.f32 %v4057, %v4393
    %v4507 = vmul.f32 %v4058, %v4398
    %v4508 = vmul.f32 %v4059, %v4403
    %v4509 = vmul.f32 %v4060, %v4408
    %v4510 = vmul.f32 %v4061, %v4413
    %v4511 = vmul.f32 %v4062, %v4418
    %v4512 = vmul.f32 %v4063, %v4423
    %v4513 = vmul.f32 %v4064, %v4428
    %v4514 = vmul.f32 %v4065, %v4433
    %v4515 = vmul.f32 %v4066, %v4438
    %v4516 = vmul.f32 %v4067, %v4443
    %v4517 = vmul.f32 %v4068, %v4448
    %v4518 = vmul.f32 %v4069, %v4453
    %v4519 = vpack.c.bf16 %v4456, %v4455
    %v4520 = vpack.c.bf16 %v4458, %v4457
    %v4521 = vpack.c.bf16 %v4460, %v4459
    %v4522 = vpack.c.bf16 %v4462, %v4461
    %v4523 = vpack.c.bf16 %v4464, %v4463
    %v4524 = vpack.c.bf16 %v4466, %v4465
    %v4525 = vpack.c.bf16 %v4468, %v4467
    %v4526 = vpack.c.bf16 %v4470, %v4469
    %v4527 = vpack.c.bf16 %v4472, %v4471
    %v4528 = vpack.c.bf16 %v4474, %v4473
    %v4529 = vpack.c.bf16 %v4476, %v4475
    %v4530 = vpack.c.bf16 %v4478, %v4477
    %v4531 = vpack.c.bf16 %v4480, %v4479
    %v4532 = vpack.c.bf16 %v4482, %v4481
    %v4533 = vpack.c.bf16 %v4484, %v4483
    %v4534 = vpack.c.bf16 %v4486, %v4485
    %v4535 = vpack.c.bf16 %v4488, %v4487
    %v4536 = vpack.c.bf16 %v4490, %v4489
    %v4537 = vpack.c.bf16 %v4492, %v4491
    %v4538 = vpack.c.bf16 %v4494, %v4493
    %v4539 = vpack.c.bf16 %v4496, %v4495
    %v4540 = vpack.c.bf16 %v4498, %v4497
    %v4541 = vpack.c.bf16 %v4500, %v4499
    %v4542 = vpack.c.bf16 %v4502, %v4501
    %v4543 = vpack.c.bf16 %v4504, %v4503
    %v4544 = vpack.c.bf16 %v4506, %v4505
    %v4545 = vpack.c.bf16 %v4508, %v4507
    %v4546 = vpack.c.bf16 %v4510, %v4509
    %v4547 = vpack.c.bf16 %v4512, %v4511
    %v4548 = vpack.c.bf16 %v4514, %v4513
    %v4549 = vpack.c.bf16 %v4516, %v4515
    %v4550 = vpack.c.bf16 %v4518, %v4517
    %s4551 = scalar_lea.vmem %s2, 256
    %v4552 = vld [vmem:[%s4551] sm:$0xf]
    %v4553 = vld [vmem:[%s4551 + $0x4] sm:$0xf]
    %v4554 = vld [vmem:[%s4551 + $0x8] sm:$0xf]
    %v4555 = vld [vmem:[%s4551 + $0xc] sm:$0xf]
    %v4556 = vld [vmem:[%s4551 + $0x10] sm:$0xf]
    %v4557 = vld [vmem:[%s4551 + $0x14] sm:$0xf]
    %v4558 = vld [vmem:[%s4551 + $0x18] sm:$0xf]
    %v4559 = vld [vmem:[%s4551 + $0x1c] sm:$0xf]
    %v4560 = vld [vmem:[%s4551 + $0x20] sm:$0xf]
    %v4561 = vld [vmem:[%s4551 + $0x24] sm:$0xf]
    %v4562 = vld [vmem:[%s4551 + $0x28] sm:$0xf]
    %v4563 = vld [vmem:[%s4551 + $0x2c] sm:$0xf]
    %v4564 = vld [vmem:[%s4551 + $0x30] sm:$0xf]
    %v4565 = vld [vmem:[%s4551 + $0x34] sm:$0xf]
    %v4566 = vld [vmem:[%s4551 + $0x38] sm:$0xf]
    %v4567 = vld [vmem:[%s4551 + $0x3c] sm:$0xf]
    %v4584 = vunpack.c.l.b16 %v4552
    %v4585 = vunpack.c.l.b16 %v4553
    %v4586 = vunpack.c.l.b16 %v4554
    %v4587 = vunpack.c.l.b16 %v4555
    %v4588 = vunpack.c.l.b16 %v4556
    %v4589 = vunpack.c.l.b16 %v4557
    %v4590 = vunpack.c.l.b16 %v4558
    %v4591 = vunpack.c.l.b16 %v4559
    %v4592 = vunpack.c.l.b16 %v4560
    %v4593 = vunpack.c.l.b16 %v4561
    %v4594 = vunpack.c.l.b16 %v4562
    %v4595 = vunpack.c.l.b16 %v4563
    %v4596 = vunpack.c.l.b16 %v4564
    %v4597 = vunpack.c.l.b16 %v4565
    %v4598 = vunpack.c.l.b16 %v4566
    %v4599 = vunpack.c.l.b16 %v4567
    %v4600 = vpack.c.b16 %v4585, %v4584
    %v4601 = vpack.c.b16 %v4587, %v4586
    %v4602 = vpack.c.b16 %v4589, %v4588
    %v4603 = vpack.c.b16 %v4591, %v4590
    %v4604 = vpack.c.b16 %v4593, %v4592
    %v4605 = vpack.c.b16 %v4595, %v4594
    %v4606 = vpack.c.b16 %v4597, %v4596
    %v4607 = vpack.c.b16 %v4599, %v4598
    %4616 = vmatprep.subr.bf16.mxu0 0
    %4617 = vmatpush1.bf16.msra.mxu0 %v4607
    %4618 = vmatprep.subr.bf16.mxu0 0
    %4619 = vmatpush1.bf16.msra.mxu0 %v4606
    %4620 = vmatprep.subr.bf16.mxu0 0
    %4621 = vmatpush1.bf16.msra.mxu0 %v4605
    %4622 = vmatprep.subr.bf16.mxu0 0
    %4623 = vmatpush1.bf16.msra.mxu0 %v4604
    %4624 = vmatprep.subr.bf16.mxu0 0
    %4625 = vmatpush1.bf16.msra.mxu0 %v4603
    %4626 = vmatprep.subr.bf16.mxu0 0
    %4627 = vmatpush1.bf16.msra.mxu0 %v4602
    %4628 = vmatprep.subr.bf16.mxu0 0
    %4629 = vmatpush1.bf16.msra.mxu0 %v4601
    %4630 = vmatprep.subr.bf16.mxu0 0
    %4631 = vmatpush1.bf16.msra.mxu0 %v4600
    %4632 = vmatprep.subr.bf16.mxu0 0
    %4633 = vmatpush2.bf16.msra.mxu0 0
    %4634 = vmatprep.subr.bf16.mxu0 0
    %4635 = vmatpush2.bf16.msra.mxu0 0
    %4636 = vmatprep.subr.bf16.mxu0 0
    %4637 = vmatpush2.bf16.msra.mxu0 0
    %4638 = vmatprep.subr.bf16.mxu0 0
    %4639 = vmatpush2.bf16.msra.mxu0 0
    %4640 = vmatprep.subr.bf16.mxu0 0
    %4641 = vmatpush2.bf16.msra.mxu0 0
    %4642 = vmatprep.subr.bf16.mxu0 0
    %4643 = vmatpush2.bf16.msra.mxu0 0
    %4644 = vmatprep.subr.bf16.mxu0 0
    %4645 = vmatpush2.bf16.msra.mxu0 0
    %4646 = vmatprep.subr.bf16.mxu0 0
    %4647 = vmatpush2.bf16.msra.mxu0 0
    %4648 = vmatprep.mubr.bf16.mxu0 0
    %4649 = vmatmul.mubr.bf16.gmra.mxu0 %v4519
    %v4650 = vpop.f32.mrf.mxu0
    %v4651 = vadd.f32 0.0, %v4650
    %v4652 = vpop.f32.mrf.mxu0
    %v4653 = vpop.f32.mrf.mxu0
    %v4654 = vadd.f32 0.0, %v4653
    %v4655 = vpop.f32.mrf.mxu0
    %4656 = vmatprep.mubr.bf16.mxu0 0
    %4657 = vmatmul.mubr.bf16.gmra.mxu0 %v4520
    %v4658 = vpop.f32.mrf.mxu0
    %v4659 = vadd.f32 0.0, %v4658
    %v4660 = vpop.f32.mrf.mxu0
    %v4661 = vpop.f32.mrf.mxu0
    %v4662 = vadd.f32 0.0, %v4661
    %v4663 = vpop.f32.mrf.mxu0
    %4664 = vmatprep.mubr.bf16.mxu0 0
    %4665 = vmatmul.mubr.bf16.gmra.mxu0 %v4521
    %v4666 = vpop.f32.mrf.mxu0
    %v4667 = vadd.f32 0.0, %v4666
    %v4668 = vpop.f32.mrf.mxu0
    %v4669 = vpop.f32.mrf.mxu0
    %v4670 = vadd.f32 0.0, %v4669
    %v4671 = vpop.f32.mrf.mxu0
    %4672 = vmatprep.mubr.bf16.mxu0 0
    %4673 = vmatmul.mubr.bf16.gmra.mxu0 %v4522
    %v4674 = vpop.f32.mrf.mxu0
    %v4675 = vadd.f32 0.0, %v4674
    %v4676 = vpop.f32.mrf.mxu0
    %v4677 = vpop.f32.mrf.mxu0
    %v4678 = vadd.f32 0.0, %v4677
    %v4679 = vpop.f32.mrf.mxu0
    %4680 = vmatprep.mubr.bf16.mxu0 0
    %4681 = vmatmul.mubr.bf16.gmra.mxu0 %v4523
    %v4682 = vpop.f32.mrf.mxu0
    %v4683 = vadd.f32 0.0, %v4682
    %v4684 = vpop.f32.mrf.mxu0
    %v4685 = vpop.f32.mrf.mxu0
    %v4686 = vadd.f32 0.0, %v4685
    %v4687 = vpop.f32.mrf.mxu0
    %4688 = vmatprep.mubr.bf16.mxu0 0
    %4689 = vmatmul.mubr.bf16.gmra.mxu0 %v4524
    %v4690 = vpop.f32.mrf.mxu0
    %v4691 = vadd.f32 0.0, %v4690
    %v4692 = vpop.f32.mrf.mxu0
    %v4693 = vpop.f32.mrf.mxu0
    %v4694 = vadd.f32 0.0, %v4693
    %v4695 = vpop.f32.mrf.mxu0
    %4696 = vmatprep.mubr.bf16.mxu0 0
    %4697 = vmatmul.mubr.bf16.gmra.mxu0 %v4525
    %v4698 = vpop.f32.mrf.mxu0
    %v4699 = vadd.f32 0.0, %v4698
    %v4700 = vpop.f32.mrf.mxu0
    %v4701 = vpop.f32.mrf.mxu0
    %v4702 = vadd.f32 0.0, %v4701
    %v4703 = vpop.f32.mrf.mxu0
    %4704 = vmatprep.mubr.bf16.mxu0 0
    %4705 = vmatmul.mubr.bf16.gmra.mxu0 %v4526
    %v4706 = vpop.f32.mrf.mxu0
    %v4707 = vadd.f32 0.0, %v4706
    %v4708 = vpop.f32.mrf.mxu0
    %v4709 = vpop.f32.mrf.mxu0
    %v4710 = vadd.f32 0.0, %v4709
    %v4711 = vpop.f32.mrf.mxu0
    %4712 = vmatprep.mubr.bf16.mxu0 0
    %4713 = vmatmul.mubr.bf16.gmra.mxu0 %v4527
    %v4714 = vpop.f32.mrf.mxu0
    %v4715 = vadd.f32 0.0, %v4714
    %v4716 = vpop.f32.mrf.mxu0
    %v4717 = vpop.f32.mrf.mxu0
    %v4718 = vadd.f32 0.0, %v4717
    %v4719 = vpop.f32.mrf.mxu0
    %4720 = vmatprep.mubr.bf16.mxu0 0
    %4721 = vmatmul.mubr.bf16.gmra.mxu0 %v4528
    %v4722 = vpop.f32.mrf.mxu0
    %v4723 = vadd.f32 0.0, %v4722
    %v4724 = vpop.f32.mrf.mxu0
    %v4725 = vpop.f32.mrf.mxu0
    %v4726 = vadd.f32 0.0, %v4725
    %v4727 = vpop.f32.mrf.mxu0
    %4728 = vmatprep.mubr.bf16.mxu0 0
    %4729 = vmatmul.mubr.bf16.gmra.mxu0 %v4529
    %v4730 = vpop.f32.mrf.mxu0
    %v4731 = vadd.f32 0.0, %v4730
    %v4732 = vpop.f32.mrf.mxu0
    %v4733 = vpop.f32.mrf.mxu0
    %v4734 = vadd.f32 0.0, %v4733
    %v4735 = vpop.f32.mrf.mxu0
    %4736 = vmatprep.mubr.bf16.mxu0 0
    %4737 = vmatmul.mubr.bf16.gmra.mxu0 %v4530
    %v4738 = vpop.f32.mrf.mxu0
    %v4739 = vadd.f32 0.0, %v4738
    %v4740 = vpop.f32.mrf.mxu0
    %v4741 = vpop.f32.mrf.mxu0
    %v4742 = vadd.f32 0.0, %v4741
    %v4743 = vpop.f32.mrf.mxu0
    %4744 = vmatprep.mubr.bf16.mxu0 0
    %4745 = vmatmul.mubr.bf16.gmra.mxu0 %v4531
    %v4746 = vpop.f32.mrf.mxu0
    %v4747 = vadd.f32 0.0, %v4746
    %v4748 = vpop.f32.mrf.mxu0
    %v4749 = vpop.f32.mrf.mxu0
    %v4750 = vadd.f32 0.0, %v4749
    %v4751 = vpop.f32.mrf.mxu0
    %4752 = vmatprep.mubr.bf16.mxu0 0
    %4753 = vmatmul.mubr.bf16.gmra.mxu0 %v4532
    %v4754 = vpop.f32.mrf.mxu0
    %v4755 = vadd.f32 0.0, %v4754
    %v4756 = vpop.f32.mrf.mxu0
    %v4757 = vpop.f32.mrf.mxu0
    %v4758 = vadd.f32 0.0, %v4757
    %v4759 = vpop.f32.mrf.mxu0
    %4760 = vmatprep.mubr.bf16.mxu0 0
    %4761 = vmatmul.mubr.bf16.gmra.mxu0 %v4533
    %v4762 = vpop.f32.mrf.mxu0
    %v4763 = vadd.f32 0.0, %v4762
    %v4764 = vpop.f32.mrf.mxu0
    %v4765 = vpop.f32.mrf.mxu0
    %v4766 = vadd.f32 0.0, %v4765
    %v4767 = vpop.f32.mrf.mxu0
    %4768 = vmatprep.mubr.bf16.mxu0 0
    %4769 = vmatmul.mubr.bf16.gmra.mxu0 %v4534
    %v4770 = vpop.f32.mrf.mxu0
    %v4771 = vadd.f32 0.0, %v4770
    %v4772 = vpop.f32.mrf.mxu0
    %v4773 = vpop.f32.mrf.mxu0
    %v4774 = vadd.f32 0.0, %v4773
    %v4775 = vpop.f32.mrf.mxu0
    %4776 = vmatprep.mubr.bf16.mxu0 0
    %4777 = vmatmul.mubr.bf16.gmra.mxu0 %v4535
    %v4778 = vpop.f32.mrf.mxu0
    %v4779 = vadd.f32 0.0, %v4778
    %v4780 = vpop.f32.mrf.mxu0
    %v4781 = vpop.f32.mrf.mxu0
    %v4782 = vadd.f32 0.0, %v4781
    %v4783 = vpop.f32.mrf.mxu0
    %4784 = vmatprep.mubr.bf16.mxu0 0
    %4785 = vmatmul.mubr.bf16.gmra.mxu0 %v4536
    %v4786 = vpop.f32.mrf.mxu0
    %v4787 = vadd.f32 0.0, %v4786
    %v4788 = vpop.f32.mrf.mxu0
    %v4789 = vpop.f32.mrf.mxu0
    %v4790 = vadd.f32 0.0, %v4789
    %v4791 = vpop.f32.mrf.mxu0
    %4792 = vmatprep.mubr.bf16.mxu0 0
    %4793 = vmatmul.mubr.bf16.gmra.mxu0 %v4537
    %v4794 = vpop.f32.mrf.mxu0
    %v4795 = vadd.f32 0.0, %v4794
    %v4796 = vpop.f32.mrf.mxu0
    %v4797 = vpop.f32.mrf.mxu0
    %v4798 = vadd.f32 0.0, %v4797
    %v4799 = vpop.f32.mrf.mxu0
    %4800 = vmatprep.mubr.bf16.mxu0 0
    %4801 = vmatmul.mubr.bf16.gmra.mxu0 %v4538
    %v4802 = vpop.f32.mrf.mxu0
    %v4803 = vadd.f32 0.0, %v4802
    %v4804 = vpop.f32.mrf.mxu0
    %v4805 = vpop.f32.mrf.mxu0
    %v4806 = vadd.f32 0.0, %v4805
    %v4807 = vpop.f32.mrf.mxu0
    %4808 = vmatprep.mubr.bf16.mxu0 0
    %4809 = vmatmul.mubr.bf16.gmra.mxu0 %v4539
    %v4810 = vpop.f32.mrf.mxu0
    %v4811 = vadd.f32 0.0, %v4810
    %v4812 = vpop.f32.mrf.mxu0
    %v4813 = vpop.f32.mrf.mxu0
    %v4814 = vadd.f32 0.0, %v4813
    %v4815 = vpop.f32.mrf.mxu0
    %4816 = vmatprep.mubr.bf16.mxu0 0
    %4817 = vmatmul.mubr.bf16.gmra.mxu0 %v4540
    %v4818 = vpop.f32.mrf.mxu0
    %v4819 = vadd.f32 0.0, %v4818
    %v4820 = vpop.f32.mrf.mxu0
    %v4821 = vpop.f32.mrf.mxu0
    %v4822 = vadd.f32 0.0, %v4821
    %v4823 = vpop.f32.mrf.mxu0
    %4824 = vmatprep.mubr.bf16.mxu0 0
    %4825 = vmatmul.mubr.bf16.gmra.mxu0 %v4541
    %v4826 = vpop.f32.mrf.mxu0
    %v4827 = vadd.f32 0.0, %v4826
    %v4828 = vpop.f32.mrf.mxu0
    %v4829 = vpop.f32.mrf.mxu0
    %v4830 = vadd.f32 0.0, %v4829
    %v4831 = vpop.f32.mrf.mxu0
    %4832 = vmatprep.mubr.bf16.mxu0 0
    %4833 = vmatmul.mubr.bf16.gmra.mxu0 %v4542
    %v4834 = vpop.f32.mrf.mxu0
    %v4835 = vadd.f32 0.0, %v4834
    %v4836 = vpop.f32.mrf.mxu0
    %v4837 = vpop.f32.mrf.mxu0
    %v4838 = vadd.f32 0.0, %v4837
    %v4839 = vpop.f32.mrf.mxu0
    %4840 = vmatprep.mubr.bf16.mxu0 0
    %4841 = vmatmul.mubr.bf16.gmra.mxu0 %v4543
    %v4842 = vpop.f32.mrf.mxu0
    %v4843 = vadd.f32 0.0, %v4842
    %v4844 = vpop.f32.mrf.mxu0
    %v4845 = vpop.f32.mrf.mxu0
    %v4846 = vadd.f32 0.0, %v4845
    %v4847 = vpop.f32.mrf.mxu0
    %4848 = vmatprep.mubr.bf16.mxu0 0
    %4849 = vmatmul.mubr.bf16.gmra.mxu0 %v4544
    %v4850 = vpop.f32.mrf.mxu0
    %v4851 = vadd.f32 0.0, %v4850
    %v4852 = vpop.f32.mrf.mxu0
    %v4853 = vpop.f32.mrf.mxu0
    %v4854 = vadd.f32 0.0, %v4853
    %v4855 = vpop.f32.mrf.mxu0
    %4856 = vmatprep.mubr.bf16.mxu0 0
    %4857 = vmatmul.mubr.bf16.gmra.mxu0 %v4545
    %v4858 = vpop.f32.mrf.mxu0
    %v4859 = vadd.f32 0.0, %v4858
    %v4860 = vpop.f32.mrf.mxu0
    %v4861 = vpop.f32.mrf.mxu0
    %v4862 = vadd.f32 0.0, %v4861
    %v4863 = vpop.f32.mrf.mxu0
    %4864 = vmatprep.mubr.bf16.mxu0 0
    %4865 = vmatmul.mubr.bf16.gmra.mxu0 %v4546
    %v4866 = vpop.f32.mrf.mxu0
    %v4867 = vadd.f32 0.0, %v4866
    %v4868 = vpop.f32.mrf.mxu0
    %v4869 = vpop.f32.mrf.mxu0
    %v4870 = vadd.f32 0.0, %v4869
    %v4871 = vpop.f32.mrf.mxu0
    %4872 = vmatprep.mubr.bf16.mxu0 0
    %4873 = vmatmul.mubr.bf16.gmra.mxu0 %v4547
    %v4874 = vpop.f32.mrf.mxu0
    %v4875 = vadd.f32 0.0, %v4874
    %v4876 = vpop.f32.mrf.mxu0
    %v4877 = vpop.f32.mrf.mxu0
    %v4878 = vadd.f32 0.0, %v4877
    %v4879 = vpop.f32.mrf.mxu0
    %4880 = vmatprep.mubr.bf16.mxu0 0
    %4881 = vmatmul.mubr.bf16.gmra.mxu0 %v4548
    %v4882 = vpop.f32.mrf.mxu0
    %v4883 = vadd.f32 0.0, %v4882
    %v4884 = vpop.f32.mrf.mxu0
    %v4885 = vpop.f32.mrf.mxu0
    %v4886 = vadd.f32 0.0, %v4885
    %v4887 = vpop.f32.mrf.mxu0
    %4888 = vmatprep.mubr.bf16.mxu0 0
    %4889 = vmatmul.mubr.bf16.gmra.mxu0 %v4549
    %v4890 = vpop.f32.mrf.mxu0
    %v4891 = vadd.f32 0.0, %v4890
    %v4892 = vpop.f32.mrf.mxu0
    %v4893 = vpop.f32.mrf.mxu0
    %v4894 = vadd.f32 0.0, %v4893
    %v4895 = vpop.f32.mrf.mxu0
    %4896 = vmatprep.mubr.bf16.mxu0 0
    %4897 = vmatmul.mubr.bf16.gmra.mxu0 %v4550
    %v4898 = vpop.f32.mrf.mxu0
    %v4899 = vadd.f32 0.0, %v4898
    %v4900 = vpop.f32.mrf.mxu0
    %v4901 = vpop.f32.mrf.mxu0
    %v4902 = vadd.f32 0.0, %v4901
    %v4903 = vpop.f32.mrf.mxu0
    %4904 = vdwg.mxu0
    %v4905 = vadd.f32 %v3942, %v4651
    %v4906 = vadd.f32 %v3943, %v4654
    %v4907 = vadd.f32 %v3944, %v4659
    %v4908 = vadd.f32 %v3945, %v4662
    %v4909 = vadd.f32 %v3946, %v4667
    %v4910 = vadd.f32 %v3947, %v4670
    %v4911 = vadd.f32 %v3948, %v4675
    %v4912 = vadd.f32 %v3949, %v4678
    %v4913 = vadd.f32 %v3950, %v4683
    %v4914 = vadd.f32 %v3951, %v4686
    %v4915 = vadd.f32 %v3952, %v4691
    %v4916 = vadd.f32 %v3953, %v4694
    %v4917 = vadd.f32 %v3954, %v4699
    %v4918 = vadd.f32 %v3955, %v4702
    %v4919 = vadd.f32 %v3956, %v4707
    %v4920 = vadd.f32 %v3957, %v4710
    %v4921 = vadd.f32 %v3958, %v4715
    %v4922 = vadd.f32 %v3959, %v4718
    %v4923 = vadd.f32 %v3960, %v4723
    %v4924 = vadd.f32 %v3961, %v4726
    %v4925 = vadd.f32 %v3962, %v4731
    %v4926 = vadd.f32 %v3963, %v4734
    %v4927 = vadd.f32 %v3964, %v4739
    %v4928 = vadd.f32 %v3965, %v4742
    %v4929 = vadd.f32 %v3966, %v4747
    %v4930 = vadd.f32 %v3967, %v4750
    %v4931 = vadd.f32 %v3968, %v4755
    %v4932 = vadd.f32 %v3969, %v4758
    %v4933 = vadd.f32 %v3970, %v4763
    %v4934 = vadd.f32 %v3971, %v4766
    %v4935 = vadd.f32 %v3972, %v4771
    %v4936 = vadd.f32 %v3973, %v4774
    %v4937 = vadd.f32 %v3974, %v4779
    %v4938 = vadd.f32 %v3975, %v4782
    %v4939 = vadd.f32 %v3976, %v4787
    %v4940 = vadd.f32 %v3977, %v4790
    %v4941 = vadd.f32 %v3978, %v4795
    %v4942 = vadd.f32 %v3979, %v4798
    %v4943 = vadd.f32 %v3980, %v4803
    %v4944 = vadd.f32 %v3981, %v4806
    %v4945 = vadd.f32 %v3982, %v4811
    %v4946 = vadd.f32 %v3983, %v4814
    %v4947 = vadd.f32 %v3984, %v4819
    %v4948 = vadd.f32 %v3985, %v4822
    %v4949 = vadd.f32 %v3986, %v4827
    %v4950 = vadd.f32 %v3987, %v4830
    %v4951 = vadd.f32 %v3988, %v4835
    %v4952 = vadd.f32 %v3989, %v4838
    %v4953 = vadd.f32 %v3990, %v4843
    %v4954 = vadd.f32 %v3991, %v4846
    %v4955 = vadd.f32 %v3992, %v4851
    %v4956 = vadd.f32 %v3993, %v4854
    %v4957 = vadd.f32 %v3994, %v4859
    %v4958 = vadd.f32 %v3995, %v4862
    %v4959 = vadd.f32 %v3996, %v4867
    %v4960 = vadd.f32 %v3997, %v4870
    %v4961 = vadd.f32 %v3998, %v4875
    %v4962 = vadd.f32 %v3999, %v4878
    %v4963 = vadd.f32 %v4000, %v4883
    %v4964 = vadd.f32 %v4001, %v4886
    %v4965 = vadd.f32 %v4002, %v4891
    %v4966 = vadd.f32 %v4003, %v4894
    %v4967 = vadd.f32 %v4004, %v4899
    %v4968 = vadd.f32 %v4005, %v4902
    %v4969 = vld [vmem:[#allocation2 + $0x19] sm:$0xff]
    %v4970 = vld [vmem:[#allocation2 + $0x21] sm:$0xff]
    %v4971 = vld [vmem:[#allocation2 + $0x29] sm:$0xff]
    %v4972 = vld [vmem:[#allocation2 + $0x31] sm:$0xff]
    %v4973 = vld [vmem:[#allocation2 + $0x39] sm:$0xff]
    %v4974 = vld [vmem:[#allocation2 + $0x41] sm:$0xff]
    %v4975 = vld [vmem:[#allocation2 + $0x49] sm:$0xff]
    %v4976 = vld [vmem:[#allocation2 + $0x51] sm:$0xff]
    %v4977 = vld [vmem:[#allocation2 + $0x59] sm:$0xff]
    %v4978 = vld [vmem:[#allocation2 + $0x61] sm:$0xff]
    %v4979 = vld [vmem:[#allocation2 + $0x69] sm:$0xff]
    %v4980 = vld [vmem:[#allocation2 + $0x71] sm:$0xff]
    %v4981 = vld [vmem:[#allocation2 + $0x79] sm:$0xff]
    %v4982 = vld [vmem:[#allocation2 + $0x81] sm:$0xff]
    %v4983 = vld [vmem:[#allocation2 + $0x89] sm:$0xff]
    %v4984 = vld [vmem:[#allocation2 + $0x91] sm:$0xff]
    %v4985 = vld [vmem:[#allocation2 + $0x99] sm:$0xff]
    %v4986 = vld [vmem:[#allocation2 + $0xa1] sm:$0xff]
    %v4987 = vld [vmem:[#allocation2 + $0xa9] sm:$0xff]
    %v4988 = vld [vmem:[#allocation2 + $0xb1] sm:$0xff]
    %v4989 = vld [vmem:[#allocation2 + $0xb9] sm:$0xff]
    %v4990 = vld [vmem:[#allocation2 + $0xc1] sm:$0xff]
    %v4991 = vld [vmem:[#allocation2 + $0xc9] sm:$0xff]
    %v4992 = vld [vmem:[#allocation2 + $0xd1] sm:$0xff]
    %v4993 = vld [vmem:[#allocation2 + $0xd9] sm:$0xff]
    %v4994 = vld [vmem:[#allocation2 + $0xe1] sm:$0xff]
    %v4995 = vld [vmem:[#allocation2 + $0xe9] sm:$0xff]
    %v4996 = vld [vmem:[#allocation2 + $0xf1] sm:$0xff]
    %v4997 = vld [vmem:[#allocation2 + $0xf9] sm:$0xff]
    %v4998 = vld [vmem:[#allocation2 + $0x101] sm:$0xff]
    %v4999 = vld [vmem:[#allocation2 + $0x109] sm:$0xff]
    %v5000 = vld [vmem:[#allocation2 + $0x111] sm:$0xff]
    %v5001 = vld [vmem:[#allocation2 + $0x119] sm:$0xff]
    %v5002 = vld [vmem:[#allocation2 + $0x121] sm:$0xff]
    %v5003 = vld [vmem:[#allocation2 + $0x129] sm:$0xff]
    %v5004 = vld [vmem:[#allocation2 + $0x131] sm:$0xff]
    %v5005 = vld [vmem:[#allocation2 + $0x139] sm:$0xff]
    %v5006 = vld [vmem:[#allocation2 + $0x141] sm:$0xff]
    %v5007 = vld [vmem:[#allocation2 + $0x149] sm:$0xff]
    %v5008 = vld [vmem:[#allocation2 + $0x151] sm:$0xff]
    %v5009 = vld [vmem:[#allocation2 + $0x159] sm:$0xff]
    %v5010 = vld [vmem:[#allocation2 + $0x161] sm:$0xff]
    %v5011 = vld [vmem:[#allocation2 + $0x169] sm:$0xff]
    %v5012 = vld [vmem:[#allocation2 + $0x171] sm:$0xff]
    %v5013 = vld [vmem:[#allocation2 + $0x179] sm:$0xff]
    %v5014 = vld [vmem:[#allocation2 + $0x181] sm:$0xff]
    %v5015 = vld [vmem:[#allocation2 + $0x189] sm:$0xff]
    %v5016 = vld [vmem:[#allocation2 + $0x191] sm:$0xff]
    %v5017 = vld [vmem:[#allocation2 + $0x199] sm:$0xff]
    %v5018 = vld [vmem:[#allocation2 + $0x1a1] sm:$0xff]
    %v5019 = vld [vmem:[#allocation2 + $0x1a9] sm:$0xff]
    %v5020 = vld [vmem:[#allocation2 + $0x1b1] sm:$0xff]
    %v5021 = vld [vmem:[#allocation2 + $0x1b9] sm:$0xff]
    %v5022 = vld [vmem:[#allocation2 + $0x1c1] sm:$0xff]
    %v5023 = vld [vmem:[#allocation2 + $0x1c9] sm:$0xff]
    %v5024 = vld [vmem:[#allocation2 + $0x1d1] sm:$0xff]
    %v5025 = vld [vmem:[#allocation2 + $0x1d9] sm:$0xff]
    %v5026 = vld [vmem:[#allocation2 + $0x1e1] sm:$0xff]
    %v5027 = vld [vmem:[#allocation2 + $0x1e9] sm:$0xff]
    %v5028 = vld [vmem:[#allocation2 + $0x1f1] sm:$0xff]
    %v5029 = vld [vmem:[#allocation2 + $0x1f9] sm:$0xff]
    %v5030 = vld [vmem:[#allocation2 + $0x201] sm:$0xff]
    %v5031 = vld [vmem:[#allocation2 + $0x209] sm:$0xff]
    %v5032 = vld [vmem:[#allocation2 + $0x211] sm:$0xff]
    %s5033 = scalar_lea.vmem %s1, 2560
    %v5034 = vld [vmem:[%s5033] sm:$0xff]
    %v5035 = vld [vmem:[%s5033 + $0x8] sm:$0xff]
    %v5036 = vld [vmem:[%s5033 + $0x10] sm:$0xff]
    %v5037 = vld [vmem:[%s5033 + $0x18] sm:$0xff]
    %v5038 = vld [vmem:[%s5033 + $0x20] sm:$0xff]
    %v5039 = vld [vmem:[%s5033 + $0x28] sm:$0xff]
    %v5040 = vld [vmem:[%s5033 + $0x30] sm:$0xff]
    %v5041 = vld [vmem:[%s5033 + $0x38] sm:$0xff]
    %v5042 = vld [vmem:[%s5033 + $0x40] sm:$0xff]
    %v5043 = vld [vmem:[%s5033 + $0x48] sm:$0xff]
    %v5044 = vld [vmem:[%s5033 + $0x50] sm:$0xff]
    %v5045 = vld [vmem:[%s5033 + $0x58] sm:$0xff]
    %v5046 = vld [vmem:[%s5033 + $0x60] sm:$0xff]
    %v5047 = vld [vmem:[%s5033 + $0x68] sm:$0xff]
    %v5048 = vld [vmem:[%s5033 + $0x70] sm:$0xff]
    %v5049 = vld [vmem:[%s5033 + $0x78] sm:$0xff]
    %v5050 = vld [vmem:[%s5033 + $0x80] sm:$0xff]
    %v5051 = vld [vmem:[%s5033 + $0x88] sm:$0xff]
    %v5052 = vld [vmem:[%s5033 + $0x90] sm:$0xff]
    %v5053 = vld [vmem:[%s5033 + $0x98] sm:$0xff]
    %v5054 = vld [vmem:[%s5033 + $0xa0] sm:$0xff]
    %v5055 = vld [vmem:[%s5033 + $0xa8] sm:$0xff]
    %v5056 = vld [vmem:[%s5033 + $0xb0] sm:$0xff]
    %v5057 = vld [vmem:[%s5033 + $0xb8] sm:$0xff]
    %v5058 = vld [vmem:[%s5033 + $0xc0] sm:$0xff]
    %v5059 = vld [vmem:[%s5033 + $0xc8] sm:$0xff]
    %v5060 = vld [vmem:[%s5033 + $0xd0] sm:$0xff]
    %v5061 = vld [vmem:[%s5033 + $0xd8] sm:$0xff]
    %v5062 = vld [vmem:[%s5033 + $0xe0] sm:$0xff]
    %v5063 = vld [vmem:[%s5033 + $0xe8] sm:$0xff]
    %v5064 = vld [vmem:[%s5033 + $0xf0] sm:$0xff]
    %v5065 = vld [vmem:[%s5033 + $0xf8] sm:$0xff]
    %v5066 = vld [vmem:[%s5033 + $0x100] sm:$0xff]
    %v5067 = vld [vmem:[%s5033 + $0x108] sm:$0xff]
    %v5068 = vld [vmem:[%s5033 + $0x110] sm:$0xff]
    %v5069 = vld [vmem:[%s5033 + $0x118] sm:$0xff]
    %v5070 = vld [vmem:[%s5033 + $0x120] sm:$0xff]
    %v5071 = vld [vmem:[%s5033 + $0x128] sm:$0xff]
    %v5072 = vld [vmem:[%s5033 + $0x130] sm:$0xff]
    %v5073 = vld [vmem:[%s5033 + $0x138] sm:$0xff]
    %v5074 = vld [vmem:[%s5033 + $0x140] sm:$0xff]
    %v5075 = vld [vmem:[%s5033 + $0x148] sm:$0xff]
    %v5076 = vld [vmem:[%s5033 + $0x150] sm:$0xff]
    %v5077 = vld [vmem:[%s5033 + $0x158] sm:$0xff]
    %v5078 = vld [vmem:[%s5033 + $0x160] sm:$0xff]
    %v5079 = vld [vmem:[%s5033 + $0x168] sm:$0xff]
    %v5080 = vld [vmem:[%s5033 + $0x170] sm:$0xff]
    %v5081 = vld [vmem:[%s5033 + $0x178] sm:$0xff]
    %v5082 = vld [vmem:[%s5033 + $0x180] sm:$0xff]
    %v5083 = vld [vmem:[%s5033 + $0x188] sm:$0xff]
    %v5084 = vld [vmem:[%s5033 + $0x190] sm:$0xff]
    %v5085 = vld [vmem:[%s5033 + $0x198] sm:$0xff]
    %v5086 = vld [vmem:[%s5033 + $0x1a0] sm:$0xff]
    %v5087 = vld [vmem:[%s5033 + $0x1a8] sm:$0xff]
    %v5088 = vld [vmem:[%s5033 + $0x1b0] sm:$0xff]
    %v5089 = vld [vmem:[%s5033 + $0x1b8] sm:$0xff]
    %v5090 = vld [vmem:[%s5033 + $0x1c0] sm:$0xff]
    %v5091 = vld [vmem:[%s5033 + $0x1c8] sm:$0xff]
    %v5092 = vld [vmem:[%s5033 + $0x1d0] sm:$0xff]
    %v5093 = vld [vmem:[%s5033 + $0x1d8] sm:$0xff]
    %v5094 = vld [vmem:[%s5033 + $0x1e0] sm:$0xff]
    %v5095 = vld [vmem:[%s5033 + $0x1e8] sm:$0xff]
    %v5096 = vld [vmem:[%s5033 + $0x1f0] sm:$0xff]
    %v5097 = vld [vmem:[%s5033 + $0x1f8] sm:$0xff]
    %5099 = vset.pattern.permute.xlu0 0
    %5100 = vperm.xlu0 %5099, %v5034
    %v5101 = vpop.permute.xlu0 %5100
    %5104 = vset.pattern.permute.xlu0 0
    %5105 = vperm.xlu0 %5104, %v5035
    %v5106 = vpop.permute.xlu0 %5105
    %5109 = vset.pattern.permute.xlu0 0
    %5110 = vperm.xlu0 %5109, %v5036
    %v5111 = vpop.permute.xlu0 %5110
    %5114 = vset.pattern.permute.xlu0 0
    %5115 = vperm.xlu0 %5114, %v5037
    %v5116 = vpop.permute.xlu0 %5115
    %5119 = vset.pattern.permute.xlu0 0
    %5120 = vperm.xlu0 %5119, %v5038
    %v5121 = vpop.permute.xlu0 %5120
    %5124 = vset.pattern.permute.xlu0 0
    %5125 = vperm.xlu0 %5124, %v5039
    %v5126 = vpop.permute.xlu0 %5125
    %5129 = vset.pattern.permute.xlu0 0
    %5130 = vperm.xlu0 %5129, %v5040
    %v5131 = vpop.permute.xlu0 %5130
    %5134 = vset.pattern.permute.xlu0 0
    %5135 = vperm.xlu0 %5134, %v5041
    %v5136 = vpop.permute.xlu0 %5135
    %5139 = vset.pattern.permute.xlu0 0
    %5140 = vperm.xlu0 %5139, %v5042
    %v5141 = vpop.permute.xlu0 %5140
    %5144 = vset.pattern.permute.xlu0 0
    %5145 = vperm.xlu0 %5144, %v5043
    %v5146 = vpop.permute.xlu0 %5145
    %5149 = vset.pattern.permute.xlu0 0
    %5150 = vperm.xlu0 %5149, %v5044
    %v5151 = vpop.permute.xlu0 %5150
    %5154 = vset.pattern.permute.xlu0 0
    %5155 = vperm.xlu0 %5154, %v5045
    %v5156 = vpop.permute.xlu0 %5155
    %5159 = vset.pattern.permute.xlu0 0
    %5160 = vperm.xlu0 %5159, %v5046
    %v5161 = vpop.permute.xlu0 %5160
    %5164 = vset.pattern.permute.xlu0 0
    %5165 = vperm.xlu0 %5164, %v5047
    %v5166 = vpop.permute.xlu0 %5165
    %5169 = vset.pattern.permute.xlu0 0
    %5170 = vperm.xlu0 %5169, %v5048
    %v5171 = vpop.permute.xlu0 %5170
    %5174 = vset.pattern.permute.xlu0 0
    %5175 = vperm.xlu0 %5174, %v5049
    %v5176 = vpop.permute.xlu0 %5175
    %5179 = vset.pattern.permute.xlu0 0
    %5180 = vperm.xlu0 %5179, %v5050
    %v5181 = vpop.permute.xlu0 %5180
    %5184 = vset.pattern.permute.xlu0 0
    %5185 = vperm.xlu0 %5184, %v5051
    %v5186 = vpop.permute.xlu0 %5185
    %5189 = vset.pattern.permute.xlu0 0
    %5190 = vperm.xlu0 %5189, %v5052
    %v5191 = vpop.permute.xlu0 %5190
    %5194 = vset.pattern.permute.xlu0 0
    %5195 = vperm.xlu0 %5194, %v5053
    %v5196 = vpop.permute.xlu0 %5195
    %5199 = vset.pattern.permute.xlu0 0
    %5200 = vperm.xlu0 %5199, %v5054
    %v5201 = vpop.permute.xlu0 %5200
    %5204 = vset.pattern.permute.xlu0 0
    %5205 = vperm.xlu0 %5204, %v5055
    %v5206 = vpop.permute.xlu0 %5205
    %5209 = vset.pattern.permute.xlu0 0
    %5210 = vperm.xlu0 %5209, %v5056
    %v5211 = vpop.permute.xlu0 %5210
    %5214 = vset.pattern.permute.xlu0 0
    %5215 = vperm.xlu0 %5214, %v5057
    %v5216 = vpop.permute.xlu0 %5215
    %5219 = vset.pattern.permute.xlu0 0
    %5220 = vperm.xlu0 %5219, %v5058
    %v5221 = vpop.permute.xlu0 %5220
    %5224 = vset.pattern.permute.xlu0 0
    %5225 = vperm.xlu0 %5224, %v5059
    %v5226 = vpop.permute.xlu0 %5225
    %5229 = vset.pattern.permute.xlu0 0
    %5230 = vperm.xlu0 %5229, %v5060
    %v5231 = vpop.permute.xlu0 %5230
    %5234 = vset.pattern.permute.xlu0 0
    %5235 = vperm.xlu0 %5234, %v5061
    %v5236 = vpop.permute.xlu0 %5235
    %5239 = vset.pattern.permute.xlu0 0
    %5240 = vperm.xlu0 %5239, %v5062
    %v5241 = vpop.permute.xlu0 %5240
    %5244 = vset.pattern.permute.xlu0 0
    %5245 = vperm.xlu0 %5244, %v5063
    %v5246 = vpop.permute.xlu0 %5245
    %5249 = vset.pattern.permute.xlu0 0
    %5250 = vperm.xlu0 %5249, %v5064
    %v5251 = vpop.permute.xlu0 %5250
    %5254 = vset.pattern.permute.xlu0 0
    %5255 = vperm.xlu0 %5254, %v5065
    %v5256 = vpop.permute.xlu0 %5255
    %5259 = vset.pattern.permute.xlu0 0
    %5260 = vperm.xlu0 %5259, %v5066
    %v5261 = vpop.permute.xlu0 %5260
    %5264 = vset.pattern.permute.xlu0 0
    %5265 = vperm.xlu0 %5264, %v5067
    %v5266 = vpop.permute.xlu0 %5265
    %5269 = vset.pattern.permute.xlu0 0
    %5270 = vperm.xlu0 %5269, %v5068
    %v5271 = vpop.permute.xlu0 %5270
    %5274 = vset.pattern.permute.xlu0 0
    %5275 = vperm.xlu0 %5274, %v5069
    %v5276 = vpop.permute.xlu0 %5275
    %5279 = vset.pattern.permute.xlu0 0
    %5280 = vperm.xlu0 %5279, %v5070
    %v5281 = vpop.permute.xlu0 %5280
    %5284 = vset.pattern.permute.xlu0 0
    %5285 = vperm.xlu0 %5284, %v5071
    %v5286 = vpop.permute.xlu0 %5285
    %5289 = vset.pattern.permute.xlu0 0
    %5290 = vperm.xlu0 %5289, %v5072
    %v5291 = vpop.permute.xlu0 %5290
    %5294 = vset.pattern.permute.xlu0 0
    %5295 = vperm.xlu0 %5294, %v5073
    %v5296 = vpop.permute.xlu0 %5295
    %5299 = vset.pattern.permute.xlu0 0
    %5300 = vperm.xlu0 %5299, %v5074
    %v5301 = vpop.permute.xlu0 %5300
    %5304 = vset.pattern.permute.xlu0 0
    %5305 = vperm.xlu0 %5304, %v5075
    %v5306 = vpop.permute.xlu0 %5305
    %5309 = vset.pattern.permute.xlu0 0
    %5310 = vperm.xlu0 %5309, %v5076
    %v5311 = vpop.permute.xlu0 %5310
    %5314 = vset.pattern.permute.xlu0 0
    %5315 = vperm.xlu0 %5314, %v5077
    %v5316 = vpop.permute.xlu0 %5315
    %5319 = vset.pattern.permute.xlu0 0
    %5320 = vperm.xlu0 %5319, %v5078
    %v5321 = vpop.permute.xlu0 %5320
    %5324 = vset.pattern.permute.xlu0 0
    %5325 = vperm.xlu0 %5324, %v5079
    %v5326 = vpop.permute.xlu0 %5325
    %5329 = vset.pattern.permute.xlu0 0
    %5330 = vperm.xlu0 %5329, %v5080
    %v5331 = vpop.permute.xlu0 %5330
    %5334 = vset.pattern.permute.xlu0 0
    %5335 = vperm.xlu0 %5334, %v5081
    %v5336 = vpop.permute.xlu0 %5335
    %5339 = vset.pattern.permute.xlu0 0
    %5340 = vperm.xlu0 %5339, %v5082
    %v5341 = vpop.permute.xlu0 %5340
    %5344 = vset.pattern.permute.xlu0 0
    %5345 = vperm.xlu0 %5344, %v5083
    %v5346 = vpop.permute.xlu0 %5345
    %5349 = vset.pattern.permute.xlu0 0
    %5350 = vperm.xlu0 %5349, %v5084
    %v5351 = vpop.permute.xlu0 %5350
    %5354 = vset.pattern.permute.xlu0 0
    %5355 = vperm.xlu0 %5354, %v5085
    %v5356 = vpop.permute.xlu0 %5355
    %5359 = vset.pattern.permute.xlu0 0
    %5360 = vperm.xlu0 %5359, %v5086
    %v5361 = vpop.permute.xlu0 %5360
    %5364 = vset.pattern.permute.xlu0 0
    %5365 = vperm.xlu0 %5364, %v5087
    %v5366 = vpop.permute.xlu0 %5365
    %5369 = vset.pattern.permute.xlu0 0
    %5370 = vperm.xlu0 %5369, %v5088
    %v5371 = vpop.permute.xlu0 %5370
    %5374 = vset.pattern.permute.xlu0 0
    %5375 = vperm.xlu0 %5374, %v5089
    %v5376 = vpop.permute.xlu0 %5375
    %5379 = vset.pattern.permute.xlu0 0
    %5380 = vperm.xlu0 %5379, %v5090
    %v5381 = vpop.permute.xlu0 %5380
    %5384 = vset.pattern.permute.xlu0 0
    %5385 = vperm.xlu0 %5384, %v5091
    %v5386 = vpop.permute.xlu0 %5385
    %5389 = vset.pattern.permute.xlu0 0
    %5390 = vperm.xlu0 %5389, %v5092
    %v5391 = vpop.permute.xlu0 %5390
    %5394 = vset.pattern.permute.xlu0 0
    %5395 = vperm.xlu0 %5394, %v5093
    %v5396 = vpop.permute.xlu0 %5395
    %5399 = vset.pattern.permute.xlu0 0
    %5400 = vperm.xlu0 %5399, %v5094
    %v5401 = vpop.permute.xlu0 %5400
    %5404 = vset.pattern.permute.xlu0 0
    %5405 = vperm.xlu0 %5404, %v5095
    %v5406 = vpop.permute.xlu0 %5405
    %5409 = vset.pattern.permute.xlu0 0
    %5410 = vperm.xlu0 %5409, %v5096
    %v5411 = vpop.permute.xlu0 %5410
    %5414 = vset.pattern.permute.xlu0 0
    %5415 = vperm.xlu0 %5414, %v5097
    %v5416 = vpop.permute.xlu0 %5415
    %v5418 = vmul.f32 %v4969, %v5101
    %v5419 = vmul.f32 %v4970, %v5106
    %v5420 = vmul.f32 %v4971, %v5111
    %v5421 = vmul.f32 %v4972, %v5116
    %v5422 = vmul.f32 %v4973, %v5121
    %v5423 = vmul.f32 %v4974, %v5126
    %v5424 = vmul.f32 %v4975, %v5131
    %v5425 = vmul.f32 %v4976, %v5136
    %v5426 = vmul.f32 %v4977, %v5141
    %v5427 = vmul.f32 %v4978, %v5146
    %v5428 = vmul.f32 %v4979, %v5151
    %v5429 = vmul.f32 %v4980, %v5156
    %v5430 = vmul.f32 %v4981, %v5161
    %v5431 = vmul.f32 %v4982, %v5166
    %v5432 = vmul.f32 %v4983, %v5171
    %v5433 = vmul.f32 %v4984, %v5176
    %v5434 = vmul.f32 %v4985, %v5181
    %v5435 = vmul.f32 %v4986, %v5186
    %v5436 = vmul.f32 %v4987, %v5191
    %v5437 = vmul.f32 %v4988, %v5196
    %v5438 = vmul.f32 %v4989, %v5201
    %v5439 = vmul.f32 %v4990, %v5206
    %v5440 = vmul.f32 %v4991, %v5211
    %v5441 = vmul.f32 %v4992, %v5216
    %v5442 = vmul.f32 %v4993, %v5221
    %v5443 = vmul.f32 %v4994, %v5226
    %v5444 = vmul.f32 %v4995, %v5231
    %v5445 = vmul.f32 %v4996, %v5236
    %v5446 = vmul.f32 %v4997, %v5241
    %v5447 = vmul.f32 %v4998, %v5246
    %v5448 = vmul.f32 %v4999, %v5251
    %v5449 = vmul.f32 %v5000, %v5256
    %v5450 = vmul.f32 %v5001, %v5261
    %v5451 = vmul.f32 %v5002, %v5266
    %v5452 = vmul.f32 %v5003, %v5271
    %v5453 = vmul.f32 %v5004, %v5276
    %v5454 = vmul.f32 %v5005, %v5281
    %v5455 = vmul.f32 %v5006, %v5286
    %v5456 = vmul.f32 %v5007, %v5291
    %v5457 = vmul.f32 %v5008, %v5296
    %v5458 = vmul.f32 %v5009, %v5301
    %v5459 = vmul.f32 %v5010, %v5306
    %v5460 = vmul.f32 %v5011, %v5311
    %v5461 = vmul.f32 %v5012, %v5316
    %v5462 = vmul.f32 %v5013, %v5321
    %v5463 = vmul.f32 %v5014, %v5326
    %v5464 = vmul.f32 %v5015, %v5331
    %v5465 = vmul.f32 %v5016, %v5336
    %v5466 = vmul.f32 %v5017, %v5341
    %v5467 = vmul.f32 %v5018, %v5346
    %v5468 = vmul.f32 %v5019, %v5351
    %v5469 = vmul.f32 %v5020, %v5356
    %v5470 = vmul.f32 %v5021, %v5361
    %v5471 = vmul.f32 %v5022, %v5366
    %v5472 = vmul.f32 %v5023, %v5371
    %v5473 = vmul.f32 %v5024, %v5376
    %v5474 = vmul.f32 %v5025, %v5381
    %v5475 = vmul.f32 %v5026, %v5386
    %v5476 = vmul.f32 %v5027, %v5391
    %v5477 = vmul.f32 %v5028, %v5396
    %v5478 = vmul.f32 %v5029, %v5401
    %v5479 = vmul.f32 %v5030, %v5406
    %v5480 = vmul.f32 %v5031, %v5411
    %v5481 = vmul.f32 %v5032, %v5416
    %v5482 = vpack.c.bf16 %v5419, %v5418
    %v5483 = vpack.c.bf16 %v5421, %v5420
    %v5484 = vpack.c.bf16 %v5423, %v5422
    %v5485 = vpack.c.bf16 %v5425, %v5424
    %v5486 = vpack.c.bf16 %v5427, %v5426
    %v5487 = vpack.c.bf16 %v5429, %v5428
    %v5488 = vpack.c.bf16 %v5431, %v5430
    %v5489 = vpack.c.bf16 %v5433, %v5432
    %v5490 = vpack.c.bf16 %v5435, %v5434
    %v5491 = vpack.c.bf16 %v5437, %v5436
    %v5492 = vpack.c.bf16 %v5439, %v5438
    %v5493 = vpack.c.bf16 %v5441, %v5440
    %v5494 = vpack.c.bf16 %v5443, %v5442
    %v5495 = vpack.c.bf16 %v5445, %v5444
    %v5496 = vpack.c.bf16 %v5447, %v5446
    %v5497 = vpack.c.bf16 %v5449, %v5448
    %v5498 = vpack.c.bf16 %v5451, %v5450
    %v5499 = vpack.c.bf16 %v5453, %v5452
    %v5500 = vpack.c.bf16 %v5455, %v5454
    %v5501 = vpack.c.bf16 %v5457, %v5456
    %v5502 = vpack.c.bf16 %v5459, %v5458
    %v5503 = vpack.c.bf16 %v5461, %v5460
    %v5504 = vpack.c.bf16 %v5463, %v5462
    %v5505 = vpack.c.bf16 %v5465, %v5464
    %v5506 = vpack.c.bf16 %v5467, %v5466
    %v5507 = vpack.c.bf16 %v5469, %v5468
    %v5508 = vpack.c.bf16 %v5471, %v5470
    %v5509 = vpack.c.bf16 %v5473, %v5472
    %v5510 = vpack.c.bf16 %v5475, %v5474
    %v5511 = vpack.c.bf16 %v5477, %v5476
    %v5512 = vpack.c.bf16 %v5479, %v5478
    %v5513 = vpack.c.bf16 %v5481, %v5480
    %s5514 = scalar_lea.vmem %s2, 320
    %v5515 = vld [vmem:[%s5514] sm:$0xf]
    %v5516 = vld [vmem:[%s5514 + $0x4] sm:$0xf]
    %v5517 = vld [vmem:[%s5514 + $0x8] sm:$0xf]
    %v5518 = vld [vmem:[%s5514 + $0xc] sm:$0xf]
    %v5519 = vld [vmem:[%s5514 + $0x10] sm:$0xf]
    %v5520 = vld [vmem:[%s5514 + $0x14] sm:$0xf]
    %v5521 = vld [vmem:[%s5514 + $0x18] sm:$0xf]
    %v5522 = vld [vmem:[%s5514 + $0x1c] sm:$0xf]
    %v5523 = vld [vmem:[%s5514 + $0x20] sm:$0xf]
    %v5524 = vld [vmem:[%s5514 + $0x24] sm:$0xf]
    %v5525 = vld [vmem:[%s5514 + $0x28] sm:$0xf]
    %v5526 = vld [vmem:[%s5514 + $0x2c] sm:$0xf]
    %v5527 = vld [vmem:[%s5514 + $0x30] sm:$0xf]
    %v5528 = vld [vmem:[%s5514 + $0x34] sm:$0xf]
    %v5529 = vld [vmem:[%s5514 + $0x38] sm:$0xf]
    %v5530 = vld [vmem:[%s5514 + $0x3c] sm:$0xf]
    %v5547 = vunpack.c.l.b16 %v5515
    %v5548 = vunpack.c.l.b16 %v5516
    %v5549 = vunpack.c.l.b16 %v5517
    %v5550 = vunpack.c.l.b16 %v5518
    %v5551 = vunpack.c.l.b16 %v5519
    %v5552 = vunpack.c.l.b16 %v5520
    %v5553 = vunpack.c.l.b16 %v5521
    %v5554 = vunpack.c.l.b16 %v5522
    %v5555 = vunpack.c.l.b16 %v5523
    %v5556 = vunpack.c.l.b16 %v5524
    %v5557 = vunpack.c.l.b16 %v5525
    %v5558 = vunpack.c.l.b16 %v5526
    %v5559 = vunpack.c.l.b16 %v5527
    %v5560 = vunpack.c.l.b16 %v5528
    %v5561 = vunpack.c.l.b16 %v5529
    %v5562 = vunpack.c.l.b16 %v5530
    %v5563 = vpack.c.b16 %v5548, %v5547
    %v5564 = vpack.c.b16 %v5550, %v5549
    %v5565 = vpack.c.b16 %v5552, %v5551
    %v5566 = vpack.c.b16 %v5554, %v5553
    %v5567 = vpack.c.b16 %v5556, %v5555
    %v5568 = vpack.c.b16 %v5558, %v5557
    %v5569 = vpack.c.b16 %v5560, %v5559
    %v5570 = vpack.c.b16 %v5562, %v5561
    %5579 = vmatprep.subr.bf16.mxu0 0
    %5580 = vmatpush1.bf16.msra.mxu0 %v5570
    %5581 = vmatprep.subr.bf16.mxu0 0
    %5582 = vmatpush1.bf16.msra.mxu0 %v5569
    %5583 = vmatprep.subr.bf16.mxu0 0
    %5584 = vmatpush1.bf16.msra.mxu0 %v5568
    %5585 = vmatprep.subr.bf16.mxu0 0
    %5586 = vmatpush1.bf16.msra.mxu0 %v5567
    %5587 = vmatprep.subr.bf16.mxu0 0
    %5588 = vmatpush1.bf16.msra.mxu0 %v5566
    %5589 = vmatprep.subr.bf16.mxu0 0
    %5590 = vmatpush1.bf16.msra.mxu0 %v5565
    %5591 = vmatprep.subr.bf16.mxu0 0
    %5592 = vmatpush1.bf16.msra.mxu0 %v5564
    %5593 = vmatprep.subr.bf16.mxu0 0
    %5594 = vmatpush1.bf16.msra.mxu0 %v5563
    %5595 = vmatprep.subr.bf16.mxu0 0
    %5596 = vmatpush2.bf16.msra.mxu0 0
    %5597 = vmatprep.subr.bf16.mxu0 0
    %5598 = vmatpush2.bf16.msra.mxu0 0
    %5599 = vmatprep.subr.bf16.mxu0 0
    %5600 = vmatpush2.bf16.msra.mxu0 0
    %5601 = vmatprep.subr.bf16.mxu0 0
    %5602 = vmatpush2.bf16.msra.mxu0 0
    %5603 = vmatprep.subr.bf16.mxu0 0
    %5604 = vmatpush2.bf16.msra.mxu0 0
    %5605 = vmatprep.subr.bf16.mxu0 0
    %5606 = vmatpush2.bf16.msra.mxu0 0
    %5607 = vmatprep.subr.bf16.mxu0 0
    %5608 = vmatpush2.bf16.msra.mxu0 0
    %5609 = vmatprep.subr.bf16.mxu0 0
    %5610 = vmatpush2.bf16.msra.mxu0 0
    %5611 = vmatprep.mubr.bf16.mxu0 0
    %5612 = vmatmul.mubr.bf16.gmra.mxu0 %v5482
    %v5613 = vpop.f32.mrf.mxu0
    %v5614 = vadd.f32 0.0, %v5613
    %v5615 = vpop.f32.mrf.mxu0
    %v5616 = vpop.f32.mrf.mxu0
    %v5617 = vadd.f32 0.0, %v5616
    %v5618 = vpop.f32.mrf.mxu0
    %5619 = vmatprep.mubr.bf16.mxu0 0
    %5620 = vmatmul.mubr.bf16.gmra.mxu0 %v5483
    %v5621 = vpop.f32.mrf.mxu0
    %v5622 = vadd.f32 0.0, %v5621
    %v5623 = vpop.f32.mrf.mxu0
    %v5624 = vpop.f32.mrf.mxu0
    %v5625 = vadd.f32 0.0, %v5624
    %v5626 = vpop.f32.mrf.mxu0
    %5627 = vmatprep.mubr.bf16.mxu0 0
    %5628 = vmatmul.mubr.bf16.gmra.mxu0 %v5484
    %v5629 = vpop.f32.mrf.mxu0
    %v5630 = vadd.f32 0.0, %v5629
    %v5631 = vpop.f32.mrf.mxu0
    %v5632 = vpop.f32.mrf.mxu0
    %v5633 = vadd.f32 0.0, %v5632
    %v5634 = vpop.f32.mrf.mxu0
    %5635 = vmatprep.mubr.bf16.mxu0 0
    %5636 = vmatmul.mubr.bf16.gmra.mxu0 %v5485
    %v5637 = vpop.f32.mrf.mxu0
    %v5638 = vadd.f32 0.0, %v5637
    %v5639 = vpop.f32.mrf.mxu0
    %v5640 = vpop.f32.mrf.mxu0
    %v5641 = vadd.f32 0.0, %v5640
    %v5642 = vpop.f32.mrf.mxu0
    %5643 = vmatprep.mubr.bf16.mxu0 0
    %5644 = vmatmul.mubr.bf16.gmra.mxu0 %v5486
    %v5645 = vpop.f32.mrf.mxu0
    %v5646 = vadd.f32 0.0, %v5645
    %v5647 = vpop.f32.mrf.mxu0
    %v5648 = vpop.f32.mrf.mxu0
    %v5649 = vadd.f32 0.0, %v5648
    %v5650 = vpop.f32.mrf.mxu0
    %5651 = vmatprep.mubr.bf16.mxu0 0
    %5652 = vmatmul.mubr.bf16.gmra.mxu0 %v5487
    %v5653 = vpop.f32.mrf.mxu0
    %v5654 = vadd.f32 0.0, %v5653
    %v5655 = vpop.f32.mrf.mxu0
    %v5656 = vpop.f32.mrf.mxu0
    %v5657 = vadd.f32 0.0, %v5656
    %v5658 = vpop.f32.mrf.mxu0
    %5659 = vmatprep.mubr.bf16.mxu0 0
    %5660 = vmatmul.mubr.bf16.gmra.mxu0 %v5488
    %v5661 = vpop.f32.mrf.mxu0
    %v5662 = vadd.f32 0.0, %v5661
    %v5663 = vpop.f32.mrf.mxu0
    %v5664 = vpop.f32.mrf.mxu0
    %v5665 = vadd.f32 0.0, %v5664
    %v5666 = vpop.f32.mrf.mxu0
    %5667 = vmatprep.mubr.bf16.mxu0 0
    %5668 = vmatmul.mubr.bf16.gmra.mxu0 %v5489
    %v5669 = vpop.f32.mrf.mxu0
    %v5670 = vadd.f32 0.0, %v5669
    %v5671 = vpop.f32.mrf.mxu0
    %v5672 = vpop.f32.mrf.mxu0
    %v5673 = vadd.f32 0.0, %v5672
    %v5674 = vpop.f32.mrf.mxu0
    %5675 = vmatprep.mubr.bf16.mxu0 0
    %5676 = vmatmul.mubr.bf16.gmra.mxu0 %v5490
    %v5677 = vpop.f32.mrf.mxu0
    %v5678 = vadd.f32 0.0, %v5677
    %v5679 = vpop.f32.mrf.mxu0
    %v5680 = vpop.f32.mrf.mxu0
    %v5681 = vadd.f32 0.0, %v5680
    %v5682 = vpop.f32.mrf.mxu0
    %5683 = vmatprep.mubr.bf16.mxu0 0
    %5684 = vmatmul.mubr.bf16.gmra.mxu0 %v5491
    %v5685 = vpop.f32.mrf.mxu0
    %v5686 = vadd.f32 0.0, %v5685
    %v5687 = vpop.f32.mrf.mxu0
    %v5688 = vpop.f32.mrf.mxu0
    %v5689 = vadd.f32 0.0, %v5688
    %v5690 = vpop.f32.mrf.mxu0
    %5691 = vmatprep.mubr.bf16.mxu0 0
    %5692 = vmatmul.mubr.bf16.gmra.mxu0 %v5492
    %v5693 = vpop.f32.mrf.mxu0
    %v5694 = vadd.f32 0.0, %v5693
    %v5695 = vpop.f32.mrf.mxu0
    %v5696 = vpop.f32.mrf.mxu0
    %v5697 = vadd.f32 0.0, %v5696
    %v5698 = vpop.f32.mrf.mxu0
    %5699 = vmatprep.mubr.bf16.mxu0 0
    %5700 = vmatmul.mubr.bf16.gmra.mxu0 %v5493
    %v5701 = vpop.f32.mrf.mxu0
    %v5702 = vadd.f32 0.0, %v5701
    %v5703 = vpop.f32.mrf.mxu0
    %v5704 = vpop.f32.mrf.mxu0
    %v5705 = vadd.f32 0.0, %v5704
    %v5706 = vpop.f32.mrf.mxu0
    %5707 = vmatprep.mubr.bf16.mxu0 0
    %5708 = vmatmul.mubr.bf16.gmra.mxu0 %v5494
    %v5709 = vpop.f32.mrf.mxu0
    %v5710 = vadd.f32 0.0, %v5709
    %v5711 = vpop.f32.mrf.mxu0
    %v5712 = vpop.f32.mrf.mxu0
    %v5713 = vadd.f32 0.0, %v5712
    %v5714 = vpop.f32.mrf.mxu0
    %5715 = vmatprep.mubr.bf16.mxu0 0
    %5716 = vmatmul.mubr.bf16.gmra.mxu0 %v5495
    %v5717 = vpop.f32.mrf.mxu0
    %v5718 = vadd.f32 0.0, %v5717
    %v5719 = vpop.f32.mrf.mxu0
    %v5720 = vpop.f32.mrf.mxu0
    %v5721 = vadd.f32 0.0, %v5720
    %v5722 = vpop.f32.mrf.mxu0
    %5723 = vmatprep.mubr.bf16.mxu0 0
    %5724 = vmatmul.mubr.bf16.gmra.mxu0 %v5496
    %v5725 = vpop.f32.mrf.mxu0
    %v5726 = vadd.f32 0.0, %v5725
    %v5727 = vpop.f32.mrf.mxu0
    %v5728 = vpop.f32.mrf.mxu0
    %v5729 = vadd.f32 0.0, %v5728
    %v5730 = vpop.f32.mrf.mxu0
    %5731 = vmatprep.mubr.bf16.mxu0 0
    %5732 = vmatmul.mubr.bf16.gmra.mxu0 %v5497
    %v5733 = vpop.f32.mrf.mxu0
    %v5734 = vadd.f32 0.0, %v5733
    %v5735 = vpop.f32.mrf.mxu0
    %v5736 = vpop.f32.mrf.mxu0
    %v5737 = vadd.f32 0.0, %v5736
    %v5738 = vpop.f32.mrf.mxu0
    %5739 = vmatprep.mubr.bf16.mxu0 0
    %5740 = vmatmul.mubr.bf16.gmra.mxu0 %v5498
    %v5741 = vpop.f32.mrf.mxu0
    %v5742 = vadd.f32 0.0, %v5741
    %v5743 = vpop.f32.mrf.mxu0
    %v5744 = vpop.f32.mrf.mxu0
    %v5745 = vadd.f32 0.0, %v5744
    %v5746 = vpop.f32.mrf.mxu0
    %5747 = vmatprep.mubr.bf16.mxu0 0
    %5748 = vmatmul.mubr.bf16.gmra.mxu0 %v5499
    %v5749 = vpop.f32.mrf.mxu0
    %v5750 = vadd.f32 0.0, %v5749
    %v5751 = vpop.f32.mrf.mxu0
    %v5752 = vpop.f32.mrf.mxu0
    %v5753 = vadd.f32 0.0, %v5752
    %v5754 = vpop.f32.mrf.mxu0
    %5755 = vmatprep.mubr.bf16.mxu0 0
    %5756 = vmatmul.mubr.bf16.gmra.mxu0 %v5500
    %v5757 = vpop.f32.mrf.mxu0
    %v5758 = vadd.f32 0.0, %v5757
    %v5759 = vpop.f32.mrf.mxu0
    %v5760 = vpop.f32.mrf.mxu0
    %v5761 = vadd.f32 0.0, %v5760
    %v5762 = vpop.f32.mrf.mxu0
    %5763 = vmatprep.mubr.bf16.mxu0 0
    %5764 = vmatmul.mubr.bf16.gmra.mxu0 %v5501
    %v5765 = vpop.f32.mrf.mxu0
    %v5766 = vadd.f32 0.0, %v5765
    %v5767 = vpop.f32.mrf.mxu0
    %v5768 = vpop.f32.mrf.mxu0
    %v5769 = vadd.f32 0.0, %v5768
    %v5770 = vpop.f32.mrf.mxu0
    %5771 = vmatprep.mubr.bf16.mxu0 0
    %5772 = vmatmul.mubr.bf16.gmra.mxu0 %v5502
    %v5773 = vpop.f32.mrf.mxu0
    %v5774 = vadd.f32 0.0, %v5773
    %v5775 = vpop.f32.mrf.mxu0
    %v5776 = vpop.f32.mrf.mxu0
    %v5777 = vadd.f32 0.0, %v5776
    %v5778 = vpop.f32.mrf.mxu0
    %5779 = vmatprep.mubr.bf16.mxu0 0
    %5780 = vmatmul.mubr.bf16.gmra.mxu0 %v5503
    %v5781 = vpop.f32.mrf.mxu0
    %v5782 = vadd.f32 0.0, %v5781
    %v5783 = vpop.f32.mrf.mxu0
    %v5784 = vpop.f32.mrf.mxu0
    %v5785 = vadd.f32 0.0, %v5784
    %v5786 = vpop.f32.mrf.mxu0
    %5787 = vmatprep.mubr.bf16.mxu0 0
    %5788 = vmatmul.mubr.bf16.gmra.mxu0 %v5504
    %v5789 = vpop.f32.mrf.mxu0
    %v5790 = vadd.f32 0.0, %v5789
    %v5791 = vpop.f32.mrf.mxu0
    %v5792 = vpop.f32.mrf.mxu0
    %v5793 = vadd.f32 0.0, %v5792
    %v5794 = vpop.f32.mrf.mxu0
    %5795 = vmatprep.mubr.bf16.mxu0 0
    %5796 = vmatmul.mubr.bf16.gmra.mxu0 %v5505
    %v5797 = vpop.f32.mrf.mxu0
    %v5798 = vadd.f32 0.0, %v5797
    %v5799 = vpop.f32.mrf.mxu0
    %v5800 = vpop.f32.mrf.mxu0
    %v5801 = vadd.f32 0.0, %v5800
    %v5802 = vpop.f32.mrf.mxu0
    %5803 = vmatprep.mubr.bf16.mxu0 0
    %5804 = vmatmul.mubr.bf16.gmra.mxu0 %v5506
    %v5805 = vpop.f32.mrf.mxu0
    %v5806 = vadd.f32 0.0, %v5805
    %v5807 = vpop.f32.mrf.mxu0
    %v5808 = vpop.f32.mrf.mxu0
    %v5809 = vadd.f32 0.0, %v5808
    %v5810 = vpop.f32.mrf.mxu0
    %5811 = vmatprep.mubr.bf16.mxu0 0
    %5812 = vmatmul.mubr.bf16.gmra.mxu0 %v5507
    %v5813 = vpop.f32.mrf.mxu0
    %v5814 = vadd.f32 0.0, %v5813
    %v5815 = vpop.f32.mrf.mxu0
    %v5816 = vpop.f32.mrf.mxu0
    %v5817 = vadd.f32 0.0, %v5816
    %v5818 = vpop.f32.mrf.mxu0
    %5819 = vmatprep.mubr.bf16.mxu0 0
    %5820 = vmatmul.mubr.bf16.gmra.mxu0 %v5508
    %v5821 = vpop.f32.mrf.mxu0
    %v5822 = vadd.f32 0.0, %v5821
    %v5823 = vpop.f32.mrf.mxu0
    %v5824 = vpop.f32.mrf.mxu0
    %v5825 = vadd.f32 0.0, %v5824
    %v5826 = vpop.f32.mrf.mxu0
    %5827 = vmatprep.mubr.bf16.mxu0 0
    %5828 = vmatmul.mubr.bf16.gmra.mxu0 %v5509
    %v5829 = vpop.f32.mrf.mxu0
    %v5830 = vadd.f32 0.0, %v5829
    %v5831 = vpop.f32.mrf.mxu0
    %v5832 = vpop.f32.mrf.mxu0
    %v5833 = vadd.f32 0.0, %v5832
    %v5834 = vpop.f32.mrf.mxu0
    %5835 = vmatprep.mubr.bf16.mxu0 0
    %5836 = vmatmul.mubr.bf16.gmra.mxu0 %v5510
    %v5837 = vpop.f32.mrf.mxu0
    %v5838 = vadd.f32 0.0, %v5837
    %v5839 = vpop.f32.mrf.mxu0
    %v5840 = vpop.f32.mrf.mxu0
    %v5841 = vadd.f32 0.0, %v5840
    %v5842 = vpop.f32.mrf.mxu0
    %5843 = vmatprep.mubr.bf16.mxu0 0
    %5844 = vmatmul.mubr.bf16.gmra.mxu0 %v5511
    %v5845 = vpop.f32.mrf.mxu0
    %v5846 = vadd.f32 0.0, %v5845
    %v5847 = vpop.f32.mrf.mxu0
    %v5848 = vpop.f32.mrf.mxu0
    %v5849 = vadd.f32 0.0, %v5848
    %v5850 = vpop.f32.mrf.mxu0
    %5851 = vmatprep.mubr.bf16.mxu0 0
    %5852 = vmatmul.mubr.bf16.gmra.mxu0 %v5512
    %v5853 = vpop.f32.mrf.mxu0
    %v5854 = vadd.f32 0.0, %v5853
    %v5855 = vpop.f32.mrf.mxu0
    %v5856 = vpop.f32.mrf.mxu0
    %v5857 = vadd.f32 0.0, %v5856
    %v5858 = vpop.f32.mrf.mxu0
    %5859 = vmatprep.mubr.bf16.mxu0 0
    %5860 = vmatmul.mubr.bf16.gmra.mxu0 %v5513
    %v5861 = vpop.f32.mrf.mxu0
    %v5862 = vadd.f32 0.0, %v5861
    %v5863 = vpop.f32.mrf.mxu0
    %v5864 = vpop.f32.mrf.mxu0
    %v5865 = vadd.f32 0.0, %v5864
    %v5866 = vpop.f32.mrf.mxu0
    %5867 = vdwg.mxu0
    %v5868 = vadd.f32 %v4905, %v5614
    %v5869 = vadd.f32 %v4906, %v5617
    %v5870 = vadd.f32 %v4907, %v5622
    %v5871 = vadd.f32 %v4908, %v5625
    %v5872 = vadd.f32 %v4909, %v5630
    %v5873 = vadd.f32 %v4910, %v5633
    %v5874 = vadd.f32 %v4911, %v5638
    %v5875 = vadd.f32 %v4912, %v5641
    %v5876 = vadd.f32 %v4913, %v5646
    %v5877 = vadd.f32 %v4914, %v5649
    %v5878 = vadd.f32 %v4915, %v5654
    %v5879 = vadd.f32 %v4916, %v5657
    %v5880 = vadd.f32 %v4917, %v5662
    %v5881 = vadd.f32 %v4918, %v5665
    %v5882 = vadd.f32 %v4919, %v5670
    %v5883 = vadd.f32 %v4920, %v5673
    %v5884 = vadd.f32 %v4921, %v5678
    %v5885 = vadd.f32 %v4922, %v5681
    %v5886 = vadd.f32 %v4923, %v5686
    %v5887 = vadd.f32 %v4924, %v5689
    %v5888 = vadd.f32 %v4925, %v5694
    %v5889 = vadd.f32 %v4926, %v5697
    %v5890 = vadd.f32 %v4927, %v5702
    %v5891 = vadd.f32 %v4928, %v5705
    %v5892 = vadd.f32 %v4929, %v5710
    %v5893 = vadd.f32 %v4930, %v5713
    %v5894 = vadd.f32 %v4931, %v5718
    %v5895 = vadd.f32 %v4932, %v5721
    %v5896 = vadd.f32 %v4933, %v5726
    %v5897 = vadd.f32 %v4934, %v5729
    %v5898 = vadd.f32 %v4935, %v5734
    %v5899 = vadd.f32 %v4936, %v5737
    %v5900 = vadd.f32 %v4937, %v5742
    %v5901 = vadd.f32 %v4938, %v5745
    %v5902 = vadd.f32 %v4939, %v5750
    %v5903 = vadd.f32 %v4940, %v5753
    %v5904 = vadd.f32 %v4941, %v5758
    %v5905 = vadd.f32 %v4942, %v5761
    %v5906 = vadd.f32 %v4943, %v5766
    %v5907 = vadd.f32 %v4944, %v5769
    %v5908 = vadd.f32 %v4945, %v5774
    %v5909 = vadd.f32 %v4946, %v5777
    %v5910 = vadd.f32 %v4947, %v5782
    %v5911 = vadd.f32 %v4948, %v5785
    %v5912 = vadd.f32 %v4949, %v5790
    %v5913 = vadd.f32 %v4950, %v5793
    %v5914 = vadd.f32 %v4951, %v5798
    %v5915 = vadd.f32 %v4952, %v5801
    %v5916 = vadd.f32 %v4953, %v5806
    %v5917 = vadd.f32 %v4954, %v5809
    %v5918 = vadd.f32 %v4955, %v5814
    %v5919 = vadd.f32 %v4956, %v5817
    %v5920 = vadd.f32 %v4957, %v5822
    %v5921 = vadd.f32 %v4958, %v5825
    %v5922 = vadd.f32 %v4959, %v5830
    %v5923 = vadd.f32 %v4960, %v5833
    %v5924 = vadd.f32 %v4961, %v5838
    %v5925 = vadd.f32 %v4962, %v5841
    %v5926 = vadd.f32 %v4963, %v5846
    %v5927 = vadd.f32 %v4964, %v5849
    %v5928 = vadd.f32 %v4965, %v5854
    %v5929 = vadd.f32 %v4966, %v5857
    %v5930 = vadd.f32 %v4967, %v5862
    %v5931 = vadd.f32 %v4968, %v5865
    %v5932 = vld [vmem:[#allocation2 + $0x27] sm:$0xff]
    %v5933 = vld [vmem:[#allocation2 + $0x2f] sm:$0xff]
    %v5934 = vld [vmem:[#allocation2 + $0x37] sm:$0xff]
    %v5935 = vld [vmem:[#allocation2 + $0x3f] sm:$0xff]
    %v5936 = vld [vmem:[#allocation2 + $0x47] sm:$0xff]
    %v5937 = vld [vmem:[#allocation2 + $0x4f] sm:$0xff]
    %v5938 = vld [vmem:[#allocation2 + $0x57] sm:$0xff]
    %v5939 = vld [vmem:[#allocation2 + $0x5f] sm:$0xff]
    %v5940 = vld [vmem:[#allocation2 + $0x67] sm:$0xff]
    %v5941 = vld [vmem:[#allocation2 + $0x6f] sm:$0xff]
    %v5942 = vld [vmem:[#allocation2 + $0x77] sm:$0xff]
    %v5943 = vld [vmem:[#allocation2 + $0x7f] sm:$0xff]
    %v5944 = vld [vmem:[#allocation2 + $0x87] sm:$0xff]
    %v5945 = vld [vmem:[#allocation2 + $0x8f] sm:$0xff]
    %v5946 = vld [vmem:[#allocation2 + $0x97] sm:$0xff]
    %v5947 = vld [vmem:[#allocation2 + $0x9f] sm:$0xff]
    %v5948 = vld [vmem:[#allocation2 + $0xa7] sm:$0xff]
    %v5949 = vld [vmem:[#allocation2 + $0xaf] sm:$0xff]
    %v5950 = vld [vmem:[#allocation2 + $0xb7] sm:$0xff]
    %v5951 = vld [vmem:[#allocation2 + $0xbf] sm:$0xff]
    %v5952 = vld [vmem:[#allocation2 + $0xc7] sm:$0xff]
    %v5953 = vld [vmem:[#allocation2 + $0xcf] sm:$0xff]
    %v5954 = vld [vmem:[#allocation2 + $0xd7] sm:$0xff]
    %v5955 = vld [vmem:[#allocation2 + $0xdf] sm:$0xff]
    %v5956 = vld [vmem:[#allocation2 + $0xe7] sm:$0xff]
    %v5957 = vld [vmem:[#allocation2 + $0xef] sm:$0xff]
    %v5958 = vld [vmem:[#allocation2 + $0xf7] sm:$0xff]
    %v5959 = vld [vmem:[#allocation2 + $0xff] sm:$0xff]
    %v5960 = vld [vmem:[#allocation2 + $0x107] sm:$0xff]
    %v5961 = vld [vmem:[#allocation2 + $0x10f] sm:$0xff]
    %v5962 = vld [vmem:[#allocation2 + $0x117] sm:$0xff]
    %v5963 = vld [vmem:[#allocation2 + $0x11f] sm:$0xff]
    %v5964 = vld [vmem:[#allocation2 + $0x127] sm:$0xff]
    %v5965 = vld [vmem:[#allocation2 + $0x12f] sm:$0xff]
    %v5966 = vld [vmem:[#allocation2 + $0x137] sm:$0xff]
    %v5967 = vld [vmem:[#allocation2 + $0x13f] sm:$0xff]
    %v5968 = vld [vmem:[#allocation2 + $0x147] sm:$0xff]
    %v5969 = vld [vmem:[#allocation2 + $0x14f] sm:$0xff]
    %v5970 = vld [vmem:[#allocation2 + $0x157] sm:$0xff]
    %v5971 = vld [vmem:[#allocation2 + $0x15f] sm:$0xff]
    %v5972 = vld [vmem:[#allocation2 + $0x167] sm:$0xff]
    %v5973 = vld [vmem:[#allocation2 + $0x16f] sm:$0xff]
    %v5974 = vld [vmem:[#allocation2 + $0x177] sm:$0xff]
    %v5975 = vld [vmem:[#allocation2 + $0x17f] sm:$0xff]
    %v5976 = vld [vmem:[#allocation2 + $0x187] sm:$0xff]
    %v5977 = vld [vmem:[#allocation2 + $0x18f] sm:$0xff]
    %v5978 = vld [vmem:[#allocation2 + $0x197] sm:$0xff]
    %v5979 = vld [vmem:[#allocation2 + $0x19f] sm:$0xff]
    %v5980 = vld [vmem:[#allocation2 + $0x1a7] sm:$0xff]
    %v5981 = vld [vmem:[#allocation2 + $0x1af] sm:$0xff]
    %v5982 = vld [vmem:[#allocation2 + $0x1b7] sm:$0xff]
    %v5983 = vld [vmem:[#allocation2 + $0x1bf] sm:$0xff]
    %v5984 = vld [vmem:[#allocation2 + $0x1c7] sm:$0xff]
    %v5985 = vld [vmem:[#allocation2 + $0x1cf] sm:$0xff]
    %v5986 = vld [vmem:[#allocation2 + $0x1d7] sm:$0xff]
    %v5987 = vld [vmem:[#allocation2 + $0x1df] sm:$0xff]
    %v5988 = vld [vmem:[#allocation2 + $0x1e7] sm:$0xff]
    %v5989 = vld [vmem:[#allocation2 + $0x1ef] sm:$0xff]
    %v5990 = vld [vmem:[#allocation2 + $0x1f7] sm:$0xff]
    %v5991 = vld [vmem:[#allocation2 + $0x1ff] sm:$0xff]
    %v5992 = vld [vmem:[#allocation2 + $0x207] sm:$0xff]
    %v5993 = vld [vmem:[#allocation2 + $0x20f] sm:$0xff]
    %v5994 = vld [vmem:[#allocation2 + $0x217] sm:$0xff]
    %v5995 = vld [vmem:[#allocation2 + $0x21f] sm:$0xff]
    %s5996 = scalar_lea.vmem %s1, 3072
    %v5997 = vld [vmem:[%s5996] sm:$0xff]
    %v5998 = vld [vmem:[%s5996 + $0x8] sm:$0xff]
    %v5999 = vld [vmem:[%s5996 + $0x10] sm:$0xff]
    %v6000 = vld [vmem:[%s5996 + $0x18] sm:$0xff]
    %v6001 = vld [vmem:[%s5996 + $0x20] sm:$0xff]
    %v6002 = vld [vmem:[%s5996 + $0x28] sm:$0xff]
    %v6003 = vld [vmem:[%s5996 + $0x30] sm:$0xff]
    %v6004 = vld [vmem:[%s5996 + $0x38] sm:$0xff]
    %v6005 = vld [vmem:[%s5996 + $0x40] sm:$0xff]
    %v6006 = vld [vmem:[%s5996 + $0x48] sm:$0xff]
    %v6007 = vld [vmem:[%s5996 + $0x50] sm:$0xff]
    %v6008 = vld [vmem:[%s5996 + $0x58] sm:$0xff]
    %v6009 = vld [vmem:[%s5996 + $0x60] sm:$0xff]
    %v6010 = vld [vmem:[%s5996 + $0x68] sm:$0xff]
    %v6011 = vld [vmem:[%s5996 + $0x70] sm:$0xff]
    %v6012 = vld [vmem:[%s5996 + $0x78] sm:$0xff]
    %v6013 = vld [vmem:[%s5996 + $0x80] sm:$0xff]
    %v6014 = vld [vmem:[%s5996 + $0x88] sm:$0xff]
    %v6015 = vld [vmem:[%s5996 + $0x90] sm:$0xff]
    %v6016 = vld [vmem:[%s5996 + $0x98] sm:$0xff]
    %v6017 = vld [vmem:[%s5996 + $0xa0] sm:$0xff]
    %v6018 = vld [vmem:[%s5996 + $0xa8] sm:$0xff]
    %v6019 = vld [vmem:[%s5996 + $0xb0] sm:$0xff]
    %v6020 = vld [vmem:[%s5996 + $0xb8] sm:$0xff]
    %v6021 = vld [vmem:[%s5996 + $0xc0] sm:$0xff]
    %v6022 = vld [vmem:[%s5996 + $0xc8] sm:$0xff]
    %v6023 = vld [vmem:[%s5996 + $0xd0] sm:$0xff]
    %v6024 = vld [vmem:[%s5996 + $0xd8] sm:$0xff]
    %v6025 = vld [vmem:[%s5996 + $0xe0] sm:$0xff]
    %v6026 = vld [vmem:[%s5996 + $0xe8] sm:$0xff]
    %v6027 = vld [vmem:[%s5996 + $0xf0] sm:$0xff]
    %v6028 = vld [vmem:[%s5996 + $0xf8] sm:$0xff]
    %v6029 = vld [vmem:[%s5996 + $0x100] sm:$0xff]
    %v6030 = vld [vmem:[%s5996 + $0x108] sm:$0xff]
    %v6031 = vld [vmem:[%s5996 + $0x110] sm:$0xff]
    %v6032 = vld [vmem:[%s5996 + $0x118] sm:$0xff]
    %v6033 = vld [vmem:[%s5996 + $0x120] sm:$0xff]
    %v6034 = vld [vmem:[%s5996 + $0x128] sm:$0xff]
    %v6035 = vld [vmem:[%s5996 + $0x130] sm:$0xff]
    %v6036 = vld [vmem:[%s5996 + $0x138] sm:$0xff]
    %v6037 = vld [vmem:[%s5996 + $0x140] sm:$0xff]
    %v6038 = vld [vmem:[%s5996 + $0x148] sm:$0xff]
    %v6039 = vld [vmem:[%s5996 + $0x150] sm:$0xff]
    %v6040 = vld [vmem:[%s5996 + $0x158] sm:$0xff]
    %v6041 = vld [vmem:[%s5996 + $0x160] sm:$0xff]
    %v6042 = vld [vmem:[%s5996 + $0x168] sm:$0xff]
    %v6043 = vld [vmem:[%s5996 + $0x170] sm:$0xff]
    %v6044 = vld [vmem:[%s5996 + $0x178] sm:$0xff]
    %v6045 = vld [vmem:[%s5996 + $0x180] sm:$0xff]
    %v6046 = vld [vmem:[%s5996 + $0x188] sm:$0xff]
    %v6047 = vld [vmem:[%s5996 + $0x190] sm:$0xff]
    %v6048 = vld [vmem:[%s5996 + $0x198] sm:$0xff]
    %v6049 = vld [vmem:[%s5996 + $0x1a0] sm:$0xff]
    %v6050 = vld [vmem:[%s5996 + $0x1a8] sm:$0xff]
    %v6051 = vld [vmem:[%s5996 + $0x1b0] sm:$0xff]
    %v6052 = vld [vmem:[%s5996 + $0x1b8] sm:$0xff]
    %v6053 = vld [vmem:[%s5996 + $0x1c0] sm:$0xff]
    %v6054 = vld [vmem:[%s5996 + $0x1c8] sm:$0xff]
    %v6055 = vld [vmem:[%s5996 + $0x1d0] sm:$0xff]
    %v6056 = vld [vmem:[%s5996 + $0x1d8] sm:$0xff]
    %v6057 = vld [vmem:[%s5996 + $0x1e0] sm:$0xff]
    %v6058 = vld [vmem:[%s5996 + $0x1e8] sm:$0xff]
    %v6059 = vld [vmem:[%s5996 + $0x1f0] sm:$0xff]
    %v6060 = vld [vmem:[%s5996 + $0x1f8] sm:$0xff]
    %6062 = vset.pattern.permute.xlu0 0
    %6063 = vperm.xlu0 %6062, %v5997
    %v6064 = vpop.permute.xlu0 %6063
    %6067 = vset.pattern.permute.xlu0 0
    %6068 = vperm.xlu0 %6067, %v5998
    %v6069 = vpop.permute.xlu0 %6068
    %6072 = vset.pattern.permute.xlu0 0
    %6073 = vperm.xlu0 %6072, %v5999
    %v6074 = vpop.permute.xlu0 %6073
    %6077 = vset.pattern.permute.xlu0 0
    %6078 = vperm.xlu0 %6077, %v6000
    %v6079 = vpop.permute.xlu0 %6078
    %6082 = vset.pattern.permute.xlu0 0
    %6083 = vperm.xlu0 %6082, %v6001
    %v6084 = vpop.permute.xlu0 %6083
    %6087 = vset.pattern.permute.xlu0 0
    %6088 = vperm.xlu0 %6087, %v6002
    %v6089 = vpop.permute.xlu0 %6088
    %6092 = vset.pattern.permute.xlu0 0
    %6093 = vperm.xlu0 %6092, %v6003
    %v6094 = vpop.permute.xlu0 %6093
    %6097 = vset.pattern.permute.xlu0 0
    %6098 = vperm.xlu0 %6097, %v6004
    %v6099 = vpop.permute.xlu0 %6098
    %6102 = vset.pattern.permute.xlu0 0
    %6103 = vperm.xlu0 %6102, %v6005
    %v6104 = vpop.permute.xlu0 %6103
    %6107 = vset.pattern.permute.xlu0 0
    %6108 = vperm.xlu0 %6107, %v6006
    %v6109 = vpop.permute.xlu0 %6108
    %6112 = vset.pattern.permute.xlu0 0
    %6113 = vperm.xlu0 %6112, %v6007
    %v6114 = vpop.permute.xlu0 %6113
    %6117 = vset.pattern.permute.xlu0 0
    %6118 = vperm.xlu0 %6117, %v6008
    %v6119 = vpop.permute.xlu0 %6118
    %6122 = vset.pattern.permute.xlu0 0
    %6123 = vperm.xlu0 %6122, %v6009
    %v6124 = vpop.permute.xlu0 %6123
    %6127 = vset.pattern.permute.xlu0 0
    %6128 = vperm.xlu0 %6127, %v6010
    %v6129 = vpop.permute.xlu0 %6128
    %6132 = vset.pattern.permute.xlu0 0
    %6133 = vperm.xlu0 %6132, %v6011
    %v6134 = vpop.permute.xlu0 %6133
    %6137 = vset.pattern.permute.xlu0 0
    %6138 = vperm.xlu0 %6137, %v6012
    %v6139 = vpop.permute.xlu0 %6138
    %6142 = vset.pattern.permute.xlu0 0
    %6143 = vperm.xlu0 %6142, %v6013
    %v6144 = vpop.permute.xlu0 %6143
    %6147 = vset.pattern.permute.xlu0 0
    %6148 = vperm.xlu0 %6147, %v6014
    %v6149 = vpop.permute.xlu0 %6148
    %6152 = vset.pattern.permute.xlu0 0
    %6153 = vperm.xlu0 %6152, %v6015
    %v6154 = vpop.permute.xlu0 %6153
    %6157 = vset.pattern.permute.xlu0 0
    %6158 = vperm.xlu0 %6157, %v6016
    %v6159 = vpop.permute.xlu0 %6158
    %6162 = vset.pattern.permute.xlu0 0
    %6163 = vperm.xlu0 %6162, %v6017
    %v6164 = vpop.permute.xlu0 %6163
    %6167 = vset.pattern.permute.xlu0 0
    %6168 = vperm.xlu0 %6167, %v6018
    %v6169 = vpop.permute.xlu0 %6168
    %6172 = vset.pattern.permute.xlu0 0
    %6173 = vperm.xlu0 %6172, %v6019
    %v6174 = vpop.permute.xlu0 %6173
    %6177 = vset.pattern.permute.xlu0 0
    %6178 = vperm.xlu0 %6177, %v6020
    %v6179 = vpop.permute.xlu0 %6178
    %6182 = vset.pattern.permute.xlu0 0
    %6183 = vperm.xlu0 %6182, %v6021
    %v6184 = vpop.permute.xlu0 %6183
    %6187 = vset.pattern.permute.xlu0 0
    %6188 = vperm.xlu0 %6187, %v6022
    %v6189 = vpop.permute.xlu0 %6188
    %6192 = vset.pattern.permute.xlu0 0
    %6193 = vperm.xlu0 %6192, %v6023
    %v6194 = vpop.permute.xlu0 %6193
    %6197 = vset.pattern.permute.xlu0 0
    %6198 = vperm.xlu0 %6197, %v6024
    %v6199 = vpop.permute.xlu0 %6198
    %6202 = vset.pattern.permute.xlu0 0
    %6203 = vperm.xlu0 %6202, %v6025
    %v6204 = vpop.permute.xlu0 %6203
    %6207 = vset.pattern.permute.xlu0 0
    %6208 = vperm.xlu0 %6207, %v6026
    %v6209 = vpop.permute.xlu0 %6208
    %6212 = vset.pattern.permute.xlu0 0
    %6213 = vperm.xlu0 %6212, %v6027
    %v6214 = vpop.permute.xlu0 %6213
    %6217 = vset.pattern.permute.xlu0 0
    %6218 = vperm.xlu0 %6217, %v6028
    %v6219 = vpop.permute.xlu0 %6218
    %6222 = vset.pattern.permute.xlu0 0
    %6223 = vperm.xlu0 %6222, %v6029
    %v6224 = vpop.permute.xlu0 %6223
    %6227 = vset.pattern.permute.xlu0 0
    %6228 = vperm.xlu0 %6227, %v6030
    %v6229 = vpop.permute.xlu0 %6228
    %6232 = vset.pattern.permute.xlu0 0
    %6233 = vperm.xlu0 %6232, %v6031
    %v6234 = vpop.permute.xlu0 %6233
    %6237 = vset.pattern.permute.xlu0 0
    %6238 = vperm.xlu0 %6237, %v6032
    %v6239 = vpop.permute.xlu0 %6238
    %6242 = vset.pattern.permute.xlu0 0
    %6243 = vperm.xlu0 %6242, %v6033
    %v6244 = vpop.permute.xlu0 %6243
    %6247 = vset.pattern.permute.xlu0 0
    %6248 = vperm.xlu0 %6247, %v6034
    %v6249 = vpop.permute.xlu0 %6248
    %6252 = vset.pattern.permute.xlu0 0
    %6253 = vperm.xlu0 %6252, %v6035
    %v6254 = vpop.permute.xlu0 %6253
    %6257 = vset.pattern.permute.xlu0 0
    %6258 = vperm.xlu0 %6257, %v6036
    %v6259 = vpop.permute.xlu0 %6258
    %6262 = vset.pattern.permute.xlu0 0
    %6263 = vperm.xlu0 %6262, %v6037
    %v6264 = vpop.permute.xlu0 %6263
    %6267 = vset.pattern.permute.xlu0 0
    %6268 = vperm.xlu0 %6267, %v6038
    %v6269 = vpop.permute.xlu0 %6268
    %6272 = vset.pattern.permute.xlu0 0
    %6273 = vperm.xlu0 %6272, %v6039
    %v6274 = vpop.permute.xlu0 %6273
    %6277 = vset.pattern.permute.xlu0 0
    %6278 = vperm.xlu0 %6277, %v6040
    %v6279 = vpop.permute.xlu0 %6278
    %6282 = vset.pattern.permute.xlu0 0
    %6283 = vperm.xlu0 %6282, %v6041
    %v6284 = vpop.permute.xlu0 %6283
    %6287 = vset.pattern.permute.xlu0 0
    %6288 = vperm.xlu0 %6287, %v6042
    %v6289 = vpop.permute.xlu0 %6288
    %6292 = vset.pattern.permute.xlu0 0
    %6293 = vperm.xlu0 %6292, %v6043
    %v6294 = vpop.permute.xlu0 %6293
    %6297 = vset.pattern.permute.xlu0 0
    %6298 = vperm.xlu0 %6297, %v6044
    %v6299 = vpop.permute.xlu0 %6298
    %6302 = vset.pattern.permute.xlu0 0
    %6303 = vperm.xlu0 %6302, %v6045
    %v6304 = vpop.permute.xlu0 %6303
    %6307 = vset.pattern.permute.xlu0 0
    %6308 = vperm.xlu0 %6307, %v6046
    %v6309 = vpop.permute.xlu0 %6308
    %6312 = vset.pattern.permute.xlu0 0
    %6313 = vperm.xlu0 %6312, %v6047
    %v6314 = vpop.permute.xlu0 %6313
    %6317 = vset.pattern.permute.xlu0 0
    %6318 = vperm.xlu0 %6317, %v6048
    %v6319 = vpop.permute.xlu0 %6318
    %6322 = vset.pattern.permute.xlu0 0
    %6323 = vperm.xlu0 %6322, %v6049
    %v6324 = vpop.permute.xlu0 %6323
    %6327 = vset.pattern.permute.xlu0 0
    %6328 = vperm.xlu0 %6327, %v6050
    %v6329 = vpop.permute.xlu0 %6328
    %6332 = vset.pattern.permute.xlu0 0
    %6333 = vperm.xlu0 %6332, %v6051
    %v6334 = vpop.permute.xlu0 %6333
    %6337 = vset.pattern.permute.xlu0 0
    %6338 = vperm.xlu0 %6337, %v6052
    %v6339 = vpop.permute.xlu0 %6338
    %6342 = vset.pattern.permute.xlu0 0
    %6343 = vperm.xlu0 %6342, %v6053
    %v6344 = vpop.permute.xlu0 %6343
    %6347 = vset.pattern.permute.xlu0 0
    %6348 = vperm.xlu0 %6347, %v6054
    %v6349 = vpop.permute.xlu0 %6348
    %6352 = vset.pattern.permute.xlu0 0
    %6353 = vperm.xlu0 %6352, %v6055
    %v6354 = vpop.permute.xlu0 %6353
    %6357 = vset.pattern.permute.xlu0 0
    %6358 = vperm.xlu0 %6357, %v6056
    %v6359 = vpop.permute.xlu0 %6358
    %6362 = vset.pattern.permute.xlu0 0
    %6363 = vperm.xlu0 %6362, %v6057
    %v6364 = vpop.permute.xlu0 %6363
    %6367 = vset.pattern.permute.xlu0 0
    %6368 = vperm.xlu0 %6367, %v6058
    %v6369 = vpop.permute.xlu0 %6368
    %6372 = vset.pattern.permute.xlu0 0
    %6373 = vperm.xlu0 %6372, %v6059
    %v6374 = vpop.permute.xlu0 %6373
    %6377 = vset.pattern.permute.xlu0 0
    %6378 = vperm.xlu0 %6377, %v6060
    %v6379 = vpop.permute.xlu0 %6378
    %v6381 = vmul.f32 %v5932, %v6064
    %v6382 = vmul.f32 %v5933, %v6069
    %v6383 = vmul.f32 %v5934, %v6074
    %v6384 = vmul.f32 %v5935, %v6079
    %v6385 = vmul.f32 %v5936, %v6084
    %v6386 = vmul.f32 %v5937, %v6089
    %v6387 = vmul.f32 %v5938, %v6094
    %v6388 = vmul.f32 %v5939, %v6099
    %v6389 = vmul.f32 %v5940, %v6104
    %v6390 = vmul.f32 %v5941, %v6109
    %v6391 = vmul.f32 %v5942, %v6114
    %v6392 = vmul.f32 %v5943, %v6119
    %v6393 = vmul.f32 %v5944, %v6124
    %v6394 = vmul.f32 %v5945, %v6129
    %v6395 = vmul.f32 %v5946, %v6134
    %v6396 = vmul.f32 %v5947, %v6139
    %v6397 = vmul.f32 %v5948, %v6144
    %v6398 = vmul.f32 %v5949, %v6149
    %v6399 = vmul.f32 %v5950, %v6154
    %v6400 = vmul.f32 %v5951, %v6159
    %v6401 = vmul.f32 %v5952, %v6164
    %v6402 = vmul.f32 %v5953, %v6169
    %v6403 = vmul.f32 %v5954, %v6174
    %v6404 = vmul.f32 %v5955, %v6179
    %v6405 = vmul.f32 %v5956, %v6184
    %v6406 = vmul.f32 %v5957, %v6189
    %v6407 = vmul.f32 %v5958, %v6194
    %v6408 = vmul.f32 %v5959, %v6199
    %v6409 = vmul.f32 %v5960, %v6204
    %v6410 = vmul.f32 %v5961, %v6209
    %v6411 = vmul.f32 %v5962, %v6214
    %v6412 = vmul.f32 %v5963, %v6219
    %v6413 = vmul.f32 %v5964, %v6224
    %v6414 = vmul.f32 %v5965, %v6229
    %v6415 = vmul.f32 %v5966, %v6234
    %v6416 = vmul.f32 %v5967, %v6239
    %v6417 = vmul.f32 %v5968, %v6244
    %v6418 = vmul.f32 %v5969, %v6249
    %v6419 = vmul.f32 %v5970, %v6254
    %v6420 = vmul.f32 %v5971, %v6259
    %v6421 = vmul.f32 %v5972, %v6264
    %v6422 = vmul.f32 %v5973, %v6269
    %v6423 = vmul.f32 %v5974, %v6274
    %v6424 = vmul.f32 %v5975, %v6279
    %v6425 = vmul.f32 %v5976, %v6284
    %v6426 = vmul.f32 %v5977, %v6289
    %v6427 = vmul.f32 %v5978, %v6294
    %v6428 = vmul.f32 %v5979, %v6299
    %v6429 = vmul.f32 %v5980, %v6304
    %v6430 = vmul.f32 %v5981, %v6309
    %v6431 = vmul.f32 %v5982, %v6314
    %v6432 = vmul.f32 %v5983, %v6319
    %v6433 = vmul.f32 %v5984, %v6324
    %v6434 = vmul.f32 %v5985, %v6329
    %v6435 = vmul.f32 %v5986, %v6334
    %v6436 = vmul.f32 %v5987, %v6339
    %v6437 = vmul.f32 %v5988, %v6344
    %v6438 = vmul.f32 %v5989, %v6349
    %v6439 = vmul.f32 %v5990, %v6354
    %v6440 = vmul.f32 %v5991, %v6359
    %v6441 = vmul.f32 %v5992, %v6364
    %v6442 = vmul.f32 %v5993, %v6369
    %v6443 = vmul.f32 %v5994, %v6374
    %v6444 = vmul.f32 %v5995, %v6379
    %v6445 = vpack.c.bf16 %v6382, %v6381
    %v6446 = vpack.c.bf16 %v6384, %v6383
    %v6447 = vpack.c.bf16 %v6386, %v6385
    %v6448 = vpack.c.bf16 %v6388, %v6387
    %v6449 = vpack.c.bf16 %v6390, %v6389
    %v6450 = vpack.c.bf16 %v6392, %v6391
    %v6451 = vpack.c.bf16 %v6394, %v6393
    %v6452 = vpack.c.bf16 %v6396, %v6395
    %v6453 = vpack.c.bf16 %v6398, %v6397
    %v6454 = vpack.c.bf16 %v6400, %v6399
    %v6455 = vpack.c.bf16 %v6402, %v6401
    %v6456 = vpack.c.bf16 %v6404, %v6403
    %v6457 = vpack.c.bf16 %v6406, %v6405
    %v6458 = vpack.c.bf16 %v6408, %v6407
    %v6459 = vpack.c.bf16 %v6410, %v6409
    %v6460 = vpack.c.bf16 %v6412, %v6411
    %v6461 = vpack.c.bf16 %v6414, %v6413
    %v6462 = vpack.c.bf16 %v6416, %v6415
    %v6463 = vpack.c.bf16 %v6418, %v6417
    %v6464 = vpack.c.bf16 %v6420, %v6419
    %v6465 = vpack.c.bf16 %v6422, %v6421
    %v6466 = vpack.c.bf16 %v6424, %v6423
    %v6467 = vpack.c.bf16 %v6426, %v6425
    %v6468 = vpack.c.bf16 %v6428, %v6427
    %v6469 = vpack.c.bf16 %v6430, %v6429
    %v6470 = vpack.c.bf16 %v6432, %v6431
    %v6471 = vpack.c.bf16 %v6434, %v6433
    %v6472 = vpack.c.bf16 %v6436, %v6435
    %v6473 = vpack.c.bf16 %v6438, %v6437
    %v6474 = vpack.c.bf16 %v6440, %v6439
    %v6475 = vpack.c.bf16 %v6442, %v6441
    %v6476 = vpack.c.bf16 %v6444, %v6443
    %s6477 = scalar_lea.vmem %s2, 384
    %v6478 = vld [vmem:[%s6477] sm:$0xf]
    %v6479 = vld [vmem:[%s6477 + $0x4] sm:$0xf]
    %v6480 = vld [vmem:[%s6477 + $0x8] sm:$0xf]
    %v6481 = vld [vmem:[%s6477 + $0xc] sm:$0xf]
    %v6482 = vld [vmem:[%s6477 + $0x10] sm:$0xf]
    %v6483 = vld [vmem:[%s6477 + $0x14] sm:$0xf]
    %v6484 = vld [vmem:[%s6477 + $0x18] sm:$0xf]
    %v6485 = vld [vmem:[%s6477 + $0x1c] sm:$0xf]
    %v6486 = vld [vmem:[%s6477 + $0x20] sm:$0xf]
    %v6487 = vld [vmem:[%s6477 + $0x24] sm:$0xf]
    %v6488 = vld [vmem:[%s6477 + $0x28] sm:$0xf]
    %v6489 = vld [vmem:[%s6477 + $0x2c] sm:$0xf]
    %v6490 = vld [vmem:[%s6477 + $0x30] sm:$0xf]
    %v6491 = vld [vmem:[%s6477 + $0x34] sm:$0xf]
    %v6492 = vld [vmem:[%s6477 + $0x38] sm:$0xf]
    %v6493 = vld [vmem:[%s6477 + $0x3c] sm:$0xf]
    %v6510 = vunpack.c.l.b16 %v6478
    %v6511 = vunpack.c.l.b16 %v6479
    %v6512 = vunpack.c.l.b16 %v6480
    %v6513 = vunpack.c.l.b16 %v6481
    %v6514 = vunpack.c.l.b16 %v6482
    %v6515 = vunpack.c.l.b16 %v6483
    %v6516 = vunpack.c.l.b16 %v6484
    %v6517 = vunpack.c.l.b16 %v6485
    %v6518 = vunpack.c.l.b16 %v6486
    %v6519 = vunpack.c.l.b16 %v6487
    %v6520 = vunpack.c.l.b16 %v6488
    %v6521 = vunpack.c.l.b16 %v6489
    %v6522 = vunpack.c.l.b16 %v6490
    %v6523 = vunpack.c.l.b16 %v6491
    %v6524 = vunpack.c.l.b16 %v6492
    %v6525 = vunpack.c.l.b16 %v6493
    %v6526 = vpack.c.b16 %v6511, %v6510
    %v6527 = vpack.c.b16 %v6513, %v6512
    %v6528 = vpack.c.b16 %v6515, %v6514
    %v6529 = vpack.c.b16 %v6517, %v6516
    %v6530 = vpack.c.b16 %v6519, %v6518
    %v6531 = vpack.c.b16 %v6521, %v6520
    %v6532 = vpack.c.b16 %v6523, %v6522
    %v6533 = vpack.c.b16 %v6525, %v6524
    %6542 = vmatprep.subr.bf16.mxu0 0
    %6543 = vmatpush1.bf16.msra.mxu0 %v6533
    %6544 = vmatprep.subr.bf16.mxu0 0
    %6545 = vmatpush1.bf16.msra.mxu0 %v6532
    %6546 = vmatprep.subr.bf16.mxu0 0
    %6547 = vmatpush1.bf16.msra.mxu0 %v6531
    %6548 = vmatprep.subr.bf16.mxu0 0
    %6549 = vmatpush1.bf16.msra.mxu0 %v6530
    %6550 = vmatprep.subr.bf16.mxu0 0
    %6551 = vmatpush1.bf16.msra.mxu0 %v6529
    %6552 = vmatprep.subr.bf16.mxu0 0
    %6553 = vmatpush1.bf16.msra.mxu0 %v6528
    %6554 = vmatprep.subr.bf16.mxu0 0
    %6555 = vmatpush1.bf16.msra.mxu0 %v6527
    %6556 = vmatprep.subr.bf16.mxu0 0
    %6557 = vmatpush1.bf16.msra.mxu0 %v6526
    %6558 = vmatprep.subr.bf16.mxu0 0
    %6559 = vmatpush2.bf16.msra.mxu0 0
    %6560 = vmatprep.subr.bf16.mxu0 0
    %6561 = vmatpush2.bf16.msra.mxu0 0
    %6562 = vmatprep.subr.bf16.mxu0 0
    %6563 = vmatpush2.bf16.msra.mxu0 0
    %6564 = vmatprep.subr.bf16.mxu0 0
    %6565 = vmatpush2.bf16.msra.mxu0 0
    %6566 = vmatprep.subr.bf16.mxu0 0
    %6567 = vmatpush2.bf16.msra.mxu0 0
    %6568 = vmatprep.subr.bf16.mxu0 0
    %6569 = vmatpush2.bf16.msra.mxu0 0
    %6570 = vmatprep.subr.bf16.mxu0 0
    %6571 = vmatpush2.bf16.msra.mxu0 0
    %6572 = vmatprep.subr.bf16.mxu0 0
    %6573 = vmatpush2.bf16.msra.mxu0 0
    %6574 = vmatprep.mubr.bf16.mxu0 0
    %6575 = vmatmul.mubr.bf16.gmra.mxu0 %v6445
    %v6576 = vpop.f32.mrf.mxu0
    %v6577 = vadd.f32 0.0, %v6576
    %v6578 = vpop.f32.mrf.mxu0
    %v6579 = vpop.f32.mrf.mxu0
    %v6580 = vadd.f32 0.0, %v6579
    %v6581 = vpop.f32.mrf.mxu0
    %6582 = vmatprep.mubr.bf16.mxu0 0
    %6583 = vmatmul.mubr.bf16.gmra.mxu0 %v6446
    %v6584 = vpop.f32.mrf.mxu0
    %v6585 = vadd.f32 0.0, %v6584
    %v6586 = vpop.f32.mrf.mxu0
    %v6587 = vpop.f32.mrf.mxu0
    %v6588 = vadd.f32 0.0, %v6587
    %v6589 = vpop.f32.mrf.mxu0
    %6590 = vmatprep.mubr.bf16.mxu0 0
    %6591 = vmatmul.mubr.bf16.gmra.mxu0 %v6447
    %v6592 = vpop.f32.mrf.mxu0
    %v6593 = vadd.f32 0.0, %v6592
    %v6594 = vpop.f32.mrf.mxu0
    %v6595 = vpop.f32.mrf.mxu0
    %v6596 = vadd.f32 0.0, %v6595
    %v6597 = vpop.f32.mrf.mxu0
    %6598 = vmatprep.mubr.bf16.mxu0 0
    %6599 = vmatmul.mubr.bf16.gmra.mxu0 %v6448
    %v6600 = vpop.f32.mrf.mxu0
    %v6601 = vadd.f32 0.0, %v6600
    %v6602 = vpop.f32.mrf.mxu0
    %v6603 = vpop.f32.mrf.mxu0
    %v6604 = vadd.f32 0.0, %v6603
    %v6605 = vpop.f32.mrf.mxu0
    %6606 = vmatprep.mubr.bf16.mxu0 0
    %6607 = vmatmul.mubr.bf16.gmra.mxu0 %v6449
    %v6608 = vpop.f32.mrf.mxu0
    %v6609 = vadd.f32 0.0, %v6608
    %v6610 = vpop.f32.mrf.mxu0
    %v6611 = vpop.f32.mrf.mxu0
    %v6612 = vadd.f32 0.0, %v6611
    %v6613 = vpop.f32.mrf.mxu0
    %6614 = vmatprep.mubr.bf16.mxu0 0
    %6615 = vmatmul.mubr.bf16.gmra.mxu0 %v6450
    %v6616 = vpop.f32.mrf.mxu0
    %v6617 = vadd.f32 0.0, %v6616
    %v6618 = vpop.f32.mrf.mxu0
    %v6619 = vpop.f32.mrf.mxu0
    %v6620 = vadd.f32 0.0, %v6619
    %v6621 = vpop.f32.mrf.mxu0
    %6622 = vmatprep.mubr.bf16.mxu0 0
    %6623 = vmatmul.mubr.bf16.gmra.mxu0 %v6451
    %v6624 = vpop.f32.mrf.mxu0
    %v6625 = vadd.f32 0.0, %v6624
    %v6626 = vpop.f32.mrf.mxu0
    %v6627 = vpop.f32.mrf.mxu0
    %v6628 = vadd.f32 0.0, %v6627
    %v6629 = vpop.f32.mrf.mxu0
    %6630 = vmatprep.mubr.bf16.mxu0 0
    %6631 = vmatmul.mubr.bf16.gmra.mxu0 %v6452
    %v6632 = vpop.f32.mrf.mxu0
    %v6633 = vadd.f32 0.0, %v6632
    %v6634 = vpop.f32.mrf.mxu0
    %v6635 = vpop.f32.mrf.mxu0
    %v6636 = vadd.f32 0.0, %v6635
    %v6637 = vpop.f32.mrf.mxu0
    %6638 = vmatprep.mubr.bf16.mxu0 0
    %6639 = vmatmul.mubr.bf16.gmra.mxu0 %v6453
    %v6640 = vpop.f32.mrf.mxu0
    %v6641 = vadd.f32 0.0, %v6640
    %v6642 = vpop.f32.mrf.mxu0
    %v6643 = vpop.f32.mrf.mxu0
    %v6644 = vadd.f32 0.0, %v6643
    %v6645 = vpop.f32.mrf.mxu0
    %6646 = vmatprep.mubr.bf16.mxu0 0
    %6647 = vmatmul.mubr.bf16.gmra.mxu0 %v6454
    %v6648 = vpop.f32.mrf.mxu0
    %v6649 = vadd.f32 0.0, %v6648
    %v6650 = vpop.f32.mrf.mxu0
    %v6651 = vpop.f32.mrf.mxu0
    %v6652 = vadd.f32 0.0, %v6651
    %v6653 = vpop.f32.mrf.mxu0
    %6654 = vmatprep.mubr.bf16.mxu0 0
    %6655 = vmatmul.mubr.bf16.gmra.mxu0 %v6455
    %v6656 = vpop.f32.mrf.mxu0
    %v6657 = vadd.f32 0.0, %v6656
    %v6658 = vpop.f32.mrf.mxu0
    %v6659 = vpop.f32.mrf.mxu0
    %v6660 = vadd.f32 0.0, %v6659
    %v6661 = vpop.f32.mrf.mxu0
    %6662 = vmatprep.mubr.bf16.mxu0 0
    %6663 = vmatmul.mubr.bf16.gmra.mxu0 %v6456
    %v6664 = vpop.f32.mrf.mxu0
    %v6665 = vadd.f32 0.0, %v6664
    %v6666 = vpop.f32.mrf.mxu0
    %v6667 = vpop.f32.mrf.mxu0
    %v6668 = vadd.f32 0.0, %v6667
    %v6669 = vpop.f32.mrf.mxu0
    %6670 = vmatprep.mubr.bf16.mxu0 0
    %6671 = vmatmul.mubr.bf16.gmra.mxu0 %v6457
    %v6672 = vpop.f32.mrf.mxu0
    %v6673 = vadd.f32 0.0, %v6672
    %v6674 = vpop.f32.mrf.mxu0
    %v6675 = vpop.f32.mrf.mxu0
    %v6676 = vadd.f32 0.0, %v6675
    %v6677 = vpop.f32.mrf.mxu0
    %6678 = vmatprep.mubr.bf16.mxu0 0
    %6679 = vmatmul.mubr.bf16.gmra.mxu0 %v6458
    %v6680 = vpop.f32.mrf.mxu0
    %v6681 = vadd.f32 0.0, %v6680
    %v6682 = vpop.f32.mrf.mxu0
    %v6683 = vpop.f32.mrf.mxu0
    %v6684 = vadd.f32 0.0, %v6683
    %v6685 = vpop.f32.mrf.mxu0
    %6686 = vmatprep.mubr.bf16.mxu0 0
    %6687 = vmatmul.mubr.bf16.gmra.mxu0 %v6459
    %v6688 = vpop.f32.mrf.mxu0
    %v6689 = vadd.f32 0.0, %v6688
    %v6690 = vpop.f32.mrf.mxu0
    %v6691 = vpop.f32.mrf.mxu0
    %v6692 = vadd.f32 0.0, %v6691
    %v6693 = vpop.f32.mrf.mxu0
    %6694 = vmatprep.mubr.bf16.mxu0 0
    %6695 = vmatmul.mubr.bf16.gmra.mxu0 %v6460
    %v6696 = vpop.f32.mrf.mxu0
    %v6697 = vadd.f32 0.0, %v6696
    %v6698 = vpop.f32.mrf.mxu0
    %v6699 = vpop.f32.mrf.mxu0
    %v6700 = vadd.f32 0.0, %v6699
    %v6701 = vpop.f32.mrf.mxu0
    %6702 = vmatprep.mubr.bf16.mxu0 0
    %6703 = vmatmul.mubr.bf16.gmra.mxu0 %v6461
    %v6704 = vpop.f32.mrf.mxu0
    %v6705 = vadd.f32 0.0, %v6704
    %v6706 = vpop.f32.mrf.mxu0
    %v6707 = vpop.f32.mrf.mxu0
    %v6708 = vadd.f32 0.0, %v6707
    %v6709 = vpop.f32.mrf.mxu0
    %6710 = vmatprep.mubr.bf16.mxu0 0
    %6711 = vmatmul.mubr.bf16.gmra.mxu0 %v6462
    %v6712 = vpop.f32.mrf.mxu0
    %v6713 = vadd.f32 0.0, %v6712
    %v6714 = vpop.f32.mrf.mxu0
    %v6715 = vpop.f32.mrf.mxu0
    %v6716 = vadd.f32 0.0, %v6715
    %v6717 = vpop.f32.mrf.mxu0
    %6718 = vmatprep.mubr.bf16.mxu0 0
    %6719 = vmatmul.mubr.bf16.gmra.mxu0 %v6463
    %v6720 = vpop.f32.mrf.mxu0
    %v6721 = vadd.f32 0.0, %v6720
    %v6722 = vpop.f32.mrf.mxu0
    %v6723 = vpop.f32.mrf.mxu0
    %v6724 = vadd.f32 0.0, %v6723
    %v6725 = vpop.f32.mrf.mxu0
    %6726 = vmatprep.mubr.bf16.mxu0 0
    %6727 = vmatmul.mubr.bf16.gmra.mxu0 %v6464
    %v6728 = vpop.f32.mrf.mxu0
    %v6729 = vadd.f32 0.0, %v6728
    %v6730 = vpop.f32.mrf.mxu0
    %v6731 = vpop.f32.mrf.mxu0
    %v6732 = vadd.f32 0.0, %v6731
    %v6733 = vpop.f32.mrf.mxu0
    %6734 = vmatprep.mubr.bf16.mxu0 0
    %6735 = vmatmul.mubr.bf16.gmra.mxu0 %v6465
    %v6736 = vpop.f32.mrf.mxu0
    %v6737 = vadd.f32 0.0, %v6736
    %v6738 = vpop.f32.mrf.mxu0
    %v6739 = vpop.f32.mrf.mxu0
    %v6740 = vadd.f32 0.0, %v6739
    %v6741 = vpop.f32.mrf.mxu0
    %6742 = vmatprep.mubr.bf16.mxu0 0
    %6743 = vmatmul.mubr.bf16.gmra.mxu0 %v6466
    %v6744 = vpop.f32.mrf.mxu0
    %v6745 = vadd.f32 0.0, %v6744
    %v6746 = vpop.f32.mrf.mxu0
    %v6747 = vpop.f32.mrf.mxu0
    %v6748 = vadd.f32 0.0, %v6747
    %v6749 = vpop.f32.mrf.mxu0
    %6750 = vmatprep.mubr.bf16.mxu0 0
    %6751 = vmatmul.mubr.bf16.gmra.mxu0 %v6467
    %v6752 = vpop.f32.mrf.mxu0
    %v6753 = vadd.f32 0.0, %v6752
    %v6754 = vpop.f32.mrf.mxu0
    %v6755 = vpop.f32.mrf.mxu0
    %v6756 = vadd.f32 0.0, %v6755
    %v6757 = vpop.f32.mrf.mxu0
    %6758 = vmatprep.mubr.bf16.mxu0 0
    %6759 = vmatmul.mubr.bf16.gmra.mxu0 %v6468
    %v6760 = vpop.f32.mrf.mxu0
    %v6761 = vadd.f32 0.0, %v6760
    %v6762 = vpop.f32.mrf.mxu0
    %v6763 = vpop.f32.mrf.mxu0
    %v6764 = vadd.f32 0.0, %v6763
    %v6765 = vpop.f32.mrf.mxu0
    %6766 = vmatprep.mubr.bf16.mxu0 0
    %6767 = vmatmul.mubr.bf16.gmra.mxu0 %v6469
    %v6768 = vpop.f32.mrf.mxu0
    %v6769 = vadd.f32 0.0, %v6768
    %v6770 = vpop.f32.mrf.mxu0
    %v6771 = vpop.f32.mrf.mxu0
    %v6772 = vadd.f32 0.0, %v6771
    %v6773 = vpop.f32.mrf.mxu0
    %6774 = vmatprep.mubr.bf16.mxu0 0
    %6775 = vmatmul.mubr.bf16.gmra.mxu0 %v6470
    %v6776 = vpop.f32.mrf.mxu0
    %v6777 = vadd.f32 0.0, %v6776
    %v6778 = vpop.f32.mrf.mxu0
    %v6779 = vpop.f32.mrf.mxu0
    %v6780 = vadd.f32 0.0, %v6779
    %v6781 = vpop.f32.mrf.mxu0
    %6782 = vmatprep.mubr.bf16.mxu0 0
    %6783 = vmatmul.mubr.bf16.gmra.mxu0 %v6471
    %v6784 = vpop.f32.mrf.mxu0
    %v6785 = vadd.f32 0.0, %v6784
    %v6786 = vpop.f32.mrf.mxu0
    %v6787 = vpop.f32.mrf.mxu0
    %v6788 = vadd.f32 0.0, %v6787
    %v6789 = vpop.f32.mrf.mxu0
    %6790 = vmatprep.mubr.bf16.mxu0 0
    %6791 = vmatmul.mubr.bf16.gmra.mxu0 %v6472
    %v6792 = vpop.f32.mrf.mxu0
    %v6793 = vadd.f32 0.0, %v6792
    %v6794 = vpop.f32.mrf.mxu0
    %v6795 = vpop.f32.mrf.mxu0
    %v6796 = vadd.f32 0.0, %v6795
    %v6797 = vpop.f32.mrf.mxu0
    %6798 = vmatprep.mubr.bf16.mxu0 0
    %6799 = vmatmul.mubr.bf16.gmra.mxu0 %v6473
    %v6800 = vpop.f32.mrf.mxu0
    %v6801 = vadd.f32 0.0, %v6800
    %v6802 = vpop.f32.mrf.mxu0
    %v6803 = vpop.f32.mrf.mxu0
    %v6804 = vadd.f32 0.0, %v6803
    %v6805 = vpop.f32.mrf.mxu0
    %6806 = vmatprep.mubr.bf16.mxu0 0
    %6807 = vmatmul.mubr.bf16.gmra.mxu0 %v6474
    %v6808 = vpop.f32.mrf.mxu0
    %v6809 = vadd.f32 0.0, %v6808
    %v6810 = vpop.f32.mrf.mxu0
    %v6811 = vpop.f32.mrf.mxu0
    %v6812 = vadd.f32 0.0, %v6811
    %v6813 = vpop.f32.mrf.mxu0
    %6814 = vmatprep.mubr.bf16.mxu0 0
    %6815 = vmatmul.mubr.bf16.gmra.mxu0 %v6475
    %v6816 = vpop.f32.mrf.mxu0
    %v6817 = vadd.f32 0.0, %v6816
    %v6818 = vpop.f32.mrf.mxu0
    %v6819 = vpop.f32.mrf.mxu0
    %v6820 = vadd.f32 0.0, %v6819
    %v6821 = vpop.f32.mrf.mxu0
    %6822 = vmatprep.mubr.bf16.mxu0 0
    %6823 = vmatmul.mubr.bf16.gmra.mxu0 %v6476
    %v6824 = vpop.f32.mrf.mxu0
    %v6825 = vadd.f32 0.0, %v6824
    %v6826 = vpop.f32.mrf.mxu0
    %v6827 = vpop.f32.mrf.mxu0
    %v6828 = vadd.f32 0.0, %v6827
    %v6829 = vpop.f32.mrf.mxu0
    %6830 = vdwg.mxu0
    %v6831 = vadd.f32 %v5868, %v6577
    %v6832 = vadd.f32 %v5869, %v6580
    %v6833 = vadd.f32 %v5870, %v6585
    %v6834 = vadd.f32 %v5871, %v6588
    %v6835 = vadd.f32 %v5872, %v6593
    %v6836 = vadd.f32 %v5873, %v6596
    %v6837 = vadd.f32 %v5874, %v6601
    %v6838 = vadd.f32 %v5875, %v6604
    %v6839 = vadd.f32 %v5876, %v6609
    %v6840 = vadd.f32 %v5877, %v6612
    %v6841 = vadd.f32 %v5878, %v6617
    %v6842 = vadd.f32 %v5879, %v6620
    %v6843 = vadd.f32 %v5880, %v6625
    %v6844 = vadd.f32 %v5881, %v6628
    %v6845 = vadd.f32 %v5882, %v6633
    %v6846 = vadd.f32 %v5883, %v6636
    %v6847 = vadd.f32 %v5884, %v6641
    %v6848 = vadd.f32 %v5885, %v6644
    %v6849 = vadd.f32 %v5886, %v6649
    %v6850 = vadd.f32 %v5887, %v6652
    %v6851 = vadd.f32 %v5888, %v6657
    %v6852 = vadd.f32 %v5889, %v6660
    %v6853 = vadd.f32 %v5890, %v6665
    %v6854 = vadd.f32 %v5891, %v6668
    %v6855 = vadd.f32 %v5892, %v6673
    %v6856 = vadd.f32 %v5893, %v6676
    %v6857 = vadd.f32 %v5894, %v6681
    %v6858 = vadd.f32 %v5895, %v6684
    %v6859 = vadd.f32 %v5896, %v6689
    %v6860 = vadd.f32 %v5897, %v6692
    %v6861 = vadd.f32 %v5898, %v6697
    %v6862 = vadd.f32 %v5899, %v6700
    %v6863 = vadd.f32 %v5900, %v6705
    %v6864 = vadd.f32 %v5901, %v6708
    %v6865 = vadd.f32 %v5902, %v6713
    %v6866 = vadd.f32 %v5903, %v6716
    %v6867 = vadd.f32 %v5904, %v6721
    %v6868 = vadd.f32 %v5905, %v6724
    %v6869 = vadd.f32 %v5906, %v6729
    %v6870 = vadd.f32 %v5907, %v6732
    %v6871 = vadd.f32 %v5908, %v6737
    %v6872 = vadd.f32 %v5909, %v6740
    %v6873 = vadd.f32 %v5910, %v6745
    %v6874 = vadd.f32 %v5911, %v6748
    %v6875 = vadd.f32 %v5912, %v6753
    %v6876 = vadd.f32 %v5913, %v6756
    %v6877 = vadd.f32 %v5914, %v6761
    %v6878 = vadd.f32 %v5915, %v6764
    %v6879 = vadd.f32 %v5916, %v6769
    %v6880 = vadd.f32 %v5917, %v6772
    %v6881 = vadd.f32 %v5918, %v6777
    %v6882 = vadd.f32 %v5919, %v6780
    %v6883 = vadd.f32 %v5920, %v6785
    %v6884 = vadd.f32 %v5921, %v6788
    %v6885 = vadd.f32 %v5922, %v6793
    %v6886 = vadd.f32 %v5923, %v6796
    %v6887 = vadd.f32 %v5924, %v6801
    %v6888 = vadd.f32 %v5925, %v6804
    %v6889 = vadd.f32 %v5926, %v6809
    %v6890 = vadd.f32 %v5927, %v6812
    %v6891 = vadd.f32 %v5928, %v6817
    %v6892 = vadd.f32 %v5929, %v6820
    %v6893 = vadd.f32 %v5930, %v6825
    %v6894 = vadd.f32 %v5931, %v6828
    %v6895 = vld [vmem:[#allocation2 + $0x28] sm:$0xff]
    %v6896 = vld [vmem:[#allocation2 + $0x30] sm:$0xff]
    %v6897 = vld [vmem:[#allocation2 + $0x38] sm:$0xff]
    %v6898 = vld [vmem:[#allocation2 + $0x40] sm:$0xff]
    %v6899 = vld [vmem:[#allocation2 + $0x48] sm:$0xff]
    %v6900 = vld [vmem:[#allocation2 + $0x50] sm:$0xff]
    %v6901 = vld [vmem:[#allocation2 + $0x58] sm:$0xff]
    %v6902 = vld [vmem:[#allocation2 + $0x60] sm:$0xff]
    %v6903 = vld [vmem:[#allocation2 + $0x68] sm:$0xff]
    %v6904 = vld [vmem:[#allocation2 + $0x70] sm:$0xff]
    %v6905 = vld [vmem:[#allocation2 + $0x78] sm:$0xff]
    %v6906 = vld [vmem:[#allocation2 + $0x80] sm:$0xff]
    %v6907 = vld [vmem:[#allocation2 + $0x88] sm:$0xff]
    %v6908 = vld [vmem:[#allocation2 + $0x90] sm:$0xff]
    %v6909 = vld [vmem:[#allocation2 + $0x98] sm:$0xff]
    %v6910 = vld [vmem:[#allocation2 + $0xa0] sm:$0xff]
    %v6911 = vld [vmem:[#allocation2 + $0xa8] sm:$0xff]
    %v6912 = vld [vmem:[#allocation2 + $0xb0] sm:$0xff]
    %v6913 = vld [vmem:[#allocation2 + $0xb8] sm:$0xff]
    %v6914 = vld [vmem:[#allocation2 + $0xc0] sm:$0xff]
    %v6915 = vld [vmem:[#allocation2 + $0xc8] sm:$0xff]
    %v6916 = vld [vmem:[#allocation2 + $0xd0] sm:$0xff]
    %v6917 = vld [vmem:[#allocation2 + $0xd8] sm:$0xff]
    %v6918 = vld [vmem:[#allocation2 + $0xe0] sm:$0xff]
    %v6919 = vld [vmem:[#allocation2 + $0xe8] sm:$0xff]
    %v6920 = vld [vmem:[#allocation2 + $0xf0] sm:$0xff]
    %v6921 = vld [vmem:[#allocation2 + $0xf8] sm:$0xff]
    %v6922 = vld [vmem:[#allocation2 + $0x100] sm:$0xff]
    %v6923 = vld [vmem:[#allocation2 + $0x108] sm:$0xff]
    %v6924 = vld [vmem:[#allocation2 + $0x110] sm:$0xff]
    %v6925 = vld [vmem:[#allocation2 + $0x118] sm:$0xff]
    %v6926 = vld [vmem:[#allocation2 + $0x120] sm:$0xff]
    %v6927 = vld [vmem:[#allocation2 + $0x128] sm:$0xff]
    %v6928 = vld [vmem:[#allocation2 + $0x130] sm:$0xff]
    %v6929 = vld [vmem:[#allocation2 + $0x138] sm:$0xff]
    %v6930 = vld [vmem:[#allocation2 + $0x140] sm:$0xff]
    %v6931 = vld [vmem:[#allocation2 + $0x148] sm:$0xff]
    %v6932 = vld [vmem:[#allocation2 + $0x150] sm:$0xff]
    %v6933 = vld [vmem:[#allocation2 + $0x158] sm:$0xff]
    %v6934 = vld [vmem:[#allocation2 + $0x160] sm:$0xff]
    %v6935 = vld [vmem:[#allocation2 + $0x168] sm:$0xff]
    %v6936 = vld [vmem:[#allocation2 + $0x170] sm:$0xff]
    %v6937 = vld [vmem:[#allocation2 + $0x178] sm:$0xff]
    %v6938 = vld [vmem:[#allocation2 + $0x180] sm:$0xff]
    %v6939 = vld [vmem:[#allocation2 + $0x188] sm:$0xff]
    %v6940 = vld [vmem:[#allocation2 + $0x190] sm:$0xff]
    %v6941 = vld [vmem:[#allocation2 + $0x198] sm:$0xff]
    %v6942 = vld [vmem:[#allocation2 + $0x1a0] sm:$0xff]
    %v6943 = vld [vmem:[#allocation2 + $0x1a8] sm:$0xff]
    %v6944 = vld [vmem:[#allocation2 + $0x1b0] sm:$0xff]
    %v6945 = vld [vmem:[#allocation2 + $0x1b8] sm:$0xff]
    %v6946 = vld [vmem:[#allocation2 + $0x1c0] sm:$0xff]
    %v6947 = vld [vmem:[#allocation2 + $0x1c8] sm:$0xff]
    %v6948 = vld [vmem:[#allocation2 + $0x1d0] sm:$0xff]
    %v6949 = vld [vmem:[#allocation2 + $0x1d8] sm:$0xff]
    %v6950 = vld [vmem:[#allocation2 + $0x1e0] sm:$0xff]
    %v6951 = vld [vmem:[#allocation2 + $0x1e8] sm:$0xff]
    %v6952 = vld [vmem:[#allocation2 + $0x1f0] sm:$0xff]
    %v6953 = vld [vmem:[#allocation2 + $0x1f8] sm:$0xff]
    %v6954 = vld [vmem:[#allocation2 + $0x200] sm:$0xff]
    %v6955 = vld [vmem:[#allocation2 + $0x208] sm:$0xff]
    %v6956 = vld [vmem:[#allocation2 + $0x210] sm:$0xff]
    %v6957 = vld [vmem:[#allocation2 + $0x218] sm:$0xff]
    %v6958 = vld [vmem:[#allocation2 + $0x220] sm:$0xff]
    %s6959 = scalar_lea.vmem %s1, 3584
    %v6960 = vld [vmem:[%s6959] sm:$0xff]
    %v6961 = vld [vmem:[%s6959 + $0x8] sm:$0xff]
    %v6962 = vld [vmem:[%s6959 + $0x10] sm:$0xff]
    %v6963 = vld [vmem:[%s6959 + $0x18] sm:$0xff]
    %v6964 = vld [vmem:[%s6959 + $0x20] sm:$0xff]
    %v6965 = vld [vmem:[%s6959 + $0x28] sm:$0xff]
    %v6966 = vld [vmem:[%s6959 + $0x30] sm:$0xff]
    %v6967 = vld [vmem:[%s6959 + $0x38] sm:$0xff]
    %v6968 = vld [vmem:[%s6959 + $0x40] sm:$0xff]
    %v6969 = vld [vmem:[%s6959 + $0x48] sm:$0xff]
    %v6970 = vld [vmem:[%s6959 + $0x50] sm:$0xff]
    %v6971 = vld [vmem:[%s6959 + $0x58] sm:$0xff]
    %v6972 = vld [vmem:[%s6959 + $0x60] sm:$0xff]
    %v6973 = vld [vmem:[%s6959 + $0x68] sm:$0xff]
    %v6974 = vld [vmem:[%s6959 + $0x70] sm:$0xff]
    %v6975 = vld [vmem:[%s6959 + $0x78] sm:$0xff]
    %v6976 = vld [vmem:[%s6959 + $0x80] sm:$0xff]
    %v6977 = vld [vmem:[%s6959 + $0x88] sm:$0xff]
    %v6978 = vld [vmem:[%s6959 + $0x90] sm:$0xff]
    %v6979 = vld [vmem:[%s6959 + $0x98] sm:$0xff]
    %v6980 = vld [vmem:[%s6959 + $0xa0] sm:$0xff]
    %v6981 = vld [vmem:[%s6959 + $0xa8] sm:$0xff]
    %v6982 = vld [vmem:[%s6959 + $0xb0] sm:$0xff]
    %v6983 = vld [vmem:[%s6959 + $0xb8] sm:$0xff]
    %v6984 = vld [vmem:[%s6959 + $0xc0] sm:$0xff]
    %v6985 = vld [vmem:[%s6959 + $0xc8] sm:$0xff]
    %v6986 = vld [vmem:[%s6959 + $0xd0] sm:$0xff]
    %v6987 = vld [vmem:[%s6959 + $0xd8] sm:$0xff]
    %v6988 = vld [vmem:[%s6959 + $0xe0] sm:$0xff]
    %v6989 = vld [vmem:[%s6959 + $0xe8] sm:$0xff]
    %v6990 = vld [vmem:[%s6959 + $0xf0] sm:$0xff]
    %v6991 = vld [vmem:[%s6959 + $0xf8] sm:$0xff]
    %v6992 = vld [vmem:[%s6959 + $0x100] sm:$0xff]
    %v6993 = vld [vmem:[%s6959 + $0x108] sm:$0xff]
    %v6994 = vld [vmem:[%s6959 + $0x110] sm:$0xff]
    %v6995 = vld [vmem:[%s6959 + $0x118] sm:$0xff]
    %v6996 = vld [vmem:[%s6959 + $0x120] sm:$0xff]
    %v6997 = vld [vmem:[%s6959 + $0x128] sm:$0xff]
    %v6998 = vld [vmem:[%s6959 + $0x130] sm:$0xff]
    %v6999 = vld [vmem:[%s6959 + $0x138] sm:$0xff]
    %v7000 = vld [vmem:[%s6959 + $0x140] sm:$0xff]
    %v7001 = vld [vmem:[%s6959 + $0x148] sm:$0xff]
    %v7002 = vld [vmem:[%s6959 + $0x150] sm:$0xff]
    %v7003 = vld [vmem:[%s6959 + $0x158] sm:$0xff]
    %v7004 = vld [vmem:[%s6959 + $0x160] sm:$0xff]
    %v7005 = vld [vmem:[%s6959 + $0x168] sm:$0xff]
    %v7006 = vld [vmem:[%s6959 + $0x170] sm:$0xff]
    %v7007 = vld [vmem:[%s6959 + $0x178] sm:$0xff]
    %v7008 = vld [vmem:[%s6959 + $0x180] sm:$0xff]
    %v7009 = vld [vmem:[%s6959 + $0x188] sm:$0xff]
    %v7010 = vld [vmem:[%s6959 + $0x190] sm:$0xff]
    %v7011 = vld [vmem:[%s6959 + $0x198] sm:$0xff]
    %v7012 = vld [vmem:[%s6959 + $0x1a0] sm:$0xff]
    %v7013 = vld [vmem:[%s6959 + $0x1a8] sm:$0xff]
    %v7014 = vld [vmem:[%s6959 + $0x1b0] sm:$0xff]
    %v7015 = vld [vmem:[%s6959 + $0x1b8] sm:$0xff]
    %v7016 = vld [vmem:[%s6959 + $0x1c0] sm:$0xff]
    %v7017 = vld [vmem:[%s6959 + $0x1c8] sm:$0xff]
    %v7018 = vld [vmem:[%s6959 + $0x1d0] sm:$0xff]
    %v7019 = vld [vmem:[%s6959 + $0x1d8] sm:$0xff]
    %v7020 = vld [vmem:[%s6959 + $0x1e0] sm:$0xff]
    %v7021 = vld [vmem:[%s6959 + $0x1e8] sm:$0xff]
    %v7022 = vld [vmem:[%s6959 + $0x1f0] sm:$0xff]
    %v7023 = vld [vmem:[%s6959 + $0x1f8] sm:$0xff]
    %7025 = vset.pattern.permute.xlu0 0
    %7026 = vperm.xlu0 %7025, %v6960
    %v7027 = vpop.permute.xlu0 %7026
    %7030 = vset.pattern.permute.xlu0 0
    %7031 = vperm.xlu0 %7030, %v6961
    %v7032 = vpop.permute.xlu0 %7031
    %7035 = vset.pattern.permute.xlu0 0
    %7036 = vperm.xlu0 %7035, %v6962
    %v7037 = vpop.permute.xlu0 %7036
    %7040 = vset.pattern.permute.xlu0 0
    %7041 = vperm.xlu0 %7040, %v6963
    %v7042 = vpop.permute.xlu0 %7041
    %7045 = vset.pattern.permute.xlu0 0
    %7046 = vperm.xlu0 %7045, %v6964
    %v7047 = vpop.permute.xlu0 %7046
    %7050 = vset.pattern.permute.xlu0 0
    %7051 = vperm.xlu0 %7050, %v6965
    %v7052 = vpop.permute.xlu0 %7051
    %7055 = vset.pattern.permute.xlu0 0
    %7056 = vperm.xlu0 %7055, %v6966
    %v7057 = vpop.permute.xlu0 %7056
    %7060 = vset.pattern.permute.xlu0 0
    %7061 = vperm.xlu0 %7060, %v6967
    %v7062 = vpop.permute.xlu0 %7061
    %7065 = vset.pattern.permute.xlu0 0
    %7066 = vperm.xlu0 %7065, %v6968
    %v7067 = vpop.permute.xlu0 %7066
    %7070 = vset.pattern.permute.xlu0 0
    %7071 = vperm.xlu0 %7070, %v6969
    %v7072 = vpop.permute.xlu0 %7071
    %7075 = vset.pattern.permute.xlu0 0
    %7076 = vperm.xlu0 %7075, %v6970
    %v7077 = vpop.permute.xlu0 %7076
    %7080 = vset.pattern.permute.xlu0 0
    %7081 = vperm.xlu0 %7080, %v6971
    %v7082 = vpop.permute.xlu0 %7081
    %7085 = vset.pattern.permute.xlu0 0
    %7086 = vperm.xlu0 %7085, %v6972
    %v7087 = vpop.permute.xlu0 %7086
    %7090 = vset.pattern.permute.xlu0 0
    %7091 = vperm.xlu0 %7090, %v6973
    %v7092 = vpop.permute.xlu0 %7091
    %7095 = vset.pattern.permute.xlu0 0
    %7096 = vperm.xlu0 %7095, %v6974
    %v7097 = vpop.permute.xlu0 %7096
    %7100 = vset.pattern.permute.xlu0 0
    %7101 = vperm.xlu0 %7100, %v6975
    %v7102 = vpop.permute.xlu0 %7101
    %7105 = vset.pattern.permute.xlu0 0
    %7106 = vperm.xlu0 %7105, %v6976
    %v7107 = vpop.permute.xlu0 %7106
    %7110 = vset.pattern.permute.xlu0 0
    %7111 = vperm.xlu0 %7110, %v6977
    %v7112 = vpop.permute.xlu0 %7111
    %7115 = vset.pattern.permute.xlu0 0
    %7116 = vperm.xlu0 %7115, %v6978
    %v7117 = vpop.permute.xlu0 %7116
    %7120 = vset.pattern.permute.xlu0 0
    %7121 = vperm.xlu0 %7120, %v6979
    %v7122 = vpop.permute.xlu0 %7121
    %7125 = vset.pattern.permute.xlu0 0
    %7126 = vperm.xlu0 %7125, %v6980
    %v7127 = vpop.permute.xlu0 %7126
    %7130 = vset.pattern.permute.xlu0 0
    %7131 = vperm.xlu0 %7130, %v6981
    %v7132 = vpop.permute.xlu0 %7131
    %7135 = vset.pattern.permute.xlu0 0
    %7136 = vperm.xlu0 %7135, %v6982
    %v7137 = vpop.permute.xlu0 %7136
    %7140 = vset.pattern.permute.xlu0 0
    %7141 = vperm.xlu0 %7140, %v6983
    %v7142 = vpop.permute.xlu0 %7141
    %7145 = vset.pattern.permute.xlu0 0
    %7146 = vperm.xlu0 %7145, %v6984
    %v7147 = vpop.permute.xlu0 %7146
    %7150 = vset.pattern.permute.xlu0 0
    %7151 = vperm.xlu0 %7150, %v6985
    %v7152 = vpop.permute.xlu0 %7151
    %7155 = vset.pattern.permute.xlu0 0
    %7156 = vperm.xlu0 %7155, %v6986
    %v7157 = vpop.permute.xlu0 %7156
    %7160 = vset.pattern.permute.xlu0 0
    %7161 = vperm.xlu0 %7160, %v6987
    %v7162 = vpop.permute.xlu0 %7161
    %7165 = vset.pattern.permute.xlu0 0
    %7166 = vperm.xlu0 %7165, %v6988
    %v7167 = vpop.permute.xlu0 %7166
    %7170 = vset.pattern.permute.xlu0 0
    %7171 = vperm.xlu0 %7170, %v6989
    %v7172 = vpop.permute.xlu0 %7171
    %7175 = vset.pattern.permute.xlu0 0
    %7176 = vperm.xlu0 %7175, %v6990
    %v7177 = vpop.permute.xlu0 %7176
    %7180 = vset.pattern.permute.xlu0 0
    %7181 = vperm.xlu0 %7180, %v6991
    %v7182 = vpop.permute.xlu0 %7181
    %7185 = vset.pattern.permute.xlu0 0
    %7186 = vperm.xlu0 %7185, %v6992
    %v7187 = vpop.permute.xlu0 %7186
    %7190 = vset.pattern.permute.xlu0 0
    %7191 = vperm.xlu0 %7190, %v6993
    %v7192 = vpop.permute.xlu0 %7191
    %7195 = vset.pattern.permute.xlu0 0
    %7196 = vperm.xlu0 %7195, %v6994
    %v7197 = vpop.permute.xlu0 %7196
    %7200 = vset.pattern.permute.xlu0 0
    %7201 = vperm.xlu0 %7200, %v6995
    %v7202 = vpop.permute.xlu0 %7201
    %7205 = vset.pattern.permute.xlu0 0
    %7206 = vperm.xlu0 %7205, %v6996
    %v7207 = vpop.permute.xlu0 %7206
    %7210 = vset.pattern.permute.xlu0 0
    %7211 = vperm.xlu0 %7210, %v6997
    %v7212 = vpop.permute.xlu0 %7211
    %7215 = vset.pattern.permute.xlu0 0
    %7216 = vperm.xlu0 %7215, %v6998
    %v7217 = vpop.permute.xlu0 %7216
    %7220 = vset.pattern.permute.xlu0 0
    %7221 = vperm.xlu0 %7220, %v6999
    %v7222 = vpop.permute.xlu0 %7221
    %7225 = vset.pattern.permute.xlu0 0
    %7226 = vperm.xlu0 %7225, %v7000
    %v7227 = vpop.permute.xlu0 %7226
    %7230 = vset.pattern.permute.xlu0 0
    %7231 = vperm.xlu0 %7230, %v7001
    %v7232 = vpop.permute.xlu0 %7231
    %7235 = vset.pattern.permute.xlu0 0
    %7236 = vperm.xlu0 %7235, %v7002
    %v7237 = vpop.permute.xlu0 %7236
    %7240 = vset.pattern.permute.xlu0 0
    %7241 = vperm.xlu0 %7240, %v7003
    %v7242 = vpop.permute.xlu0 %7241
    %7245 = vset.pattern.permute.xlu0 0
    %7246 = vperm.xlu0 %7245, %v7004
    %v7247 = vpop.permute.xlu0 %7246
    %7250 = vset.pattern.permute.xlu0 0
    %7251 = vperm.xlu0 %7250, %v7005
    %v7252 = vpop.permute.xlu0 %7251
    %7255 = vset.pattern.permute.xlu0 0
    %7256 = vperm.xlu0 %7255, %v7006
    %v7257 = vpop.permute.xlu0 %7256
    %7260 = vset.pattern.permute.xlu0 0
    %7261 = vperm.xlu0 %7260, %v7007
    %v7262 = vpop.permute.xlu0 %7261
    %7265 = vset.pattern.permute.xlu0 0
    %7266 = vperm.xlu0 %7265, %v7008
    %v7267 = vpop.permute.xlu0 %7266
    %7270 = vset.pattern.permute.xlu0 0
    %7271 = vperm.xlu0 %7270, %v7009
    %v7272 = vpop.permute.xlu0 %7271
    %7275 = vset.pattern.permute.xlu0 0
    %7276 = vperm.xlu0 %7275, %v7010
    %v7277 = vpop.permute.xlu0 %7276
    %7280 = vset.pattern.permute.xlu0 0
    %7281 = vperm.xlu0 %7280, %v7011
    %v7282 = vpop.permute.xlu0 %7281
    %7285 = vset.pattern.permute.xlu0 0
    %7286 = vperm.xlu0 %7285, %v7012
    %v7287 = vpop.permute.xlu0 %7286
    %7290 = vset.pattern.permute.xlu0 0
    %7291 = vperm.xlu0 %7290, %v7013
    %v7292 = vpop.permute.xlu0 %7291
    %7295 = vset.pattern.permute.xlu0 0
    %7296 = vperm.xlu0 %7295, %v7014
    %v7297 = vpop.permute.xlu0 %7296
    %7300 = vset.pattern.permute.xlu0 0
    %7301 = vperm.xlu0 %7300, %v7015
    %v7302 = vpop.permute.xlu0 %7301
    %7305 = vset.pattern.permute.xlu0 0
    %7306 = vperm.xlu0 %7305, %v7016
    %v7307 = vpop.permute.xlu0 %7306
    %7310 = vset.pattern.permute.xlu0 0
    %7311 = vperm.xlu0 %7310, %v7017
    %v7312 = vpop.permute.xlu0 %7311
    %7315 = vset.pattern.permute.xlu0 0
    %7316 = vperm.xlu0 %7315, %v7018
    %v7317 = vpop.permute.xlu0 %7316
    %7320 = vset.pattern.permute.xlu0 0
    %7321 = vperm.xlu0 %7320, %v7019
    %v7322 = vpop.permute.xlu0 %7321
    %7325 = vset.pattern.permute.xlu0 0
    %7326 = vperm.xlu0 %7325, %v7020
    %v7327 = vpop.permute.xlu0 %7326
    %7330 = vset.pattern.permute.xlu0 0
    %7331 = vperm.xlu0 %7330, %v7021
    %v7332 = vpop.permute.xlu0 %7331
    %7335 = vset.pattern.permute.xlu0 0
    %7336 = vperm.xlu0 %7335, %v7022
    %v7337 = vpop.permute.xlu0 %7336
    %7340 = vset.pattern.permute.xlu0 0
    %7341 = vperm.xlu0 %7340, %v7023
    %v7342 = vpop.permute.xlu0 %7341
    %v7344 = vmul.f32 %v6895, %v7027
    %v7345 = vmul.f32 %v6896, %v7032
    %v7346 = vmul.f32 %v6897, %v7037
    %v7347 = vmul.f32 %v6898, %v7042
    %v7348 = vmul.f32 %v6899, %v7047
    %v7349 = vmul.f32 %v6900, %v7052
    %v7350 = vmul.f32 %v6901, %v7057
    %v7351 = vmul.f32 %v6902, %v7062
    %v7352 = vmul.f32 %v6903, %v7067
    %v7353 = vmul.f32 %v6904, %v7072
    %v7354 = vmul.f32 %v6905, %v7077
    %v7355 = vmul.f32 %v6906, %v7082
    %v7356 = vmul.f32 %v6907, %v7087
    %v7357 = vmul.f32 %v6908, %v7092
    %v7358 = vmul.f32 %v6909, %v7097
    %v7359 = vmul.f32 %v6910, %v7102
    %v7360 = vmul.f32 %v6911, %v7107
    %v7361 = vmul.f32 %v6912, %v7112
    %v7362 = vmul.f32 %v6913, %v7117
    %v7363 = vmul.f32 %v6914, %v7122
    %v7364 = vmul.f32 %v6915, %v7127
    %v7365 = vmul.f32 %v6916, %v7132
    %v7366 = vmul.f32 %v6917, %v7137
    %v7367 = vmul.f32 %v6918, %v7142
    %v7368 = vmul.f32 %v6919, %v7147
    %v7369 = vmul.f32 %v6920, %v7152
    %v7370 = vmul.f32 %v6921, %v7157
    %v7371 = vmul.f32 %v6922, %v7162
    %v7372 = vmul.f32 %v6923, %v7167
    %v7373 = vmul.f32 %v6924, %v7172
    %v7374 = vmul.f32 %v6925, %v7177
    %v7375 = vmul.f32 %v6926, %v7182
    %v7376 = vmul.f32 %v6927, %v7187
    %v7377 = vmul.f32 %v6928, %v7192
    %v7378 = vmul.f32 %v6929, %v7197
    %v7379 = vmul.f32 %v6930, %v7202
    %v7380 = vmul.f32 %v6931, %v7207
    %v7381 = vmul.f32 %v6932, %v7212
    %v7382 = vmul.f32 %v6933, %v7217
    %v7383 = vmul.f32 %v6934, %v7222
    %v7384 = vmul.f32 %v6935, %v7227
    %v7385 = vmul.f32 %v6936, %v7232
    %v7386 = vmul.f32 %v6937, %v7237
    %v7387 = vmul.f32 %v6938, %v7242
    %v7388 = vmul.f32 %v6939, %v7247
    %v7389 = vmul.f32 %v6940, %v7252
    %v7390 = vmul.f32 %v6941, %v7257
    %v7391 = vmul.f32 %v6942, %v7262
    %v7392 = vmul.f32 %v6943, %v7267
    %v7393 = vmul.f32 %v6944, %v7272
    %v7394 = vmul.f32 %v6945, %v7277
    %v7395 = vmul.f32 %v6946, %v7282
    %v7396 = vmul.f32 %v6947, %v7287
    %v7397 = vmul.f32 %v6948, %v7292
    %v7398 = vmul.f32 %v6949, %v7297
    %v7399 = vmul.f32 %v6950, %v7302
    %v7400 = vmul.f32 %v6951, %v7307
    %v7401 = vmul.f32 %v6952, %v7312
    %v7402 = vmul.f32 %v6953, %v7317
    %v7403 = vmul.f32 %v6954, %v7322
    %v7404 = vmul.f32 %v6955, %v7327
    %v7405 = vmul.f32 %v6956, %v7332
    %v7406 = vmul.f32 %v6957, %v7337
    %v7407 = vmul.f32 %v6958, %v7342
    %v7408 = vpack.c.bf16 %v7345, %v7344
    %v7409 = vpack.c.bf16 %v7347, %v7346
    %v7410 = vpack.c.bf16 %v7349, %v7348
    %v7411 = vpack.c.bf16 %v7351, %v7350
    %v7412 = vpack.c.bf16 %v7353, %v7352
    %v7413 = vpack.c.bf16 %v7355, %v7354
    %v7414 = vpack.c.bf16 %v7357, %v7356
    %v7415 = vpack.c.bf16 %v7359, %v7358
    %v7416 = vpack.c.bf16 %v7361, %v7360
    %v7417 = vpack.c.bf16 %v7363, %v7362
    %v7418 = vpack.c.bf16 %v7365, %v7364
    %v7419 = vpack.c.bf16 %v7367, %v7366
    %v7420 = vpack.c.bf16 %v7369, %v7368
    %v7421 = vpack.c.bf16 %v7371, %v7370
    %v7422 = vpack.c.bf16 %v7373, %v7372
    %v7423 = vpack.c.bf16 %v7375, %v7374
    %v7424 = vpack.c.bf16 %v7377, %v7376
    %v7425 = vpack.c.bf16 %v7379, %v7378
    %v7426 = vpack.c.bf16 %v7381, %v7380
    %v7427 = vpack.c.bf16 %v7383, %v7382
    %v7428 = vpack.c.bf16 %v7385, %v7384
    %v7429 = vpack.c.bf16 %v7387, %v7386
    %v7430 = vpack.c.bf16 %v7389, %v7388
    %v7431 = vpack.c.bf16 %v7391, %v7390
    %v7432 = vpack.c.bf16 %v7393, %v7392
    %v7433 = vpack.c.bf16 %v7395, %v7394
    %v7434 = vpack.c.bf16 %v7397, %v7396
    %v7435 = vpack.c.bf16 %v7399, %v7398
    %v7436 = vpack.c.bf16 %v7401, %v7400
    %v7437 = vpack.c.bf16 %v7403, %v7402
    %v7438 = vpack.c.bf16 %v7405, %v7404
    %v7439 = vpack.c.bf16 %v7407, %v7406
    %s7440 = scalar_lea.vmem %s2, 448
    %v7441 = vld [vmem:[%s7440] sm:$0xf]
    %v7442 = vld [vmem:[%s7440 + $0x4] sm:$0xf]
    %v7443 = vld [vmem:[%s7440 + $0x8] sm:$0xf]
    %v7444 = vld [vmem:[%s7440 + $0xc] sm:$0xf]
    %v7445 = vld [vmem:[%s7440 + $0x10] sm:$0xf]
    %v7446 = vld [vmem:[%s7440 + $0x14] sm:$0xf]
    %v7447 = vld [vmem:[%s7440 + $0x18] sm:$0xf]
    %v7448 = vld [vmem:[%s7440 + $0x1c] sm:$0xf]
    %v7449 = vld [vmem:[%s7440 + $0x20] sm:$0xf]
    %v7450 = vld [vmem:[%s7440 + $0x24] sm:$0xf]
    %v7451 = vld [vmem:[%s7440 + $0x28] sm:$0xf]
    %v7452 = vld [vmem:[%s7440 + $0x2c] sm:$0xf]
    %v7453 = vld [vmem:[%s7440 + $0x30] sm:$0xf]
    %v7454 = vld [vmem:[%s7440 + $0x34] sm:$0xf]
    %v7455 = vld [vmem:[%s7440 + $0x38] sm:$0xf]
    %v7456 = vld [vmem:[%s7440 + $0x3c] sm:$0xf]
    %v7473 = vunpack.c.l.b16 %v7441
    %v7474 = vunpack.c.l.b16 %v7442
    %v7475 = vunpack.c.l.b16 %v7443
    %v7476 = vunpack.c.l.b16 %v7444
    %v7477 = vunpack.c.l.b16 %v7445
    %v7478 = vunpack.c.l.b16 %v7446
    %v7479 = vunpack.c.l.b16 %v7447
    %v7480 = vunpack.c.l.b16 %v7448
    %v7481 = vunpack.c.l.b16 %v7449
    %v7482 = vunpack.c.l.b16 %v7450
    %v7483 = vunpack.c.l.b16 %v7451
    %v7484 = vunpack.c.l.b16 %v7452
    %v7485 = vunpack.c.l.b16 %v7453
    %v7486 = vunpack.c.l.b16 %v7454
    %v7487 = vunpack.c.l.b16 %v7455
    %v7488 = vunpack.c.l.b16 %v7456
    %v7489 = vpack.c.b16 %v7474, %v7473
    %v7490 = vpack.c.b16 %v7476, %v7475
    %v7491 = vpack.c.b16 %v7478, %v7477
    %v7492 = vpack.c.b16 %v7480, %v7479
    %v7493 = vpack.c.b16 %v7482, %v7481
    %v7494 = vpack.c.b16 %v7484, %v7483
    %v7495 = vpack.c.b16 %v7486, %v7485
    %v7496 = vpack.c.b16 %v7488, %v7487
    %7505 = vmatprep.subr.bf16.mxu0 0
    %7506 = vmatpush1.bf16.msra.mxu0 %v7496
    %7507 = vmatprep.subr.bf16.mxu0 0
    %7508 = vmatpush1.bf16.msra.mxu0 %v7495
    %7509 = vmatprep.subr.bf16.mxu0 0
    %7510 = vmatpush1.bf16.msra.mxu0 %v7494
    %7511 = vmatprep.subr.bf16.mxu0 0
    %7512 = vmatpush1.bf16.msra.mxu0 %v7493
    %7513 = vmatprep.subr.bf16.mxu0 0
    %7514 = vmatpush1.bf16.msra.mxu0 %v7492
    %7515 = vmatprep.subr.bf16.mxu0 0
    %7516 = vmatpush1.bf16.msra.mxu0 %v7491
    %7517 = vmatprep.subr.bf16.mxu0 0
    %7518 = vmatpush1.bf16.msra.mxu0 %v7490
    %7519 = vmatprep.subr.bf16.mxu0 0
    %7520 = vmatpush1.bf16.msra.mxu0 %v7489
    %7521 = vmatprep.subr.bf16.mxu0 0
    %7522 = vmatpush2.bf16.msra.mxu0 0
    %7523 = vmatprep.subr.bf16.mxu0 0
    %7524 = vmatpush2.bf16.msra.mxu0 0
    %7525 = vmatprep.subr.bf16.mxu0 0
    %7526 = vmatpush2.bf16.msra.mxu0 0
    %7527 = vmatprep.subr.bf16.mxu0 0
    %7528 = vmatpush2.bf16.msra.mxu0 0
    %7529 = vmatprep.subr.bf16.mxu0 0
    %7530 = vmatpush2.bf16.msra.mxu0 0
    %7531 = vmatprep.subr.bf16.mxu0 0
    %7532 = vmatpush2.bf16.msra.mxu0 0
    %7533 = vmatprep.subr.bf16.mxu0 0
    %7534 = vmatpush2.bf16.msra.mxu0 0
    %7535 = vmatprep.subr.bf16.mxu0 0
    %7536 = vmatpush2.bf16.msra.mxu0 0
    %7537 = vmatprep.mubr.bf16.mxu0 0
    %7538 = vmatmul.mubr.bf16.gmra.mxu0 %v7408
    %v7539 = vpop.f32.mrf.mxu0
    %v7540 = vadd.f32 0.0, %v7539
    %v7541 = vpop.f32.mrf.mxu0
    %v7542 = vpop.f32.mrf.mxu0
    %v7543 = vadd.f32 0.0, %v7542
    %v7544 = vpop.f32.mrf.mxu0
    %7545 = vmatprep.mubr.bf16.mxu0 0
    %7546 = vmatmul.mubr.bf16.gmra.mxu0 %v7409
    %v7547 = vpop.f32.mrf.mxu0
    %v7548 = vadd.f32 0.0, %v7547
    %v7549 = vpop.f32.mrf.mxu0
    %v7550 = vpop.f32.mrf.mxu0
    %v7551 = vadd.f32 0.0, %v7550
    %v7552 = vpop.f32.mrf.mxu0
    %7553 = vmatprep.mubr.bf16.mxu0 0
    %7554 = vmatmul.mubr.bf16.gmra.mxu0 %v7410
    %v7555 = vpop.f32.mrf.mxu0
    %v7556 = vadd.f32 0.0, %v7555
    %v7557 = vpop.f32.mrf.mxu0
    %v7558 = vpop.f32.mrf.mxu0
    %v7559 = vadd.f32 0.0, %v7558
    %v7560 = vpop.f32.mrf.mxu0
    %7561 = vmatprep.mubr.bf16.mxu0 0
    %7562 = vmatmul.mubr.bf16.gmra.mxu0 %v7411
    %v7563 = vpop.f32.mrf.mxu0
    %v7564 = vadd.f32 0.0, %v7563
    %v7565 = vpop.f32.mrf.mxu0
    %v7566 = vpop.f32.mrf.mxu0
    %v7567 = vadd.f32 0.0, %v7566
    %v7568 = vpop.f32.mrf.mxu0
    %7569 = vmatprep.mubr.bf16.mxu0 0
    %7570 = vmatmul.mubr.bf16.gmra.mxu0 %v7412
    %v7571 = vpop.f32.mrf.mxu0
    %v7572 = vadd.f32 0.0, %v7571
    %v7573 = vpop.f32.mrf.mxu0
    %v7574 = vpop.f32.mrf.mxu0
    %v7575 = vadd.f32 0.0, %v7574
    %v7576 = vpop.f32.mrf.mxu0
    %7577 = vmatprep.mubr.bf16.mxu0 0
    %7578 = vmatmul.mubr.bf16.gmra.mxu0 %v7413
    %v7579 = vpop.f32.mrf.mxu0
    %v7580 = vadd.f32 0.0, %v7579
    %v7581 = vpop.f32.mrf.mxu0
    %v7582 = vpop.f32.mrf.mxu0
    %v7583 = vadd.f32 0.0, %v7582
    %v7584 = vpop.f32.mrf.mxu0
    %7585 = vmatprep.mubr.bf16.mxu0 0
    %7586 = vmatmul.mubr.bf16.gmra.mxu0 %v7414
    %v7587 = vpop.f32.mrf.mxu0
    %v7588 = vadd.f32 0.0, %v7587
    %v7589 = vpop.f32.mrf.mxu0
    %v7590 = vpop.f32.mrf.mxu0
    %v7591 = vadd.f32 0.0, %v7590
    %v7592 = vpop.f32.mrf.mxu0
    %7593 = vmatprep.mubr.bf16.mxu0 0
    %7594 = vmatmul.mubr.bf16.gmra.mxu0 %v7415
    %v7595 = vpop.f32.mrf.mxu0
    %v7596 = vadd.f32 0.0, %v7595
    %v7597 = vpop.f32.mrf.mxu0
    %v7598 = vpop.f32.mrf.mxu0
    %v7599 = vadd.f32 0.0, %v7598
    %v7600 = vpop.f32.mrf.mxu0
    %7601 = vmatprep.mubr.bf16.mxu0 0
    %7602 = vmatmul.mubr.bf16.gmra.mxu0 %v7416
    %v7603 = vpop.f32.mrf.mxu0
    %v7604 = vadd.f32 0.0, %v7603
    %v7605 = vpop.f32.mrf.mxu0
    %v7606 = vpop.f32.mrf.mxu0
    %v7607 = vadd.f32 0.0, %v7606
    %v7608 = vpop.f32.mrf.mxu0
    %7609 = vmatprep.mubr.bf16.mxu0 0
    %7610 = vmatmul.mubr.bf16.gmra.mxu0 %v7417
    %v7611 = vpop.f32.mrf.mxu0
    %v7612 = vadd.f32 0.0, %v7611
    %v7613 = vpop.f32.mrf.mxu0
    %v7614 = vpop.f32.mrf.mxu0
    %v7615 = vadd.f32 0.0, %v7614
    %v7616 = vpop.f32.mrf.mxu0
    %7617 = vmatprep.mubr.bf16.mxu0 0
    %7618 = vmatmul.mubr.bf16.gmra.mxu0 %v7418
    %v7619 = vpop.f32.mrf.mxu0
    %v7620 = vadd.f32 0.0, %v7619
    %v7621 = vpop.f32.mrf.mxu0
    %v7622 = vpop.f32.mrf.mxu0
    %v7623 = vadd.f32 0.0, %v7622
    %v7624 = vpop.f32.mrf.mxu0
    %7625 = vmatprep.mubr.bf16.mxu0 0
    %7626 = vmatmul.mubr.bf16.gmra.mxu0 %v7419
    %v7627 = vpop.f32.mrf.mxu0
    %v7628 = vadd.f32 0.0, %v7627
    %v7629 = vpop.f32.mrf.mxu0
    %v7630 = vpop.f32.mrf.mxu0
    %v7631 = vadd.f32 0.0, %v7630
    %v7632 = vpop.f32.mrf.mxu0
    %7633 = vmatprep.mubr.bf16.mxu0 0
    %7634 = vmatmul.mubr.bf16.gmra.mxu0 %v7420
    %v7635 = vpop.f32.mrf.mxu0
    %v7636 = vadd.f32 0.0, %v7635
    %v7637 = vpop.f32.mrf.mxu0
    %v7638 = vpop.f32.mrf.mxu0
    %v7639 = vadd.f32 0.0, %v7638
    %v7640 = vpop.f32.mrf.mxu0
    %7641 = vmatprep.mubr.bf16.mxu0 0
    %7642 = vmatmul.mubr.bf16.gmra.mxu0 %v7421
    %v7643 = vpop.f32.mrf.mxu0
    %v7644 = vadd.f32 0.0, %v7643
    %v7645 = vpop.f32.mrf.mxu0
    %v7646 = vpop.f32.mrf.mxu0
    %v7647 = vadd.f32 0.0, %v7646
    %v7648 = vpop.f32.mrf.mxu0
    %7649 = vmatprep.mubr.bf16.mxu0 0
    %7650 = vmatmul.mubr.bf16.gmra.mxu0 %v7422
    %v7651 = vpop.f32.mrf.mxu0
    %v7652 = vadd.f32 0.0, %v7651
    %v7653 = vpop.f32.mrf.mxu0
    %v7654 = vpop.f32.mrf.mxu0
    %v7655 = vadd.f32 0.0, %v7654
    %v7656 = vpop.f32.mrf.mxu0
    %7657 = vmatprep.mubr.bf16.mxu0 0
    %7658 = vmatmul.mubr.bf16.gmra.mxu0 %v7423
    %v7659 = vpop.f32.mrf.mxu0
    %v7660 = vadd.f32 0.0, %v7659
    %v7661 = vpop.f32.mrf.mxu0
    %v7662 = vpop.f32.mrf.mxu0
    %v7663 = vadd.f32 0.0, %v7662
    %v7664 = vpop.f32.mrf.mxu0
    %7665 = vmatprep.mubr.bf16.mxu0 0
    %7666 = vmatmul.mubr.bf16.gmra.mxu0 %v7424
    %v7667 = vpop.f32.mrf.mxu0
    %v7668 = vadd.f32 0.0, %v7667
    %v7669 = vpop.f32.mrf.mxu0
    %v7670 = vpop.f32.mrf.mxu0
    %v7671 = vadd.f32 0.0, %v7670
    %v7672 = vpop.f32.mrf.mxu0
    %7673 = vmatprep.mubr.bf16.mxu0 0
    %7674 = vmatmul.mubr.bf16.gmra.mxu0 %v7425
    %v7675 = vpop.f32.mrf.mxu0
    %v7676 = vadd.f32 0.0, %v7675
    %v7677 = vpop.f32.mrf.mxu0
    %v7678 = vpop.f32.mrf.mxu0
    %v7679 = vadd.f32 0.0, %v7678
    %v7680 = vpop.f32.mrf.mxu0
    %7681 = vmatprep.mubr.bf16.mxu0 0
    %7682 = vmatmul.mubr.bf16.gmra.mxu0 %v7426
    %v7683 = vpop.f32.mrf.mxu0
    %v7684 = vadd.f32 0.0, %v7683
    %v7685 = vpop.f32.mrf.mxu0
    %v7686 = vpop.f32.mrf.mxu0
    %v7687 = vadd.f32 0.0, %v7686
    %v7688 = vpop.f32.mrf.mxu0
    %7689 = vmatprep.mubr.bf16.mxu0 0
    %7690 = vmatmul.mubr.bf16.gmra.mxu0 %v7427
    %v7691 = vpop.f32.mrf.mxu0
    %v7692 = vadd.f32 0.0, %v7691
    %v7693 = vpop.f32.mrf.mxu0
    %v7694 = vpop.f32.mrf.mxu0
    %v7695 = vadd.f32 0.0, %v7694
    %v7696 = vpop.f32.mrf.mxu0
    %7697 = vmatprep.mubr.bf16.mxu0 0
    %7698 = vmatmul.mubr.bf16.gmra.mxu0 %v7428
    %v7699 = vpop.f32.mrf.mxu0
    %v7700 = vadd.f32 0.0, %v7699
    %v7701 = vpop.f32.mrf.mxu0
    %v7702 = vpop.f32.mrf.mxu0
    %v7703 = vadd.f32 0.0, %v7702
    %v7704 = vpop.f32.mrf.mxu0
    %7705 = vmatprep.mubr.bf16.mxu0 0
    %7706 = vmatmul.mubr.bf16.gmra.mxu0 %v7429
    %v7707 = vpop.f32.mrf.mxu0
    %v7708 = vadd.f32 0.0, %v7707
    %v7709 = vpop.f32.mrf.mxu0
    %v7710 = vpop.f32.mrf.mxu0
    %v7711 = vadd.f32 0.0, %v7710
    %v7712 = vpop.f32.mrf.mxu0
    %7713 = vmatprep.mubr.bf16.mxu0 0
    %7714 = vmatmul.mubr.bf16.gmra.mxu0 %v7430
    %v7715 = vpop.f32.mrf.mxu0
    %v7716 = vadd.f32 0.0, %v7715
    %v7717 = vpop.f32.mrf.mxu0
    %v7718 = vpop.f32.mrf.mxu0
    %v7719 = vadd.f32 0.0, %v7718
    %v7720 = vpop.f32.mrf.mxu0
    %7721 = vmatprep.mubr.bf16.mxu0 0
    %7722 = vmatmul.mubr.bf16.gmra.mxu0 %v7431
    %v7723 = vpop.f32.mrf.mxu0
    %v7724 = vadd.f32 0.0, %v7723
    %v7725 = vpop.f32.mrf.mxu0
    %v7726 = vpop.f32.mrf.mxu0
    %v7727 = vadd.f32 0.0, %v7726
    %v7728 = vpop.f32.mrf.mxu0
    %7729 = vmatprep.mubr.bf16.mxu0 0
    %7730 = vmatmul.mubr.bf16.gmra.mxu0 %v7432
    %v7731 = vpop.f32.mrf.mxu0
    %v7732 = vadd.f32 0.0, %v7731
    %v7733 = vpop.f32.mrf.mxu0
    %v7734 = vpop.f32.mrf.mxu0
    %v7735 = vadd.f32 0.0, %v7734
    %v7736 = vpop.f32.mrf.mxu0
    %7737 = vmatprep.mubr.bf16.mxu0 0
    %7738 = vmatmul.mubr.bf16.gmra.mxu0 %v7433
    %v7739 = vpop.f32.mrf.mxu0
    %v7740 = vadd.f32 0.0, %v7739
    %v7741 = vpop.f32.mrf.mxu0
    %v7742 = vpop.f32.mrf.mxu0
    %v7743 = vadd.f32 0.0, %v7742
    %v7744 = vpop.f32.mrf.mxu0
    %7745 = vmatprep.mubr.bf16.mxu0 0
    %7746 = vmatmul.mubr.bf16.gmra.mxu0 %v7434
    %v7747 = vpop.f32.mrf.mxu0
    %v7748 = vadd.f32 0.0, %v7747
    %v7749 = vpop.f32.mrf.mxu0
    %v7750 = vpop.f32.mrf.mxu0
    %v7751 = vadd.f32 0.0, %v7750
    %v7752 = vpop.f32.mrf.mxu0
    %7753 = vmatprep.mubr.bf16.mxu0 0
    %7754 = vmatmul.mubr.bf16.gmra.mxu0 %v7435
    %v7755 = vpop.f32.mrf.mxu0
    %v7756 = vadd.f32 0.0, %v7755
    %v7757 = vpop.f32.mrf.mxu0
    %v7758 = vpop.f32.mrf.mxu0
    %v7759 = vadd.f32 0.0, %v7758
    %v7760 = vpop.f32.mrf.mxu0
    %7761 = vmatprep.mubr.bf16.mxu0 0
    %7762 = vmatmul.mubr.bf16.gmra.mxu0 %v7436
    %v7763 = vpop.f32.mrf.mxu0
    %v7764 = vadd.f32 0.0, %v7763
    %v7765 = vpop.f32.mrf.mxu0
    %v7766 = vpop.f32.mrf.mxu0
    %v7767 = vadd.f32 0.0, %v7766
    %v7768 = vpop.f32.mrf.mxu0
    %7769 = vmatprep.mubr.bf16.mxu0 0
    %7770 = vmatmul.mubr.bf16.gmra.mxu0 %v7437
    %v7771 = vpop.f32.mrf.mxu0
    %v7772 = vadd.f32 0.0, %v7771
    %v7773 = vpop.f32.mrf.mxu0
    %v7774 = vpop.f32.mrf.mxu0
    %v7775 = vadd.f32 0.0, %v7774
    %v7776 = vpop.f32.mrf.mxu0
    %7777 = vmatprep.mubr.bf16.mxu0 0
    %7778 = vmatmul.mubr.bf16.gmra.mxu0 %v7438
    %v7779 = vpop.f32.mrf.mxu0
    %v7780 = vadd.f32 0.0, %v7779
    %v7781 = vpop.f32.mrf.mxu0
    %v7782 = vpop.f32.mrf.mxu0
    %v7783 = vadd.f32 0.0, %v7782
    %v7784 = vpop.f32.mrf.mxu0
    %7785 = vmatprep.mubr.bf16.mxu0 0
    %7786 = vmatmul.mubr.bf16.gmra.mxu0 %v7439
    %v7787 = vpop.f32.mrf.mxu0
    %v7788 = vadd.f32 0.0, %v7787
    %v7789 = vpop.f32.mrf.mxu0
    %v7790 = vpop.f32.mrf.mxu0
    %v7791 = vadd.f32 0.0, %v7790
    %v7792 = vpop.f32.mrf.mxu0
    %7793 = vdwg.mxu0
    %v7794 = vadd.f32 %v6831, %v7540
    %v7795 = vadd.f32 %v6832, %v7543
    %v7796 = vadd.f32 %v6833, %v7548
    %v7797 = vadd.f32 %v6834, %v7551
    %v7798 = vadd.f32 %v6835, %v7556
    %v7799 = vadd.f32 %v6836, %v7559
    %v7800 = vadd.f32 %v6837, %v7564
    %v7801 = vadd.f32 %v6838, %v7567
    %v7802 = vadd.f32 %v6839, %v7572
    %v7803 = vadd.f32 %v6840, %v7575
    %v7804 = vadd.f32 %v6841, %v7580
    %v7805 = vadd.f32 %v6842, %v7583
    %v7806 = vadd.f32 %v6843, %v7588
    %v7807 = vadd.f32 %v6844, %v7591
    %v7808 = vadd.f32 %v6845, %v7596
    %v7809 = vadd.f32 %v6846, %v7599
    %v7810 = vadd.f32 %v6847, %v7604
    %v7811 = vadd.f32 %v6848, %v7607
    %v7812 = vadd.f32 %v6849, %v7612
    %v7813 = vadd.f32 %v6850, %v7615
    %v7814 = vadd.f32 %v6851, %v7620
    %v7815 = vadd.f32 %v6852, %v7623
    %v7816 = vadd.f32 %v6853, %v7628
    %v7817 = vadd.f32 %v6854, %v7631
    %v7818 = vadd.f32 %v6855, %v7636
    %v7819 = vadd.f32 %v6856, %v7639
    %v7820 = vadd.f32 %v6857, %v7644
    %v7821 = vadd.f32 %v6858, %v7647
    %v7822 = vadd.f32 %v6859, %v7652
    %v7823 = vadd.f32 %v6860, %v7655
    %v7824 = vadd.f32 %v6861, %v7660
    %v7825 = vadd.f32 %v6862, %v7663
    %v7826 = vadd.f32 %v6863, %v7668
    %v7827 = vadd.f32 %v6864, %v7671
    %v7828 = vadd.f32 %v6865, %v7676
    %v7829 = vadd.f32 %v6866, %v7679
    %v7830 = vadd.f32 %v6867, %v7684
    %v7831 = vadd.f32 %v6868, %v7687
    %v7832 = vadd.f32 %v6869, %v7692
    %v7833 = vadd.f32 %v6870, %v7695
    %v7834 = vadd.f32 %v6871, %v7700
    %v7835 = vadd.f32 %v6872, %v7703
    %v7836 = vadd.f32 %v6873, %v7708
    %v7837 = vadd.f32 %v6874, %v7711
    %v7838 = vadd.f32 %v6875, %v7716
    %v7839 = vadd.f32 %v6876, %v7719
    %v7840 = vadd.f32 %v6877, %v7724
    %v7841 = vadd.f32 %v6878, %v7727
    %v7842 = vadd.f32 %v6879, %v7732
    %v7843 = vadd.f32 %v6880, %v7735
    %v7844 = vadd.f32 %v6881, %v7740
    %v7845 = vadd.f32 %v6882, %v7743
    %v7846 = vadd.f32 %v6883, %v7748
    %v7847 = vadd.f32 %v6884, %v7751
    %v7848 = vadd.f32 %v6885, %v7756
    %v7849 = vadd.f32 %v6886, %v7759
    %v7850 = vadd.f32 %v6887, %v7764
    %v7851 = vadd.f32 %v6888, %v7767
    %v7852 = vadd.f32 %v6889, %v7772
    %v7853 = vadd.f32 %v6890, %v7775
    %v7854 = vadd.f32 %v6891, %v7780
    %v7855 = vadd.f32 %v6892, %v7783
    %v7856 = vadd.f32 %v6893, %v7788
    %v7857 = vadd.f32 %v6894, %v7791
    %v7858 = vld [vmem:[#allocation2 + $0x29] sm:$0xff]
    %v7859 = vld [vmem:[#allocation2 + $0x31] sm:$0xff]
    %v7860 = vld [vmem:[#allocation2 + $0x39] sm:$0xff]
    %v7861 = vld [vmem:[#allocation2 + $0x41] sm:$0xff]
    %v7862 = vld [vmem:[#allocation2 + $0x49] sm:$0xff]
    %v7863 = vld [vmem:[#allocation2 + $0x51] sm:$0xff]
    %v7864 = vld [vmem:[#allocation2 + $0x59] sm:$0xff]
    %v7865 = vld [vmem:[#allocation2 + $0x61] sm:$0xff]
    %v7866 = vld [vmem:[#allocation2 + $0x69] sm:$0xff]
    %v7867 = vld [vmem:[#allocation2 + $0x71] sm:$0xff]
    %v7868 = vld [vmem:[#allocation2 + $0x79] sm:$0xff]
    %v7869 = vld [vmem:[#allocation2 + $0x81] sm:$0xff]
    %v7870 = vld [vmem:[#allocation2 + $0x89] sm:$0xff]
    %v7871 = vld [vmem:[#allocation2 + $0x91] sm:$0xff]
    %v7872 = vld [vmem:[#allocation2 + $0x99] sm:$0xff]
    %v7873 = vld [vmem:[#allocation2 + $0xa1] sm:$0xff]
    %v7874 = vld [vmem:[#allocation2 + $0xa9] sm:$0xff]
    %v7875 = vld [vmem:[#allocation2 + $0xb1] sm:$0xff]
    %v7876 = vld [vmem:[#allocation2 + $0xb9] sm:$0xff]
    %v7877 = vld [vmem:[#allocation2 + $0xc1] sm:$0xff]
    %v7878 = vld [vmem:[#allocation2 + $0xc9] sm:$0xff]
    %v7879 = vld [vmem:[#allocation2 + $0xd1] sm:$0xff]
    %v7880 = vld [vmem:[#allocation2 + $0xd9] sm:$0xff]
    %v7881 = vld [vmem:[#allocation2 + $0xe1] sm:$0xff]
    %v7882 = vld [vmem:[#allocation2 + $0xe9] sm:$0xff]
    %v7883 = vld [vmem:[#allocation2 + $0xf1] sm:$0xff]
    %v7884 = vld [vmem:[#allocation2 + $0xf9] sm:$0xff]
    %v7885 = vld [vmem:[#allocation2 + $0x101] sm:$0xff]
    %v7886 = vld [vmem:[#allocation2 + $0x109] sm:$0xff]
    %v7887 = vld [vmem:[#allocation2 + $0x111] sm:$0xff]
    %v7888 = vld [vmem:[#allocation2 + $0x119] sm:$0xff]
    %v7889 = vld [vmem:[#allocation2 + $0x121] sm:$0xff]
    %v7890 = vld [vmem:[#allocation2 + $0x129] sm:$0xff]
    %v7891 = vld [vmem:[#allocation2 + $0x131] sm:$0xff]
    %v7892 = vld [vmem:[#allocation2 + $0x139] sm:$0xff]
    %v7893 = vld [vmem:[#allocation2 + $0x141] sm:$0xff]
    %v7894 = vld [vmem:[#allocation2 + $0x149] sm:$0xff]
    %v7895 = vld [vmem:[#allocation2 + $0x151] sm:$0xff]
    %v7896 = vld [vmem:[#allocation2 + $0x159] sm:$0xff]
    %v7897 = vld [vmem:[#allocation2 + $0x161] sm:$0xff]
    %v7898 = vld [vmem:[#allocation2 + $0x169] sm:$0xff]
    %v7899 = vld [vmem:[#allocation2 + $0x171] sm:$0xff]
    %v7900 = vld [vmem:[#allocation2 + $0x179] sm:$0xff]
    %v7901 = vld [vmem:[#allocation2 + $0x181] sm:$0xff]
    %v7902 = vld [vmem:[#allocation2 + $0x189] sm:$0xff]
    %v7903 = vld [vmem:[#allocation2 + $0x191] sm:$0xff]
    %v7904 = vld [vmem:[#allocation2 + $0x199] sm:$0xff]
    %v7905 = vld [vmem:[#allocation2 + $0x1a1] sm:$0xff]
    %v7906 = vld [vmem:[#allocation2 + $0x1a9] sm:$0xff]
    %v7907 = vld [vmem:[#allocation2 + $0x1b1] sm:$0xff]
    %v7908 = vld [vmem:[#allocation2 + $0x1b9] sm:$0xff]
    %v7909 = vld [vmem:[#allocation2 + $0x1c1] sm:$0xff]
    %v7910 = vld [vmem:[#allocation2 + $0x1c9] sm:$0xff]
    %v7911 = vld [vmem:[#allocation2 + $0x1d1] sm:$0xff]
    %v7912 = vld [vmem:[#allocation2 + $0x1d9] sm:$0xff]
    %v7913 = vld [vmem:[#allocation2 + $0x1e1] sm:$0xff]
    %v7914 = vld [vmem:[#allocation2 + $0x1e9] sm:$0xff]
    %v7915 = vld [vmem:[#allocation2 + $0x1f1] sm:$0xff]
    %v7916 = vld [vmem:[#allocation2 + $0x1f9] sm:$0xff]
    %v7917 = vld [vmem:[#allocation2 + $0x201] sm:$0xff]
    %v7918 = vld [vmem:[#allocation2 + $0x209] sm:$0xff]
    %v7919 = vld [vmem:[#allocation2 + $0x211] sm:$0xff]
    %v7920 = vld [vmem:[#allocation2 + $0x219] sm:$0xff]
    %v7921 = vld [vmem:[#allocation2 + $0x221] sm:$0xff]
    %s7922 = scalar_lea.vmem %s1, 4096
    %v7923 = vld [vmem:[%s7922] sm:$0xff]
    %v7924 = vld [vmem:[%s7922 + $0x8] sm:$0xff]
    %v7925 = vld [vmem:[%s7922 + $0x10] sm:$0xff]
    %v7926 = vld [vmem:[%s7922 + $0x18] sm:$0xff]
    %v7927 = vld [vmem:[%s7922 + $0x20] sm:$0xff]
    %v7928 = vld [vmem:[%s7922 + $0x28] sm:$0xff]
    %v7929 = vld [vmem:[%s7922 + $0x30] sm:$0xff]
    %v7930 = vld [vmem:[%s7922 + $0x38] sm:$0xff]
    %v7931 = vld [vmem:[%s7922 + $0x40] sm:$0xff]
    %v7932 = vld [vmem:[%s7922 + $0x48] sm:$0xff]
    %v7933 = vld [vmem:[%s7922 + $0x50] sm:$0xff]
    %v7934 = vld [vmem:[%s7922 + $0x58] sm:$0xff]
    %v7935 = vld [vmem:[%s7922 + $0x60] sm:$0xff]
    %v7936 = vld [vmem:[%s7922 + $0x68] sm:$0xff]
    %v7937 = vld [vmem:[%s7922 + $0x70] sm:$0xff]
    %v7938 = vld [vmem:[%s7922 + $0x78] sm:$0xff]
    %v7939 = vld [vmem:[%s7922 + $0x80] sm:$0xff]
    %v7940 = vld [vmem:[%s7922 + $0x88] sm:$0xff]
    %v7941 = vld [vmem:[%s7922 + $0x90] sm:$0xff]
    %v7942 = vld [vmem:[%s7922 + $0x98] sm:$0xff]
    %v7943 = vld [vmem:[%s7922 + $0xa0] sm:$0xff]
    %v7944 = vld [vmem:[%s7922 + $0xa8] sm:$0xff]
    %v7945 = vld [vmem:[%s7922 + $0xb0] sm:$0xff]
    %v7946 = vld [vmem:[%s7922 + $0xb8] sm:$0xff]
    %v7947 = vld [vmem:[%s7922 + $0xc0] sm:$0xff]
    %v7948 = vld [vmem:[%s7922 + $0xc8] sm:$0xff]
    %v7949 = vld [vmem:[%s7922 + $0xd0] sm:$0xff]
    %v7950 = vld [vmem:[%s7922 + $0xd8] sm:$0xff]
    %v7951 = vld [vmem:[%s7922 + $0xe0] sm:$0xff]
    %v7952 = vld [vmem:[%s7922 + $0xe8] sm:$0xff]
    %v7953 = vld [vmem:[%s7922 + $0xf0] sm:$0xff]
    %v7954 = vld [vmem:[%s7922 + $0xf8] sm:$0xff]
    %v7955 = vld [vmem:[%s7922 + $0x100] sm:$0xff]
    %v7956 = vld [vmem:[%s7922 + $0x108] sm:$0xff]
    %v7957 = vld [vmem:[%s7922 + $0x110] sm:$0xff]
    %v7958 = vld [vmem:[%s7922 + $0x118] sm:$0xff]
    %v7959 = vld [vmem:[%s7922 + $0x120] sm:$0xff]
    %v7960 = vld [vmem:[%s7922 + $0x128] sm:$0xff]
    %v7961 = vld [vmem:[%s7922 + $0x130] sm:$0xff]
    %v7962 = vld [vmem:[%s7922 + $0x138] sm:$0xff]
    %v7963 = vld [vmem:[%s7922 + $0x140] sm:$0xff]
    %v7964 = vld [vmem:[%s7922 + $0x148] sm:$0xff]
    %v7965 = vld [vmem:[%s7922 + $0x150] sm:$0xff]
    %v7966 = vld [vmem:[%s7922 + $0x158] sm:$0xff]
    %v7967 = vld [vmem:[%s7922 + $0x160] sm:$0xff]
    %v7968 = vld [vmem:[%s7922 + $0x168] sm:$0xff]
    %v7969 = vld [vmem:[%s7922 + $0x170] sm:$0xff]
    %v7970 = vld [vmem:[%s7922 + $0x178] sm:$0xff]
    %v7971 = vld [vmem:[%s7922 + $0x180] sm:$0xff]
    %v7972 = vld [vmem:[%s7922 + $0x188] sm:$0xff]
    %v7973 = vld [vmem:[%s7922 + $0x190] sm:$0xff]
    %v7974 = vld [vmem:[%s7922 + $0x198] sm:$0xff]
    %v7975 = vld [vmem:[%s7922 + $0x1a0] sm:$0xff]
    %v7976 = vld [vmem:[%s7922 + $0x1a8] sm:$0xff]
    %v7977 = vld [vmem:[%s7922 + $0x1b0] sm:$0xff]
    %v7978 = vld [vmem:[%s7922 + $0x1b8] sm:$0xff]
    %v7979 = vld [vmem:[%s7922 + $0x1c0] sm:$0xff]
    %v7980 = vld [vmem:[%s7922 + $0x1c8] sm:$0xff]
    %v7981 = vld [vmem:[%s7922 + $0x1d0] sm:$0xff]
    %v7982 = vld [vmem:[%s7922 + $0x1d8] sm:$0xff]
    %v7983 = vld [vmem:[%s7922 + $0x1e0] sm:$0xff]
    %v7984 = vld [vmem:[%s7922 + $0x1e8] sm:$0xff]
    %v7985 = vld [vmem:[%s7922 + $0x1f0] sm:$0xff]
    %v7986 = vld [vmem:[%s7922 + $0x1f8] sm:$0xff]
    %7988 = vset.pattern.permute.xlu0 0
    %7989 = vperm.xlu0 %7988, %v7923
    %v7990 = vpop.permute.xlu0 %7989
    %7993 = vset.pattern.permute.xlu0 0
    %7994 = vperm.xlu0 %7993, %v7924
    %v7995 = vpop.permute.xlu0 %7994
    %7998 = vset.pattern.permute.xlu0 0
    %7999 = vperm.xlu0 %7998, %v7925
    %v8000 = vpop.permute.xlu0 %7999
    %8003 = vset.pattern.permute.xlu0 0
    %8004 = vperm.xlu0 %8003, %v7926
    %v8005 = vpop.permute.xlu0 %8004
    %8008 = vset.pattern.permute.xlu0 0
    %8009 = vperm.xlu0 %8008, %v7927
    %v8010 = vpop.permute.xlu0 %8009
    %8013 = vset.pattern.permute.xlu0 0
    %8014 = vperm.xlu0 %8013, %v7928
    %v8015 = vpop.permute.xlu0 %8014
    %8018 = vset.pattern.permute.xlu0 0
    %8019 = vperm.xlu0 %8018, %v7929
    %v8020 = vpop.permute.xlu0 %8019
    %8023 = vset.pattern.permute.xlu0 0
    %8024 = vperm.xlu0 %8023, %v7930
    %v8025 = vpop.permute.xlu0 %8024
    %8028 = vset.pattern.permute.xlu0 0
    %8029 = vperm.xlu0 %8028, %v7931
    %v8030 = vpop.permute.xlu0 %8029
    %8033 = vset.pattern.permute.xlu0 0
    %8034 = vperm.xlu0 %8033, %v7932
    %v8035 = vpop.permute.xlu0 %8034
    %8038 = vset.pattern.permute.xlu0 0
    %8039 = vperm.xlu0 %8038, %v7933
    %v8040 = vpop.permute.xlu0 %8039
    %8043 = vset.pattern.permute.xlu0 0
    %8044 = vperm.xlu0 %8043, %v7934
    %v8045 = vpop.permute.xlu0 %8044
    %8048 = vset.pattern.permute.xlu0 0
    %8049 = vperm.xlu0 %8048, %v7935
    %v8050 = vpop.permute.xlu0 %8049
    %8053 = vset.pattern.permute.xlu0 0
    %8054 = vperm.xlu0 %8053, %v7936
    %v8055 = vpop.permute.xlu0 %8054
    %8058 = vset.pattern.permute.xlu0 0
    %8059 = vperm.xlu0 %8058, %v7937
    %v8060 = vpop.permute.xlu0 %8059
    %8063 = vset.pattern.permute.xlu0 0
    %8064 = vperm.xlu0 %8063, %v7938
    %v8065 = vpop.permute.xlu0 %8064
    %8068 = vset.pattern.permute.xlu0 0
    %8069 = vperm.xlu0 %8068, %v7939
    %v8070 = vpop.permute.xlu0 %8069
    %8073 = vset.pattern.permute.xlu0 0
    %8074 = vperm.xlu0 %8073, %v7940
    %v8075 = vpop.permute.xlu0 %8074
    %8078 = vset.pattern.permute.xlu0 0
    %8079 = vperm.xlu0 %8078, %v7941
    %v8080 = vpop.permute.xlu0 %8079
    %8083 = vset.pattern.permute.xlu0 0
    %8084 = vperm.xlu0 %8083, %v7942
    %v8085 = vpop.permute.xlu0 %8084
    %8088 = vset.pattern.permute.xlu0 0
    %8089 = vperm.xlu0 %8088, %v7943
    %v8090 = vpop.permute.xlu0 %8089
    %8093 = vset.pattern.permute.xlu0 0
    %8094 = vperm.xlu0 %8093, %v7944
    %v8095 = vpop.permute.xlu0 %8094
    %8098 = vset.pattern.permute.xlu0 0
    %8099 = vperm.xlu0 %8098, %v7945
    %v8100 = vpop.permute.xlu0 %8099
    %8103 = vset.pattern.permute.xlu0 0
    %8104 = vperm.xlu0 %8103, %v7946
    %v8105 = vpop.permute.xlu0 %8104
    %8108 = vset.pattern.permute.xlu0 0
    %8109 = vperm.xlu0 %8108, %v7947
    %v8110 = vpop.permute.xlu0 %8109
    %8113 = vset.pattern.permute.xlu0 0
    %8114 = vperm.xlu0 %8113, %v7948
    %v8115 = vpop.permute.xlu0 %8114
    %8118 = vset.pattern.permute.xlu0 0
    %8119 = vperm.xlu0 %8118, %v7949
    %v8120 = vpop.permute.xlu0 %8119
    %8123 = vset.pattern.permute.xlu0 0
    %8124 = vperm.xlu0 %8123, %v7950
    %v8125 = vpop.permute.xlu0 %8124
    %8128 = vset.pattern.permute.xlu0 0
    %8129 = vperm.xlu0 %8128, %v7951
    %v8130 = vpop.permute.xlu0 %8129
    %8133 = vset.pattern.permute.xlu0 0
    %8134 = vperm.xlu0 %8133, %v7952
    %v8135 = vpop.permute.xlu0 %8134
    %8138 = vset.pattern.permute.xlu0 0
    %8139 = vperm.xlu0 %8138, %v7953
    %v8140 = vpop.permute.xlu0 %8139
    %8143 = vset.pattern.permute.xlu0 0
    %8144 = vperm.xlu0 %8143, %v7954
    %v8145 = vpop.permute.xlu0 %8144
    %8148 = vset.pattern.permute.xlu0 0
    %8149 = vperm.xlu0 %8148, %v7955
    %v8150 = vpop.permute.xlu0 %8149
    %8153 = vset.pattern.permute.xlu0 0
    %8154 = vperm.xlu0 %8153, %v7956
    %v8155 = vpop.permute.xlu0 %8154
    %8158 = vset.pattern.permute.xlu0 0
    %8159 = vperm.xlu0 %8158, %v7957
    %v8160 = vpop.permute.xlu0 %8159
    %8163 = vset.pattern.permute.xlu0 0
    %8164 = vperm.xlu0 %8163, %v7958
    %v8165 = vpop.permute.xlu0 %8164
    %8168 = vset.pattern.permute.xlu0 0
    %8169 = vperm.xlu0 %8168, %v7959
    %v8170 = vpop.permute.xlu0 %8169
    %8173 = vset.pattern.permute.xlu0 0
    %8174 = vperm.xlu0 %8173, %v7960
    %v8175 = vpop.permute.xlu0 %8174
    %8178 = vset.pattern.permute.xlu0 0
    %8179 = vperm.xlu0 %8178, %v7961
    %v8180 = vpop.permute.xlu0 %8179
    %8183 = vset.pattern.permute.xlu0 0
    %8184 = vperm.xlu0 %8183, %v7962
    %v8185 = vpop.permute.xlu0 %8184
    %8188 = vset.pattern.permute.xlu0 0
    %8189 = vperm.xlu0 %8188, %v7963
    %v8190 = vpop.permute.xlu0 %8189
    %8193 = vset.pattern.permute.xlu0 0
    %8194 = vperm.xlu0 %8193, %v7964
    %v8195 = vpop.permute.xlu0 %8194
    %8198 = vset.pattern.permute.xlu0 0
    %8199 = vperm.xlu0 %8198, %v7965
    %v8200 = vpop.permute.xlu0 %8199
    %8203 = vset.pattern.permute.xlu0 0
    %8204 = vperm.xlu0 %8203, %v7966
    %v8205 = vpop.permute.xlu0 %8204
    %8208 = vset.pattern.permute.xlu0 0
    %8209 = vperm.xlu0 %8208, %v7967
    %v8210 = vpop.permute.xlu0 %8209
    %8213 = vset.pattern.permute.xlu0 0
    %8214 = vperm.xlu0 %8213, %v7968
    %v8215 = vpop.permute.xlu0 %8214
    %8218 = vset.pattern.permute.xlu0 0
    %8219 = vperm.xlu0 %8218, %v7969
    %v8220 = vpop.permute.xlu0 %8219
    %8223 = vset.pattern.permute.xlu0 0
    %8224 = vperm.xlu0 %8223, %v7970
    %v8225 = vpop.permute.xlu0 %8224
    %8228 = vset.pattern.permute.xlu0 0
    %8229 = vperm.xlu0 %8228, %v7971
    %v8230 = vpop.permute.xlu0 %8229
    %8233 = vset.pattern.permute.xlu0 0
    %8234 = vperm.xlu0 %8233, %v7972
    %v8235 = vpop.permute.xlu0 %8234
    %8238 = vset.pattern.permute.xlu0 0
    %8239 = vperm.xlu0 %8238, %v7973
    %v8240 = vpop.permute.xlu0 %8239
    %8243 = vset.pattern.permute.xlu0 0
    %8244 = vperm.xlu0 %8243, %v7974
    %v8245 = vpop.permute.xlu0 %8244
    %8248 = vset.pattern.permute.xlu0 0
    %8249 = vperm.xlu0 %8248, %v7975
    %v8250 = vpop.permute.xlu0 %8249
    %8253 = vset.pattern.permute.xlu0 0
    %8254 = vperm.xlu0 %8253, %v7976
    %v8255 = vpop.permute.xlu0 %8254
    %8258 = vset.pattern.permute.xlu0 0
    %8259 = vperm.xlu0 %8258, %v7977
    %v8260 = vpop.permute.xlu0 %8259
    %8263 = vset.pattern.permute.xlu0 0
    %8264 = vperm.xlu0 %8263, %v7978
    %v8265 = vpop.permute.xlu0 %8264
    %8268 = vset.pattern.permute.xlu0 0
    %8269 = vperm.xlu0 %8268, %v7979
    %v8270 = vpop.permute.xlu0 %8269
    %8273 = vset.pattern.permute.xlu0 0
    %8274 = vperm.xlu0 %8273, %v7980
    %v8275 = vpop.permute.xlu0 %8274
    %8278 = vset.pattern.permute.xlu0 0
    %8279 = vperm.xlu0 %8278, %v7981
    %v8280 = vpop.permute.xlu0 %8279
    %8283 = vset.pattern.permute.xlu0 0
    %8284 = vperm.xlu0 %8283, %v7982
    %v8285 = vpop.permute.xlu0 %8284
    %8288 = vset.pattern.permute.xlu0 0
    %8289 = vperm.xlu0 %8288, %v7983
    %v8290 = vpop.permute.xlu0 %8289
    %8293 = vset.pattern.permute.xlu0 0
    %8294 = vperm.xlu0 %8293, %v7984
    %v8295 = vpop.permute.xlu0 %8294
    %8298 = vset.pattern.permute.xlu0 0
    %8299 = vperm.xlu0 %8298, %v7985
    %v8300 = vpop.permute.xlu0 %8299
    %8303 = vset.pattern.permute.xlu0 0
    %8304 = vperm.xlu0 %8303, %v7986
    %v8305 = vpop.permute.xlu0 %8304
    %v8307 = vmul.f32 %v7858, %v7990
    %v8308 = vmul.f32 %v7859, %v7995
    %v8309 = vmul.f32 %v7860, %v8000
    %v8310 = vmul.f32 %v7861, %v8005
    %v8311 = vmul.f32 %v7862, %v8010
    %v8312 = vmul.f32 %v7863, %v8015
    %v8313 = vmul.f32 %v7864, %v8020
    %v8314 = vmul.f32 %v7865, %v8025
    %v8315 = vmul.f32 %v7866, %v8030
    %v8316 = vmul.f32 %v7867, %v8035
    %v8317 = vmul.f32 %v7868, %v8040
    %v8318 = vmul.f32 %v7869, %v8045
    %v8319 = vmul.f32 %v7870, %v8050
    %v8320 = vmul.f32 %v7871, %v8055
    %v8321 = vmul.f32 %v7872, %v8060
    %v8322 = vmul.f32 %v7873, %v8065
    %v8323 = vmul.f32 %v7874, %v8070
    %v8324 = vmul.f32 %v7875, %v8075
    %v8325 = vmul.f32 %v7876, %v8080
    %v8326 = vmul.f32 %v7877, %v8085
    %v8327 = vmul.f32 %v7878, %v8090
    %v8328 = vmul.f32 %v7879, %v8095
    %v8329 = vmul.f32 %v7880, %v8100
    %v8330 = vmul.f32 %v7881, %v8105
    %v8331 = vmul.f32 %v7882, %v8110
    %v8332 = vmul.f32 %v7883, %v8115
    %v8333 = vmul.f32 %v7884, %v8120
    %v8334 = vmul.f32 %v7885, %v8125
    %v8335 = vmul.f32 %v7886, %v8130
    %v8336 = vmul.f32 %v7887, %v8135
    %v8337 = vmul.f32 %v7888, %v8140
    %v8338 = vmul.f32 %v7889, %v8145
    %v8339 = vmul.f32 %v7890, %v8150
    %v8340 = vmul.f32 %v7891, %v8155
    %v8341 = vmul.f32 %v7892, %v8160
    %v8342 = vmul.f32 %v7893, %v8165
    %v8343 = vmul.f32 %v7894, %v8170
    %v8344 = vmul.f32 %v7895, %v8175
    %v8345 = vmul.f32 %v7896, %v8180
    %v8346 = vmul.f32 %v7897, %v8185
    %v8347 = vmul.f32 %v7898, %v8190
    %v8348 = vmul.f32 %v7899, %v8195
    %v8349 = vmul.f32 %v7900, %v8200
    %v8350 = vmul.f32 %v7901, %v8205
    %v8351 = vmul.f32 %v7902, %v8210
    %v8352 = vmul.f32 %v7903, %v8215
    %v8353 = vmul.f32 %v7904, %v8220
    %v8354 = vmul.f32 %v7905, %v8225
    %v8355 = vmul.f32 %v7906, %v8230
    %v8356 = vmul.f32 %v7907, %v8235
    %v8357 = vmul.f32 %v7908, %v8240
    %v8358 = vmul.f32 %v7909, %v8245
    %v8359 = vmul.f32 %v7910, %v8250
    %v8360 = vmul.f32 %v7911, %v8255
    %v8361 = vmul.f32 %v7912, %v8260
    %v8362 = vmul.f32 %v7913, %v8265
    %v8363 = vmul.f32 %v7914, %v8270
    %v8364 = vmul.f32 %v7915, %v8275
    %v8365 = vmul.f32 %v7916, %v8280
    %v8366 = vmul.f32 %v7917, %v8285
    %v8367 = vmul.f32 %v7918, %v8290
    %v8368 = vmul.f32 %v7919, %v8295
    %v8369 = vmul.f32 %v7920, %v8300
    %v8370 = vmul.f32 %v7921, %v8305
    %v8371 = vpack.c.bf16 %v8308, %v8307
    %v8372 = vpack.c.bf16 %v8310, %v8309
    %v8373 = vpack.c.bf16 %v8312, %v8311
    %v8374 = vpack.c.bf16 %v8314, %v8313
    %v8375 = vpack.c.bf16 %v8316, %v8315
    %v8376 = vpack.c.bf16 %v8318, %v8317
    %v8377 = vpack.c.bf16 %v8320, %v8319
    %v8378 = vpack.c.bf16 %v8322, %v8321
    %v8379 = vpack.c.bf16 %v8324, %v8323
    %v8380 = vpack.c.bf16 %v8326, %v8325
    %v8381 = vpack.c.bf16 %v8328, %v8327
    %v8382 = vpack.c.bf16 %v8330, %v8329
    %v8383 = vpack.c.bf16 %v8332, %v8331
    %v8384 = vpack.c.bf16 %v8334, %v8333
    %v8385 = vpack.c.bf16 %v8336, %v8335
    %v8386 = vpack.c.bf16 %v8338, %v8337
    %v8387 = vpack.c.bf16 %v8340, %v8339
    %v8388 = vpack.c.bf16 %v8342, %v8341
    %v8389 = vpack.c.bf16 %v8344, %v8343
    %v8390 = vpack.c.bf16 %v8346, %v8345
    %v8391 = vpack.c.bf16 %v8348, %v8347
    %v8392 = vpack.c.bf16 %v8350, %v8349
    %v8393 = vpack.c.bf16 %v8352, %v8351
    %v8394 = vpack.c.bf16 %v8354, %v8353
    %v8395 = vpack.c.bf16 %v8356, %v8355
    %v8396 = vpack.c.bf16 %v8358, %v8357
    %v8397 = vpack.c.bf16 %v8360, %v8359
    %v8398 = vpack.c.bf16 %v8362, %v8361
    %v8399 = vpack.c.bf16 %v8364, %v8363
    %v8400 = vpack.c.bf16 %v8366, %v8365
    %v8401 = vpack.c.bf16 %v8368, %v8367
    %v8402 = vpack.c.bf16 %v8370, %v8369
    %s8403 = scalar_lea.vmem %s2, 512
    %v8404 = vld [vmem:[%s8403] sm:$0xf]
    %v8405 = vld [vmem:[%s8403 + $0x4] sm:$0xf]
    %v8406 = vld [vmem:[%s8403 + $0x8] sm:$0xf]
    %v8407 = vld [vmem:[%s8403 + $0xc] sm:$0xf]
    %v8408 = vld [vmem:[%s8403 + $0x10] sm:$0xf]
    %v8409 = vld [vmem:[%s8403 + $0x14] sm:$0xf]
    %v8410 = vld [vmem:[%s8403 + $0x18] sm:$0xf]
    %v8411 = vld [vmem:[%s8403 + $0x1c] sm:$0xf]
    %v8412 = vld [vmem:[%s8403 + $0x20] sm:$0xf]
    %v8413 = vld [vmem:[%s8403 + $0x24] sm:$0xf]
    %v8414 = vld [vmem:[%s8403 + $0x28] sm:$0xf]
    %v8415 = vld [vmem:[%s8403 + $0x2c] sm:$0xf]
    %v8416 = vld [vmem:[%s8403 + $0x30] sm:$0xf]
    %v8417 = vld [vmem:[%s8403 + $0x34] sm:$0xf]
    %v8418 = vld [vmem:[%s8403 + $0x38] sm:$0xf]
    %v8419 = vld [vmem:[%s8403 + $0x3c] sm:$0xf]
    %v8436 = vunpack.c.l.b16 %v8404
    %v8437 = vunpack.c.l.b16 %v8405
    %v8438 = vunpack.c.l.b16 %v8406
    %v8439 = vunpack.c.l.b16 %v8407
    %v8440 = vunpack.c.l.b16 %v8408
    %v8441 = vunpack.c.l.b16 %v8409
    %v8442 = vunpack.c.l.b16 %v8410
    %v8443 = vunpack.c.l.b16 %v8411
    %v8444 = vunpack.c.l.b16 %v8412
    %v8445 = vunpack.c.l.b16 %v8413
    %v8446 = vunpack.c.l.b16 %v8414
    %v8447 = vunpack.c.l.b16 %v8415
    %v8448 = vunpack.c.l.b16 %v8416
    %v8449 = vunpack.c.l.b16 %v8417
    %v8450 = vunpack.c.l.b16 %v8418
    %v8451 = vunpack.c.l.b16 %v8419
    %v8452 = vpack.c.b16 %v8437, %v8436
    %v8453 = vpack.c.b16 %v8439, %v8438
    %v8454 = vpack.c.b16 %v8441, %v8440
    %v8455 = vpack.c.b16 %v8443, %v8442
    %v8456 = vpack.c.b16 %v8445, %v8444
    %v8457 = vpack.c.b16 %v8447, %v8446
    %v8458 = vpack.c.b16 %v8449, %v8448
    %v8459 = vpack.c.b16 %v8451, %v8450
    %8468 = vmatprep.subr.bf16.mxu0 0
    %8469 = vmatpush1.bf16.msra.mxu0 %v8459
    %8470 = vmatprep.subr.bf16.mxu0 0
    %8471 = vmatpush1.bf16.msra.mxu0 %v8458
    %8472 = vmatprep.subr.bf16.mxu0 0
    %8473 = vmatpush1.bf16.msra.mxu0 %v8457
    %8474 = vmatprep.subr.bf16.mxu0 0
    %8475 = vmatpush1.bf16.msra.mxu0 %v8456
    %8476 = vmatprep.subr.bf16.mxu0 0
    %8477 = vmatpush1.bf16.msra.mxu0 %v8455
    %8478 = vmatprep.subr.bf16.mxu0 0
    %8479 = vmatpush1.bf16.msra.mxu0 %v8454
    %8480 = vmatprep.subr.bf16.mxu0 0
    %8481 = vmatpush1.bf16.msra.mxu0 %v8453
    %8482 = vmatprep.subr.bf16.mxu0 0
    %8483 = vmatpush1.bf16.msra.mxu0 %v8452
    %8484 = vmatprep.subr.bf16.mxu0 0
    %8485 = vmatpush2.bf16.msra.mxu0 0
    %8486 = vmatprep.subr.bf16.mxu0 0
    %8487 = vmatpush2.bf16.msra.mxu0 0
    %8488 = vmatprep.subr.bf16.mxu0 0
    %8489 = vmatpush2.bf16.msra.mxu0 0
    %8490 = vmatprep.subr.bf16.mxu0 0
    %8491 = vmatpush2.bf16.msra.mxu0 0
    %8492 = vmatprep.subr.bf16.mxu0 0
    %8493 = vmatpush2.bf16.msra.mxu0 0
    %8494 = vmatprep.subr.bf16.mxu0 0
    %8495 = vmatpush2.bf16.msra.mxu0 0
    %8496 = vmatprep.subr.bf16.mxu0 0
    %8497 = vmatpush2.bf16.msra.mxu0 0
    %8498 = vmatprep.subr.bf16.mxu0 0
    %8499 = vmatpush2.bf16.msra.mxu0 0
    %8500 = vmatprep.mubr.bf16.mxu0 0
    %8501 = vmatmul.mubr.bf16.gmra.mxu0 %v8371
    %v8502 = vpop.f32.mrf.mxu0
    %v8503 = vadd.f32 0.0, %v8502
    %v8504 = vpop.f32.mrf.mxu0
    %v8505 = vpop.f32.mrf.mxu0
    %v8506 = vadd.f32 0.0, %v8505
    %v8507 = vpop.f32.mrf.mxu0
    %8508 = vmatprep.mubr.bf16.mxu0 0
    %8509 = vmatmul.mubr.bf16.gmra.mxu0 %v8372
    %v8510 = vpop.f32.mrf.mxu0
    %v8511 = vadd.f32 0.0, %v8510
    %v8512 = vpop.f32.mrf.mxu0
    %v8513 = vpop.f32.mrf.mxu0
    %v8514 = vadd.f32 0.0, %v8513
    %v8515 = vpop.f32.mrf.mxu0
    %8516 = vmatprep.mubr.bf16.mxu0 0
    %8517 = vmatmul.mubr.bf16.gmra.mxu0 %v8373
    %v8518 = vpop.f32.mrf.mxu0
    %v8519 = vadd.f32 0.0, %v8518
    %v8520 = vpop.f32.mrf.mxu0
    %v8521 = vpop.f32.mrf.mxu0
    %v8522 = vadd.f32 0.0, %v8521
    %v8523 = vpop.f32.mrf.mxu0
    %8524 = vmatprep.mubr.bf16.mxu0 0
    %8525 = vmatmul.mubr.bf16.gmra.mxu0 %v8374
    %v8526 = vpop.f32.mrf.mxu0
    %v8527 = vadd.f32 0.0, %v8526
    %v8528 = vpop.f32.mrf.mxu0
    %v8529 = vpop.f32.mrf.mxu0
    %v8530 = vadd.f32 0.0, %v8529
    %v8531 = vpop.f32.mrf.mxu0
    %8532 = vmatprep.mubr.bf16.mxu0 0
    %8533 = vmatmul.mubr.bf16.gmra.mxu0 %v8375
    %v8534 = vpop.f32.mrf.mxu0
    %v8535 = vadd.f32 0.0, %v8534
    %v8536 = vpop.f32.mrf.mxu0
    %v8537 = vpop.f32.mrf.mxu0
    %v8538 = vadd.f32 0.0, %v8537
    %v8539 = vpop.f32.mrf.mxu0
    %8540 = vmatprep.mubr.bf16.mxu0 0
    %8541 = vmatmul.mubr.bf16.gmra.mxu0 %v8376
    %v8542 = vpop.f32.mrf.mxu0
    %v8543 = vadd.f32 0.0, %v8542
    %v8544 = vpop.f32.mrf.mxu0
    %v8545 = vpop.f32.mrf.mxu0
    %v8546 = vadd.f32 0.0, %v8545
    %v8547 = vpop.f32.mrf.mxu0
    %8548 = vmatprep.mubr.bf16.mxu0 0
    %8549 = vmatmul.mubr.bf16.gmra.mxu0 %v8377
    %v8550 = vpop.f32.mrf.mxu0
    %v8551 = vadd.f32 0.0, %v8550
    %v8552 = vpop.f32.mrf.mxu0
    %v8553 = vpop.f32.mrf.mxu0
    %v8554 = vadd.f32 0.0, %v8553
    %v8555 = vpop.f32.mrf.mxu0
    %8556 = vmatprep.mubr.bf16.mxu0 0
    %8557 = vmatmul.mubr.bf16.gmra.mxu0 %v8378
    %v8558 = vpop.f32.mrf.mxu0
    %v8559 = vadd.f32 0.0, %v8558
    %v8560 = vpop.f32.mrf.mxu0
    %v8561 = vpop.f32.mrf.mxu0
    %v8562 = vadd.f32 0.0, %v8561
    %v8563 = vpop.f32.mrf.mxu0
    %8564 = vmatprep.mubr.bf16.mxu0 0
    %8565 = vmatmul.mubr.bf16.gmra.mxu0 %v8379
    %v8566 = vpop.f32.mrf.mxu0
    %v8567 = vadd.f32 0.0, %v8566
    %v8568 = vpop.f32.mrf.mxu0
    %v8569 = vpop.f32.mrf.mxu0
    %v8570 = vadd.f32 0.0, %v8569
    %v8571 = vpop.f32.mrf.mxu0
    %8572 = vmatprep.mubr.bf16.mxu0 0
    %8573 = vmatmul.mubr.bf16.gmra.mxu0 %v8380
    %v8574 = vpop.f32.mrf.mxu0
    %v8575 = vadd.f32 0.0, %v8574
    %v8576 = vpop.f32.mrf.mxu0
    %v8577 = vpop.f32.mrf.mxu0
    %v8578 = vadd.f32 0.0, %v8577
    %v8579 = vpop.f32.mrf.mxu0
    %8580 = vmatprep.mubr.bf16.mxu0 0
    %8581 = vmatmul.mubr.bf16.gmra.mxu0 %v8381
    %v8582 = vpop.f32.mrf.mxu0
    %v8583 = vadd.f32 0.0, %v8582
    %v8584 = vpop.f32.mrf.mxu0
    %v8585 = vpop.f32.mrf.mxu0
    %v8586 = vadd.f32 0.0, %v8585
    %v8587 = vpop.f32.mrf.mxu0
    %8588 = vmatprep.mubr.bf16.mxu0 0
    %8589 = vmatmul.mubr.bf16.gmra.mxu0 %v8382
    %v8590 = vpop.f32.mrf.mxu0
    %v8591 = vadd.f32 0.0, %v8590
    %v8592 = vpop.f32.mrf.mxu0
    %v8593 = vpop.f32.mrf.mxu0
    %v8594 = vadd.f32 0.0, %v8593
    %v8595 = vpop.f32.mrf.mxu0
    %8596 = vmatprep.mubr.bf16.mxu0 0
    %8597 = vmatmul.mubr.bf16.gmra.mxu0 %v8383
    %v8598 = vpop.f32.mrf.mxu0
    %v8599 = vadd.f32 0.0, %v8598
    %v8600 = vpop.f32.mrf.mxu0
    %v8601 = vpop.f32.mrf.mxu0
    %v8602 = vadd.f32 0.0, %v8601
    %v8603 = vpop.f32.mrf.mxu0
    %8604 = vmatprep.mubr.bf16.mxu0 0
    %8605 = vmatmul.mubr.bf16.gmra.mxu0 %v8384
    %v8606 = vpop.f32.mrf.mxu0
    %v8607 = vadd.f32 0.0, %v8606
    %v8608 = vpop.f32.mrf.mxu0
    %v8609 = vpop.f32.mrf.mxu0
    %v8610 = vadd.f32 0.0, %v8609
    %v8611 = vpop.f32.mrf.mxu0
    %8612 = vmatprep.mubr.bf16.mxu0 0
    %8613 = vmatmul.mubr.bf16.gmra.mxu0 %v8385
    %v8614 = vpop.f32.mrf.mxu0
    %v8615 = vadd.f32 0.0, %v8614
    %v8616 = vpop.f32.mrf.mxu0
    %v8617 = vpop.f32.mrf.mxu0
    %v8618 = vadd.f32 0.0, %v8617
    %v8619 = vpop.f32.mrf.mxu0
    %8620 = vmatprep.mubr.bf16.mxu0 0
    %8621 = vmatmul.mubr.bf16.gmra.mxu0 %v8386
    %v8622 = vpop.f32.mrf.mxu0
    %v8623 = vadd.f32 0.0, %v8622
    %v8624 = vpop.f32.mrf.mxu0
    %v8625 = vpop.f32.mrf.mxu0
    %v8626 = vadd.f32 0.0, %v8625
    %v8627 = vpop.f32.mrf.mxu0
    %8628 = vmatprep.mubr.bf16.mxu0 0
    %8629 = vmatmul.mubr.bf16.gmra.mxu0 %v8387
    %v8630 = vpop.f32.mrf.mxu0
    %v8631 = vadd.f32 0.0, %v8630
    %v8632 = vpop.f32.mrf.mxu0
    %v8633 = vpop.f32.mrf.mxu0
    %v8634 = vadd.f32 0.0, %v8633
    %v8635 = vpop.f32.mrf.mxu0
    %8636 = vmatprep.mubr.bf16.mxu0 0
    %8637 = vmatmul.mubr.bf16.gmra.mxu0 %v8388
    %v8638 = vpop.f32.mrf.mxu0
    %v8639 = vadd.f32 0.0, %v8638
    %v8640 = vpop.f32.mrf.mxu0
    %v8641 = vpop.f32.mrf.mxu0
    %v8642 = vadd.f32 0.0, %v8641
    %v8643 = vpop.f32.mrf.mxu0
    %8644 = vmatprep.mubr.bf16.mxu0 0
    %8645 = vmatmul.mubr.bf16.gmra.mxu0 %v8389
    %v8646 = vpop.f32.mrf.mxu0
    %v8647 = vadd.f32 0.0, %v8646
    %v8648 = vpop.f32.mrf.mxu0
    %v8649 = vpop.f32.mrf.mxu0
    %v8650 = vadd.f32 0.0, %v8649
    %v8651 = vpop.f32.mrf.mxu0
    %8652 = vmatprep.mubr.bf16.mxu0 0
    %8653 = vmatmul.mubr.bf16.gmra.mxu0 %v8390
    %v8654 = vpop.f32.mrf.mxu0
    %v8655 = vadd.f32 0.0, %v8654
    %v8656 = vpop.f32.mrf.mxu0
    %v8657 = vpop.f32.mrf.mxu0
    %v8658 = vadd.f32 0.0, %v8657
    %v8659 = vpop.f32.mrf.mxu0
    %8660 = vmatprep.mubr.bf16.mxu0 0
    %8661 = vmatmul.mubr.bf16.gmra.mxu0 %v8391
    %v8662 = vpop.f32.mrf.mxu0
    %v8663 = vadd.f32 0.0, %v8662
    %v8664 = vpop.f32.mrf.mxu0
    %v8665 = vpop.f32.mrf.mxu0
    %v8666 = vadd.f32 0.0, %v8665
    %v8667 = vpop.f32.mrf.mxu0
    %8668 = vmatprep.mubr.bf16.mxu0 0
    %8669 = vmatmul.mubr.bf16.gmra.mxu0 %v8392
    %v8670 = vpop.f32.mrf.mxu0
    %v8671 = vadd.f32 0.0, %v8670
    %v8672 = vpop.f32.mrf.mxu0
    %v8673 = vpop.f32.mrf.mxu0
    %v8674 = vadd.f32 0.0, %v8673
    %v8675 = vpop.f32.mrf.mxu0
    %8676 = vmatprep.mubr.bf16.mxu0 0
    %8677 = vmatmul.mubr.bf16.gmra.mxu0 %v8393
    %v8678 = vpop.f32.mrf.mxu0
    %v8679 = vadd.f32 0.0, %v8678
    %v8680 = vpop.f32.mrf.mxu0
    %v8681 = vpop.f32.mrf.mxu0
    %v8682 = vadd.f32 0.0, %v8681
    %v8683 = vpop.f32.mrf.mxu0
    %8684 = vmatprep.mubr.bf16.mxu0 0
    %8685 = vmatmul.mubr.bf16.gmra.mxu0 %v8394
    %v8686 = vpop.f32.mrf.mxu0
    %v8687 = vadd.f32 0.0, %v8686
    %v8688 = vpop.f32.mrf.mxu0
    %v8689 = vpop.f32.mrf.mxu0
    %v8690 = vadd.f32 0.0, %v8689
    %v8691 = vpop.f32.mrf.mxu0
    %8692 = vmatprep.mubr.bf16.mxu0 0
    %8693 = vmatmul.mubr.bf16.gmra.mxu0 %v8395
    %v8694 = vpop.f32.mrf.mxu0
    %v8695 = vadd.f32 0.0, %v8694
    %v8696 = vpop.f32.mrf.mxu0
    %v8697 = vpop.f32.mrf.mxu0
    %v8698 = vadd.f32 0.0, %v8697
    %v8699 = vpop.f32.mrf.mxu0
    %8700 = vmatprep.mubr.bf16.mxu0 0
    %8701 = vmatmul.mubr.bf16.gmra.mxu0 %v8396
    %v8702 = vpop.f32.mrf.mxu0
    %v8703 = vadd.f32 0.0, %v8702
    %v8704 = vpop.f32.mrf.mxu0
    %v8705 = vpop.f32.mrf.mxu0
    %v8706 = vadd.f32 0.0, %v8705
    %v8707 = vpop.f32.mrf.mxu0
    %8708 = vmatprep.mubr.bf16.mxu0 0
    %8709 = vmatmul.mubr.bf16.gmra.mxu0 %v8397
    %v8710 = vpop.f32.mrf.mxu0
    %v8711 = vadd.f32 0.0, %v8710
    %v8712 = vpop.f32.mrf.mxu0
    %v8713 = vpop.f32.mrf.mxu0
    %v8714 = vadd.f32 0.0, %v8713
    %v8715 = vpop.f32.mrf.mxu0
    %8716 = vmatprep.mubr.bf16.mxu0 0
    %8717 = vmatmul.mubr.bf16.gmra.mxu0 %v8398
    %v8718 = vpop.f32.mrf.mxu0
    %v8719 = vadd.f32 0.0, %v8718
    %v8720 = vpop.f32.mrf.mxu0
    %v8721 = vpop.f32.mrf.mxu0
    %v8722 = vadd.f32 0.0, %v8721
    %v8723 = vpop.f32.mrf.mxu0
    %8724 = vmatprep.mubr.bf16.mxu0 0
    %8725 = vmatmul.mubr.bf16.gmra.mxu0 %v8399
    %v8726 = vpop.f32.mrf.mxu0
    %v8727 = vadd.f32 0.0, %v8726
    %v8728 = vpop.f32.mrf.mxu0
    %v8729 = vpop.f32.mrf.mxu0
    %v8730 = vadd.f32 0.0, %v8729
    %v8731 = vpop.f32.mrf.mxu0
    %8732 = vmatprep.mubr.bf16.mxu0 0
    %8733 = vmatmul.mubr.bf16.gmra.mxu0 %v8400
    %v8734 = vpop.f32.mrf.mxu0
    %v8735 = vadd.f32 0.0, %v8734
    %v8736 = vpop.f32.mrf.mxu0
    %v8737 = vpop.f32.mrf.mxu0
    %v8738 = vadd.f32 0.0, %v8737
    %v8739 = vpop.f32.mrf.mxu0
    %8740 = vmatprep.mubr.bf16.mxu0 0
    %8741 = vmatmul.mubr.bf16.gmra.mxu0 %v8401
    %v8742 = vpop.f32.mrf.mxu0
    %v8743 = vadd.f32 0.0, %v8742
    %v8744 = vpop.f32.mrf.mxu0
    %v8745 = vpop.f32.mrf.mxu0
    %v8746 = vadd.f32 0.0, %v8745
    %v8747 = vpop.f32.mrf.mxu0
    %8748 = vmatprep.mubr.bf16.mxu0 0
    %8749 = vmatmul.mubr.bf16.gmra.mxu0 %v8402
    %v8750 = vpop.f32.mrf.mxu0
    %v8751 = vadd.f32 0.0, %v8750
    %v8752 = vpop.f32.mrf.mxu0
    %v8753 = vpop.f32.mrf.mxu0
    %v8754 = vadd.f32 0.0, %v8753
    %v8755 = vpop.f32.mrf.mxu0
    %8756 = vdwg.mxu0
    %v8757 = vadd.f32 %v7794, %v8503
    %v8758 = vadd.f32 %v7795, %v8506
    %v8759 = vadd.f32 %v7796, %v8511
    %v8760 = vadd.f32 %v7797, %v8514
    %v8761 = vadd.f32 %v7798, %v8519
    %v8762 = vadd.f32 %v7799, %v8522
    %v8763 = vadd.f32 %v7800, %v8527
    %v8764 = vadd.f32 %v7801, %v8530
    %v8765 = vadd.f32 %v7802, %v8535
    %v8766 = vadd.f32 %v7803, %v8538
    %v8767 = vadd.f32 %v7804, %v8543
    %v8768 = vadd.f32 %v7805, %v8546
    %v8769 = vadd.f32 %v7806, %v8551
    %v8770 = vadd.f32 %v7807, %v8554
    %v8771 = vadd.f32 %v7808, %v8559
    %v8772 = vadd.f32 %v7809, %v8562
    %v8773 = vadd.f32 %v7810, %v8567
    %v8774 = vadd.f32 %v7811, %v8570
    %v8775 = vadd.f32 %v7812, %v8575
    %v8776 = vadd.f32 %v7813, %v8578
    %v8777 = vadd.f32 %v7814, %v8583
    %v8778 = vadd.f32 %v7815, %v8586
    %v8779 = vadd.f32 %v7816, %v8591
    %v8780 = vadd.f32 %v7817, %v8594
    %v8781 = vadd.f32 %v7818, %v8599
    %v8782 = vadd.f32 %v7819, %v8602
    %v8783 = vadd.f32 %v7820, %v8607
    %v8784 = vadd.f32 %v7821, %v8610
    %v8785 = vadd.f32 %v7822, %v8615
    %v8786 = vadd.f32 %v7823, %v8618
    %v8787 = vadd.f32 %v7824, %v8623
    %v8788 = vadd.f32 %v7825, %v8626
    %v8789 = vadd.f32 %v7826, %v8631
    %v8790 = vadd.f32 %v7827, %v8634
    %v8791 = vadd.f32 %v7828, %v8639
    %v8792 = vadd.f32 %v7829, %v8642
    %v8793 = vadd.f32 %v7830, %v8647
    %v8794 = vadd.f32 %v7831, %v8650
    %v8795 = vadd.f32 %v7832, %v8655
    %v8796 = vadd.f32 %v7833, %v8658
    %v8797 = vadd.f32 %v7834, %v8663
    %v8798 = vadd.f32 %v7835, %v8666
    %v8799 = vadd.f32 %v7836, %v8671
    %v8800 = vadd.f32 %v7837, %v8674
    %v8801 = vadd.f32 %v7838, %v8679
    %v8802 = vadd.f32 %v7839, %v8682
    %v8803 = vadd.f32 %v7840, %v8687
    %v8804 = vadd.f32 %v7841, %v8690
    %v8805 = vadd.f32 %v7842, %v8695
    %v8806 = vadd.f32 %v7843, %v8698
    %v8807 = vadd.f32 %v7844, %v8703
    %v8808 = vadd.f32 %v7845, %v8706
    %v8809 = vadd.f32 %v7846, %v8711
    %v8810 = vadd.f32 %v7847, %v8714
    %v8811 = vadd.f32 %v7848, %v8719
    %v8812 = vadd.f32 %v7849, %v8722
    %v8813 = vadd.f32 %v7850, %v8727
    %v8814 = vadd.f32 %v7851, %v8730
    %v8815 = vadd.f32 %v7852, %v8735
    %v8816 = vadd.f32 %v7853, %v8738
    %v8817 = vadd.f32 %v7854, %v8743
    %v8818 = vadd.f32 %v7855, %v8746
    %v8819 = vadd.f32 %v7856, %v8751
    %v8820 = vadd.f32 %v7857, %v8754
    %v8821 = vld [vmem:[%s3] sm:$0x1]
    %v8822 = vld [vmem:[%s4] sm:$0x1]
    %v8823 = vadd.f32 %v8757, %v8758
    %v8824 = vadd.f32 %v8823, %v8759
    %v8825 = vadd.f32 %v8824, %v8760
    %v8826 = vadd.f32 %v8825, %v8761
    %v8827 = vadd.f32 %v8826, %v8762
    %v8828 = vadd.f32 %v8827, %v8763
    %v8829 = vadd.f32 %v8828, %v8764
    %v8830 = vadd.f32 %v8829, %v8765
    %v8831 = vadd.f32 %v8830, %v8766
    %v8832 = vadd.f32 %v8831, %v8767
    %v8833 = vadd.f32 %v8832, %v8768
    %v8834 = vadd.f32 %v8833, %v8769
    %v8835 = vadd.f32 %v8834, %v8770
    %v8836 = vadd.f32 %v8835, %v8771
    %v8837 = vadd.f32 %v8836, %v8772
    %v8838 = vadd.f32 %v8837, %v8773
    %v8839 = vadd.f32 %v8838, %v8774
    %v8840 = vadd.f32 %v8839, %v8775
    %v8841 = vadd.f32 %v8840, %v8776
    %v8842 = vadd.f32 %v8841, %v8777
    %v8843 = vadd.f32 %v8842, %v8778
    %v8844 = vadd.f32 %v8843, %v8779
    %v8845 = vadd.f32 %v8844, %v8780
    %v8846 = vadd.f32 %v8845, %v8781
    %v8847 = vadd.f32 %v8846, %v8782
    %v8848 = vadd.f32 %v8847, %v8783
    %v8849 = vadd.f32 %v8848, %v8784
    %v8850 = vadd.f32 %v8849, %v8785
    %v8851 = vadd.f32 %v8850, %v8786
    %v8852 = vadd.f32 %v8851, %v8787
    %v8853 = vadd.f32 %v8852, %v8788
    %v8854 = vadd.f32 %v8853, %v8789
    %v8855 = vadd.f32 %v8854, %v8790
    %v8856 = vadd.f32 %v8855, %v8791
    %v8857 = vadd.f32 %v8856, %v8792
    %v8858 = vadd.f32 %v8857, %v8793
    %v8859 = vadd.f32 %v8858, %v8794
    %v8860 = vadd.f32 %v8859, %v8795
    %v8861 = vadd.f32 %v8860, %v8796
    %v8862 = vadd.f32 %v8861, %v8797
    %v8863 = vadd.f32 %v8862, %v8798
    %v8864 = vadd.f32 %v8863, %v8799
    %v8865 = vadd.f32 %v8864, %v8800
    %v8866 = vadd.f32 %v8865, %v8801
    %v8867 = vadd.f32 %v8866, %v8802
    %v8868 = vadd.f32 %v8867, %v8803
    %v8869 = vadd.f32 %v8868, %v8804
    %v8870 = vadd.f32 %v8869, %v8805
    %v8871 = vadd.f32 %v8870, %v8806
    %v8872 = vadd.f32 %v8871, %v8807
    %v8873 = vadd.f32 %v8872, %v8808
    %v8874 = vadd.f32 %v8873, %v8809
    %v8875 = vadd.f32 %v8874, %v8810
    %v8876 = vadd.f32 %v8875, %v8811
    %v8877 = vadd.f32 %v8876, %v8812
    %v8878 = vadd.f32 %v8877, %v8813
    %v8879 = vadd.f32 %v8878, %v8814
    %v8880 = vadd.f32 %v8879, %v8815
    %v8881 = vadd.f32 %v8880, %v8816
    %v8882 = vadd.f32 %v8881, %v8817
    %v8883 = vadd.f32 %v8882, %v8818
    %v8884 = vadd.f32 %v8883, %v8819
    %v8885 = vadd.f32 %v8884, %v8820
    %v8886 = vrot.slane %v8885, 4
    %v8887 = vadd.f32 %v8885, %v8886
    %v8888 = vrot.slane %v8887, 2
    %v8889 = vadd.f32 %v8887, %v8888
    %v8890 = vrot.slane %v8889, 1
    %v8891 = vadd.f32 %v8889, %v8890
    %v8892 = vmul.f32 %v8891, 0.001953125
    %v8893 = vmul.f32 %v8757, %v8757
    %v8894 = vmul.f32 %v8758, %v8758
    %v8895 = vmul.f32 %v8759, %v8759
    %v8896 = vmul.f32 %v8760, %v8760
    %v8897 = vmul.f32 %v8761, %v8761
    %v8898 = vmul.f32 %v8762, %v8762
    %v8899 = vmul.f32 %v8763, %v8763
    %v8900 = vmul.f32 %v8764, %v8764
    %v8901 = vmul.f32 %v8765, %v8765
    %v8902 = vmul.f32 %v8766, %v8766
    %v8903 = vmul.f32 %v8767, %v8767
    %v8904 = vmul.f32 %v8768, %v8768
    %v8905 = vmul.f32 %v8769, %v8769
    %v8906 = vmul.f32 %v8770, %v8770
    %v8907 = vmul.f32 %v8771, %v8771
    %v8908 = vmul.f32 %v8772, %v8772
    %v8909 = vmul.f32 %v8773, %v8773
    %v8910 = vmul.f32 %v8774, %v8774
    %v8911 = vmul.f32 %v8775, %v8775
    %v8912 = vmul.f32 %v8776, %v8776
    %v8913 = vmul.f32 %v8777, %v8777
    %v8914 = vmul.f32 %v8778, %v8778
    %v8915 = vmul.f32 %v8779, %v8779
    %v8916 = vmul.f32 %v8780, %v8780
    %v8917 = vmul.f32 %v8781, %v8781
    %v8918 = vmul.f32 %v8782, %v8782
    %v8919 = vmul.f32 %v8783, %v8783
    %v8920 = vmul.f32 %v8784, %v8784
    %v8921 = vmul.f32 %v8785, %v8785
    %v8922 = vmul.f32 %v8786, %v8786
    %v8923 = vmul.f32 %v8787, %v8787
    %v8924 = vmul.f32 %v8788, %v8788
    %v8925 = vmul.f32 %v8789, %v8789
    %v8926 = vmul.f32 %v8790, %v8790
    %v8927 = vmul.f32 %v8791, %v8791
    %v8928 = vmul.f32 %v8792, %v8792
    %v8929 = vmul.f32 %v8793, %v8793
    %v8930 = vmul.f32 %v8794, %v8794
    %v8931 = vmul.f32 %v8795, %v8795
    %v8932 = vmul.f32 %v8796, %v8796
    %v8933 = vmul.f32 %v8797, %v8797
    %v8934 = vmul.f32 %v8798, %v8798
    %v8935 = vmul.f32 %v8799, %v8799
    %v8936 = vmul.f32 %v8800, %v8800
    %v8937 = vmul.f32 %v8801, %v8801
    %v8938 = vmul.f32 %v8802, %v8802
    %v8939 = vmul.f32 %v8803, %v8803
    %v8940 = vmul.f32 %v8804, %v8804
    %v8941 = vmul.f32 %v8805, %v8805
    %v8942 = vmul.f32 %v8806, %v8806
    %v8943 = vmul.f32 %v8807, %v8807
    %v8944 = vmul.f32 %v8808, %v8808
    %v8945 = vmul.f32 %v8809, %v8809
    %v8946 = vmul.f32 %v8810, %v8810
    %v8947 = vmul.f32 %v8811, %v8811
    %v8948 = vmul.f32 %v8812, %v8812
    %v8949 = vmul.f32 %v8813, %v8813
    %v8950 = vmul.f32 %v8814, %v8814
    %v8951 = vmul.f32 %v8815, %v8815
    %v8952 = vmul.f32 %v8816, %v8816
    %v8953 = vmul.f32 %v8817, %v8817
    %v8954 = vmul.f32 %v8818, %v8818
    %v8955 = vmul.f32 %v8819, %v8819
    %v8956 = vmul.f32 %v8820, %v8820
    %v8957 = vadd.f32 %v8893, %v8894
    %v8958 = vadd.f32 %v8957, %v8895
    %v8959 = vadd.f32 %v8958, %v8896
    %v8960 = vadd.f32 %v8959, %v8897
    %v8961 = vadd.f32 %v8960, %v8898
    %v8962 = vadd.f32 %v8961, %v8899
    %v8963 = vadd.f32 %v8962, %v8900
    %v8964 = vadd.f32 %v8963, %v8901
    %v8965 = vadd.f32 %v8964, %v8902
    %v8966 = vadd.f32 %v8965, %v8903
    %v8967 = vadd.f32 %v8966, %v8904
    %v8968 = vadd.f32 %v8967, %v8905
    %v8969 = vadd.f32 %v8968, %v8906
    %v8970 = vadd.f32 %v8969, %v8907
    %v8971 = vadd.f32 %v8970, %v8908
    %v8972 = vadd.f32 %v8971, %v8909
    %v8973 = vadd.f32 %v8972, %v8910
    %v8974 = vadd.f32 %v8973, %v8911
    %v8975 = vadd.f32 %v8974, %v8912
    %v8976 = vadd.f32 %v8975, %v8913
    %v8977 = vadd.f32 %v8976, %v8914
    %v8978 = vadd.f32 %v8977, %v8915
    %v8979 = vadd.f32 %v8978, %v8916
    %v8980 = vadd.f32 %v8979, %v8917
    %v8981 = vadd.f32 %v8980, %v8918
    %v8982 = vadd.f32 %v8981, %v8919
    %v8983 = vadd.f32 %v8982, %v8920
    %v8984 = vadd.f32 %v8983, %v8921
    %v8985 = vadd.f32 %v8984, %v8922
    %v8986 = vadd.f32 %v8985, %v8923
    %v8987 = vadd.f32 %v8986, %v8924
    %v8988 = vadd.f32 %v8987, %v8925
    %v8989 = vadd.f32 %v8988, %v8926
    %v8990 = vadd.f32 %v8989, %v8927
    %v8991 = vadd.f32 %v8990, %v8928
    %v8992 = vadd.f32 %v8991, %v8929
    %v8993 = vadd.f32 %v8992, %v8930
    %v8994 = vadd.f32 %v8993, %v8931
    %v8995 = vadd.f32 %v8994, %v8932
    %v8996 = vadd.f32 %v8995, %v8933
    %v8997 = vadd.f32 %v8996, %v8934
    %v8998 = vadd.f32 %v8997, %v8935
    %v8999 = vadd.f32 %v8998, %v8936
    %v9000 = vadd.f32 %v8999, %v8937
    %v9001 = vadd.f32 %v9000, %v8938
    %v9002 = vadd.f32 %v9001, %v8939
    %v9003 = vadd.f32 %v9002, %v8940
    %v9004 = vadd.f32 %v9003, %v8941
    %v9005 = vadd.f32 %v9004, %v8942
    %v9006 = vadd.f32 %v9005, %v8943
    %v9007 = vadd.f32 %v9006, %v8944
    %v9008 = vadd.f32 %v9007, %v8945
    %v9009 = vadd.f32 %v9008, %v8946
    %v9010 = vadd.f32 %v9009, %v8947
    %v9011 = vadd.f32 %v9010, %v8948
    %v9012 = vadd.f32 %v9011, %v8949
    %v9013 = vadd.f32 %v9012, %v8950
    %v9014 = vadd.f32 %v9013, %v8951
    %v9015 = vadd.f32 %v9014, %v8952
    %v9016 = vadd.f32 %v9015, %v8953
    %v9017 = vadd.f32 %v9016, %v8954
    %v9018 = vadd.f32 %v9017, %v8955
    %v9019 = vadd.f32 %v9018, %v8956
    %v9020 = vrot.slane %v9019, 4
    %v9021 = vadd.f32 %v9019, %v9020
    %v9022 = vrot.slane %v9021, 2
    %v9023 = vadd.f32 %v9021, %v9022
    %v9024 = vrot.slane %v9023, 1
    %v9025 = vadd.f32 %v9023, %v9024
    %v9026 = vmul.f32 %v9025, 0.001953125
    %v9027 = vmul.f32 %v8892, %v8892
    %v9028 = vsub.f32 %v9026, %v9027
    %v9029 = vmax.f32 %v9028, 0.0
    %v9030 = vsub.f32 %v8757, %v8892
    %v9031 = vsub.f32 %v8758, %v8892
    %v9032 = vsub.f32 %v8759, %v8892
    %v9033 = vsub.f32 %v8760, %v8892
    %v9034 = vsub.f32 %v8761, %v8892
    %v9035 = vsub.f32 %v8762, %v8892
    %v9036 = vsub.f32 %v8763, %v8892
    %v9037 = vsub.f32 %v8764, %v8892
    %v9038 = vsub.f32 %v8765, %v8892
    %v9039 = vsub.f32 %v8766, %v8892
    %v9040 = vsub.f32 %v8767, %v8892
    %v9041 = vsub.f32 %v8768, %v8892
    %v9042 = vsub.f32 %v8769, %v8892
    %v9043 = vsub.f32 %v8770, %v8892
    %v9044 = vsub.f32 %v8771, %v8892
    %v9045 = vsub.f32 %v8772, %v8892
    %v9046 = vsub.f32 %v8773, %v8892
    %v9047 = vsub.f32 %v8774, %v8892
    %v9048 = vsub.f32 %v8775, %v8892
    %v9049 = vsub.f32 %v8776, %v8892
    %v9050 = vsub.f32 %v8777, %v8892
    %v9051 = vsub.f32 %v8778, %v8892
    %v9052 = vsub.f32 %v8779, %v8892
    %v9053 = vsub.f32 %v8780, %v8892
    %v9054 = vsub.f32 %v8781, %v8892
    %v9055 = vsub.f32 %v8782, %v8892
    %v9056 = vsub.f32 %v8783, %v8892
    %v9057 = vsub.f32 %v8784, %v8892
    %v9058 = vsub.f32 %v8785, %v8892
    %v9059 = vsub.f32 %v8786, %v8892
    %v9060 = vsub.f32 %v8787, %v8892
    %v9061 = vsub.f32 %v8788, %v8892
    %v9062 = vsub.f32 %v8789, %v8892
    %v9063 = vsub.f32 %v8790, %v8892
    %v9064 = vsub.f32 %v8791, %v8892
    %v9065 = vsub.f32 %v8792, %v8892
    %v9066 = vsub.f32 %v8793, %v8892
    %v9067 = vsub.f32 %v8794, %v8892
    %v9068 = vsub.f32 %v8795, %v8892
    %v9069 = vsub.f32 %v8796, %v8892
    %v9070 = vsub.f32 %v8797, %v8892
    %v9071 = vsub.f32 %v8798, %v8892
    %v9072 = vsub.f32 %v8799, %v8892
    %v9073 = vsub.f32 %v8800, %v8892
    %v9074 = vsub.f32 %v8801, %v8892
    %v9075 = vsub.f32 %v8802, %v8892
    %v9076 = vsub.f32 %v8803, %v8892
    %v9077 = vsub.f32 %v8804, %v8892
    %v9078 = vsub.f32 %v8805, %v8892
    %v9079 = vsub.f32 %v8806, %v8892
    %v9080 = vsub.f32 %v8807, %v8892
    %v9081 = vsub.f32 %v8808, %v8892
    %v9082 = vsub.f32 %v8809, %v8892
    %v9083 = vsub.f32 %v8810, %v8892
    %v9084 = vsub.f32 %v8811, %v8892
    %v9085 = vsub.f32 %v8812, %v8892
    %v9086 = vsub.f32 %v8813, %v8892
    %v9087 = vsub.f32 %v8814, %v8892
    %v9088 = vsub.f32 %v8815, %v8892
    %v9089 = vsub.f32 %v8816, %v8892
    %v9090 = vsub.f32 %v8817, %v8892
    %v9091 = vsub.f32 %v8818, %v8892
    %v9092 = vsub.f32 %v8819, %v8892
    %v9093 = vsub.f32 %v8820, %v8892
    %v9094 = vadd.f32 %v9029, 1e-05
    %v9095 = vrsqrt.pop %v9094
    %v9096 = vmul.f32 %v9030, %v9095
    %v9097 = vmul.f32 %v9031, %v9095
    %v9098 = vmul.f32 %v9032, %v9095
    %v9099 = vmul.f32 %v9033, %v9095
    %v9100 = vmul.f32 %v9034, %v9095
    %v9101 = vmul.f32 %v9035, %v9095
    %v9102 = vmul.f32 %v9036, %v9095
    %v9103 = vmul.f32 %v9037, %v9095
    %v9104 = vmul.f32 %v9038, %v9095
    %v9105 = vmul.f32 %v9039, %v9095
    %v9106 = vmul.f32 %v9040, %v9095
    %v9107 = vmul.f32 %v9041, %v9095
    %v9108 = vmul.f32 %v9042, %v9095
    %v9109 = vmul.f32 %v9043, %v9095
    %v9110 = vmul.f32 %v9044, %v9095
    %v9111 = vmul.f32 %v9045, %v9095
    %v9112 = vmul.f32 %v9046, %v9095
    %v9113 = vmul.f32 %v9047, %v9095
    %v9114 = vmul.f32 %v9048, %v9095
    %v9115 = vmul.f32 %v9049, %v9095
    %v9116 = vmul.f32 %v9050, %v9095
    %v9117 = vmul.f32 %v9051, %v9095
    %v9118 = vmul.f32 %v9052, %v9095
    %v9119 = vmul.f32 %v9053, %v9095
    %v9120 = vmul.f32 %v9054, %v9095
    %v9121 = vmul.f32 %v9055, %v9095
    %v9122 = vmul.f32 %v9056, %v9095
    %v9123 = vmul.f32 %v9057, %v9095
    %v9124 = vmul.f32 %v9058, %v9095
    %v9125 = vmul.f32 %v9059, %v9095
    %v9126 = vmul.f32 %v9060, %v9095
    %v9127 = vmul.f32 %v9061, %v9095
    %v9128 = vmul.f32 %v9062, %v9095
    %v9129 = vmul.f32 %v9063, %v9095
    %v9130 = vmul.f32 %v9064, %v9095
    %v9131 = vmul.f32 %v9065, %v9095
    %v9132 = vmul.f32 %v9066, %v9095
    %v9133 = vmul.f32 %v9067, %v9095
    %v9134 = vmul.f32 %v9068, %v9095
    %v9135 = vmul.f32 %v9069, %v9095
    %v9136 = vmul.f32 %v9070, %v9095
    %v9137 = vmul.f32 %v9071, %v9095
    %v9138 = vmul.f32 %v9072, %v9095
    %v9139 = vmul.f32 %v9073, %v9095
    %v9140 = vmul.f32 %v9074, %v9095
    %v9141 = vmul.f32 %v9075, %v9095
    %v9142 = vmul.f32 %v9076, %v9095
    %v9143 = vmul.f32 %v9077, %v9095
    %v9144 = vmul.f32 %v9078, %v9095
    %v9145 = vmul.f32 %v9079, %v9095
    %v9146 = vmul.f32 %v9080, %v9095
    %v9147 = vmul.f32 %v9081, %v9095
    %v9148 = vmul.f32 %v9082, %v9095
    %v9149 = vmul.f32 %v9083, %v9095
    %v9150 = vmul.f32 %v9084, %v9095
    %v9151 = vmul.f32 %v9085, %v9095
    %v9152 = vmul.f32 %v9086, %v9095
    %v9153 = vmul.f32 %v9087, %v9095
    %v9154 = vmul.f32 %v9088, %v9095
    %v9155 = vmul.f32 %v9089, %v9095
    %v9156 = vmul.f32 %v9090, %v9095
    %v9157 = vmul.f32 %v9091, %v9095
    %v9158 = vmul.f32 %v9092, %v9095
    %v9159 = vmul.f32 %v9093, %v9095
    %v9161 = vlaneseq
    %v9162 = vshrl.u32 %v9161, 7
    %v9163 = vsub.s32 0, %v9162
    %v9164 = vrot.slane %v8821, %v9163
    %v9166 = vmul.f32 %v9096, %v9164
    %v9167 = vmul.f32 %v9097, %v9164
    %v9168 = vmul.f32 %v9098, %v9164
    %v9169 = vmul.f32 %v9099, %v9164
    %v9170 = vmul.f32 %v9100, %v9164
    %v9171 = vmul.f32 %v9101, %v9164
    %v9172 = vmul.f32 %v9102, %v9164
    %v9173 = vmul.f32 %v9103, %v9164
    %v9174 = vmul.f32 %v9104, %v9164
    %v9175 = vmul.f32 %v9105, %v9164
    %v9176 = vmul.f32 %v9106, %v9164
    %v9177 = vmul.f32 %v9107, %v9164
    %v9178 = vmul.f32 %v9108, %v9164
    %v9179 = vmul.f32 %v9109, %v9164
    %v9180 = vmul.f32 %v9110, %v9164
    %v9181 = vmul.f32 %v9111, %v9164
    %v9182 = vmul.f32 %v9112, %v9164
    %v9183 = vmul.f32 %v9113, %v9164
    %v9184 = vmul.f32 %v9114, %v9164
    %v9185 = vmul.f32 %v9115, %v9164
    %v9186 = vmul.f32 %v9116, %v9164
    %v9187 = vmul.f32 %v9117, %v9164
    %v9188 = vmul.f32 %v9118, %v9164
    %v9189 = vmul.f32 %v9119, %v9164
    %v9190 = vmul.f32 %v9120, %v9164
    %v9191 = vmul.f32 %v9121, %v9164
    %v9192 = vmul.f32 %v9122, %v9164
    %v9193 = vmul.f32 %v9123, %v9164
    %v9194 = vmul.f32 %v9124, %v9164
    %v9195 = vmul.f32 %v9125, %v9164
    %v9196 = vmul.f32 %v9126, %v9164
    %v9197 = vmul.f32 %v9127, %v9164
    %v9198 = vmul.f32 %v9128, %v9164
    %v9199 = vmul.f32 %v9129, %v9164
    %v9200 = vmul.f32 %v9130, %v9164
    %v9201 = vmul.f32 %v9131, %v9164
    %v9202 = vmul.f32 %v9132, %v9164
    %v9203 = vmul.f32 %v9133, %v9164
    %v9204 = vmul.f32 %v9134, %v9164
    %v9205 = vmul.f32 %v9135, %v9164
    %v9206 = vmul.f32 %v9136, %v9164
    %v9207 = vmul.f32 %v9137, %v9164
    %v9208 = vmul.f32 %v9138, %v9164
    %v9209 = vmul.f32 %v9139, %v9164
    %v9210 = vmul.f32 %v9140, %v9164
    %v9211 = vmul.f32 %v9141, %v9164
    %v9212 = vmul.f32 %v9142, %v9164
    %v9213 = vmul.f32 %v9143, %v9164
    %v9214 = vmul.f32 %v9144, %v9164
    %v9215 = vmul.f32 %v9145, %v9164
    %v9216 = vmul.f32 %v9146, %v9164
    %v9217 = vmul.f32 %v9147, %v9164
    %v9218 = vmul.f32 %v9148, %v9164
    %v9219 = vmul.f32 %v9149, %v9164
    %v9220 = vmul.f32 %v9150, %v9164
    %v9221 = vmul.f32 %v9151, %v9164
    %v9222 = vmul.f32 %v9152, %v9164
    %v9223 = vmul.f32 %v9153, %v9164
    %v9224 = vmul.f32 %v9154, %v9164
    %v9225 = vmul.f32 %v9155, %v9164
    %v9226 = vmul.f32 %v9156, %v9164
    %v9227 = vmul.f32 %v9157, %v9164
    %v9228 = vmul.f32 %v9158, %v9164
    %v9229 = vmul.f32 %v9159, %v9164
    %v9231 = vlaneseq
    %v9232 = vshrl.u32 %v9231, 7
    %v9233 = vsub.s32 0, %v9232
    %v9234 = vrot.slane %v8822, %v9233
    %v9236 = vadd.f32 %v9166, %v9234
    %v9237 = vadd.f32 %v9167, %v9234
    %v9238 = vadd.f32 %v9168, %v9234
    %v9239 = vadd.f32 %v9169, %v9234
    %v9240 = vadd.f32 %v9170, %v9234
    %v9241 = vadd.f32 %v9171, %v9234
    %v9242 = vadd.f32 %v9172, %v9234
    %v9243 = vadd.f32 %v9173, %v9234
    %v9244 = vadd.f32 %v9174, %v9234
    %v9245 = vadd.f32 %v9175, %v9234
    %v9246 = vadd.f32 %v9176, %v9234
    %v9247 = vadd.f32 %v9177, %v9234
    %v9248 = vadd.f32 %v9178, %v9234
    %v9249 = vadd.f32 %v9179, %v9234
    %v9250 = vadd.f32 %v9180, %v9234
    %v9251 = vadd.f32 %v9181, %v9234
    %v9252 = vadd.f32 %v9182, %v9234
    %v9253 = vadd.f32 %v9183, %v9234
    %v9254 = vadd.f32 %v9184, %v9234
    %v9255 = vadd.f32 %v9185, %v9234
    %v9256 = vadd.f32 %v9186, %v9234
    %v9257 = vadd.f32 %v9187, %v9234
    %v9258 = vadd.f32 %v9188, %v9234
    %v9259 = vadd.f32 %v9189, %v9234
    %v9260 = vadd.f32 %v9190, %v9234
    %v9261 = vadd.f32 %v9191, %v9234
    %v9262 = vadd.f32 %v9192, %v9234
    %v9263 = vadd.f32 %v9193, %v9234
    %v9264 = vadd.f32 %v9194, %v9234
    %v9265 = vadd.f32 %v9195, %v9234
    %v9266 = vadd.f32 %v9196, %v9234
    %v9267 = vadd.f32 %v9197, %v9234
    %v9268 = vadd.f32 %v9198, %v9234
    %v9269 = vadd.f32 %v9199, %v9234
    %v9270 = vadd.f32 %v9200, %v9234
    %v9271 = vadd.f32 %v9201, %v9234
    %v9272 = vadd.f32 %v9202, %v9234
    %v9273 = vadd.f32 %v9203, %v9234
    %v9274 = vadd.f32 %v9204, %v9234
    %v9275 = vadd.f32 %v9205, %v9234
    %v9276 = vadd.f32 %v9206, %v9234
    %v9277 = vadd.f32 %v9207, %v9234
    %v9278 = vadd.f32 %v9208, %v9234
    %v9279 = vadd.f32 %v9209, %v9234
    %v9280 = vadd.f32 %v9210, %v9234
    %v9281 = vadd.f32 %v9211, %v9234
    %v9282 = vadd.f32 %v9212, %v9234
    %v9283 = vadd.f32 %v9213, %v9234
    %v9284 = vadd.f32 %v9214, %v9234
    %v9285 = vadd.f32 %v9215, %v9234
    %v9286 = vadd.f32 %v9216, %v9234
    %v9287 = vadd.f32 %v9217, %v9234
    %v9288 = vadd.f32 %v9218, %v9234
    %v9289 = vadd.f32 %v9219, %v9234
    %v9290 = vadd.f32 %v9220, %v9234
    %v9291 = vadd.f32 %v9221, %v9234
    %v9292 = vadd.f32 %v9222, %v9234
    %v9293 = vadd.f32 %v9223, %v9234
    %v9294 = vadd.f32 %v9224, %v9234
    %v9295 = vadd.f32 %v9225, %v9234
    %v9296 = vadd.f32 %v9226, %v9234
    %v9297 = vadd.f32 %v9227, %v9234
    %v9298 = vadd.f32 %v9228, %v9234
    %v9299 = vadd.f32 %v9229, %v9234
    %v9300 = vmax.f32 %v9236, 0.0
    %v9301 = vmax.f32 %v9237, 0.0
    %v9302 = vmax.f32 %v9238, 0.0
    %v9303 = vmax.f32 %v9239, 0.0
    %v9304 = vmax.f32 %v9240, 0.0
    %v9305 = vmax.f32 %v9241, 0.0
    %v9306 = vmax.f32 %v9242, 0.0
    %v9307 = vmax.f32 %v9243, 0.0
    %v9308 = vmax.f32 %v9244, 0.0
    %v9309 = vmax.f32 %v9245, 0.0
    %v9310 = vmax.f32 %v9246, 0.0
    %v9311 = vmax.f32 %v9247, 0.0
    %v9312 = vmax.f32 %v9248, 0.0
    %v9313 = vmax.f32 %v9249, 0.0
    %v9314 = vmax.f32 %v9250, 0.0
    %v9315 = vmax.f32 %v9251, 0.0
    %v9316 = vmax.f32 %v9252, 0.0
    %v9317 = vmax.f32 %v9253, 0.0
    %v9318 = vmax.f32 %v9254, 0.0
    %v9319 = vmax.f32 %v9255, 0.0
    %v9320 = vmax.f32 %v9256, 0.0
    %v9321 = vmax.f32 %v9257, 0.0
    %v9322 = vmax.f32 %v9258, 0.0
    %v9323 = vmax.f32 %v9259, 0.0
    %v9324 = vmax.f32 %v9260, 0.0
    %v9325 = vmax.f32 %v9261, 0.0
    %v9326 = vmax.f32 %v9262, 0.0
    %v9327 = vmax.f32 %v9263, 0.0
    %v9328 = vmax.f32 %v9264, 0.0
    %v9329 = vmax.f32 %v9265, 0.0
    %v9330 = vmax.f32 %v9266, 0.0
    %v9331 = vmax.f32 %v9267, 0.0
    %v9332 = vmax.f32 %v9268, 0.0
    %v9333 = vmax.f32 %v9269, 0.0
    %v9334 = vmax.f32 %v9270, 0.0
    %v9335 = vmax.f32 %v9271, 0.0
    %v9336 = vmax.f32 %v9272, 0.0
    %v9337 = vmax.f32 %v9273, 0.0
    %v9338 = vmax.f32 %v9274, 0.0
    %v9339 = vmax.f32 %v9275, 0.0
    %v9340 = vmax.f32 %v9276, 0.0
    %v9341 = vmax.f32 %v9277, 0.0
    %v9342 = vmax.f32 %v9278, 0.0
    %v9343 = vmax.f32 %v9279, 0.0
    %v9344 = vmax.f32 %v9280, 0.0
    %v9345 = vmax.f32 %v9281, 0.0
    %v9346 = vmax.f32 %v9282, 0.0
    %v9347 = vmax.f32 %v9283, 0.0
    %v9348 = vmax.f32 %v9284, 0.0
    %v9349 = vmax.f32 %v9285, 0.0
    %v9350 = vmax.f32 %v9286, 0.0
    %v9351 = vmax.f32 %v9287, 0.0
    %v9352 = vmax.f32 %v9288, 0.0
    %v9353 = vmax.f32 %v9289, 0.0
    %v9354 = vmax.f32 %v9290, 0.0
    %v9355 = vmax.f32 %v9291, 0.0
    %v9356 = vmax.f32 %v9292, 0.0
    %v9357 = vmax.f32 %v9293, 0.0
    %v9358 = vmax.f32 %v9294, 0.0
    %v9359 = vmax.f32 %v9295, 0.0
    %v9360 = vmax.f32 %v9296, 0.0
    %v9361 = vmax.f32 %v9297, 0.0
    %v9362 = vmax.f32 %v9298, 0.0
    %v9363 = vmax.f32 %v9299, 0.0
    %v9364 = vpack.c.bf16 %v9301, %v9300
    %v9365 = vpack.c.bf16 %v9303, %v9302
    %v9366 = vpack.c.bf16 %v9305, %v9304
    %v9367 = vpack.c.bf16 %v9307, %v9306
    %v9368 = vpack.c.bf16 %v9309, %v9308
    %v9369 = vpack.c.bf16 %v9311, %v9310
    %v9370 = vpack.c.bf16 %v9313, %v9312
    %v9371 = vpack.c.bf16 %v9315, %v9314
    %v9372 = vpack.c.bf16 %v9317, %v9316
    %v9373 = vpack.c.bf16 %v9319, %v9318
    %v9374 = vpack.c.bf16 %v9321, %v9320
    %v9375 = vpack.c.bf16 %v9323, %v9322
    %v9376 = vpack.c.bf16 %v9325, %v9324
    %v9377 = vpack.c.bf16 %v9327, %v9326
    %v9378 = vpack.c.bf16 %v9329, %v9328
    %v9379 = vpack.c.bf16 %v9331, %v9330
    %v9380 = vpack.c.bf16 %v9333, %v9332
    %v9381 = vpack.c.bf16 %v9335, %v9334
    %v9382 = vpack.c.bf16 %v9337, %v9336
    %v9383 = vpack.c.bf16 %v9339, %v9338
    %v9384 = vpack.c.bf16 %v9341, %v9340
    %v9385 = vpack.c.bf16 %v9343, %v9342
    %v9386 = vpack.c.bf16 %v9345, %v9344
    %v9387 = vpack.c.bf16 %v9347, %v9346
    %v9388 = vpack.c.bf16 %v9349, %v9348
    %v9389 = vpack.c.bf16 %v9351, %v9350
    %v9390 = vpack.c.bf16 %v9353, %v9352
    %v9391 = vpack.c.bf16 %v9355, %v9354
    %v9392 = vpack.c.bf16 %v9357, %v9356
    %v9393 = vpack.c.bf16 %v9359, %v9358
    %v9394 = vpack.c.bf16 %v9361, %v9360
    %v9395 = vpack.c.bf16 %v9363, %v9362
    %v9428 = vunpack.c.l.b16 %v9364
    %v9429 = vunpack.c.h.b16 %v9364
    %v9430 = vunpack.c.l.b16 %v9365
    %v9431 = vunpack.c.h.b16 %v9365
    %v9432 = vunpack.c.l.b16 %v9366
    %v9433 = vunpack.c.h.b16 %v9366
    %v9434 = vunpack.c.l.b16 %v9367
    %v9435 = vunpack.c.h.b16 %v9367
    %v9436 = vunpack.c.l.b16 %v9368
    %v9437 = vunpack.c.h.b16 %v9368
    %v9438 = vunpack.c.l.b16 %v9369
    %v9439 = vunpack.c.h.b16 %v9369
    %v9440 = vunpack.c.l.b16 %v9370
    %v9441 = vunpack.c.h.b16 %v9370
    %v9442 = vunpack.c.l.b16 %v9371
    %v9443 = vunpack.c.h.b16 %v9371
    %v9444 = vunpack.c.l.b16 %v9372
    %v9445 = vunpack.c.h.b16 %v9372
    %v9446 = vunpack.c.l.b16 %v9373
    %v9447 = vunpack.c.h.b16 %v9373
    %v9448 = vunpack.c.l.b16 %v9374
    %v9449 = vunpack.c.h.b16 %v9374
    %v9450 = vunpack.c.l.b16 %v9375
    %v9451 = vunpack.c.h.b16 %v9375
    %v9452 = vunpack.c.l.b16 %v9376
    %v9453 = vunpack.c.h.b16 %v9376
    %v9454 = vunpack.c.l.b16 %v9377
    %v9455 = vunpack.c.h.b16 %v9377
    %v9456 = vunpack.c.l.b16 %v9378
    %v9457 = vunpack.c.h.b16 %v9378
    %v9458 = vunpack.c.l.b16 %v9379
    %v9459 = vunpack.c.h.b16 %v9379
    %v9460 = vunpack.c.l.b16 %v9380
    %v9461 = vunpack.c.h.b16 %v9380
    %v9462 = vunpack.c.l.b16 %v9381
    %v9463 = vunpack.c.h.b16 %v9381
    %v9464 = vunpack.c.l.b16 %v9382
    %v9465 = vunpack.c.h.b16 %v9382
    %v9466 = vunpack.c.l.b16 %v9383
    %v9467 = vunpack.c.h.b16 %v9383
    %v9468 = vunpack.c.l.b16 %v9384
    %v9469 = vunpack.c.h.b16 %v9384
    %v9470 = vunpack.c.l.b16 %v9385
    %v9471 = vunpack.c.h.b16 %v9385
    %v9472 = vunpack.c.l.b16 %v9386
    %v9473 = vunpack.c.h.b16 %v9386
    %v9474 = vunpack.c.l.b16 %v9387
    %v9475 = vunpack.c.h.b16 %v9387
    %v9476 = vunpack.c.l.b16 %v9388
    %v9477 = vunpack.c.h.b16 %v9388
    %v9478 = vunpack.c.l.b16 %v9389
    %v9479 = vunpack.c.h.b16 %v9389
    %v9480 = vunpack.c.l.b16 %v9390
    %v9481 = vunpack.c.h.b16 %v9390
    %v9482 = vunpack.c.l.b16 %v9391
    %v9483 = vunpack.c.h.b16 %v9391
    %v9484 = vunpack.c.l.b16 %v9392
    %v9485 = vunpack.c.h.b16 %v9392
    %v9486 = vunpack.c.l.b16 %v9393
    %v9487 = vunpack.c.h.b16 %v9393
    %v9488 = vunpack.c.l.b16 %v9394
    %v9489 = vunpack.c.h.b16 %v9394
    %v9490 = vunpack.c.l.b16 %v9395
    %v9491 = vunpack.c.h.b16 %v9395
    %v9492 = vpack.c.b16 %v9428, %v9428
    %v9493 = vpack.c.b16 %v9429, %v9429
    %v9494 = vpack.c.b16 %v9430, %v9430
    %v9495 = vpack.c.b16 %v9431, %v9431
    %v9496 = vpack.c.b16 %v9432, %v9432
    %v9497 = vpack.c.b16 %v9433, %v9433
    %v9498 = vpack.c.b16 %v9434, %v9434
    %v9499 = vpack.c.b16 %v9435, %v9435
    %v9500 = vpack.c.b16 %v9436, %v9436
    %v9501 = vpack.c.b16 %v9437, %v9437
    %v9502 = vpack.c.b16 %v9438, %v9438
    %v9503 = vpack.c.b16 %v9439, %v9439
    %v9504 = vpack.c.b16 %v9440, %v9440
    %v9505 = vpack.c.b16 %v9441, %v9441
    %v9506 = vpack.c.b16 %v9442, %v9442
    %v9507 = vpack.c.b16 %v9443, %v9443
    %v9508 = vpack.c.b16 %v9444, %v9444
    %v9509 = vpack.c.b16 %v9445, %v9445
    %v9510 = vpack.c.b16 %v9446, %v9446
    %v9511 = vpack.c.b16 %v9447, %v9447
    %v9512 = vpack.c.b16 %v9448, %v9448
    %v9513 = vpack.c.b16 %v9449, %v9449
    %v9514 = vpack.c.b16 %v9450, %v9450
    %v9515 = vpack.c.b16 %v9451, %v9451
    %v9516 = vpack.c.b16 %v9452, %v9452
    %v9517 = vpack.c.b16 %v9453, %v9453
    %v9518 = vpack.c.b16 %v9454, %v9454
    %v9519 = vpack.c.b16 %v9455, %v9455
    %v9520 = vpack.c.b16 %v9456, %v9456
    %v9521 = vpack.c.b16 %v9457, %v9457
    %v9522 = vpack.c.b16 %v9458, %v9458
    %v9523 = vpack.c.b16 %v9459, %v9459
    %v9524 = vpack.c.b16 %v9460, %v9460
    %v9525 = vpack.c.b16 %v9461, %v9461
    %v9526 = vpack.c.b16 %v9462, %v9462
    %v9527 = vpack.c.b16 %v9463, %v9463
    %v9528 = vpack.c.b16 %v9464, %v9464
    %v9529 = vpack.c.b16 %v9465, %v9465
    %v9530 = vpack.c.b16 %v9466, %v9466
    %v9531 = vpack.c.b16 %v9467, %v9467
    %v9532 = vpack.c.b16 %v9468, %v9468
    %v9533 = vpack.c.b16 %v9469, %v9469
    %v9534 = vpack.c.b16 %v9470, %v9470
    %v9535 = vpack.c.b16 %v9471, %v9471
    %v9536 = vpack.c.b16 %v9472, %v9472
    %v9537 = vpack.c.b16 %v9473, %v9473
    %v9538 = vpack.c.b16 %v9474, %v9474
    %v9539 = vpack.c.b16 %v9475, %v9475
    %v9540 = vpack.c.b16 %v9476, %v9476
    %v9541 = vpack.c.b16 %v9477, %v9477
    %v9542 = vpack.c.b16 %v9478, %v9478
    %v9543 = vpack.c.b16 %v9479, %v9479
    %v9544 = vpack.c.b16 %v9480, %v9480
    %v9545 = vpack.c.b16 %v9481, %v9481
    %v9546 = vpack.c.b16 %v9482, %v9482
    %v9547 = vpack.c.b16 %v9483, %v9483
    %v9548 = vpack.c.b16 %v9484, %v9484
    %v9549 = vpack.c.b16 %v9485, %v9485
    %v9550 = vpack.c.b16 %v9486, %v9486
    %v9551 = vpack.c.b16 %v9487, %v9487
    %v9552 = vpack.c.b16 %v9488, %v9488
    %v9553 = vpack.c.b16 %v9489, %v9489
    %v9554 = vpack.c.b16 %v9490, %v9490
    %v9555 = vpack.c.b16 %v9491, %v9491
    %9620 = vst [vmem:[#allocation3] sm:$0xf] %v9492
    %9621 = vst [vmem:[#allocation3 + $0x4] sm:$0xf] %v9493
    %9622 = vst [vmem:[#allocation3 + $0x8] sm:$0xf] %v9494
    %9623 = vst [vmem:[#allocation3 + $0xc] sm:$0xf] %v9495
    %9624 = vst [vmem:[#allocation3 + $0x10] sm:$0xf] %v9496
    %9625 = vst [vmem:[#allocation3 + $0x14] sm:$0xf] %v9497
    %9626 = vst [vmem:[#allocation3 + $0x18] sm:$0xf] %v9498
    %9627 = vst [vmem:[#allocation3 + $0x1c] sm:$0xf] %v9499
    %9628 = vst [vmem:[#allocation3 + $0x20] sm:$0xf] %v9500
    %9629 = vst [vmem:[#allocation3 + $0x24] sm:$0xf] %v9501
    %9630 = vst [vmem:[#allocation3 + $0x28] sm:$0xf] %v9502
    %9631 = vst [vmem:[#allocation3 + $0x2c] sm:$0xf] %v9503
    %9632 = vst [vmem:[#allocation3 + $0x30] sm:$0xf] %v9504
    %9633 = vst [vmem:[#allocation3 + $0x34] sm:$0xf] %v9505
    %9634 = vst [vmem:[#allocation3 + $0x38] sm:$0xf] %v9506
    %9635 = vst [vmem:[#allocation3 + $0x3c] sm:$0xf] %v9507
    %9636 = vst [vmem:[#allocation3 + $0x40] sm:$0xf] %v9508
    %9637 = vst [vmem:[#allocation3 + $0x44] sm:$0xf] %v9509
    %9638 = vst [vmem:[#allocation3 + $0x48] sm:$0xf] %v9510
    %9639 = vst [vmem:[#allocation3 + $0x4c] sm:$0xf] %v9511
    %9640 = vst [vmem:[#allocation3 + $0x50] sm:$0xf] %v9512
    %9641 = vst [vmem:[#allocation3 + $0x54] sm:$0xf] %v9513
    %9642 = vst [vmem:[#allocation3 + $0x58] sm:$0xf] %v9514
    %9643 = vst [vmem:[#allocation3 + $0x5c] sm:$0xf] %v9515
    %9644 = vst [vmem:[#allocation3 + $0x60] sm:$0xf] %v9516
    %9645 = vst [vmem:[#allocation3 + $0x64] sm:$0xf] %v9517
    %9646 = vst [vmem:[#allocation3 + $0x68] sm:$0xf] %v9518
    %9647 = vst [vmem:[#allocation3 + $0x6c] sm:$0xf] %v9519
    %9648 = vst [vmem:[#allocation3 + $0x70] sm:$0xf] %v9520
    %9649 = vst [vmem:[#allocation3 + $0x74] sm:$0xf] %v9521
    %9650 = vst [vmem:[#allocation3 + $0x78] sm:$0xf] %v9522
    %9651 = vst [vmem:[#allocation3 + $0x7c] sm:$0xf] %v9523
    %9652 = vst [vmem:[#allocation3 + $0x80] sm:$0xf] %v9524
    %9653 = vst [vmem:[#allocation3 + $0x84] sm:$0xf] %v9525
    %9654 = vst [vmem:[#allocation3 + $0x88] sm:$0xf] %v9526
    %9655 = vst [vmem:[#allocation3 + $0x8c] sm:$0xf] %v9527
    %9656 = vst [vmem:[#allocation3 + $0x90] sm:$0xf] %v9528
    %9657 = vst [vmem:[#allocation3 + $0x94] sm:$0xf] %v9529
    %9658 = vst [vmem:[#allocation3 + $0x98] sm:$0xf] %v9530
    %9659 = vst [vmem:[#allocation3 + $0x9c] sm:$0xf] %v9531
    %9660 = vst [vmem:[#allocation3 + $0xa0] sm:$0xf] %v9532
    %9661 = vst [vmem:[#allocation3 + $0xa4] sm:$0xf] %v9533
    %9662 = vst [vmem:[#allocation3 + $0xa8] sm:$0xf] %v9534
    %9663 = vst [vmem:[#allocation3 + $0xac] sm:$0xf] %v9535
    %9664 = vst [vmem:[#allocation3 + $0xb0] sm:$0xf] %v9536
    %9665 = vst [vmem:[#allocation3 + $0xb4] sm:$0xf] %v9537
    %9666 = vst [vmem:[#allocation3 + $0xb8] sm:$0xf] %v9538
    %9667 = vst [vmem:[#allocation3 + $0xbc] sm:$0xf] %v9539
    %9668 = vst [vmem:[#allocation3 + $0xc0] sm:$0xf] %v9540
    %9669 = vst [vmem:[#allocation3 + $0xc4] sm:$0xf] %v9541
    %9670 = vst [vmem:[#allocation3 + $0xc8] sm:$0xf] %v9542
    %9671 = vst [vmem:[#allocation3 + $0xcc] sm:$0xf] %v9543
    %9672 = vst [vmem:[#allocation3 + $0xd0] sm:$0xf] %v9544
    %9673 = vst [vmem:[#allocation3 + $0xd4] sm:$0xf] %v9545
    %9674 = vst [vmem:[#allocation3 + $0xd8] sm:$0xf] %v9546
    %9675 = vst [vmem:[#allocation3 + $0xdc] sm:$0xf] %v9547
    %9676 = vst [vmem:[#allocation3 + $0xe0] sm:$0xf] %v9548
    %9677 = vst [vmem:[#allocation3 + $0xe4] sm:$0xf] %v9549
    %9678 = vst [vmem:[#allocation3 + $0xe8] sm:$0xf] %v9550
    %9679 = vst [vmem:[#allocation3 + $0xec] sm:$0xf] %v9551
    %9680 = vst [vmem:[#allocation3 + $0xf0] sm:$0xf] %v9552
    %9681 = vst [vmem:[#allocation3 + $0xf4] sm:$0xf] %v9553
    %9682 = vst [vmem:[#allocation3 + $0xf8] sm:$0xf] %v9554
    %9683 = vst [vmem:[#allocation3 + $0xfc] sm:$0xf] %v9555
    // Predicated region
    $region22: #{tpu_custom_call.1} parent=1 // pred_check
      _
    $region23: #{tpu_custom_call.1} parent=1 // pred_check_branch
      %9685 = sbr.rel (0) target = $region25
    $region24: #{tpu_custom_call.1} parent=1 // pred_region
      %s9687 = ssub.s32 4096, 4096
      %9688 = vsyncadd [#allocation4], %s9687
      %s9689 = sshll.u32 [#allocation3], 4
      %s9690 = int_to_ptr.vmem [resolvable:$true] %s9689
      %9695 = dma.vmem_to_hbm [thread:$0]  %s9690, 4096, %s5, [#allocation4], 64, 64, 4
    $region25: #{tpu_custom_call.1} parent=1 // pred_fallthru
      _
    // Predicated region
    $region26: #{tpu_custom_call.1} parent=1 // pred_check
      _
    $region27: #{tpu_custom_call.1} parent=1 // pred_check_branch
      %9697 = sbr.rel (0) target = $region29
    $region28: #{tpu_custom_call.1} parent=1 // pred_region
      %9698 = dma.done [#allocation4], 4096
    $region29: #{tpu_custom_call.1} parent=1 // pred_fallthru
      _
    %9699 = vsyncpa [#allocation4], 1

</llo_original>
